<compile_context>
chip_gen: v6e
topology: v6e:2x2x1
jax: 0.10.0
libtpu: 0.0.40
codegen_flags: <defaults>
</compile_context>

<pallas_src>
import functools
import math

import jax
import jax.numpy as jnp
from jax.experimental import pallas as pl
from jax.experimental.pallas import tpu as pltpu

FC_STRIDE = 48   # stride of the `fc` Conv1d in the torch module
SUBLANE = 8      # native f32 sublane tile; batch is padded to a multiple of this


def _bilstm2_fused_kernel(
    x_ref, wih1_ref, whh1_ref, wih2_ref, whh2_ref,
    wfc_ref, bfc_ref, wh1_ref, bh1_ref, wh2_ref, bh2_ref, wconv_ref,
    out_ref,
    gx_ref, seq_ref, xs_ref, h_ref, c_ref,
    *, stride, unroll):
    """Fused BiLSTM2 forward.

    x_ref       : (T*B, D)     time-major input, rows ordered (t, b); B is padded to 8 sublanes
    wih{1,2}    : (Din, 8H)    combined fwd+rev input->gate weights (bf16), interleaved gate layout
    whh{1,2}    : (2H, 8H)     block-diagonal fwd+rev hidden->gate weights (bf16), same layout
    wfc/wh1/wh2 : (Cin, Cout)  1x1-conv weights (pre-transposed, f32); b* : (1, Cout)
    wconv       : (K*C, C)     kernel-7 conv as im2col weights
    out_ref     : (L_out*B, C) rows ordered (l, b)
    gx_ref      : (T*B, 8H)    scratch: hoisted input projection (both directions), f32
    seq_ref     : (T*B, 2H)    scratch: layer output [h_fwd | h_rev] (reused by both layers)
    xs_ref      : (Ls*B, 2H)   scratch: stride-48 gathered rows
    h_ref/c_ref : (B, 2H)      scratch: recurrent state [fwd | rev], f32
    """
    B, H2 = h_ref.shape                 # B = padded batch (multiple of 8)
    H = H2 // 2
    G = gx_ref.shape[1]                 # 8H : 4 gates x 2 directions (= 128 when H = 16)
    T = gx_ref.shape[0] // B
    C = wh2_ref.shape[1]                # head channel width (hidden_size)
    K = wconv_ref.shape[0] // C
    Ls = xs_ref.shape[0] // B
    L_out = Ls - K + 1

    # column c of the combined gate vector belongs to the forward direction iff (c % 2H) < H
    lane = jax.lax.broadcasted_iota(jnp.int32, (B, G), 1)
    fwd_cols = (lane % H2) < H

    def bilstm_layer(inp_ref, wih_ref, whh_ref):
        # (a) hoisted input projection: all T steps, both directions, one bf16 MXU matmul, f32 acc.
        gx_ref[...] = jnp.dot(inp_ref[...].astype(jnp.bfloat16), wih_ref[...],
                              preferred_element_type=jnp.float32)
        # (b) fused fwd+rev recurrence: one bf16 (B,2H)@(2H,8H) matmul per step, f32 state.
        h_ref[...] = jnp.zeros_like(h_ref)
        c_ref[...] = jnp.zeros_like(c_ref)
        whh = whh_ref[...]              # loop-invariant bf16 RHS

        def one_step(t):
            row_f = pl.multiple_of(t * B, SUBLANE)            # fwd direction: time t
            row_r = pl.multiple_of((T - 1 - t) * B, SUBLANE)  # rev direction: time T-1-t
            gx = jnp.where(fwd_cols,
                           gx_ref[pl.ds(row_f, B), :],
                           gx_ref[pl.ds(row_r, B), :])
            gates = gx + jnp.dot(h_ref[...].astype(jnp.bfloat16), whh,
                                 preferred_element_type=jnp.float32)
            sig = jax.nn.sigmoid(gates)                       # one EUP push covers i, f, o
            tnh = jnp.tanh(gates)                             # one EUP push covers g
            i = sig[:, 0 * H2:1 * H2]                         # 32-lane-aligned slices; each gate is
            f = sig[:, 1 * H2:2 * H2]                         # already in [fwd | rev] layout
            g = tnh[:, 2 * H2:3 * H2]                         # matching the h/c state, so updates
            o = sig[:, 3 * H2:4 * H2]                         # are purely elementwise (f32 on VPU).
            c = f * c_ref[...] + i * g
            h = o * jnp.tanh(c)
            c_ref[...] = c
            h_ref[...] = h
            seq_ref[pl.ds(row_f, B), 0:H] = h[:, 0:H]         # fwd half  -> time t
            seq_ref[pl.ds(row_r, B), H:H2] = h[:, H:H2]       # rev half  -> time T-1-t

        def step_block(blk, carry):
            for u in range(unroll):                           # manual unroll of the serial loop
                one_step(blk * unroll + u)
            return carry

        jax.lax.fori_loop(0, T // unroll, step_block, 0)
        for t in range(T - T % unroll, T):                    # static remainder (empty if unroll|T)
            one_step(t)

    bilstm_layer(x_ref, wih1_ref, whh1_ref)
    # TODO(synk): nn.LSTM applies dropout=0.75 between layers in training mode only; identity here
    #             (eval-mode semantics; torch RNG cannot be matched anyway).
    bilstm_layer(seq_ref, wih2_ref, whh2_ref)

    # ---- head -----------------------------------------------------------------------------
    # fc is Conv1d(kernel=1, stride=48): gather every 48th timestep, then a matmul.
    for s in range(Ls):
        xs_ref[s * B:(s + 1) * B, :] = seq_ref[s * stride * B: s * stride * B + B, :]
    y = jnp.dot(xs_ref[...], wfc_ref[...], preferred_element_type=jnp.float32) + bfc_ref[...]
    y = jnp.dot(y, wh1_ref[...], preferred_element_type=jnp.float32) + bh1_ref[...]
    y = jnp.maximum(
        jnp.dot(y, wh2_ref[...], preferred_element_type=jnp.float32) + bh2_ref[...], 0.0)
    # `weight` Conv1d(kernel=7, bias=False) as a single im2col matmul, then ReLU
    # (torch squeezes before the ReLU; squeeze commutes with ReLU and is done in the wrapper).
    slab = jnp.concatenate([y[k * B:(k + L_out) * B, :] for k in range(K)], axis=1)
    out = jnp.dot(slab, wconv_ref[...], preferred_element_type=jnp.float32)
    out_ref[...] = jnp.maximum(out, 0.0)


# ---------------------------------- full forward -------------------------------------------
def bilstm2_forward(x, params):
    """x: (T, B, seq_length), time-major like PyTorch nn.LSTM (batch_first=False)."""
    T, B, D = x.shape
    H2 = params["whh1"].shape[0]                  # 2 * (hidden_size // 2)
    C = params["wh2_t"].shape[1]                  # hidden_size
    K = params["wconv_2d"].shape[0] // C
    Ls = (T - 1) // FC_STRIDE + 1
    L_out = Ls - K + 1
    assert L_out >= 1, "sequence too short for the stride-48 fc + kernel-7 conv"
    unroll = 8 if T % 8 == 0 else (4 if T % 4 == 0 else 1)

    # Pad batch to the native 8-sublane tile so every per-step access is full-tile aligned.
    B_pad = ((B + SUBLANE - 1) // SUBLANE) * SUBLANE
    if B_pad != B:
        x = jnp.pad(x, ((0, 0), (0, B_pad - B), (0, 0)))

    # VMEM guard (v5e default scoped VMEM is the first limit you'd hit at very large T*B).
    gx_bytes = T * B_pad * 4 * H2 * 4
    assert gx_bytes < 12 * 1024 * 1024, "hoisted projection too big; chunk it over time"

    kernel = functools.partial(_bilstm2_fused_kernel, stride=FC_STRIDE, unroll=unroll)
    out2d = pl.pallas_call(
        kernel,
        out_shape=jax.ShapeDtypeStruct((L_out * B_pad, C), jnp.float32),
        in_specs=[pl.BlockSpec(memory_space=pltpu.MemorySpace.VMEM)] * 12,
        out_specs=pl.BlockSpec(memory_space=pltpu.MemorySpace.VMEM),
        scratch_shapes=[
            pltpu.VMEM((T * B_pad, 4 * H2), jnp.float32),   # gx : hoisted gate projection
            pltpu.VMEM((T * B_pad, H2), jnp.float32),       # seq: layer activations (reused L1/L2)
            pltpu.VMEM((Ls * B_pad, H2), jnp.float32),      # xs : stride-48 gather
            pltpu.VMEM((B_pad, H2), jnp.float32),           # h  [fwd | rev]
            pltpu.VMEM((B_pad, H2), jnp.float32),           # c  [fwd | rev]
        ],
    )(
        x.reshape(T * B_pad, D),                            # free reshape (merges leading dims)
        params["wih1"], params["whh1"], params["wih2"], params["whh2"],
        params["wfc_t"], params["bfc"], params["wh1_t"], params["bh1"],
        params["wh2_t"], params["bh2"], params["wconv_2d"],
    )
    # rows of out2d are ordered (l, b); drop batch padding -> torch NCW (B, C, L_out) -> .squeeze()
    logit = jnp.transpose(out2d.reshape(L_out, B_pad, C)[:, :B, :], (1, 2, 0))
    return jnp.squeeze(logit)


# ---------------------------------- parameters ----------------------------------------------
def init_params(key, seq_length, hidden_size, num_layers=2, kernel=7):
    """Random params in kernel-ready layout (all combining / transposing / casting done once)."""
    assert num_layers == 2, "kernel is specialized for the module default num_layer=2"
    H = hidden_size // 2
    keys = iter(jax.random.split(key, 64))

    def u(shape, bound):
        return jax.random.uniform(next(keys), shape, jnp.float32, -bound, bound)

    k_lstm = 1.0 / math.sqrt(H)

    def combine_ih(w_f, w_r):
        # PyTorch (4H, Din) fwd/rev -> (Din, 8H), gate-interleaved [i_f i_r f_f f_r g_f g_r o_f o_r]
        wtf, wtr = w_f.T, w_r.T
        cols = []
        for q in range(4):
            cols += [wtf[:, q * H:(q + 1) * H], wtr[:, q * H:(q + 1) * H]]
        return jnp.concatenate(cols, axis=1).astype(jnp.bfloat16)   # bf16 MXU operand

    def combine_hh(w_f, w_r):
        # PyTorch (4H, H) fwd/rev -> block-diagonal (2H, 8H) in the same interleaved gate layout
        wtf, wtr = w_f.T, w_r.T
        z = jnp.zeros((H, H), jnp.float32)
        cols = []
        for q in range(4):
            cols.append(jnp.concatenate([wtf[:, q * H:(q + 1) * H], z], axis=0))
            cols.append(jnp.concatenate([z, wtr[:, q * H:(q + 1) * H]], axis=0))
        return jnp.concatenate(cols, axis=1).astype(jnp.bfloat16)   # bf16 MXU operand

    lstm = []
    in_size = seq_length
    for _ in range(num_layers):
        w_ih_f, w_hh_f = u((4 * H, in_size), k_lstm), u((4 * H, H), k_lstm)
        w_ih_r, w_hh_r = u((4 * H, in_size), k_lstm), u((4 * H, H), k_lstm)
        lstm.append((combine_ih(w_ih_f, w_ih_r), combine_hh(w_hh_f, w_hh_r)))
        in_size = 2 * H
    # NOTE: nn.LSTM(..., bias=False) in the torch module -> bias-free gates are correct here.

    # TODO(synk): the torch module declares fc = Conv1d(hidden_size*2, ...) but the BiLSTM only
    #             produces hidden_size channels (shape bug in the original); fc is instantiated
    #             with in_channels=hidden_size so the forward is runnable.
    cb = lambda fan_in: 1.0 / math.sqrt(fan_in)
    w_fc = u((hidden_size, hidden_size), cb(hidden_size))
    b_fc = u((hidden_size,), cb(hidden_size))
    w_h1 = u((hidden_size // 2, hidden_size), cb(hidden_size))
    b_h1 = u((hidden_size // 2,), cb(hidden_size))
    w_h2 = u((hidden_size, hidden_size // 2), cb(hidden_size // 2))
    b_h2 = u((hidden_size,), cb(hidden_size // 2))
    w_conv = u((hidden_size, hidden_size, kernel), cb(hidden_size * kernel))

    return dict(
        wih1=lstm[0][0], whh1=lstm[0][1], wih2=lstm[1][0], whh2=lstm[1][1],
        wfc_t=jnp.transpose(w_fc), bfc=b_fc[None, :],
        wh1_t=jnp.transpose(w_h1), bh1=b_h1[None, :],
        wh2_t=jnp.transpose(w_h2), bh2=b_h2[None, :],
        wconv_2d=jnp.transpose(w_conv, (2, 1, 0)).reshape(kernel * hidden_size, hidden_size),
    )


if __name__ == "__main__":
    SEQ_LENGTH = 8      # LSTM input feature size (called "seq_length" in the torch module)
    HIDDEN = 32         # -> H = 16 per direction, 8H = 128 = one full vreg of gates per step
    T = 336             # time steps; stride-48 fc followed by kernel-7 conv needs T >= 289
    B = 2               # padded to 8 sublanes inside the wrapper

    key = jax.random.PRNGKey(0)
    kx, kp = jax.random.split(key)
    x = jax.random.normal(kx, (T, B, SEQ_LENGTH), jnp.float32)
    params = init_params(kp, SEQ_LENGTH, HIDDEN)

    fwd = jax.jit(bilstm2_forward)
    out = jax.block_until_ready(fwd(x, params))

    assert out.shape == (B, HIDDEN), out.shape
    assert bool(jnp.all(jnp.isfinite(out)))
    print("KERNEL_OK")
</pallas_src>

<mosaic_0001>
module attributes {stable_mosaic.version = 11 : i64} {
  func.func @_bilstm2_fused_kernel(%arg0: memref<2688x8xf32, #tpu.memory_space<vmem>>, %arg1: memref<8x128xbf16, #tpu.memory_space<vmem>>, %arg2: memref<32x128xbf16, #tpu.memory_space<vmem>>, %arg3: memref<32x128xbf16, #tpu.memory_space<vmem>>, %arg4: memref<32x128xbf16, #tpu.memory_space<vmem>>, %arg5: memref<32x32xf32, #tpu.memory_space<vmem>>, %arg6: memref<1x32xf32, #tpu.memory_space<vmem>>, %arg7: memref<32x16xf32, #tpu.memory_space<vmem>>, %arg8: memref<1x16xf32, #tpu.memory_space<vmem>>, %arg9: memref<16x32xf32, #tpu.memory_space<vmem>>, %arg10: memref<1x32xf32, #tpu.memory_space<vmem>>, %arg11: memref<224x32xf32, #tpu.memory_space<vmem>>, %arg12: memref<8x32xf32, #tpu.memory_space<vmem>>, %arg13: memref<2688x128xf32, #tpu.memory_space<vmem>>, %arg14: memref<2688x32xf32, #tpu.memory_space<vmem>>, %arg15: memref<56x32xf32, #tpu.memory_space<vmem>>, %arg16: memref<8x32xf32, #tpu.memory_space<vmem>>, %arg17: memref<8x32xf32, #tpu.memory_space<vmem>>) attributes {dimension_semantics = [], scalar_prefetch = 0 : i64, scratch_operands = 5 : i64, tpu.core_type = #tpu.core_type<tc>} {
    %0 = tpu.iota {dimensions = array<i32: 1>} : vector<8x128xi32>
    %c32_i32 = arith.constant 32 : i32
    %c0_i32 = arith.constant 0 : i32
    %1 = arith.cmpi eq, %c32_i32, %c0_i32 : i32
    %c1_i32 = arith.constant 1 : i32
    %2 = arith.select %1, %c1_i32, %c32_i32 : i32
    %3 = vector.broadcast %2 : i32 to vector<8x128xi32>
    %4 = arith.remsi %0, %3 : vector<8x128xi32>
    %c0_i32_0 = arith.constant 0 : i32
    %5 = vector.broadcast %c0_i32_0 : i32 to vector<8x128xi32>
    %6 = arith.cmpi ne, %4, %5 : vector<8x128xi32>
    %c0_i32_1 = arith.constant 0 : i32
    %7 = vector.broadcast %c0_i32_1 : i32 to vector<8x128xi32>
    %8 = arith.cmpi slt, %4, %7 : vector<8x128xi32>
    %c0_i32_2 = arith.constant 0 : i32
    %9 = arith.cmpi slt, %2, %c0_i32_2 : i32
    %10 = vector.broadcast %9 : i1 to vector<8x128xi1>
    %11 = vector.broadcast %10 : vector<8x128xi1> to vector<8x128xi1>
    %12 = arith.xori %8, %11 : vector<8x128xi1>
    %13 = arith.andi %12, %6 : vector<8x128xi1>
    %14 = vector.broadcast %2 : i32 to vector<8x128xi32>
    %15 = arith.addi %4, %14 : vector<8x128xi32>
    %16 = arith.select %13, %15, %4 : vector<8x128xi1>, vector<8x128xi32>
    %c16_i32 = arith.constant 16 : i32
    %17 = vector.broadcast %c16_i32 : i32 to vector<8x128xi32>
    %18 = arith.cmpi slt, %16, %17 : vector<8x128xi32>
    %c0 = arith.constant 0 : index
    %c0_3 = arith.constant 0 : index
    %19 = vector.load %arg0[%c0, %c0_3] : memref<2688x8xf32, #tpu.memory_space<vmem>>, vector<2688x8xf32>
    %20 = arith.truncf %19 : vector<2688x8xf32> to vector<2688x8xbf16>
    %c0_4 = arith.constant 0 : index
    %c0_5 = arith.constant 0 : index
    %21 = vector.load %arg1[%c0_4, %c0_5] : memref<8x128xbf16, #tpu.memory_space<vmem>>, vector<8x128xbf16>
    %cst = arith.constant dense<0.000000e+00> : vector<2688x128xf32>
    %22 = tpu.matmul %20, %21, %cst {dimension_numbers = #tpu.dot_dimension_numbers<[1], [0], [0], [1], [0, 0, 1, 1], [], []>} : vector<2688x8xbf16>, vector<8x128xbf16>, vector<2688x128xf32> -> vector<2688x128xf32>
    %c0_6 = arith.constant 0 : index
    %c0_7 = arith.constant 0 : index
    %23 = vector.load %arg13[%c0_6, %c0_7] : memref<2688x128xf32, #tpu.memory_space<vmem>>, vector<2688x128xf32>
    tpu.vector_store %arg13[%c0_6, %c0_7], %22 {strides = array<i32>} : memref<2688x128xf32, #tpu.memory_space<vmem>>, vector<2688x128xf32>,
    %cst_8 = arith.constant 0.000000e+00 : f32
    %24 = vector.broadcast %cst_8 : f32 to vector<8x32xf32>
    %c0_9 = arith.constant 0 : index
    %c0_10 = arith.constant 0 : index
    %25 = vector.load %arg16[%c0_9, %c0_10] : memref<8x32xf32, #tpu.memory_space<vmem>>, vector<8x32xf32>
    tpu.vector_store %arg16[%c0_9, %c0_10], %24 {strides = array<i32>} : memref<8x32xf32, #tpu.memory_space<vmem>>, vector<8x32xf32>,
    %cst_11 = arith.constant 0.000000e+00 : f32
    %26 = vector.broadcast %cst_11 : f32 to vector<8x32xf32>
    %c0_12 = arith.constant 0 : index
    %c0_13 = arith.constant 0 : index
    %27 = vector.load %arg17[%c0_12, %c0_13] : memref<8x32xf32, #tpu.memory_space<vmem>>, vector<8x32xf32>
    tpu.vector_store %arg17[%c0_12, %c0_13], %26 {strides = array<i32>} : memref<8x32xf32, #tpu.memory_space<vmem>>, vector<8x32xf32>,
    %c0_14 = arith.constant 0 : index
    %c0_15 = arith.constant 0 : index
    %28 = vector.load %arg2[%c0_14, %c0_15] : memref<32x128xbf16, #tpu.memory_space<vmem>>, vector<32x128xbf16>
    %c0_i32_16 = arith.constant 0 : i32
    %c42_i32 = arith.constant 42 : i32
    %29 = arith.addi %c0_i32_16, %c42_i32 : i32
    %c1_i32_17 = arith.constant 1 : i32
    scf.for %arg18 = %c0_i32_16 to %29 step %c1_i32_17  : i32 {
      %c8_i32 = arith.constant 8 : i32
      %86 = arith.muli %arg18, %c8_i32 : i32
      %c0_i32_78 = arith.constant 0 : i32
      %87 = arith.addi %86, %c0_i32_78 : i32
      %c8_i32_79 = arith.constant 8 : i32
      %88 = arith.muli %87, %c8_i32_79 : i32
      %89 = tpu.assume_multiple %88, 8 : i32
      %c335_i32 = arith.constant 335 : i32
      %90 = arith.subi %c335_i32, %87 : i32
      %c8_i32_80 = arith.constant 8 : i32
      %91 = arith.muli %90, %c8_i32_80 : i32
      %92 = tpu.assume_multiple %91, 8 : i32
      %93 = arith.index_cast %89 : i32 to index
      %c0_81 = arith.constant 0 : index
      %94 = vector.load %arg13[%93, %c0_81] : memref<2688x128xf32, #tpu.memory_space<vmem>>, vector<8x128xf32>
      %95 = arith.index_cast %92 : i32 to index
      %c0_82 = arith.constant 0 : index
      %96 = vector.load %arg13[%95, %c0_82] : memref<2688x128xf32, #tpu.memory_space<vmem>>, vector<8x128xf32>
      %97 = arith.select %18, %94, %96 : vector<8x128xi1>, vector<8x128xf32>
      %c0_83 = arith.constant 0 : index
      %c0_84 = arith.constant 0 : index
      %98 = vector.load %arg16[%c0_83, %c0_84] : memref<8x32xf32, #tpu.memory_space<vmem>>, vector<8x32xf32>
      %99 = arith.truncf %98 : vector<8x32xf32> to vector<8x32xbf16>
      %cst_85 = arith.constant dense<0.000000e+00> : vector<8x128xf32>
      %100 = tpu.matmul %99, %28, %cst_85 {dimension_numbers = #tpu.dot_dimension_numbers<[1], [0], [0], [1], [0, 0, 1, 1], [], []>} : vector<8x32xbf16>, vector<32x128xbf16>, vector<8x128xf32> -> vector<8x128xf32>
      %101 = arith.addf %97, %100 : vector<8x128xf32>
      %102 = arith.negf %101 : vector<8x128xf32>
      %103 = math.exp %102 : vector<8x128xf32>
      %cst_86 = arith.constant 1.000000e+00 : f32
      %104 = vector.broadcast %cst_86 : f32 to vector<8x128xf32>
      %105 = arith.addf %104, %103 : vector<8x128xf32>
      %106 = arith.divf %104, %105 : vector<8x128xf32>
      %107 = math.tanh %101 : vector<8x128xf32>
      %108 = vector.extract_strided_slice %106 {offsets = [0, 0], sizes = [8, 32], strides = [1, 1]} : vector<8x128xf32> to vector<8x32xf32>
      %109 = vector.extract_strided_slice %106 {offsets = [0, 32], sizes = [8, 32], strides = [1, 1]} : vector<8x128xf32> to vector<8x32xf32>
      %110 = vector.extract_strided_slice %107 {offsets = [0, 64], sizes = [8, 32], strides = [1, 1]} : vector<8x128xf32> to vector<8x32xf32>
      %111 = vector.extract_strided_slice %106 {offsets = [0, 96], sizes = [8, 32], strides = [1, 1]} : vector<8x128xf32> to vector<8x32xf32>
      %c0_87 = arith.constant 0 : index
      %c0_88 = arith.constant 0 : index
      %112 = vector.load %arg17[%c0_87, %c0_88] : memref<8x32xf32, #tpu.memory_space<vmem>>, vector<8x32xf32>
      %113 = arith.mulf %109, %112 : vector<8x32xf32>
      %114 = arith.mulf %108, %110 : vector<8x32xf32>
      %115 = arith.addf %113, %114 : vector<8x32xf32>
      %116 = math.tanh %115 : vector<8x32xf32>
      %117 = arith.mulf %111, %116 : vector<8x32xf32>
      %c0_89 = arith.constant 0 : index
      %c0_90 = arith.constant 0 : index
      %118 = vector.load %arg17[%c0_89, %c0_90] : memref<8x32xf32, #tpu.memory_space<vmem>>, vector<8x32xf32>
      tpu.vector_store %arg17[%c0_89, %c0_90], %115 {strides = array<i32>} : memref<8x32xf32, #tpu.memory_space<vmem>>, vector<8x32xf32>,
      %c0_91 = arith.constant 0 : index
      %c0_92 = arith.constant 0 : index
      %119 = vector.load %arg16[%c0_91, %c0_92] : memref<8x32xf32, #tpu.memory_space<vmem>>, vector<8x32xf32>
      tpu.vector_store %arg16[%c0_91, %c0_92], %117 {strides = array<i32>} : memref<8x32xf32, #tpu.memory_space<vmem>>, vector<8x32xf32>,
      %120 = vector.extract_strided_slice %117 {offsets = [0, 0], sizes = [8, 16], strides = [1, 1]} : vector<8x32xf32> to vector<8x16xf32>
      %121 = arith.index_cast %89 : i32 to index
      %c0_93 = arith.constant 0 : index
      %122 = vector.load %arg14[%121, %c0_93] : memref<2688x32xf32, #tpu.memory_space<vmem>>, vector<8x16xf32>
      tpu.vector_store %arg14[%121, %c0_93], %120 {strides = array<i32>} : memref<2688x32xf32, #tpu.memory_space<vmem>>, vector<8x16xf32>,
      %123 = vector.extract_strided_slice %117 {offsets = [0, 16], sizes = [8, 16], strides = [1, 1]} : vector<8x32xf32> to vector<8x16xf32>
      %124 = arith.index_cast %92 : i32 to index
      %c16_94 = arith.constant 16 : index
      %125 = vector.load %arg14[%124, %c16_94] : memref<2688x32xf32, #tpu.memory_space<vmem>>, vector<8x16xf32>
      tpu.vector_store %arg14[%124, %c16_94], %123 {strides = array<i32>} : memref<2688x32xf32, #tpu.memory_space<vmem>>, vector<8x16xf32>,
      %c8_i32_95 = arith.constant 8 : i32
      %126 = arith.muli %arg18, %c8_i32_95 : i32
      %c1_i32_96 = arith.constant 1 : i32
      %127 = arith.addi %126, %c1_i32_96 : i32
      %c8_i32_97 = arith.constant 8 : i32
      %128 = arith.muli %127, %c8_i32_97 : i32
      %129 = tpu.assume_multiple %128, 8 : i32
      %c335_i32_98 = arith.constant 335 : i32
      %130 = arith.subi %c335_i32_98, %127 : i32
      %c8_i32_99 = arith.constant 8 : i32
      %131 = arith.muli %130, %c8_i32_99 : i32
      %132 = tpu.assume_multiple %131, 8 : i32
      %133 = arith.index_cast %129 : i32 to index
      %c0_100 = arith.constant 0 : index
      %134 = vector.load %arg13[%133, %c0_100] : memref<2688x128xf32, #tpu.memory_space<vmem>>, vector<8x128xf32>
      %135 = arith.index_cast %132 : i32 to index
      %c0_101 = arith.constant 0 : index
      %136 = vector.load %arg13[%135, %c0_101] : memref<2688x128xf32, #tpu.memory_space<vmem>>, vector<8x128xf32>
      %137 = arith.select %18, %134, %136 : vector<8x128xi1>, vector<8x128xf32>
      %c0_102 = arith.constant 0 : index
      %c0_103 = arith.constant 0 : index
      %138 = vector.load %arg16[%c0_102, %c0_103] : memref<8x32xf32, #tpu.memory_space<vmem>>, vector<8x32xf32>
      %139 = arith.truncf %138 : vector<8x32xf32> to vector<8x32xbf16>
      %cst_104 = arith.constant dense<0.000000e+00> : vector<8x128xf32>
      %140 = tpu.matmul %139, %28, %cst_104 {dimension_numbers = #tpu.dot_dimension_numbers<[1], [0], [0], [1], [0, 0, 1, 1], [], []>} : vector<8x32xbf16>, vector<32x128xbf16>, vector<8x128xf32> -> vector<8x128xf32>
      %141 = arith.addf %137, %140 : vector<8x128xf32>
      %142 = arith.negf %141 : vector<8x128xf32>
      %143 = math.exp %142 : vector<8x128xf32>
      %cst_105 = arith.constant 1.000000e+00 : f32
      %144 = vector.broadcast %cst_105 : f32 to vector<8x128xf32>
      %145 = arith.addf %144, %143 : vector<8x128xf32>
      %146 = arith.divf %144, %145 : vector<8x128xf32>
      %147 = math.tanh %141 : vector<8x128xf32>
      %148 = vector.extract_strided_slice %146 {offsets = [0, 0], sizes = [8, 32], strides = [1, 1]} : vector<8x128xf32> to vector<8x32xf32>
      %149 = vector.extract_strided_slice %146 {offsets = [0, 32], sizes = [8, 32], strides = [1, 1]} : vector<8x128xf32> to vector<8x32xf32>
      %150 = vector.extract_strided_slice %147 {offsets = [0, 64], sizes = [8, 32], strides = [1, 1]} : vector<8x128xf32> to vector<8x32xf32>
      %151 = vector.extract_strided_slice %146 {offsets = [0, 96], sizes = [8, 32], strides = [1, 1]} : vector<8x128xf32> to vector<8x32xf32>
      %c0_106 = arith.constant 0 : index
      %c0_107 = arith.constant 0 : index
      %152 = vector.load %arg17[%c0_106, %c0_107] : memref<8x32xf32, #tpu.memory_space<vmem>>, vector<8x32xf32>
      %153 = arith.mulf %149, %152 : vector<8x32xf32>
      %154 = arith.mulf %148, %150 : vector<8x32xf32>
      %155 = arith.addf %153, %154 : vector<8x32xf32>
      %156 = math.tanh %155 : vector<8x32xf32>
      %157 = arith.mulf %151, %156 : vector<8x32xf32>
      %c0_108 = arith.constant 0 : index
      %c0_109 = arith.constant 0 : index
      %158 = vector.load %arg17[%c0_108, %c0_109] : memref<8x32xf32, #tpu.memory_space<vmem>>, vector<8x32xf32>
      tpu.vector_store %arg17[%c0_108, %c0_109], %155 {strides = array<i32>} : memref<8x32xf32, #tpu.memory_space<vmem>>, vector<8x32xf32>,
      %c0_110 = arith.constant 0 : index
      %c0_111 = arith.constant 0 : index
      %159 = vector.load %arg16[%c0_110, %c0_111] : memref<8x32xf32, #tpu.memory_space<vmem>>, vector<8x32xf32>
      tpu.vector_store %arg16[%c0_110, %c0_111], %157 {strides = array<i32>} : memref<8x32xf32, #tpu.memory_space<vmem>>, vector<8x32xf32>,
      %160 = vector.extract_strided_slice %157 {offsets = [0, 0], sizes = [8, 16], strides = [1, 1]} : vector<8x32xf32> to vector<8x16xf32>
      %161 = arith.index_cast %129 : i32 to index
      %c0_112 = arith.constant 0 : index
      %162 = vector.load %arg14[%161, %c0_112] : memref<2688x32xf32, #tpu.memory_space<vmem>>, vector<8x16xf32>
      tpu.vector_store %arg14[%161, %c0_112], %160 {strides = array<i32>} : memref<2688x32xf32, #tpu.memory_space<vmem>>, vector<8x16xf32>,
      %163 = vector.extract_strided_slice %157 {offsets = [0, 16], sizes = [8, 16], strides = [1, 1]} : vector<8x32xf32> to vector<8x16xf32>
      %164 = arith.index_cast %132 : i32 to index
      %c16_113 = arith.constant 16 : index
      %165 = vector.load %arg14[%164, %c16_113] : memref<2688x32xf32, #tpu.memory_space<vmem>>, vector<8x16xf32>
      tpu.vector_store %arg14[%164, %c16_113], %163 {strides = array<i32>} : memref<2688x32xf32, #tpu.memory_space<vmem>>, vector<8x16xf32>,
      %c8_i32_114 = arith.constant 8 : i32
      %166 = arith.muli %arg18, %c8_i32_114 : i32
      %c2_i32 = arith.constant 2 : i32
      %167 = arith.addi %166, %c2_i32 : i32
      %c8_i32_115 = arith.constant 8 : i32
      %168 = arith.muli %167, %c8_i32_115 : i32
      %169 = tpu.assume_multiple %168, 8 : i32
      %c335_i32_116 = arith.constant 335 : i32
      %170 = arith.subi %c335_i32_116, %167 : i32
      %c8_i32_117 = arith.constant 8 : i32
      %171 = arith.muli %170, %c8_i32_117 : i32
      %172 = tpu.assume_multiple %171, 8 : i32
      %173 = arith.index_cast %169 : i32 to index
      %c0_118 = arith.constant 0 : index
      %174 = vector.load %arg13[%173, %c0_118] : memref<2688x128xf32, #tpu.memory_space<vmem>>, vector<8x128xf32>
      %175 = arith.index_cast %172 : i32 to index
      %c0_119 = arith.constant 0 : index
      %176 = vector.load %arg13[%175, %c0_119] : memref<2688x128xf32, #tpu.memory_space<vmem>>, vector<8x128xf32>
      %177 = arith.select %18, %174, %176 : vector<8x128xi1>, vector<8x128xf32>
      %c0_120 = arith.constant 0 : index
      %c0_121 = arith.constant 0 : index
      %178 = vector.load %arg16[%c0_120, %c0_121] : memref<8x32xf32, #tpu.memory_space<vmem>>, vector<8x32xf32>
      %179 = arith.truncf %178 : vector<8x32xf32> to vector<8x32xbf16>
      %cst_122 = arith.constant dense<0.000000e+00> : vector<8x128xf32>
      %180 = tpu.matmul %179, %28, %cst_122 {dimension_numbers = #tpu.dot_dimension_numbers<[1], [0], [0], [1], [0, 0, 1, 1], [], []>} : vector<8x32xbf16>, vector<32x128xbf16>, vector<8x128xf32> -> vector<8x128xf32>
      %181 = arith.addf %177, %180 : vector<8x128xf32>
      %182 = arith.negf %181 : vector<8x128xf32>
      %183 = math.exp %182 : vector<8x128xf32>
      %cst_123 = arith.constant 1.000000e+00 : f32
      %184 = vector.broadcast %cst_123 : f32 to vector<8x128xf32>
      %185 = arith.addf %184, %183 : vector<8x128xf32>
      %186 = arith.divf %184, %185 : vector<8x128xf32>
      %187 = math.tanh %181 : vector<8x128xf32>
      %188 = vector.extract_strided_slice %186 {offsets = [0, 0], sizes = [8, 32], strides = [1, 1]} : vector<8x128xf32> to vector<8x32xf32>
      %189 = vector.extract_strided_slice %186 {offsets = [0, 32], sizes = [8, 32], strides = [1, 1]} : vector<8x128xf32> to vector<8x32xf32>
      %190 = vector.extract_strided_slice %187 {offsets = [0, 64], sizes = [8, 32], strides = [1, 1]} : vector<8x128xf32> to vector<8x32xf32>
      %191 = vector.extract_strided_slice %186 {offsets = [0, 96], sizes = [8, 32], strides = [1, 1]} : vector<8x128xf32> to vector<8x32xf32>
      %c0_124 = arith.constant 0 : index
      %c0_125 = arith.constant 0 : index
      %192 = vector.load %arg17[%c0_124, %c0_125] : memref<8x32xf32, #tpu.memory_space<vmem>>, vector<8x32xf32>
      %193 = arith.mulf %189, %192 : vector<8x32xf32>
      %194 = arith.mulf %188, %190 : vector<8x32xf32>
      %195 = arith.addf %193, %194 : vector<8x32xf32>
      %196 = math.tanh %195 : vector<8x32xf32>
      %197 = arith.mulf %191, %196 : vector<8x32xf32>
      %c0_126 = arith.constant 0 : index
      %c0_127 = arith.constant 0 : index
      %198 = vector.load %arg17[%c0_126, %c0_127] : memref<8x32xf32, #tpu.memory_space<vmem>>, vector<8x32xf32>
      tpu.vector_store %arg17[%c0_126, %c0_127], %195 {strides = array<i32>} : memref<8x32xf32, #tpu.memory_space<vmem>>, vector<8x32xf32>,
      %c0_128 = arith.constant 0 : index
      %c0_129 = arith.constant 0 : index
      %199 = vector.load %arg16[%c0_128, %c0_129] : memref<8x32xf32, #tpu.memory_space<vmem>>, vector<8x32xf32>
      tpu.vector_store %arg16[%c0_128, %c0_129], %197 {strides = array<i32>} : memref<8x32xf32, #tpu.memory_space<vmem>>, vector<8x32xf32>,
      %200 = vector.extract_strided_slice %197 {offsets = [0, 0], sizes = [8, 16], strides = [1, 1]} : vector<8x32xf32> to vector<8x16xf32>
      %201 = arith.index_cast %169 : i32 to index
      %c0_130 = arith.constant 0 : index
      %202 = vector.load %arg14[%201, %c0_130] : memref<2688x32xf32, #tpu.memory_space<vmem>>, vector<8x16xf32>
      tpu.vector_store %arg14[%201, %c0_130], %200 {strides = array<i32>} : memref<2688x32xf32, #tpu.memory_space<vmem>>, vector<8x16xf32>,
      %203 = vector.extract_strided_slice %197 {offsets = [0, 16], sizes = [8, 16], strides = [1, 1]} : vector<8x32xf32> to vector<8x16xf32>
      %204 = arith.index_cast %172 : i32 to index
      %c16_131 = arith.constant 16 : index
      %205 = vector.load %arg14[%204, %c16_131] : memref<2688x32xf32, #tpu.memory_space<vmem>>, vector<8x16xf32>
      tpu.vector_store %arg14[%204, %c16_131], %203 {strides = array<i32>} : memref<2688x32xf32, #tpu.memory_space<vmem>>, vector<8x16xf32>,
      %c8_i32_132 = arith.constant 8 : i32
      %206 = arith.muli %arg18, %c8_i32_132 : i32
      %c3_i32 = arith.constant 3 : i32
      %207 = arith.addi %206, %c3_i32 : i32
      %c8_i32_133 = arith.constant 8 : i32
      %208 = arith.muli %207, %c8_i32_133 : i32
      %209 = tpu.assume_multiple %208, 8 : i32
      %c335_i32_134 = arith.constant 335 : i32
      %210 = arith.subi %c335_i32_134, %207 : i32
      %c8_i32_135 = arith.constant 8 : i32
      %211 = arith.muli %210, %c8_i32_135 : i32
      %212 = tpu.assume_multiple %211, 8 : i32
      %213 = arith.index_cast %209 : i32 to index
      %c0_136 = arith.constant 0 : index
      %214 = vector.load %arg13[%213, %c0_136] : memref<2688x128xf32, #tpu.memory_space<vmem>>, vector<8x128xf32>
      %215 = arith.index_cast %212 : i32 to index
      %c0_137 = arith.constant 0 : index
      %216 = vector.load %arg13[%215, %c0_137] : memref<2688x128xf32, #tpu.memory_space<vmem>>, vector<8x128xf32>
      %217 = arith.select %18, %214, %216 : vector<8x128xi1>, vector<8x128xf32>
      %c0_138 = arith.constant 0 : index
      %c0_139 = arith.constant 0 : index
      %218 = vector.load %arg16[%c0_138, %c0_139] : memref<8x32xf32, #tpu.memory_space<vmem>>, vector<8x32xf32>
      %219 = arith.truncf %218 : vector<8x32xf32> to vector<8x32xbf16>
      %cst_140 = arith.constant dense<0.000000e+00> : vector<8x128xf32>
      %220 = tpu.matmul %219, %28, %cst_140 {dimension_numbers = #tpu.dot_dimension_numbers<[1], [0], [0], [1], [0, 0, 1, 1], [], []>} : vector<8x32xbf16>, vector<32x128xbf16>, vector<8x128xf32> -> vector<8x128xf32>
      %221 = arith.addf %217, %220 : vector<8x128xf32>
      %222 = arith.negf %221 : vector<8x128xf32>
      %223 = math.exp %222 : vector<8x128xf32>
      %cst_141 = arith.constant 1.000000e+00 : f32
      %224 = vector.broadcast %cst_141 : f32 to vector<8x128xf32>
      %225 = arith.addf %224, %223 : vector<8x128xf32>
      %226 = arith.divf %224, %225 : vector<8x128xf32>
      %227 = math.tanh %221 : vector<8x128xf32>
      %228 = vector.extract_strided_slice %226 {offsets = [0, 0], sizes = [8, 32], strides = [1, 1]} : vector<8x128xf32> to vector<8x32xf32>
      %229 = vector.extract_strided_slice %226 {offsets = [0, 32], sizes = [8, 32], strides = [1, 1]} : vector<8x128xf32> to vector<8x32xf32>
      %230 = vector.extract_strided_slice %227 {offsets = [0, 64], sizes = [8, 32], strides = [1, 1]} : vector<8x128xf32> to vector<8x32xf32>
      %231 = vector.extract_strided_slice %226 {offsets = [0, 96], sizes = [8, 32], strides = [1, 1]} : vector<8x128xf32> to vector<8x32xf32>
      %c0_142 = arith.constant 0 : index
      %c0_143 = arith.constant 0 : index
      %232 = vector.load %arg17[%c0_142, %c0_143] : memref<8x32xf32, #tpu.memory_space<vmem>>, vector<8x32xf32>
      %233 = arith.mulf %229, %232 : vector<8x32xf32>
      %234 = arith.mulf %228, %230 : vector<8x32xf32>
      %235 = arith.addf %233, %234 : vector<8x32xf32>
      %236 = math.tanh %235 : vector<8x32xf32>
      %237 = arith.mulf %231, %236 : vector<8x32xf32>
      %c0_144 = arith.constant 0 : index
      %c0_145 = arith.constant 0 : index
      %238 = vector.load %arg17[%c0_144, %c0_145] : memref<8x32xf32, #tpu.memory_space<vmem>>, vector<8x32xf32>
      tpu.vector_store %arg17[%c0_144, %c0_145], %235 {strides = array<i32>} : memref<8x32xf32, #tpu.memory_space<vmem>>, vector<8x32xf32>,
      %c0_146 = arith.constant 0 : index
      %c0_147 = arith.constant 0 : index
      %239 = vector.load %arg16[%c0_146, %c0_147] : memref<8x32xf32, #tpu.memory_space<vmem>>, vector<8x32xf32>
      tpu.vector_store %arg16[%c0_146, %c0_147], %237 {strides = array<i32>} : memref<8x32xf32, #tpu.memory_space<vmem>>, vector<8x32xf32>,
      %240 = vector.extract_strided_slice %237 {offsets = [0, 0], sizes = [8, 16], strides = [1, 1]} : vector<8x32xf32> to vector<8x16xf32>
      %241 = arith.index_cast %209 : i32 to index
      %c0_148 = arith.constant 0 : index
      %242 = vector.load %arg14[%241, %c0_148] : memref<2688x32xf32, #tpu.memory_space<vmem>>, vector<8x16xf32>
      tpu.vector_store %arg14[%241, %c0_148], %240 {strides = array<i32>} : memref<2688x32xf32, #tpu.memory_space<vmem>>, vector<8x16xf32>,
      %243 = vector.extract_strided_slice %237 {offsets = [0, 16], sizes = [8, 16], strides = [1, 1]} : vector<8x32xf32> to vector<8x16xf32>
      %244 = arith.index_cast %212 : i32 to index
      %c16_149 = arith.constant 16 : index
      %245 = vector.load %arg14[%244, %c16_149] : memref<2688x32xf32, #tpu.memory_space<vmem>>, vector<8x16xf32>
      tpu.vector_store %arg14[%244, %c16_149], %243 {strides = array<i32>} : memref<2688x32xf32, #tpu.memory_space<vmem>>, vector<8x16xf32>,
      %c8_i32_150 = arith.constant 8 : i32
      %246 = arith.muli %arg18, %c8_i32_150 : i32
      %c4_i32 = arith.constant 4 : i32
      %247 = arith.addi %246, %c4_i32 : i32
      %c8_i32_151 = arith.constant 8 : i32
      %248 = arith.muli %247, %c8_i32_151 : i32
      %249 = tpu.assume_multiple %248, 8 : i32
      %c335_i32_152 = arith.constant 335 : i32
      %250 = arith.subi %c335_i32_152, %247 : i32
      %c8_i32_153 = arith.constant 8 : i32
      %251 = arith.muli %250, %c8_i32_153 : i32
      %252 = tpu.assume_multiple %251, 8 : i32
      %253 = arith.index_cast %249 : i32 to index
      %c0_154 = arith.constant 0 : index
      %254 = vector.load %arg13[%253, %c0_154] : memref<2688x128xf32, #tpu.memory_space<vmem>>, vector<8x128xf32>
      %255 = arith.index_cast %252 : i32 to index
      %c0_155 = arith.constant 0 : index
      %256 = vector.load %arg13[%255, %c0_155] : memref<2688x128xf32, #tpu.memory_space<vmem>>, vector<8x128xf32>
      %257 = arith.select %18, %254, %256 : vector<8x128xi1>, vector<8x128xf32>
      %c0_156 = arith.constant 0 : index
      %c0_157 = arith.constant 0 : index
      %258 = vector.load %arg16[%c0_156, %c0_157] : memref<8x32xf32, #tpu.memory_space<vmem>>, vector<8x32xf32>
      %259 = arith.truncf %258 : vector<8x32xf32> to vector<8x32xbf16>
      %cst_158 = arith.constant dense<0.000000e+00> : vector<8x128xf32>
      %260 = tpu.matmul %259, %28, %cst_158 {dimension_numbers = #tpu.dot_dimension_numbers<[1], [0], [0], [1], [0, 0, 1, 1], [], []>} : vector<8x32xbf16>, vector<32x128xbf16>, vector<8x128xf32> -> vector<8x128xf32>
      %261 = arith.addf %257, %260 : vector<8x128xf32>
      %262 = arith.negf %261 : vector<8x128xf32>
      %263 = math.exp %262 : vector<8x128xf32>
      %cst_159 = arith.constant 1.000000e+00 : f32
      %264 = vector.broadcast %cst_159 : f32 to vector<8x128xf32>
      %265 = arith.addf %264, %263 : vector<8x128xf32>
      %266 = arith.divf %264, %265 : vector<8x128xf32>
      %267 = math.tanh %261 : vector<8x128xf32>
      %268 = vector.extract_strided_slice %266 {offsets = [0, 0], sizes = [8, 32], strides = [1, 1]} : vector<8x128xf32> to vector<8x32xf32>
      %269 = vector.extract_strided_slice %266 {offsets = [0, 32], sizes = [8, 32], strides = [1, 1]} : vector<8x128xf32> to vector<8x32xf32>
      %270 = vector.extract_strided_slice %267 {offsets = [0, 64], sizes = [8, 32], strides = [1, 1]} : vector<8x128xf32> to vector<8x32xf32>
      %271 = vector.extract_strided_slice %266 {offsets = [0, 96], sizes = [8, 32], strides = [1, 1]} : vector<8x128xf32> to vector<8x32xf32>
      %c0_160 = arith.constant 0 : index
      %c0_161 = arith.constant 0 : index
      %272 = vector.load %arg17[%c0_160, %c0_161] : memref<8x32xf32, #tpu.memory_space<vmem>>, vector<8x32xf32>
      %273 = arith.mulf %269, %272 : vector<8x32xf32>
      %274 = arith.mulf %268, %270 : vector<8x32xf32>
      %275 = arith.addf %273, %274 : vector<8x32xf32>
      %276 = math.tanh %275 : vector<8x32xf32>
      %277 = arith.mulf %271, %276 : vector<8x32xf32>
      %c0_162 = arith.constant 0 : index
      %c0_163 = arith.constant 0 : index
      %278 = vector.load %arg17[%c0_162, %c0_163] : memref<8x32xf32, #tpu.memory_space<vmem>>, vector<8x32xf32>
      tpu.vector_store %arg17[%c0_162, %c0_163], %275 {strides = array<i32>} : memref<8x32xf32, #tpu.memory_space<vmem>>, vector<8x32xf32>,
      %c0_164 = arith.constant 0 : index
      %c0_165 = arith.constant 0 : index
      %279 = vector.load %arg16[%c0_164, %c0_165] : memref<8x32xf32, #tpu.memory_space<vmem>>, vector<8x32xf32>
      tpu.vector_store %arg16[%c0_164, %c0_165], %277 {strides = array<i32>} : memref<8x32xf32, #tpu.memory_space<vmem>>, vector<8x32xf32>,
      %280 = vector.extract_strided_slice %277 {offsets = [0, 0], sizes = [8, 16], strides = [1, 1]} : vector<8x32xf32> to vector<8x16xf32>
      %281 = arith.index_cast %249 : i32 to index
      %c0_166 = arith.constant 0 : index
      %282 = vector.load %arg14[%281, %c0_166] : memref<2688x32xf32, #tpu.memory_space<vmem>>, vector<8x16xf32>
      tpu.vector_store %arg14[%281, %c0_166], %280 {strides = array<i32>} : memref<2688x32xf32, #tpu.memory_space<vmem>>, vector<8x16xf32>,
      %283 = vector.extract_strided_slice %277 {offsets = [0, 16], sizes = [8, 16], strides = [1, 1]} : vector<8x32xf32> to vector<8x16xf32>
      %284 = arith.index_cast %252 : i32 to index
      %c16_167 = arith.constant 16 : index
      %285 = vector.load %arg14[%284, %c16_167] : memref<2688x32xf32, #tpu.memory_space<vmem>>, vector<8x16xf32>
      tpu.vector_store %arg14[%284, %c16_167], %283 {strides = array<i32>} : memref<2688x32xf32, #tpu.memory_space<vmem>>, vector<8x16xf32>,
      %c8_i32_168 = arith.constant 8 : i32
      %286 = arith.muli %arg18, %c8_i32_168 : i32
      %c5_i32 = arith.constant 5 : i32
      %287 = arith.addi %286, %c5_i32 : i32
      %c8_i32_169 = arith.constant 8 : i32
      %288 = arith.muli %287, %c8_i32_169 : i32
      %289 = tpu.assume_multiple %288, 8 : i32
      %c335_i32_170 = arith.constant 335 : i32
      %290 = arith.subi %c335_i32_170, %287 : i32
      %c8_i32_171 = arith.constant 8 : i32
      %291 = arith.muli %290, %c8_i32_171 : i32
      %292 = tpu.assume_multiple %291, 8 : i32
      %293 = arith.index_cast %289 : i32 to index
      %c0_172 = arith.constant 0 : index
      %294 = vector.load %arg13[%293, %c0_172] : memref<2688x128xf32, #tpu.memory_space<vmem>>, vector<8x128xf32>
      %295 = arith.index_cast %292 : i32 to index
      %c0_173 = arith.constant 0 : index
      %296 = vector.load %arg13[%295, %c0_173] : memref<2688x128xf32, #tpu.memory_space<vmem>>, vector<8x128xf32>
      %297 = arith.select %18, %294, %296 : vector<8x128xi1>, vector<8x128xf32>
      %c0_174 = arith.constant 0 : index
      %c0_175 = arith.constant 0 : index
      %298 = vector.load %arg16[%c0_174, %c0_175] : memref<8x32xf32, #tpu.memory_space<vmem>>, vector<8x32xf32>
      %299 = arith.truncf %298 : vector<8x32xf32> to vector<8x32xbf16>
      %cst_176 = arith.constant dense<0.000000e+00> : vector<8x128xf32>
      %300 = tpu.matmul %299, %28, %cst_176 {dimension_numbers = #tpu.dot_dimension_numbers<[1], [0], [0], [1], [0, 0, 1, 1], [], []>} : vector<8x32xbf16>, vector<32x128xbf16>, vector<8x128xf32> -> vector<8x128xf32>
      %301 = arith.addf %297, %300 : vector<8x128xf32>
      %302 = arith.negf %301 : vector<8x128xf32>
      %303 = math.exp %302 : vector<8x128xf32>
      %cst_177 = arith.constant 1.000000e+00 : f32
      %304 = vector.broadcast %cst_177 : f32 to vector<8x128xf32>
      %305 = arith.addf %304, %303 : vector<8x128xf32>
      %306 = arith.divf %304, %305 : vector<8x128xf32>
      %307 = math.tanh %301 : vector<8x128xf32>
      %308 = vector.extract_strided_slice %306 {offsets = [0, 0], sizes = [8, 32], strides = [1, 1]} : vector<8x128xf32> to vector<8x32xf32>
      %309 = vector.extract_strided_slice %306 {offsets = [0, 32], sizes = [8, 32], strides = [1, 1]} : vector<8x128xf32> to vector<8x32xf32>
      %310 = vector.extract_strided_slice %307 {offsets = [0, 64], sizes = [8, 32], strides = [1, 1]} : vector<8x128xf32> to vector<8x32xf32>
      %311 = vector.extract_strided_slice %306 {offsets = [0, 96], sizes = [8, 32], strides = [1, 1]} : vector<8x128xf32> to vector<8x32xf32>
      %c0_178 = arith.constant 0 : index
      %c0_179 = arith.constant 0 : index
      %312 = vector.load %arg17[%c0_178, %c0_179] : memref<8x32xf32, #tpu.memory_space<vmem>>, vector<8x32xf32>
      %313 = arith.mulf %309, %312 : vector<8x32xf32>
      %314 = arith.mulf %308, %310 : vector<8x32xf32>
      %315 = arith.addf %313, %314 : vector<8x32xf32>
      %316 = math.tanh %315 : vector<8x32xf32>
      %317 = arith.mulf %311, %316 : vector<8x32xf32>
      %c0_180 = arith.constant 0 : index
      %c0_181 = arith.constant 0 : index
      %318 = vector.load %arg17[%c0_180, %c0_181] : memref<8x32xf32, #tpu.memory_space<vmem>>, vector<8x32xf32>
      tpu.vector_store %arg17[%c0_180, %c0_181], %315 {strides = array<i32>} : memref<8x32xf32, #tpu.memory_space<vmem>>, vector<8x32xf32>,
      %c0_182 = arith.constant 0 : index
      %c0_183 = arith.constant 0 : index
      %319 = vector.load %arg16[%c0_182, %c0_183] : memref<8x32xf32, #tpu.memory_space<vmem>>, vector<8x32xf32>
      tpu.vector_store %arg16[%c0_182, %c0_183], %317 {strides = array<i32>} : memref<8x32xf32, #tpu.memory_space<vmem>>, vector<8x32xf32>,
      %320 = vector.extract_strided_slice %317 {offsets = [0, 0], sizes = [8, 16], strides = [1, 1]} : vector<8x32xf32> to vector<8x16xf32>
      %321 = arith.index_cast %289 : i32 to index
      %c0_184 = arith.constant 0 : index
      %322 = vector.load %arg14[%321, %c0_184] : memref<2688x32xf32, #tpu.memory_space<vmem>>, vector<8x16xf32>
      tpu.vector_store %arg14[%321, %c0_184], %320 {strides = array<i32>} : memref<2688x32xf32, #tpu.memory_space<vmem>>, vector<8x16xf32>,
      %323 = vector.extract_strided_slice %317 {offsets = [0, 16], sizes = [8, 16], strides = [1, 1]} : vector<8x32xf32> to vector<8x16xf32>
      %324 = arith.index_cast %292 : i32 to index
      %c16_185 = arith.constant 16 : index
      %325 = vector.load %arg14[%324, %c16_185] : memref<2688x32xf32, #tpu.memory_space<vmem>>, vector<8x16xf32>
      tpu.vector_store %arg14[%324, %c16_185], %323 {strides = array<i32>} : memref<2688x32xf32, #tpu.memory_space<vmem>>, vector<8x16xf32>,
      %c8_i32_186 = arith.constant 8 : i32
      %326 = arith.muli %arg18, %c8_i32_186 : i32
      %c6_i32 = arith.constant 6 : i32
      %327 = arith.addi %326, %c6_i32 : i32
      %c8_i32_187 = arith.constant 8 : i32
      %328 = arith.muli %327, %c8_i32_187 : i32
      %329 = tpu.assume_multiple %328, 8 : i32
      %c335_i32_188 = arith.constant 335 : i32
      %330 = arith.subi %c335_i32_188, %327 : i32
      %c8_i32_189 = arith.constant 8 : i32
      %331 = arith.muli %330, %c8_i32_189 : i32
      %332 = tpu.assume_multiple %331, 8 : i32
      %333 = arith.index_cast %329 : i32 to index
      %c0_190 = arith.constant 0 : index
      %334 = vector.load %arg13[%333, %c0_190] : memref<2688x128xf32, #tpu.memory_space<vmem>>, vector<8x128xf32>
      %335 = arith.index_cast %332 : i32 to index
      %c0_191 = arith.constant 0 : index
      %336 = vector.load %arg13[%335, %c0_191] : memref<2688x128xf32, #tpu.memory_space<vmem>>, vector<8x128xf32>
      %337 = arith.select %18, %334, %336 : vector<8x128xi1>, vector<8x128xf32>
      %c0_192 = arith.constant 0 : index
      %c0_193 = arith.constant 0 : index
      %338 = vector.load %arg16[%c0_192, %c0_193] : memref<8x32xf32, #tpu.memory_space<vmem>>, vector<8x32xf32>
      %339 = arith.truncf %338 : vector<8x32xf32> to vector<8x32xbf16>
      %cst_194 = arith.constant dense<0.000000e+00> : vector<8x128xf32>
      %340 = tpu.matmul %339, %28, %cst_194 {dimension_numbers = #tpu.dot_dimension_numbers<[1], [0], [0], [1], [0, 0, 1, 1], [], []>} : vector<8x32xbf16>, vector<32x128xbf16>, vector<8x128xf32> -> vector<8x128xf32>
      %341 = arith.addf %337, %340 : vector<8x128xf32>
      %342 = arith.negf %341 : vector<8x128xf32>
      %343 = math.exp %342 : vector<8x128xf32>
      %cst_195 = arith.constant 1.000000e+00 : f32
      %344 = vector.broadcast %cst_195 : f32 to vector<8x128xf32>
      %345 = arith.addf %344, %343 : vector<8x128xf32>
      %346 = arith.divf %344, %345 : vector<8x128xf32>
      %347 = math.tanh %341 : vector<8x128xf32>
      %348 = vector.extract_strided_slice %346 {offsets = [0, 0], sizes = [8, 32], strides = [1, 1]} : vector<8x128xf32> to vector<8x32xf32>
      %349 = vector.extract_strided_slice %346 {offsets = [0, 32], sizes = [8, 32], strides = [1, 1]} : vector<8x128xf32> to vector<8x32xf32>
      %350 = vector.extract_strided_slice %347 {offsets = [0, 64], sizes = [8, 32], strides = [1, 1]} : vector<8x128xf32> to vector<8x32xf32>
      %351 = vector.extract_strided_slice %346 {offsets = [0, 96], sizes = [8, 32], strides = [1, 1]} : vector<8x128xf32> to vector<8x32xf32>
      %c0_196 = arith.constant 0 : index
      %c0_197 = arith.constant 0 : index
      %352 = vector.load %arg17[%c0_196, %c0_197] : memref<8x32xf32, #tpu.memory_space<vmem>>, vector<8x32xf32>
      %353 = arith.mulf %349, %352 : vector<8x32xf32>
      %354 = arith.mulf %348, %350 : vector<8x32xf32>
      %355 = arith.addf %353, %354 : vector<8x32xf32>
      %356 = math.tanh %355 : vector<8x32xf32>
      %357 = arith.mulf %351, %356 : vector<8x32xf32>
      %c0_198 = arith.constant 0 : index
      %c0_199 = arith.constant 0 : index
      %358 = vector.load %arg17[%c0_198, %c0_199] : memref<8x32xf32, #tpu.memory_space<vmem>>, vector<8x32xf32>
      tpu.vector_store %arg17[%c0_198, %c0_199], %355 {strides = array<i32>} : memref<8x32xf32, #tpu.memory_space<vmem>>, vector<8x32xf32>,
      %c0_200 = arith.constant 0 : index
      %c0_201 = arith.constant 0 : index
      %359 = vector.load %arg16[%c0_200, %c0_201] : memref<8x32xf32, #tpu.memory_space<vmem>>, vector<8x32xf32>
      tpu.vector_store %arg16[%c0_200, %c0_201], %357 {strides = array<i32>} : memref<8x32xf32, #tpu.memory_space<vmem>>, vector<8x32xf32>,
      %360 = vector.extract_strided_slice %357 {offsets = [0, 0], sizes = [8, 16], strides = [1, 1]} : vector<8x32xf32> to vector<8x16xf32>
      %361 = arith.index_cast %329 : i32 to index
      %c0_202 = arith.constant 0 : index
      %362 = vector.load %arg14[%361, %c0_202] : memref<2688x32xf32, #tpu.memory_space<vmem>>, vector<8x16xf32>
      tpu.vector_store %arg14[%361, %c0_202], %360 {strides = array<i32>} : memref<2688x32xf32, #tpu.memory_space<vmem>>, vector<8x16xf32>,
      %363 = vector.extract_strided_slice %357 {offsets = [0, 16], sizes = [8, 16], strides = [1, 1]} : vector<8x32xf32> to vector<8x16xf32>
      %364 = arith.index_cast %332 : i32 to index
      %c16_203 = arith.constant 16 : index
      %365 = vector.load %arg14[%364, %c16_203] : memref<2688x32xf32, #tpu.memory_space<vmem>>, vector<8x16xf32>
      tpu.vector_store %arg14[%364, %c16_203], %363 {strides = array<i32>} : memref<2688x32xf32, #tpu.memory_space<vmem>>, vector<8x16xf32>,
      %c8_i32_204 = arith.constant 8 : i32
      %366 = arith.muli %arg18, %c8_i32_204 : i32
      %c7_i32 = arith.constant 7 : i32
      %367 = arith.addi %366, %c7_i32 : i32
      %c8_i32_205 = arith.constant 8 : i32
      %368 = arith.muli %367, %c8_i32_205 : i32
      %369 = tpu.assume_multiple %368, 8 : i32
      %c335_i32_206 = arith.constant 335 : i32
      %370 = arith.subi %c335_i32_206, %367 : i32
      %c8_i32_207 = arith.constant 8 : i32
      %371 = arith.muli %370, %c8_i32_207 : i32
      %372 = tpu.assume_multiple %371, 8 : i32
      %373 = arith.index_cast %369 : i32 to index
      %c0_208 = arith.constant 0 : index
      %374 = vector.load %arg13[%373, %c0_208] : memref<2688x128xf32, #tpu.memory_space<vmem>>, vector<8x128xf32>
      %375 = arith.index_cast %372 : i32 to index
      %c0_209 = arith.constant 0 : index
      %376 = vector.load %arg13[%375, %c0_209] : memref<2688x128xf32, #tpu.memory_space<vmem>>, vector<8x128xf32>
      %377 = arith.select %18, %374, %376 : vector<8x128xi1>, vector<8x128xf32>
      %c0_210 = arith.constant 0 : index
      %c0_211 = arith.constant 0 : index
      %378 = vector.load %arg16[%c0_210, %c0_211] : memref<8x32xf32, #tpu.memory_space<vmem>>, vector<8x32xf32>
      %379 = arith.truncf %378 : vector<8x32xf32> to vector<8x32xbf16>
      %cst_212 = arith.constant dense<0.000000e+00> : vector<8x128xf32>
      %380 = tpu.matmul %379, %28, %cst_212 {dimension_numbers = #tpu.dot_dimension_numbers<[1], [0], [0], [1], [0, 0, 1, 1], [], []>} : vector<8x32xbf16>, vector<32x128xbf16>, vector<8x128xf32> -> vector<8x128xf32>
      %381 = arith.addf %377, %380 : vector<8x128xf32>
      %382 = arith.negf %381 : vector<8x128xf32>
      %383 = math.exp %382 : vector<8x128xf32>
      %cst_213 = arith.constant 1.000000e+00 : f32
      %384 = vector.broadcast %cst_213 : f32 to vector<8x128xf32>
      %385 = arith.addf %384, %383 : vector<8x128xf32>
      %386 = arith.divf %384, %385 : vector<8x128xf32>
      %387 = math.tanh %381 : vector<8x128xf32>
      %388 = vector.extract_strided_slice %386 {offsets = [0, 0], sizes = [8, 32], strides = [1, 1]} : vector<8x128xf32> to vector<8x32xf32>
      %389 = vector.extract_strided_slice %386 {offsets = [0, 32], sizes = [8, 32], strides = [1, 1]} : vector<8x128xf32> to vector<8x32xf32>
      %390 = vector.extract_strided_slice %387 {offsets = [0, 64], sizes = [8, 32], strides = [1, 1]} : vector<8x128xf32> to vector<8x32xf32>
      %391 = vector.extract_strided_slice %386 {offsets = [0, 96], sizes = [8, 32], strides = [1, 1]} : vector<8x128xf32> to vector<8x32xf32>
      %c0_214 = arith.constant 0 : index
      %c0_215 = arith.constant 0 : index
      %392 = vector.load %arg17[%c0_214, %c0_215] : memref<8x32xf32, #tpu.memory_space<vmem>>, vector<8x32xf32>
      %393 = arith.mulf %389, %392 : vector<8x32xf32>
      %394 = arith.mulf %388, %390 : vector<8x32xf32>
      %395 = arith.addf %393, %394 : vector<8x32xf32>
      %396 = math.tanh %395 : vector<8x32xf32>
      %397 = arith.mulf %391, %396 : vector<8x32xf32>
      %c0_216 = arith.constant 0 : index
      %c0_217 = arith.constant 0 : index
      %398 = vector.load %arg17[%c0_216, %c0_217] : memref<8x32xf32, #tpu.memory_space<vmem>>, vector<8x32xf32>
      tpu.vector_store %arg17[%c0_216, %c0_217], %395 {strides = array<i32>} : memref<8x32xf32, #tpu.memory_space<vmem>>, vector<8x32xf32>,
      %c0_218 = arith.constant 0 : index
      %c0_219 = arith.constant 0 : index
      %399 = vector.load %arg16[%c0_218, %c0_219] : memref<8x32xf32, #tpu.memory_space<vmem>>, vector<8x32xf32>
      tpu.vector_store %arg16[%c0_218, %c0_219], %397 {strides = array<i32>} : memref<8x32xf32, #tpu.memory_space<vmem>>, vector<8x32xf32>,
      %400 = vector.extract_strided_slice %397 {offsets = [0, 0], sizes = [8, 16], strides = [1, 1]} : vector<8x32xf32> to vector<8x16xf32>
      %401 = arith.index_cast %369 : i32 to index
      %c0_220 = arith.constant 0 : index
      %402 = vector.load %arg14[%401, %c0_220] : memref<2688x32xf32, #tpu.memory_space<vmem>>, vector<8x16xf32>
      tpu.vector_store %arg14[%401, %c0_220], %400 {strides = array<i32>} : memref<2688x32xf32, #tpu.memory_space<vmem>>, vector<8x16xf32>,
      %403 = vector.extract_strided_slice %397 {offsets = [0, 16], sizes = [8, 16], strides = [1, 1]} : vector<8x32xf32> to vector<8x16xf32>
      %404 = arith.index_cast %372 : i32 to index
      %c16_221 = arith.constant 16 : index
      %405 = vector.load %arg14[%404, %c16_221] : memref<2688x32xf32, #tpu.memory_space<vmem>>, vector<8x16xf32>
      tpu.vector_store %arg14[%404, %c16_221], %403 {strides = array<i32>} : memref<2688x32xf32, #tpu.memory_space<vmem>>, vector<8x16xf32>,
    }
    %c42_i32_18 = arith.constant 42 : i32
    %c0_19 = arith.constant 0 : index
    %c0_20 = arith.constant 0 : index
    %30 = vector.load %arg14[%c0_19, %c0_20] : memref<2688x32xf32, #tpu.memory_space<vmem>>, vector<2688x32xf32>
    %31 = arith.truncf %30 : vector<2688x32xf32> to vector<2688x32xbf16>
    %c0_21 = arith.constant 0 : index
    %c0_22 = arith.constant 0 : index
    %32 = vector.load %arg3[%c0_21, %c0_22] : memref<32x128xbf16, #tpu.memory_space<vmem>>, vector<32x128xbf16>
    %cst_23 = arith.constant dense<0.000000e+00> : vector<2688x128xf32>
    %33 = tpu.matmul %31, %32, %cst_23 {dimension_numbers = #tpu.dot_dimension_numbers<[1], [0], [0], [1], [0, 0, 1, 1], [], []>} : vector<2688x32xbf16>, vector<32x128xbf16>, vector<2688x128xf32> -> vector<2688x128xf32>
    %c0_24 = arith.constant 0 : index
    %c0_25 = arith.constant 0 : index
    %34 = vector.load %arg13[%c0_24, %c0_25] : memref<2688x128xf32, #tpu.memory_space<vmem>>, vector<2688x128xf32>
    tpu.vector_store %arg13[%c0_24, %c0_25], %33 {strides = array<i32>} : memref<2688x128xf32, #tpu.memory_space<vmem>>, vector<2688x128xf32>,
    %cst_26 = arith.constant 0.000000e+00 : f32
    %35 = vector.broadcast %cst_26 : f32 to vector<8x32xf32>
    %c0_27 = arith.constant 0 : index
    %c0_28 = arith.constant 0 : index
    %36 = vector.load %arg16[%c0_27, %c0_28] : memref<8x32xf32, #tpu.memory_space<vmem>>, vector<8x32xf32>
    tpu.vector_store %arg16[%c0_27, %c0_28], %35 {strides = array<i32>} : memref<8x32xf32, #tpu.memory_space<vmem>>, vector<8x32xf32>,
    %cst_29 = arith.constant 0.000000e+00 : f32
    %37 = vector.broadcast %cst_29 : f32 to vector<8x32xf32>
    %c0_30 = arith.constant 0 : index
    %c0_31 = arith.constant 0 : index
    %38 = vector.load %arg17[%c0_30, %c0_31] : memref<8x32xf32, #tpu.memory_space<vmem>>, vector<8x32xf32>
    tpu.vector_store %arg17[%c0_30, %c0_31], %37 {strides = array<i32>} : memref<8x32xf32, #tpu.memory_space<vmem>>, vector<8x32xf32>,
    %c0_32 = arith.constant 0 : index
    %c0_33 = arith.constant 0 : index
    %39 = vector.load %arg4[%c0_32, %c0_33] : memref<32x128xbf16, #tpu.memory_space<vmem>>, vector<32x128xbf16>
    %c0_i32_34 = arith.constant 0 : i32
    %c42_i32_35 = arith.constant 42 : i32
    %40 = arith.addi %c0_i32_34, %c42_i32_35 : i32
    %c1_i32_36 = arith.constant 1 : i32
    scf.for %arg18 = %c0_i32_34 to %40 step %c1_i32_36  : i32 {
      %c8_i32 = arith.constant 8 : i32
      %86 = arith.muli %arg18, %c8_i32 : i32
      %c0_i32_78 = arith.constant 0 : i32
      %87 = arith.addi %86, %c0_i32_78 : i32
      %c8_i32_79 = arith.constant 8 : i32
      %88 = arith.muli %87, %c8_i32_79 : i32
      %89 = tpu.assume_multiple %88, 8 : i32
      %c335_i32 = arith.constant 335 : i32
      %90 = arith.subi %c335_i32, %87 : i32
      %c8_i32_80 = arith.constant 8 : i32
      %91 = arith.muli %90, %c8_i32_80 : i32
      %92 = tpu.assume_multiple %91, 8 : i32
      %93 = arith.index_cast %89 : i32 to index
      %c0_81 = arith.constant 0 : index
      %94 = vector.load %arg13[%93, %c0_81] : memref<2688x128xf32, #tpu.memory_space<vmem>>, vector<8x128xf32>
      %95 = arith.index_cast %92 : i32 to index
      %c0_82 = arith.constant 0 : index
      %96 = vector.load %arg13[%95, %c0_82] : memref<2688x128xf32, #tpu.memory_space<vmem>>, vector<8x128xf32>
      %97 = arith.select %18, %94, %96 : vector<8x128xi1>, vector<8x128xf32>
      %c0_83 = arith.constant 0 : index
      %c0_84 = arith.constant 0 : index
      %98 = vector.load %arg16[%c0_83, %c0_84] : memref<8x32xf32, #tpu.memory_space<vmem>>, vector<8x32xf32>
      %99 = arith.truncf %98 : vector<8x32xf32> to vector<8x32xbf16>
      %cst_85 = arith.constant dense<0.000000e+00> : vector<8x128xf32>
      %100 = tpu.matmul %99, %39, %cst_85 {dimension_numbers = #tpu.dot_dimension_numbers<[1], [0], [0], [1], [0, 0, 1, 1], [], []>} : vector<8x32xbf16>, vector<32x128xbf16>, vector<8x128xf32> -> vector<8x128xf32>
      %101 = arith.addf %97, %100 : vector<8x128xf32>
      %102 = arith.negf %101 : vector<8x128xf32>
      %103 = math.exp %102 : vector<8x128xf32>
      %cst_86 = arith.constant 1.000000e+00 : f32
      %104 = vector.broadcast %cst_86 : f32 to vector<8x128xf32>
      %105 = arith.addf %104, %103 : vector<8x128xf32>
      %106 = arith.divf %104, %105 : vector<8x128xf32>
      %107 = math.tanh %101 : vector<8x128xf32>
      %108 = vector.extract_strided_slice %106 {offsets = [0, 0], sizes = [8, 32], strides = [1, 1]} : vector<8x128xf32> to vector<8x32xf32>
      %109 = vector.extract_strided_slice %106 {offsets = [0, 32], sizes = [8, 32], strides = [1, 1]} : vector<8x128xf32> to vector<8x32xf32>
      %110 = vector.extract_strided_slice %107 {offsets = [0, 64], sizes = [8, 32], strides = [1, 1]} : vector<8x128xf32> to vector<8x32xf32>
      %111 = vector.extract_strided_slice %106 {offsets = [0, 96], sizes = [8, 32], strides = [1, 1]} : vector<8x128xf32> to vector<8x32xf32>
      %c0_87 = arith.constant 0 : index
      %c0_88 = arith.constant 0 : index
      %112 = vector.load %arg17[%c0_87, %c0_88] : memref<8x32xf32, #tpu.memory_space<vmem>>, vector<8x32xf32>
      %113 = arith.mulf %109, %112 : vector<8x32xf32>
      %114 = arith.mulf %108, %110 : vector<8x32xf32>
      %115 = arith.addf %113, %114 : vector<8x32xf32>
      %116 = math.tanh %115 : vector<8x32xf32>
      %117 = arith.mulf %111, %116 : vector<8x32xf32>
      %c0_89 = arith.constant 0 : index
      %c0_90 = arith.constant 0 : index
      %118 = vector.load %arg17[%c0_89, %c0_90] : memref<8x32xf32, #tpu.memory_space<vmem>>, vector<8x32xf32>
      tpu.vector_store %arg17[%c0_89, %c0_90], %115 {strides = array<i32>} : memref<8x32xf32, #tpu.memory_space<vmem>>, vector<8x32xf32>,
      %c0_91 = arith.constant 0 : index
      %c0_92 = arith.constant 0 : index
      %119 = vector.load %arg16[%c0_91, %c0_92] : memref<8x32xf32, #tpu.memory_space<vmem>>, vector<8x32xf32>
      tpu.vector_store %arg16[%c0_91, %c0_92], %117 {strides = array<i32>} : memref<8x32xf32, #tpu.memory_space<vmem>>, vector<8x32xf32>,
      %120 = vector.extract_strided_slice %117 {offsets = [0, 0], sizes = [8, 16], strides = [1, 1]} : vector<8x32xf32> to vector<8x16xf32>
      %121 = arith.index_cast %89 : i32 to index
      %c0_93 = arith.constant 0 : index
      %122 = vector.load %arg14[%121, %c0_93] : memref<2688x32xf32, #tpu.memory_space<vmem>>, vector<8x16xf32>
      tpu.vector_store %arg14[%121, %c0_93], %120 {strides = array<i32>} : memref<2688x32xf32, #tpu.memory_space<vmem>>, vector<8x16xf32>,
      %123 = vector.extract_strided_slice %117 {offsets = [0, 16], sizes = [8, 16], strides = [1, 1]} : vector<8x32xf32> to vector<8x16xf32>
      %124 = arith.index_cast %92 : i32 to index
      %c16_94 = arith.constant 16 : index
      %125 = vector.load %arg14[%124, %c16_94] : memref<2688x32xf32, #tpu.memory_space<vmem>>, vector<8x16xf32>
      tpu.vector_store %arg14[%124, %c16_94], %123 {strides = array<i32>} : memref<2688x32xf32, #tpu.memory_space<vmem>>, vector<8x16xf32>,
      %c8_i32_95 = arith.constant 8 : i32
      %126 = arith.muli %arg18, %c8_i32_95 : i32
      %c1_i32_96 = arith.constant 1 : i32
      %127 = arith.addi %126, %c1_i32_96 : i32
      %c8_i32_97 = arith.constant 8 : i32
      %128 = arith.muli %127, %c8_i32_97 : i32
      %129 = tpu.assume_multiple %128, 8 : i32
      %c335_i32_98 = arith.constant 335 : i32
      %130 = arith.subi %c335_i32_98, %127 : i32
      %c8_i32_99 = arith.constant 8 : i32
      %131 = arith.muli %130, %c8_i32_99 : i32
      %132 = tpu.assume_multiple %131, 8 : i32
      %133 = arith.index_cast %129 : i32 to index
      %c0_100 = arith.constant 0 : index
      %134 = vector.load %arg13[%133, %c0_100] : memref<2688x128xf32, #tpu.memory_space<vmem>>, vector<8x128xf32>
      %135 = arith.index_cast %132 : i32 to index
      %c0_101 = arith.constant 0 : index
      %136 = vector.load %arg13[%135, %c0_101] : memref<2688x128xf32, #tpu.memory_space<vmem>>, vector<8x128xf32>
      %137 = arith.select %18, %134, %136 : vector<8x128xi1>, vector<8x128xf32>
      %c0_102 = arith.constant 0 : index
      %c0_103 = arith.constant 0 : index
      %138 = vector.load %arg16[%c0_102, %c0_103] : memref<8x32xf32, #tpu.memory_space<vmem>>, vector<8x32xf32>
      %139 = arith.truncf %138 : vector<8x32xf32> to vector<8x32xbf16>
      %cst_104 = arith.constant dense<0.000000e+00> : vector<8x128xf32>
      %140 = tpu.matmul %139, %39, %cst_104 {dimension_numbers = #tpu.dot_dimension_numbers<[1], [0], [0], [1], [0, 0, 1, 1], [], []>} : vector<8x32xbf16>, vector<32x128xbf16>, vector<8x128xf32> -> vector<8x128xf32>
      %141 = arith.addf %137, %140 : vector<8x128xf32>
      %142 = arith.negf %141 : vector<8x128xf32>
      %143 = math.exp %142 : vector<8x128xf32>
      %cst_105 = arith.constant 1.000000e+00 : f32
      %144 = vector.broadcast %cst_105 : f32 to vector<8x128xf32>
      %145 = arith.addf %144, %143 : vector<8x128xf32>
      %146 = arith.divf %144, %145 : vector<8x128xf32>
      %147 = math.tanh %141 : vector<8x128xf32>
      %148 = vector.extract_strided_slice %146 {offsets = [0, 0], sizes = [8, 32], strides = [1, 1]} : vector<8x128xf32> to vector<8x32xf32>
      %149 = vector.extract_strided_slice %146 {offsets = [0, 32], sizes = [8, 32], strides = [1, 1]} : vector<8x128xf32> to vector<8x32xf32>
      %150 = vector.extract_strided_slice %147 {offsets = [0, 64], sizes = [8, 32], strides = [1, 1]} : vector<8x128xf32> to vector<8x32xf32>
      %151 = vector.extract_strided_slice %146 {offsets = [0, 96], sizes = [8, 32], strides = [1, 1]} : vector<8x128xf32> to vector<8x32xf32>
      %c0_106 = arith.constant 0 : index
      %c0_107 = arith.constant 0 : index
      %152 = vector.load %arg17[%c0_106, %c0_107] : memref<8x32xf32, #tpu.memory_space<vmem>>, vector<8x32xf32>
      %153 = arith.mulf %149, %152 : vector<8x32xf32>
      %154 = arith.mulf %148, %150 : vector<8x32xf32>
      %155 = arith.addf %153, %154 : vector<8x32xf32>
      %156 = math.tanh %155 : vector<8x32xf32>
      %157 = arith.mulf %151, %156 : vector<8x32xf32>
      %c0_108 = arith.constant 0 : index
      %c0_109 = arith.constant 0 : index
      %158 = vector.load %arg17[%c0_108, %c0_109] : memref<8x32xf32, #tpu.memory_space<vmem>>, vector<8x32xf32>
      tpu.vector_store %arg17[%c0_108, %c0_109], %155 {strides = array<i32>} : memref<8x32xf32, #tpu.memory_space<vmem>>, vector<8x32xf32>,
      %c0_110 = arith.constant 0 : index
      %c0_111 = arith.constant 0 : index
      %159 = vector.load %arg16[%c0_110, %c0_111] : memref<8x32xf32, #tpu.memory_space<vmem>>, vector<8x32xf32>
      tpu.vector_store %arg16[%c0_110, %c0_111], %157 {strides = array<i32>} : memref<8x32xf32, #tpu.memory_space<vmem>>, vector<8x32xf32>,
      %160 = vector.extract_strided_slice %157 {offsets = [0, 0], sizes = [8, 16], strides = [1, 1]} : vector<8x32xf32> to vector<8x16xf32>
      %161 = arith.index_cast %129 : i32 to index
      %c0_112 = arith.constant 0 : index
      %162 = vector.load %arg14[%161, %c0_112] : memref<2688x32xf32, #tpu.memory_space<vmem>>, vector<8x16xf32>
      tpu.vector_store %arg14[%161, %c0_112], %160 {strides = array<i32>} : memref<2688x32xf32, #tpu.memory_space<vmem>>, vector<8x16xf32>,
      %163 = vector.extract_strided_slice %157 {offsets = [0, 16], sizes = [8, 16], strides = [1, 1]} : vector<8x32xf32> to vector<8x16xf32>
      %164 = arith.index_cast %132 : i32 to index
      %c16_113 = arith.constant 16 : index
      %165 = vector.load %arg14[%164, %c16_113] : memref<2688x32xf32, #tpu.memory_space<vmem>>, vector<8x16xf32>
      tpu.vector_store %arg14[%164, %c16_113], %163 {strides = array<i32>} : memref<2688x32xf32, #tpu.memory_space<vmem>>, vector<8x16xf32>,
      %c8_i32_114 = arith.constant 8 : i32
      %166 = arith.muli %arg18, %c8_i32_114 : i32
      %c2_i32 = arith.constant 2 : i32
      %167 = arith.addi %166, %c2_i32 : i32
      %c8_i32_115 = arith.constant 8 : i32
      %168 = arith.muli %167, %c8_i32_115 : i32
      %169 = tpu.assume_multiple %168, 8 : i32
      %c335_i32_116 = arith.constant 335 : i32
      %170 = arith.subi %c335_i32_116, %167 : i32
      %c8_i32_117 = arith.constant 8 : i32
      %171 = arith.muli %170, %c8_i32_117 : i32
      %172 = tpu.assume_multiple %171, 8 : i32
      %173 = arith.index_cast %169 : i32 to index
      %c0_118 = arith.constant 0 : index
      %174 = vector.load %arg13[%173, %c0_118] : memref<2688x128xf32, #tpu.memory_space<vmem>>, vector<8x128xf32>
      %175 = arith.index_cast %172 : i32 to index
      %c0_119 = arith.constant 0 : index
      %176 = vector.load %arg13[%175, %c0_119] : memref<2688x128xf32, #tpu.memory_space<vmem>>, vector<8x128xf32>
      %177 = arith.select %18, %174, %176 : vector<8x128xi1>, vector<8x128xf32>
      %c0_120 = arith.constant 0 : index
      %c0_121 = arith.constant 0 : index
      %178 = vector.load %arg16[%c0_120, %c0_121] : memref<8x32xf32, #tpu.memory_space<vmem>>, vector<8x32xf32>
      %179 = arith.truncf %178 : vector<8x32xf32> to vector<8x32xbf16>
      %cst_122 = arith.constant dense<0.000000e+00> : vector<8x128xf32>
      %180 = tpu.matmul %179, %39, %cst_122 {dimension_numbers = #tpu.dot_dimension_numbers<[1], [0], [0], [1], [0, 0, 1, 1], [], []>} : vector<8x32xbf16>, vector<32x128xbf16>, vector<8x128xf32> -> vector<8x128xf32>
      %181 = arith.addf %177, %180 : vector<8x128xf32>
      %182 = arith.negf %181 : vector<8x128xf32>
      %183 = math.exp %182 : vector<8x128xf32>
      %cst_123 = arith.constant 1.000000e+00 : f32
      %184 = vector.broadcast %cst_123 : f32 to vector<8x128xf32>
      %185 = arith.addf %184, %183 : vector<8x128xf32>
      %186 = arith.divf %184, %185 : vector<8x128xf32>
      %187 = math.tanh %181 : vector<8x128xf32>
      %188 = vector.extract_strided_slice %186 {offsets = [0, 0], sizes = [8, 32], strides = [1, 1]} : vector<8x128xf32> to vector<8x32xf32>
      %189 = vector.extract_strided_slice %186 {offsets = [0, 32], sizes = [8, 32], strides = [1, 1]} : vector<8x128xf32> to vector<8x32xf32>
      %190 = vector.extract_strided_slice %187 {offsets = [0, 64], sizes = [8, 32], strides = [1, 1]} : vector<8x128xf32> to vector<8x32xf32>
      %191 = vector.extract_strided_slice %186 {offsets = [0, 96], sizes = [8, 32], strides = [1, 1]} : vector<8x128xf32> to vector<8x32xf32>
      %c0_124 = arith.constant 0 : index
      %c0_125 = arith.constant 0 : index
      %192 = vector.load %arg17[%c0_124, %c0_125] : memref<8x32xf32, #tpu.memory_space<vmem>>, vector<8x32xf32>
      %193 = arith.mulf %189, %192 : vector<8x32xf32>
      %194 = arith.mulf %188, %190 : vector<8x32xf32>
      %195 = arith.addf %193, %194 : vector<8x32xf32>
      %196 = math.tanh %195 : vector<8x32xf32>
      %197 = arith.mulf %191, %196 : vector<8x32xf32>
      %c0_126 = arith.constant 0 : index
      %c0_127 = arith.constant 0 : index
      %198 = vector.load %arg17[%c0_126, %c0_127] : memref<8x32xf32, #tpu.memory_space<vmem>>, vector<8x32xf32>
      tpu.vector_store %arg17[%c0_126, %c0_127], %195 {strides = array<i32>} : memref<8x32xf32, #tpu.memory_space<vmem>>, vector<8x32xf32>,
      %c0_128 = arith.constant 0 : index
      %c0_129 = arith.constant 0 : index
      %199 = vector.load %arg16[%c0_128, %c0_129] : memref<8x32xf32, #tpu.memory_space<vmem>>, vector<8x32xf32>
      tpu.vector_store %arg16[%c0_128, %c0_129], %197 {strides = array<i32>} : memref<8x32xf32, #tpu.memory_space<vmem>>, vector<8x32xf32>,
      %200 = vector.extract_strided_slice %197 {offsets = [0, 0], sizes = [8, 16], strides = [1, 1]} : vector<8x32xf32> to vector<8x16xf32>
      %201 = arith.index_cast %169 : i32 to index
      %c0_130 = arith.constant 0 : index
      %202 = vector.load %arg14[%201, %c0_130] : memref<2688x32xf32, #tpu.memory_space<vmem>>, vector<8x16xf32>
      tpu.vector_store %arg14[%201, %c0_130], %200 {strides = array<i32>} : memref<2688x32xf32, #tpu.memory_space<vmem>>, vector<8x16xf32>,
      %203 = vector.extract_strided_slice %197 {offsets = [0, 16], sizes = [8, 16], strides = [1, 1]} : vector<8x32xf32> to vector<8x16xf32>
      %204 = arith.index_cast %172 : i32 to index
      %c16_131 = arith.constant 16 : index
      %205 = vector.load %arg14[%204, %c16_131] : memref<2688x32xf32, #tpu.memory_space<vmem>>, vector<8x16xf32>
      tpu.vector_store %arg14[%204, %c16_131], %203 {strides = array<i32>} : memref<2688x32xf32, #tpu.memory_space<vmem>>, vector<8x16xf32>,
      %c8_i32_132 = arith.constant 8 : i32
      %206 = arith.muli %arg18, %c8_i32_132 : i32
      %c3_i32 = arith.constant 3 : i32
      %207 = arith.addi %206, %c3_i32 : i32
      %c8_i32_133 = arith.constant 8 : i32
      %208 = arith.muli %207, %c8_i32_133 : i32
      %209 = tpu.assume_multiple %208, 8 : i32
      %c335_i32_134 = arith.constant 335 : i32
      %210 = arith.subi %c335_i32_134, %207 : i32
      %c8_i32_135 = arith.constant 8 : i32
      %211 = arith.muli %210, %c8_i32_135 : i32
      %212 = tpu.assume_multiple %211, 8 : i32
      %213 = arith.index_cast %209 : i32 to index
      %c0_136 = arith.constant 0 : index
      %214 = vector.load %arg13[%213, %c0_136] : memref<2688x128xf32, #tpu.memory_space<vmem>>, vector<8x128xf32>
      %215 = arith.index_cast %212 : i32 to index
      %c0_137 = arith.constant 0 : index
      %216 = vector.load %arg13[%215, %c0_137] : memref<2688x128xf32, #tpu.memory_space<vmem>>, vector<8x128xf32>
      %217 = arith.select %18, %214, %216 : vector<8x128xi1>, vector<8x128xf32>
      %c0_138 = arith.constant 0 : index
      %c0_139 = arith.constant 0 : index
      %218 = vector.load %arg16[%c0_138, %c0_139] : memref<8x32xf32, #tpu.memory_space<vmem>>, vector<8x32xf32>
      %219 = arith.truncf %218 : vector<8x32xf32> to vector<8x32xbf16>
      %cst_140 = arith.constant dense<0.000000e+00> : vector<8x128xf32>
      %220 = tpu.matmul %219, %39, %cst_140 {dimension_numbers = #tpu.dot_dimension_numbers<[1], [0], [0], [1], [0, 0, 1, 1], [], []>} : vector<8x32xbf16>, vector<32x128xbf16>, vector<8x128xf32> -> vector<8x128xf32>
      %221 = arith.addf %217, %220 : vector<8x128xf32>
      %222 = arith.negf %221 : vector<8x128xf32>
      %223 = math.exp %222 : vector<8x128xf32>
      %cst_141 = arith.constant 1.000000e+00 : f32
      %224 = vector.broadcast %cst_141 : f32 to vector<8x128xf32>
      %225 = arith.addf %224, %223 : vector<8x128xf32>
      %226 = arith.divf %224, %225 : vector<8x128xf32>
      %227 = math.tanh %221 : vector<8x128xf32>
      %228 = vector.extract_strided_slice %226 {offsets = [0, 0], sizes = [8, 32], strides = [1, 1]} : vector<8x128xf32> to vector<8x32xf32>
      %229 = vector.extract_strided_slice %226 {offsets = [0, 32], sizes = [8, 32], strides = [1, 1]} : vector<8x128xf32> to vector<8x32xf32>
      %230 = vector.extract_strided_slice %227 {offsets = [0, 64], sizes = [8, 32], strides = [1, 1]} : vector<8x128xf32> to vector<8x32xf32>
      %231 = vector.extract_strided_slice %226 {offsets = [0, 96], sizes = [8, 32], strides = [1, 1]} : vector<8x128xf32> to vector<8x32xf32>
      %c0_142 = arith.constant 0 : index
      %c0_143 = arith.constant 0 : index
      %232 = vector.load %arg17[%c0_142, %c0_143] : memref<8x32xf32, #tpu.memory_space<vmem>>, vector<8x32xf32>
      %233 = arith.mulf %229, %232 : vector<8x32xf32>
      %234 = arith.mulf %228, %230 : vector<8x32xf32>
      %235 = arith.addf %233, %234 : vector<8x32xf32>
      %236 = math.tanh %235 : vector<8x32xf32>
      %237 = arith.mulf %231, %236 : vector<8x32xf32>
      %c0_144 = arith.constant 0 : index
      %c0_145 = arith.constant 0 : index
      %238 = vector.load %arg17[%c0_144, %c0_145] : memref<8x32xf32, #tpu.memory_space<vmem>>, vector<8x32xf32>
      tpu.vector_store %arg17[%c0_144, %c0_145], %235 {strides = array<i32>} : memref<8x32xf32, #tpu.memory_space<vmem>>, vector<8x32xf32>,
      %c0_146 = arith.constant 0 : index
      %c0_147 = arith.constant 0 : index
      %239 = vector.load %arg16[%c0_146, %c0_147] : memref<8x32xf32, #tpu.memory_space<vmem>>, vector<8x32xf32>
      tpu.vector_store %arg16[%c0_146, %c0_147], %237 {strides = array<i32>} : memref<8x32xf32, #tpu.memory_space<vmem>>, vector<8x32xf32>,
      %240 = vector.extract_strided_slice %237 {offsets = [0, 0], sizes = [8, 16], strides = [1, 1]} : vector<8x32xf32> to vector<8x16xf32>
      %241 = arith.index_cast %209 : i32 to index
      %c0_148 = arith.constant 0 : index
      %242 = vector.load %arg14[%241, %c0_148] : memref<2688x32xf32, #tpu.memory_space<vmem>>, vector<8x16xf32>
      tpu.vector_store %arg14[%241, %c0_148], %240 {strides = array<i32>} : memref<2688x32xf32, #tpu.memory_space<vmem>>, vector<8x16xf32>,
      %243 = vector.extract_strided_slice %237 {offsets = [0, 16], sizes = [8, 16], strides = [1, 1]} : vector<8x32xf32> to vector<8x16xf32>
      %244 = arith.index_cast %212 : i32 to index
      %c16_149 = arith.constant 16 : index
      %245 = vector.load %arg14[%244, %c16_149] : memref<2688x32xf32, #tpu.memory_space<vmem>>, vector<8x16xf32>
      tpu.vector_store %arg14[%244, %c16_149], %243 {strides = array<i32>} : memref<2688x32xf32, #tpu.memory_space<vmem>>, vector<8x16xf32>,
      %c8_i32_150 = arith.constant 8 : i32
      %246 = arith.muli %arg18, %c8_i32_150 : i32
      %c4_i32 = arith.constant 4 : i32
      %247 = arith.addi %246, %c4_i32 : i32
      %c8_i32_151 = arith.constant 8 : i32
      %248 = arith.muli %247, %c8_i32_151 : i32
      %249 = tpu.assume_multiple %248, 8 : i32
      %c335_i32_152 = arith.constant 335 : i32
      %250 = arith.subi %c335_i32_152, %247 : i32
      %c8_i32_153 = arith.constant 8 : i32
      %251 = arith.muli %250, %c8_i32_153 : i32
      %252 = tpu.assume_multiple %251, 8 : i32
      %253 = arith.index_cast %249 : i32 to index
      %c0_154 = arith.constant 0 : index
      %254 = vector.load %arg13[%253, %c0_154] : memref<2688x128xf32, #tpu.memory_space<vmem>>, vector<8x128xf32>
      %255 = arith.index_cast %252 : i32 to index
      %c0_155 = arith.constant 0 : index
      %256 = vector.load %arg13[%255, %c0_155] : memref<2688x128xf32, #tpu.memory_space<vmem>>, vector<8x128xf32>
      %257 = arith.select %18, %254, %256 : vector<8x128xi1>, vector<8x128xf32>
      %c0_156 = arith.constant 0 : index
      %c0_157 = arith.constant 0 : index
      %258 = vector.load %arg16[%c0_156, %c0_157] : memref<8x32xf32, #tpu.memory_space<vmem>>, vector<8x32xf32>
      %259 = arith.truncf %258 : vector<8x32xf32> to vector<8x32xbf16>
      %cst_158 = arith.constant dense<0.000000e+00> : vector<8x128xf32>
      %260 = tpu.matmul %259, %39, %cst_158 {dimension_numbers = #tpu.dot_dimension_numbers<[1], [0], [0], [1], [0, 0, 1, 1], [], []>} : vector<8x32xbf16>, vector<32x128xbf16>, vector<8x128xf32> -> vector<8x128xf32>
      %261 = arith.addf %257, %260 : vector<8x128xf32>
      %262 = arith.negf %261 : vector<8x128xf32>
      %263 = math.exp %262 : vector<8x128xf32>
      %cst_159 = arith.constant 1.000000e+00 : f32
      %264 = vector.broadcast %cst_159 : f32 to vector<8x128xf32>
      %265 = arith.addf %264, %263 : vector<8x128xf32>
      %266 = arith.divf %264, %265 : vector<8x128xf32>
      %267 = math.tanh %261 : vector<8x128xf32>
      %268 = vector.extract_strided_slice %266 {offsets = [0, 0], sizes = [8, 32], strides = [1, 1]} : vector<8x128xf32> to vector<8x32xf32>
      %269 = vector.extract_strided_slice %266 {offsets = [0, 32], sizes = [8, 32], strides = [1, 1]} : vector<8x128xf32> to vector<8x32xf32>
      %270 = vector.extract_strided_slice %267 {offsets = [0, 64], sizes = [8, 32], strides = [1, 1]} : vector<8x128xf32> to vector<8x32xf32>
      %271 = vector.extract_strided_slice %266 {offsets = [0, 96], sizes = [8, 32], strides = [1, 1]} : vector<8x128xf32> to vector<8x32xf32>
      %c0_160 = arith.constant 0 : index
      %c0_161 = arith.constant 0 : index
      %272 = vector.load %arg17[%c0_160, %c0_161] : memref<8x32xf32, #tpu.memory_space<vmem>>, vector<8x32xf32>
      %273 = arith.mulf %269, %272 : vector<8x32xf32>
      %274 = arith.mulf %268, %270 : vector<8x32xf32>
      %275 = arith.addf %273, %274 : vector<8x32xf32>
      %276 = math.tanh %275 : vector<8x32xf32>
      %277 = arith.mulf %271, %276 : vector<8x32xf32>
      %c0_162 = arith.constant 0 : index
      %c0_163 = arith.constant 0 : index
      %278 = vector.load %arg17[%c0_162, %c0_163] : memref<8x32xf32, #tpu.memory_space<vmem>>, vector<8x32xf32>
      tpu.vector_store %arg17[%c0_162, %c0_163], %275 {strides = array<i32>} : memref<8x32xf32, #tpu.memory_space<vmem>>, vector<8x32xf32>,
      %c0_164 = arith.constant 0 : index
      %c0_165 = arith.constant 0 : index
      %279 = vector.load %arg16[%c0_164, %c0_165] : memref<8x32xf32, #tpu.memory_space<vmem>>, vector<8x32xf32>
      tpu.vector_store %arg16[%c0_164, %c0_165], %277 {strides = array<i32>} : memref<8x32xf32, #tpu.memory_space<vmem>>, vector<8x32xf32>,
      %280 = vector.extract_strided_slice %277 {offsets = [0, 0], sizes = [8, 16], strides = [1, 1]} : vector<8x32xf32> to vector<8x16xf32>
      %281 = arith.index_cast %249 : i32 to index
      %c0_166 = arith.constant 0 : index
      %282 = vector.load %arg14[%281, %c0_166] : memref<2688x32xf32, #tpu.memory_space<vmem>>, vector<8x16xf32>
      tpu.vector_store %arg14[%281, %c0_166], %280 {strides = array<i32>} : memref<2688x32xf32, #tpu.memory_space<vmem>>, vector<8x16xf32>,
      %283 = vector.extract_strided_slice %277 {offsets = [0, 16], sizes = [8, 16], strides = [1, 1]} : vector<8x32xf32> to vector<8x16xf32>
      %284 = arith.index_cast %252 : i32 to index
      %c16_167 = arith.constant 16 : index
      %285 = vector.load %arg14[%284, %c16_167] : memref<2688x32xf32, #tpu.memory_space<vmem>>, vector<8x16xf32>
      tpu.vector_store %arg14[%284, %c16_167], %283 {strides = array<i32>} : memref<2688x32xf32, #tpu.memory_space<vmem>>, vector<8x16xf32>,
      %c8_i32_168 = arith.constant 8 : i32
      %286 = arith.muli %arg18, %c8_i32_168 : i32
      %c5_i32 = arith.constant 5 : i32
      %287 = arith.addi %286, %c5_i32 : i32
      %c8_i32_169 = arith.constant 8 : i32
      %288 = arith.muli %287, %c8_i32_169 : i32
      %289 = tpu.assume_multiple %288, 8 : i32
      %c335_i32_170 = arith.constant 335 : i32
      %290 = arith.subi %c335_i32_170, %287 : i32
      %c8_i32_171 = arith.constant 8 : i32
      %291 = arith.muli %290, %c8_i32_171 : i32
      %292 = tpu.assume_multiple %291, 8 : i32
      %293 = arith.index_cast %289 : i32 to index
      %c0_172 = arith.constant 0 : index
      %294 = vector.load %arg13[%293, %c0_172] : memref<2688x128xf32, #tpu.memory_space<vmem>>, vector<8x128xf32>
      %295 = arith.index_cast %292 : i32 to index
      %c0_173 = arith.constant 0 : index
      %296 = vector.load %arg13[%295, %c0_173] : memref<2688x128xf32, #tpu.memory_space<vmem>>, vector<8x128xf32>
      %297 = arith.select %18, %294, %296 : vector<8x128xi1>, vector<8x128xf32>
      %c0_174 = arith.constant 0 : index
      %c0_175 = arith.constant 0 : index
      %298 = vector.load %arg16[%c0_174, %c0_175] : memref<8x32xf32, #tpu.memory_space<vmem>>, vector<8x32xf32>
      %299 = arith.truncf %298 : vector<8x32xf32> to vector<8x32xbf16>
      %cst_176 = arith.constant dense<0.000000e+00> : vector<8x128xf32>
      %300 = tpu.matmul %299, %39, %cst_176 {dimension_numbers = #tpu.dot_dimension_numbers<[1], [0], [0], [1], [0, 0, 1, 1], [], []>} : vector<8x32xbf16>, vector<32x128xbf16>, vector<8x128xf32> -> vector<8x128xf32>
      %301 = arith.addf %297, %300 : vector<8x128xf32>
      %302 = arith.negf %301 : vector<8x128xf32>
      %303 = math.exp %302 : vector<8x128xf32>
      %cst_177 = arith.constant 1.000000e+00 : f32
      %304 = vector.broadcast %cst_177 : f32 to vector<8x128xf32>
      %305 = arith.addf %304, %303 : vector<8x128xf32>
      %306 = arith.divf %304, %305 : vector<8x128xf32>
      %307 = math.tanh %301 : vector<8x128xf32>
      %308 = vector.extract_strided_slice %306 {offsets = [0, 0], sizes = [8, 32], strides = [1, 1]} : vector<8x128xf32> to vector<8x32xf32>
      %309 = vector.extract_strided_slice %306 {offsets = [0, 32], sizes = [8, 32], strides = [1, 1]} : vector<8x128xf32> to vector<8x32xf32>
      %310 = vector.extract_strided_slice %307 {offsets = [0, 64], sizes = [8, 32], strides = [1, 1]} : vector<8x128xf32> to vector<8x32xf32>
      %311 = vector.extract_strided_slice %306 {offsets = [0, 96], sizes = [8, 32], strides = [1, 1]} : vector<8x128xf32> to vector<8x32xf32>
      %c0_178 = arith.constant 0 : index
      %c0_179 = arith.constant 0 : index
      %312 = vector.load %arg17[%c0_178, %c0_179] : memref<8x32xf32, #tpu.memory_space<vmem>>, vector<8x32xf32>
      %313 = arith.mulf %309, %312 : vector<8x32xf32>
      %314 = arith.mulf %308, %310 : vector<8x32xf32>
      %315 = arith.addf %313, %314 : vector<8x32xf32>
      %316 = math.tanh %315 : vector<8x32xf32>
      %317 = arith.mulf %311, %316 : vector<8x32xf32>
      %c0_180 = arith.constant 0 : index
      %c0_181 = arith.constant 0 : index
      %318 = vector.load %arg17[%c0_180, %c0_181] : memref<8x32xf32, #tpu.memory_space<vmem>>, vector<8x32xf32>
      tpu.vector_store %arg17[%c0_180, %c0_181], %315 {strides = array<i32>} : memref<8x32xf32, #tpu.memory_space<vmem>>, vector<8x32xf32>,
      %c0_182 = arith.constant 0 : index
      %c0_183 = arith.constant 0 : index
      %319 = vector.load %arg16[%c0_182, %c0_183] : memref<8x32xf32, #tpu.memory_space<vmem>>, vector<8x32xf32>
      tpu.vector_store %arg16[%c0_182, %c0_183], %317 {strides = array<i32>} : memref<8x32xf32, #tpu.memory_space<vmem>>, vector<8x32xf32>,
      %320 = vector.extract_strided_slice %317 {offsets = [0, 0], sizes = [8, 16], strides = [1, 1]} : vector<8x32xf32> to vector<8x16xf32>
      %321 = arith.index_cast %289 : i32 to index
      %c0_184 = arith.constant 0 : index
      %322 = vector.load %arg14[%321, %c0_184] : memref<2688x32xf32, #tpu.memory_space<vmem>>, vector<8x16xf32>
      tpu.vector_store %arg14[%321, %c0_184], %320 {strides = array<i32>} : memref<2688x32xf32, #tpu.memory_space<vmem>>, vector<8x16xf32>,
      %323 = vector.extract_strided_slice %317 {offsets = [0, 16], sizes = [8, 16], strides = [1, 1]} : vector<8x32xf32> to vector<8x16xf32>
      %324 = arith.index_cast %292 : i32 to index
      %c16_185 = arith.constant 16 : index
      %325 = vector.load %arg14[%324, %c16_185] : memref<2688x32xf32, #tpu.memory_space<vmem>>, vector<8x16xf32>
      tpu.vector_store %arg14[%324, %c16_185], %323 {strides = array<i32>} : memref<2688x32xf32, #tpu.memory_space<vmem>>, vector<8x16xf32>,
      %c8_i32_186 = arith.constant 8 : i32
      %326 = arith.muli %arg18, %c8_i32_186 : i32
      %c6_i32 = arith.constant 6 : i32
      %327 = arith.addi %326, %c6_i32 : i32
      %c8_i32_187 = arith.constant 8 : i32
      %328 = arith.muli %327, %c8_i32_187 : i32
      %329 = tpu.assume_multiple %328, 8 : i32
      %c335_i32_188 = arith.constant 335 : i32
      %330 = arith.subi %c335_i32_188, %327 : i32
      %c8_i32_189 = arith.constant 8 : i32
      %331 = arith.muli %330, %c8_i32_189 : i32
      %332 = tpu.assume_multiple %331, 8 : i32
      %333 = arith.index_cast %329 : i32 to index
      %c0_190 = arith.constant 0 : index
      %334 = vector.load %arg13[%333, %c0_190] : memref<2688x128xf32, #tpu.memory_space<vmem>>, vector<8x128xf32>
      %335 = arith.index_cast %332 : i32 to index
      %c0_191 = arith.constant 0 : index
      %336 = vector.load %arg13[%335, %c0_191] : memref<2688x128xf32, #tpu.memory_space<vmem>>, vector<8x128xf32>
      %337 = arith.select %18, %334, %336 : vector<8x128xi1>, vector<8x128xf32>
      %c0_192 = arith.constant 0 : index
      %c0_193 = arith.constant 0 : index
      %338 = vector.load %arg16[%c0_192, %c0_193] : memref<8x32xf32, #tpu.memory_space<vmem>>, vector<8x32xf32>
      %339 = arith.truncf %338 : vector<8x32xf32> to vector<8x32xbf16>
      %cst_194 = arith.constant dense<0.000000e+00> : vector<8x128xf32>
      %340 = tpu.matmul %339, %39, %cst_194 {dimension_numbers = #tpu.dot_dimension_numbers<[1], [0], [0], [1], [0, 0, 1, 1], [], []>} : vector<8x32xbf16>, vector<32x128xbf16>, vector<8x128xf32> -> vector<8x128xf32>
      %341 = arith.addf %337, %340 : vector<8x128xf32>
      %342 = arith.negf %341 : vector<8x128xf32>
      %343 = math.exp %342 : vector<8x128xf32>
      %cst_195 = arith.constant 1.000000e+00 : f32
      %344 = vector.broadcast %cst_195 : f32 to vector<8x128xf32>
      %345 = arith.addf %344, %343 : vector<8x128xf32>
      %346 = arith.divf %344, %345 : vector<8x128xf32>
      %347 = math.tanh %341 : vector<8x128xf32>
      %348 = vector.extract_strided_slice %346 {offsets = [0, 0], sizes = [8, 32], strides = [1, 1]} : vector<8x128xf32> to vector<8x32xf32>
      %349 = vector.extract_strided_slice %346 {offsets = [0, 32], sizes = [8, 32], strides = [1, 1]} : vector<8x128xf32> to vector<8x32xf32>
      %350 = vector.extract_strided_slice %347 {offsets = [0, 64], sizes = [8, 32], strides = [1, 1]} : vector<8x128xf32> to vector<8x32xf32>
      %351 = vector.extract_strided_slice %346 {offsets = [0, 96], sizes = [8, 32], strides = [1, 1]} : vector<8x128xf32> to vector<8x32xf32>
      %c0_196 = arith.constant 0 : index
      %c0_197 = arith.constant 0 : index
      %352 = vector.load %arg17[%c0_196, %c0_197] : memref<8x32xf32, #tpu.memory_space<vmem>>, vector<8x32xf32>
      %353 = arith.mulf %349, %352 : vector<8x32xf32>
      %354 = arith.mulf %348, %350 : vector<8x32xf32>
      %355 = arith.addf %353, %354 : vector<8x32xf32>
      %356 = math.tanh %355 : vector<8x32xf32>
      %357 = arith.mulf %351, %356 : vector<8x32xf32>
      %c0_198 = arith.constant 0 : index
      %c0_199 = arith.constant 0 : index
      %358 = vector.load %arg17[%c0_198, %c0_199] : memref<8x32xf32, #tpu.memory_space<vmem>>, vector<8x32xf32>
      tpu.vector_store %arg17[%c0_198, %c0_199], %355 {strides = array<i32>} : memref<8x32xf32, #tpu.memory_space<vmem>>, vector<8x32xf32>,
      %c0_200 = arith.constant 0 : index
      %c0_201 = arith.constant 0 : index
      %359 = vector.load %arg16[%c0_200, %c0_201] : memref<8x32xf32, #tpu.memory_space<vmem>>, vector<8x32xf32>
      tpu.vector_store %arg16[%c0_200, %c0_201], %357 {strides = array<i32>} : memref<8x32xf32, #tpu.memory_space<vmem>>, vector<8x32xf32>,
      %360 = vector.extract_strided_slice %357 {offsets = [0, 0], sizes = [8, 16], strides = [1, 1]} : vector<8x32xf32> to vector<8x16xf32>
      %361 = arith.index_cast %329 : i32 to index
      %c0_202 = arith.constant 0 : index
      %362 = vector.load %arg14[%361, %c0_202] : memref<2688x32xf32, #tpu.memory_space<vmem>>, vector<8x16xf32>
      tpu.vector_store %arg14[%361, %c0_202], %360 {strides = array<i32>} : memref<2688x32xf32, #tpu.memory_space<vmem>>, vector<8x16xf32>,
      %363 = vector.extract_strided_slice %357 {offsets = [0, 16], sizes = [8, 16], strides = [1, 1]} : vector<8x32xf32> to vector<8x16xf32>
      %364 = arith.index_cast %332 : i32 to index
      %c16_203 = arith.constant 16 : index
      %365 = vector.load %arg14[%364, %c16_203] : memref<2688x32xf32, #tpu.memory_space<vmem>>, vector<8x16xf32>
      tpu.vector_store %arg14[%364, %c16_203], %363 {strides = array<i32>} : memref<2688x32xf32, #tpu.memory_space<vmem>>, vector<8x16xf32>,
      %c8_i32_204 = arith.constant 8 : i32
      %366 = arith.muli %arg18, %c8_i32_204 : i32
      %c7_i32 = arith.constant 7 : i32
      %367 = arith.addi %366, %c7_i32 : i32
      %c8_i32_205 = arith.constant 8 : i32
      %368 = arith.muli %367, %c8_i32_205 : i32
      %369 = tpu.assume_multiple %368, 8 : i32
      %c335_i32_206 = arith.constant 335 : i32
      %370 = arith.subi %c335_i32_206, %367 : i32
      %c8_i32_207 = arith.constant 8 : i32
      %371 = arith.muli %370, %c8_i32_207 : i32
      %372 = tpu.assume_multiple %371, 8 : i32
      %373 = arith.index_cast %369 : i32 to index
      %c0_208 = arith.constant 0 : index
      %374 = vector.load %arg13[%373, %c0_208] : memref<2688x128xf32, #tpu.memory_space<vmem>>, vector<8x128xf32>
      %375 = arith.index_cast %372 : i32 to index
      %c0_209 = arith.constant 0 : index
      %376 = vector.load %arg13[%375, %c0_209] : memref<2688x128xf32, #tpu.memory_space<vmem>>, vector<8x128xf32>
      %377 = arith.select %18, %374, %376 : vector<8x128xi1>, vector<8x128xf32>
      %c0_210 = arith.constant 0 : index
      %c0_211 = arith.constant 0 : index
      %378 = vector.load %arg16[%c0_210, %c0_211] : memref<8x32xf32, #tpu.memory_space<vmem>>, vector<8x32xf32>
      %379 = arith.truncf %378 : vector<8x32xf32> to vector<8x32xbf16>
      %cst_212 = arith.constant dense<0.000000e+00> : vector<8x128xf32>
      %380 = tpu.matmul %379, %39, %cst_212 {dimension_numbers = #tpu.dot_dimension_numbers<[1], [0], [0], [1], [0, 0, 1, 1], [], []>} : vector<8x32xbf16>, vector<32x128xbf16>, vector<8x128xf32> -> vector<8x128xf32>
      %381 = arith.addf %377, %380 : vector<8x128xf32>
      %382 = arith.negf %381 : vector<8x128xf32>
      %383 = math.exp %382 : vector<8x128xf32>
      %cst_213 = arith.constant 1.000000e+00 : f32
      %384 = vector.broadcast %cst_213 : f32 to vector<8x128xf32>
      %385 = arith.addf %384, %383 : vector<8x128xf32>
      %386 = arith.divf %384, %385 : vector<8x128xf32>
      %387 = math.tanh %381 : vector<8x128xf32>
      %388 = vector.extract_strided_slice %386 {offsets = [0, 0], sizes = [8, 32], strides = [1, 1]} : vector<8x128xf32> to vector<8x32xf32>
      %389 = vector.extract_strided_slice %386 {offsets = [0, 32], sizes = [8, 32], strides = [1, 1]} : vector<8x128xf32> to vector<8x32xf32>
      %390 = vector.extract_strided_slice %387 {offsets = [0, 64], sizes = [8, 32], strides = [1, 1]} : vector<8x128xf32> to vector<8x32xf32>
      %391 = vector.extract_strided_slice %386 {offsets = [0, 96], sizes = [8, 32], strides = [1, 1]} : vector<8x128xf32> to vector<8x32xf32>
      %c0_214 = arith.constant 0 : index
      %c0_215 = arith.constant 0 : index
      %392 = vector.load %arg17[%c0_214, %c0_215] : memref<8x32xf32, #tpu.memory_space<vmem>>, vector<8x32xf32>
      %393 = arith.mulf %389, %392 : vector<8x32xf32>
      %394 = arith.mulf %388, %390 : vector<8x32xf32>
      %395 = arith.addf %393, %394 : vector<8x32xf32>
      %396 = math.tanh %395 : vector<8x32xf32>
      %397 = arith.mulf %391, %396 : vector<8x32xf32>
      %c0_216 = arith.constant 0 : index
      %c0_217 = arith.constant 0 : index
      %398 = vector.load %arg17[%c0_216, %c0_217] : memref<8x32xf32, #tpu.memory_space<vmem>>, vector<8x32xf32>
      tpu.vector_store %arg17[%c0_216, %c0_217], %395 {strides = array<i32>} : memref<8x32xf32, #tpu.memory_space<vmem>>, vector<8x32xf32>,
      %c0_218 = arith.constant 0 : index
      %c0_219 = arith.constant 0 : index
      %399 = vector.load %arg16[%c0_218, %c0_219] : memref<8x32xf32, #tpu.memory_space<vmem>>, vector<8x32xf32>
      tpu.vector_store %arg16[%c0_218, %c0_219], %397 {strides = array<i32>} : memref<8x32xf32, #tpu.memory_space<vmem>>, vector<8x32xf32>,
      %400 = vector.extract_strided_slice %397 {offsets = [0, 0], sizes = [8, 16], strides = [1, 1]} : vector<8x32xf32> to vector<8x16xf32>
      %401 = arith.index_cast %369 : i32 to index
      %c0_220 = arith.constant 0 : index
      %402 = vector.load %arg14[%401, %c0_220] : memref<2688x32xf32, #tpu.memory_space<vmem>>, vector<8x16xf32>
      tpu.vector_store %arg14[%401, %c0_220], %400 {strides = array<i32>} : memref<2688x32xf32, #tpu.memory_space<vmem>>, vector<8x16xf32>,
      %403 = vector.extract_strided_slice %397 {offsets = [0, 16], sizes = [8, 16], strides = [1, 1]} : vector<8x32xf32> to vector<8x16xf32>
      %404 = arith.index_cast %372 : i32 to index
      %c16_221 = arith.constant 16 : index
      %405 = vector.load %arg14[%404, %c16_221] : memref<2688x32xf32, #tpu.memory_space<vmem>>, vector<8x16xf32>
      tpu.vector_store %arg14[%404, %c16_221], %403 {strides = array<i32>} : memref<2688x32xf32, #tpu.memory_space<vmem>>, vector<8x16xf32>,
    }
    %c42_i32_37 = arith.constant 42 : i32
    %c0_38 = arith.constant 0 : index
    %c0_39 = arith.constant 0 : index
    %41 = vector.load %arg14[%c0_38, %c0_39] : memref<2688x32xf32, #tpu.memory_space<vmem>>, vector<8x32xf32>
    %c0_40 = arith.constant 0 : index
    %c0_41 = arith.constant 0 : index
    %42 = vector.load %arg15[%c0_40, %c0_41] : memref<56x32xf32, #tpu.memory_space<vmem>>, vector<8x32xf32>
    tpu.vector_store %arg15[%c0_40, %c0_41], %41 {strides = array<i32>} : memref<56x32xf32, #tpu.memory_space<vmem>>, vector<8x32xf32>,
    %c384 = arith.constant 384 : index
    %c0_42 = arith.constant 0 : index
    %43 = vector.load %arg14[%c384, %c0_42] : memref<2688x32xf32, #tpu.memory_space<vmem>>, vector<8x32xf32>
    %c8 = arith.constant 8 : index
    %c0_43 = arith.constant 0 : index
    %44 = vector.load %arg15[%c8, %c0_43] : memref<56x32xf32, #tpu.memory_space<vmem>>, vector<8x32xf32>
    tpu.vector_store %arg15[%c8, %c0_43], %43 {strides = array<i32>} : memref<56x32xf32, #tpu.memory_space<vmem>>, vector<8x32xf32>,
    %c768 = arith.constant 768 : index
    %c0_44 = arith.constant 0 : index
    %45 = vector.load %arg14[%c768, %c0_44] : memref<2688x32xf32, #tpu.memory_space<vmem>>, vector<8x32xf32>
    %c16 = arith.constant 16 : index
    %c0_45 = arith.constant 0 : index
    %46 = vector.load %arg15[%c16, %c0_45] : memref<56x32xf32, #tpu.memory_space<vmem>>, vector<8x32xf32>
    tpu.vector_store %arg15[%c16, %c0_45], %45 {strides = array<i32>} : memref<56x32xf32, #tpu.memory_space<vmem>>, vector<8x32xf32>,
    %c1152 = arith.constant 1152 : index
    %c0_46 = arith.constant 0 : index
    %47 = vector.load %arg14[%c1152, %c0_46] : memref<2688x32xf32, #tpu.memory_space<vmem>>, vector<8x32xf32>
    %c24 = arith.constant 24 : index
    %c0_47 = arith.constant 0 : index
    %48 = vector.load %arg15[%c24, %c0_47] : memref<56x32xf32, #tpu.memory_space<vmem>>, vector<8x32xf32>
    tpu.vector_store %arg15[%c24, %c0_47], %47 {strides = array<i32>} : memref<56x32xf32, #tpu.memory_space<vmem>>, vector<8x32xf32>,
    %c1536 = arith.constant 1536 : index
    %c0_48 = arith.constant 0 : index
    %49 = vector.load %arg14[%c1536, %c0_48] : memref<2688x32xf32, #tpu.memory_space<vmem>>, vector<8x32xf32>
    %c32 = arith.constant 32 : index
    %c0_49 = arith.constant 0 : index
    %50 = vector.load %arg15[%c32, %c0_49] : memref<56x32xf32, #tpu.memory_space<vmem>>, vector<8x32xf32>
    tpu.vector_store %arg15[%c32, %c0_49], %49 {strides = array<i32>} : memref<56x32xf32, #tpu.memory_space<vmem>>, vector<8x32xf32>,
    %c1920 = arith.constant 1920 : index
    %c0_50 = arith.constant 0 : index
    %51 = vector.load %arg14[%c1920, %c0_50] : memref<2688x32xf32, #tpu.memory_space<vmem>>, vector<8x32xf32>
    %c40 = arith.constant 40 : index
    %c0_51 = arith.constant 0 : index
    %52 = vector.load %arg15[%c40, %c0_51] : memref<56x32xf32, #tpu.memory_space<vmem>>, vector<8x32xf32>
    tpu.vector_store %arg15[%c40, %c0_51], %51 {strides = array<i32>} : memref<56x32xf32, #tpu.memory_space<vmem>>, vector<8x32xf32>,
    %c2304 = arith.constant 2304 : index
    %c0_52 = arith.constant 0 : index
    %53 = vector.load %arg14[%c2304, %c0_52] : memref<2688x32xf32, #tpu.memory_space<vmem>>, vector<8x32xf32>
    %c48 = arith.constant 48 : index
    %c0_53 = arith.constant 0 : index
    %54 = vector.load %arg15[%c48, %c0_53] : memref<56x32xf32, #tpu.memory_space<vmem>>, vector<8x32xf32>
    tpu.vector_store %arg15[%c48, %c0_53], %53 {strides = array<i32>} : memref<56x32xf32, #tpu.memory_space<vmem>>, vector<8x32xf32>,
    %c0_54 = arith.constant 0 : index
    %c0_55 = arith.constant 0 : index
    %55 = vector.load %arg15[%c0_54, %c0_55] : memref<56x32xf32, #tpu.memory_space<vmem>>, vector<56x32xf32>
    %c0_56 = arith.constant 0 : index
    %c0_57 = arith.constant 0 : index
    %56 = vector.load %arg5[%c0_56, %c0_57] : memref<32x32xf32, #tpu.memory_space<vmem>>, vector<32x32xf32>
    %cst_58 = arith.constant dense<0.000000e+00> : vector<56x32xf32>
    %57 = tpu.matmul %55, %56, %cst_58 {dimension_numbers = #tpu.dot_dimension_numbers<[1], [0], [0], [1], [0, 0, 1, 1], [], []>} : vector<56x32xf32>, vector<32x32xf32>, vector<56x32xf32> -> vector<56x32xf32>
    %c0_59 = arith.constant 0 : index
    %c0_60 = arith.constant 0 : index
    %58 = vector.load %arg6[%c0_59, %c0_60] : memref<1x32xf32, #tpu.memory_space<vmem>>, vector<1x32xf32>
    %59 = vector.broadcast %58 : vector<1x32xf32> to vector<56x32xf32>
    %60 = arith.addf %57, %59 : vector<56x32xf32>
    %c0_61 = arith.constant 0 : index
    %c0_62 = arith.constant 0 : index
    %61 = vector.load %arg7[%c0_61, %c0_62] : memref<32x16xf32, #tpu.memory_space<vmem>>, vector<32x16xf32>
    %cst_63 = arith.constant dense<0.000000e+00> : vector<56x16xf32>
    %62 = tpu.matmul %60, %61, %cst_63 {dimension_numbers = #tpu.dot_dimension_numbers<[1], [0], [0], [1], [0, 0, 1, 1], [], []>} : vector<56x32xf32>, vector<32x16xf32>, vector<56x16xf32> -> vector<56x16xf32>
    %c0_64 = arith.constant 0 : index
    %c0_65 = arith.constant 0 : index
    %63 = vector.load %arg8[%c0_64, %c0_65] : memref<1x16xf32, #tpu.memory_space<vmem>>, vector<1x16xf32>
    %64 = vector.broadcast %63 : vector<1x16xf32> to vector<56x16xf32>
    %65 = arith.addf %62, %64 : vector<56x16xf32>
    %c0_66 = arith.constant 0 : index
    %c0_67 = arith.constant 0 : index
    %66 = vector.load %arg9[%c0_66, %c0_67] : memref<16x32xf32, #tpu.memory_space<vmem>>, vector<16x32xf32>
    %cst_68 = arith.constant dense<0.000000e+00> : vector<56x32xf32>
    %67 = tpu.matmul %65, %66, %cst_68 {dimension_numbers = #tpu.dot_dimension_numbers<[1], [0], [0], [1], [0, 0, 1, 1], [], []>} : vector<56x16xf32>, vector<16x32xf32>, vector<56x32xf32> -> vector<56x32xf32>
    %c0_69 = arith.constant 0 : index
    %c0_70 = arith.constant 0 : index
    %68 = vector.load %arg10[%c0_69, %c0_70] : memref<1x32xf32, #tpu.memory_space<vmem>>, vector<1x32xf32>
    %69 = vector.broadcast %68 : vector<1x32xf32> to vector<56x32xf32>
    %70 = arith.addf %67, %69 : vector<56x32xf32>
    %cst_71 = arith.constant 0.000000e+00 : f32
    %71 = vector.broadcast %cst_71 : f32 to vector<56x32xf32>
    %72 = arith.maximumf %70, %71 : vector<56x32xf32>
    %73 = vector.extract_strided_slice %72 {offsets = [0, 0], sizes = [8, 32], strides = [1, 1]} : vector<56x32xf32> to vector<8x32xf32>
    %74 = vector.extract_strided_slice %72 {offsets = [8, 0], sizes = [8, 32], strides = [1, 1]} : vector<56x32xf32> to vector<8x32xf32>
    %75 = vector.extract_strided_slice %72 {offsets = [16, 0], sizes = [8, 32], strides = [1, 1]} : vector<56x32xf32> to vector<8x32xf32>
    %76 = vector.extract_strided_slice %72 {offsets = [24, 0], sizes = [8, 32], strides = [1, 1]} : vector<56x32xf32> to vector<8x32xf32>
    %77 = vector.extract_strided_slice %72 {offsets = [32, 0], sizes = [8, 32], strides = [1, 1]} : vector<56x32xf32> to vector<8x32xf32>
    %78 = vector.extract_strided_slice %72 {offsets = [40, 0], sizes = [8, 32], strides = [1, 1]} : vector<56x32xf32> to vector<8x32xf32>
    %79 = vector.extract_strided_slice %72 {offsets = [48, 0], sizes = [8, 32], strides = [1, 1]} : vector<56x32xf32> to vector<8x32xf32>
    %80 = tpu.concatenate %73, %74, %75, %76, %77, %78, %79 in 1 : vector<8x32xf32>, vector<8x32xf32>, vector<8x32xf32>, vector<8x32xf32>, vector<8x32xf32>, vector<8x32xf32>, vector<8x32xf32> -> vector<8x224xf32>
    %c0_72 = arith.constant 0 : index
    %c0_73 = arith.constant 0 : index
    %81 = vector.load %arg11[%c0_72, %c0_73] : memref<224x32xf32, #tpu.memory_space<vmem>>, vector<224x32xf32>
    %cst_74 = arith.constant dense<0.000000e+00> : vector<8x32xf32>
    %82 = tpu.matmul %80, %81, %cst_74 {dimension_numbers = #tpu.dot_dimension_numbers<[1], [0], [0], [1], [0, 0, 1, 1], [], []>} : vector<8x224xf32>, vector<224x32xf32>, vector<8x32xf32> -> vector<8x32xf32>
    %cst_75 = arith.constant 0.000000e+00 : f32
    %83 = vector.broadcast %cst_75 : f32 to vector<8x32xf32>
    %84 = arith.maximumf %82, %83 : vector<8x32xf32>
    %c0_76 = arith.constant 0 : index
    %c0_77 = arith.constant 0 : index
    %85 = vector.load %arg12[%c0_76, %c0_77] : memref<8x32xf32, #tpu.memory_space<vmem>>, vector<8x32xf32>
    tpu.vector_store %arg12[%c0_76, %c0_77], %84 {strides = array<i32>} : memref<8x32xf32, #tpu.memory_space<vmem>>, vector<8x32xf32>,
    return
  }
}

</mosaic_0001>

<llo_original>
// kernel: bilstm2_forward.1
$region0: #{bilstm2_forward.1}
  #allocation0 [shape = 'u32[]', space=smem, size = 0x4, offset = 0x4, fixed_abs, tag = 'smem constant byte address 0x4 - core index']
  #allocation1 [shape = 'u32[144,128]{1,0:T(1,128)}', space=vmem, size = 0x12000, scoped, tag = 'internal scratch']
  #allocation2 [shape = 'f32[2688,128]{1,0:T(8,128)}', space=vmem, size = 0x150000, scoped, tag = 'scratch operand']
  #allocation3 [shape = 'f32[2688,32]{1,0:T(8,128)}', space=vmem, size = 0x150000, scoped, tag = 'scratch operand']
  #allocation4 [shape = 'f32[56,32]{1,0:T(8,128)}', space=vmem, size = 0x7000, scoped, tag = 'scratch operand']
  #allocation5 [shape = 'f32[8,32]{1,0:T(8,128)}', space=vmem, size = 0x1000, scoped, tag = 'scratch operand']
  #allocation6 [shape = 'f32[8,32]{1,0:T(8,128)}', space=vmem, size = 0x1000, scoped, tag = 'scratch operand']
  %s0 = inlined_call_operand.vmem [shape: f32[2688,8], index: 0, kind: input, shape index: {}]
  %s1 = inlined_call_operand.vmem [shape: bf16[8,128], index: 1, kind: input, shape index: {}]
  %s2 = inlined_call_operand.vmem [shape: bf16[32,128], index: 2, kind: input, shape index: {}]
  %s3 = inlined_call_operand.vmem [shape: bf16[32,128], index: 3, kind: input, shape index: {}]
  %s4 = inlined_call_operand.vmem [shape: bf16[32,128], index: 4, kind: input, shape index: {}]
  %s5 = inlined_call_operand.vmem [shape: f32[32,32], index: 5, kind: input, shape index: {}]
  %s6 = inlined_call_operand.vmem [shape: f32[1,32], index: 6, kind: input, shape index: {}]
  %s7 = inlined_call_operand.vmem [shape: f32[32,16], index: 7, kind: input, shape index: {}]
  %s8 = inlined_call_operand.vmem [shape: f32[1,16], index: 8, kind: input, shape index: {}]
  %s9 = inlined_call_operand.vmem [shape: f32[16,32], index: 9, kind: input, shape index: {}]
  %s10 = inlined_call_operand.vmem [shape: f32[1,32], index: 10, kind: input, shape index: {}]
  %s11 = inlined_call_operand.vmem [shape: f32[224,32], index: 11, kind: input, shape index: {}]
  %s12 = inlined_call_operand.vmem [shape: f32[8,32], index: 12, kind: output, shape index: {}]
  %s13 = sld [smem:[#allocation0]]
  $region72: #{bilstm2_forward.1} parent=0
    _
  %s15 = ssub.s32 1, %s13
  %s16 = scalar_select 0, %s15, %s13
  // Predicated region
  $region2: #{bilstm2_forward.1} parent=0 // pred_check
    _
  $region3: #{bilstm2_forward.1} parent=0 // pred_check_branch
    %18 = sbr.rel (0) target = $region5
  $region4: #{bilstm2_forward.1} parent=0 // pred_region
    _
  $region5: #{bilstm2_forward.1} parent=0 // pred_fallthru
    _
  // Predicated region
  $region6: #{bilstm2_forward.1} parent=0 // pred_check
    _
  $region7: #{bilstm2_forward.1} parent=0 // pred_check_branch
    %20 = sbr.rel (0) target = $region9
  $region8: #{bilstm2_forward.1} parent=0 // pred_region
    _
  $region9: #{bilstm2_forward.1} parent=0 // pred_fallthru
    _
  // Predicated region
  $region10: #{bilstm2_forward.1} parent=0 // pred_check
    _
  $region11: #{bilstm2_forward.1} parent=0 // pred_check_branch
    %22 = sbr.rel (0) target = $region13
  $region12: #{bilstm2_forward.1} parent=0 // pred_region
    _
  $region13: #{bilstm2_forward.1} parent=0 // pred_fallthru
    _
  // Predicated region
  $region14: #{bilstm2_forward.1} parent=0 // pred_check
    _
  $region15: #{bilstm2_forward.1} parent=0 // pred_check_branch
    %24 = sbr.rel (0) target = $region17
  $region16: #{bilstm2_forward.1} parent=0 // pred_region
    _
  $region17: #{bilstm2_forward.1} parent=0 // pred_fallthru
    _
  // Predicated region
  $region18: #{bilstm2_forward.1} parent=0 // pred_check
    _
  $region19: #{bilstm2_forward.1} parent=0 // pred_check_branch
    %26 = sbr.rel (0) target = $region21
  $region20: #{bilstm2_forward.1} parent=0 // pred_region
    _
  $region21: #{bilstm2_forward.1} parent=0 // pred_fallthru
    _
  // Predicated region
  $region22: #{bilstm2_forward.1} parent=0 // pred_check
    _
  $region23: #{bilstm2_forward.1} parent=0 // pred_check_branch
    %28 = sbr.rel (0) target = $region25
  $region24: #{bilstm2_forward.1} parent=0 // pred_region
    _
  $region25: #{bilstm2_forward.1} parent=0 // pred_fallthru
    _
  // Predicated region
  $region26: #{bilstm2_forward.1} parent=0 // pred_check
    _
  $region27: #{bilstm2_forward.1} parent=0 // pred_check_branch
    %30 = sbr.rel (0) target = $region29
  $region28: #{bilstm2_forward.1} parent=0 // pred_region
    _
  $region29: #{bilstm2_forward.1} parent=0 // pred_fallthru
    _
  // Predicated region
  $region30: #{bilstm2_forward.1} parent=0 // pred_check
    _
  $region31: #{bilstm2_forward.1} parent=0 // pred_check_branch
    %32 = sbr.rel (0) target = $region33
  $region32: #{bilstm2_forward.1} parent=0 // pred_region
    _
  $region33: #{bilstm2_forward.1} parent=0 // pred_fallthru
    _
  // Predicated region
  $region34: #{bilstm2_forward.1} parent=0 // pred_check
    _
  $region35: #{bilstm2_forward.1} parent=0 // pred_check_branch
    %34 = sbr.rel (0) target = $region37
  $region36: #{bilstm2_forward.1} parent=0 // pred_region
    _
  $region37: #{bilstm2_forward.1} parent=0 // pred_fallthru
    _
  // Predicated region
  $region38: #{bilstm2_forward.1} parent=0 // pred_check
    _
  $region39: #{bilstm2_forward.1} parent=0 // pred_check_branch
    %36 = sbr.rel (0) target = $region41
  $region40: #{bilstm2_forward.1} parent=0 // pred_region
    _
  $region41: #{bilstm2_forward.1} parent=0 // pred_fallthru
    _
  // Predicated region
  $region42: #{bilstm2_forward.1} parent=0 // pred_check
    _
  $region43: #{bilstm2_forward.1} parent=0 // pred_check_branch
    %38 = sbr.rel (0) target = $region45
  $region44: #{bilstm2_forward.1} parent=0 // pred_region
    _
  $region45: #{bilstm2_forward.1} parent=0 // pred_fallthru
    _
  // Predicated region
  $region46: #{bilstm2_forward.1} parent=0 // pred_check
    _
  $region47: #{bilstm2_forward.1} parent=0 // pred_check_branch
    %40 = sbr.rel (0) target = $region49
  $region48: #{bilstm2_forward.1} parent=0 // pred_region
    _
  $region49: #{bilstm2_forward.1} parent=0 // pred_fallthru
    _
  %v42 = vlaneseq
  %v43 = vand.u32 %v42, 127
  %vm44 = vcmp.lt.s32.totalorder %v43, 0
  %v45 = vsub.s32 0, %v43
  %v46 = vsel %vm44, %v45, %v43
  %v47 = vshrl.u32 %v46, 5
  %v48 = vand.u32 %v46, 31
  %v49 = vsub.s32 0, %v48
  %v50 = vsel %vm44, %v49, %v48
  %vm51 = vcmp.ne.s32.totalorder %v50, 0
  %vm52 = vcmp.lt.s32.totalorder %v50, 0
  %vm53 = vmand %vm52, %vm51
  %v54 = vadd.s32 %v50, 32
  %v55 = vsel %vm53, %v54, %v50
  %vm56 = vcmp.lt.s32.totalorder %v55, 16
  %v57 = vld [vmem:[%s0] sm:$0xff]
  %v58 = vld [vmem:[%s0 + $0x8] sm:$0xff]
  %v59 = vld [vmem:[%s0 + $0x10] sm:$0xff]
  %v60 = vld [vmem:[%s0 + $0x18] sm:$0xff]
  %v61 = vld [vmem:[%s0 + $0x20] sm:$0xff]
  %v62 = vld [vmem:[%s0 + $0x28] sm:$0xff]
  %v63 = vld [vmem:[%s0 + $0x30] sm:$0xff]
  %v64 = vld [vmem:[%s0 + $0x38] sm:$0xff]
  %v65 = vld [vmem:[%s0 + $0x40] sm:$0xff]
  %v66 = vld [vmem:[%s0 + $0x48] sm:$0xff]
  %v67 = vld [vmem:[%s0 + $0x50] sm:$0xff]
  %v68 = vld [vmem:[%s0 + $0x58] sm:$0xff]
  %v69 = vld [vmem:[%s0 + $0x60] sm:$0xff]
  %v70 = vld [vmem:[%s0 + $0x68] sm:$0xff]
  %v71 = vld [vmem:[%s0 + $0x70] sm:$0xff]
  %v72 = vld [vmem:[%s0 + $0x78] sm:$0xff]
  %v73 = vld [vmem:[%s0 + $0x80] sm:$0xff]
  %v74 = vld [vmem:[%s0 + $0x88] sm:$0xff]
  %v75 = vld [vmem:[%s0 + $0x90] sm:$0xff]
  %v76 = vld [vmem:[%s0 + $0x98] sm:$0xff]
  %v77 = vld [vmem:[%s0 + $0xa0] sm:$0xff]
  %v78 = vld [vmem:[%s0 + $0xa8] sm:$0xff]
  %v79 = vld [vmem:[%s0 + $0xb0] sm:$0xff]
  %v80 = vld [vmem:[%s0 + $0xb8] sm:$0xff]
  %v81 = vld [vmem:[%s0 + $0xc0] sm:$0xff]
  %v82 = vld [vmem:[%s0 + $0xc8] sm:$0xff]
  %v83 = vld [vmem:[%s0 + $0xd0] sm:$0xff]
  %v84 = vld [vmem:[%s0 + $0xd8] sm:$0xff]
  %v85 = vld [vmem:[%s0 + $0xe0] sm:$0xff]
  %v86 = vld [vmem:[%s0 + $0xe8] sm:$0xff]
  %v87 = vld [vmem:[%s0 + $0xf0] sm:$0xff]
  %v88 = vld [vmem:[%s0 + $0xf8] sm:$0xff]
  %v89 = vld [vmem:[%s0 + $0x100] sm:$0xff]
  %v90 = vld [vmem:[%s0 + $0x108] sm:$0xff]
  %v91 = vld [vmem:[%s0 + $0x110] sm:$0xff]
  %v92 = vld [vmem:[%s0 + $0x118] sm:$0xff]
  %v93 = vld [vmem:[%s0 + $0x120] sm:$0xff]
  %v94 = vld [vmem:[%s0 + $0x128] sm:$0xff]
  %v95 = vld [vmem:[%s0 + $0x130] sm:$0xff]
  %v96 = vld [vmem:[%s0 + $0x138] sm:$0xff]
  %v97 = vld [vmem:[%s0 + $0x140] sm:$0xff]
  %v98 = vld [vmem:[%s0 + $0x148] sm:$0xff]
  %v99 = vld [vmem:[%s0 + $0x150] sm:$0xff]
  %v100 = vld [vmem:[%s0 + $0x158] sm:$0xff]
  %v101 = vld [vmem:[%s0 + $0x160] sm:$0xff]
  %v102 = vld [vmem:[%s0 + $0x168] sm:$0xff]
  %v103 = vld [vmem:[%s0 + $0x170] sm:$0xff]
  %v104 = vld [vmem:[%s0 + $0x178] sm:$0xff]
  %v105 = vld [vmem:[%s0 + $0x180] sm:$0xff]
  %v106 = vld [vmem:[%s0 + $0x188] sm:$0xff]
  %v107 = vld [vmem:[%s0 + $0x190] sm:$0xff]
  %v108 = vld [vmem:[%s0 + $0x198] sm:$0xff]
  %v109 = vld [vmem:[%s0 + $0x1a0] sm:$0xff]
  %v110 = vld [vmem:[%s0 + $0x1a8] sm:$0xff]
  %v111 = vld [vmem:[%s0 + $0x1b0] sm:$0xff]
  %v112 = vld [vmem:[%s0 + $0x1b8] sm:$0xff]
  %v113 = vld [vmem:[%s0 + $0x1c0] sm:$0xff]
  %v114 = vld [vmem:[%s0 + $0x1c8] sm:$0xff]
  %v115 = vld [vmem:[%s0 + $0x1d0] sm:$0xff]
  %v116 = vld [vmem:[%s0 + $0x1d8] sm:$0xff]
  %v117 = vld [vmem:[%s0 + $0x1e0] sm:$0xff]
  %v118 = vld [vmem:[%s0 + $0x1e8] sm:$0xff]
  %v119 = vld [vmem:[%s0 + $0x1f0] sm:$0xff]
  %v120 = vld [vmem:[%s0 + $0x1f8] sm:$0xff]
  %v121 = vld [vmem:[%s0 + $0x200] sm:$0xff]
  %v122 = vld [vmem:[%s0 + $0x208] sm:$0xff]
  %v123 = vld [vmem:[%s0 + $0x210] sm:$0xff]
  %v124 = vld [vmem:[%s0 + $0x218] sm:$0xff]
  %v125 = vld [vmem:[%s0 + $0x220] sm:$0xff]
  %v126 = vld [vmem:[%s0 + $0x228] sm:$0xff]
  %v127 = vld [vmem:[%s0 + $0x230] sm:$0xff]
  %v128 = vld [vmem:[%s0 + $0x238] sm:$0xff]
  %v129 = vld [vmem:[%s0 + $0x240] sm:$0xff]
  %v130 = vld [vmem:[%s0 + $0x248] sm:$0xff]
  %v131 = vld [vmem:[%s0 + $0x250] sm:$0xff]
  %v132 = vld [vmem:[%s0 + $0x258] sm:$0xff]
  %v133 = vld [vmem:[%s0 + $0x260] sm:$0xff]
  %v134 = vld [vmem:[%s0 + $0x268] sm:$0xff]
  %v135 = vld [vmem:[%s0 + $0x270] sm:$0xff]
  %v136 = vld [vmem:[%s0 + $0x278] sm:$0xff]
  %v137 = vld [vmem:[%s0 + $0x280] sm:$0xff]
  %v138 = vld [vmem:[%s0 + $0x288] sm:$0xff]
  %v139 = vld [vmem:[%s0 + $0x290] sm:$0xff]
  %v140 = vld [vmem:[%s0 + $0x298] sm:$0xff]
  %v141 = vld [vmem:[%s0 + $0x2a0] sm:$0xff]
  %v142 = vld [vmem:[%s0 + $0x2a8] sm:$0xff]
  %v143 = vld [vmem:[%s0 + $0x2b0] sm:$0xff]
  %v144 = vld [vmem:[%s0 + $0x2b8] sm:$0xff]
  %v145 = vld [vmem:[%s0 + $0x2c0] sm:$0xff]
  %v146 = vld [vmem:[%s0 + $0x2c8] sm:$0xff]
  %v147 = vld [vmem:[%s0 + $0x2d0] sm:$0xff]
  %v148 = vld [vmem:[%s0 + $0x2d8] sm:$0xff]
  %v149 = vld [vmem:[%s0 + $0x2e0] sm:$0xff]
  %v150 = vld [vmem:[%s0 + $0x2e8] sm:$0xff]
  %v151 = vld [vmem:[%s0 + $0x2f0] sm:$0xff]
  %v152 = vld [vmem:[%s0 + $0x2f8] sm:$0xff]
  %v153 = vld [vmem:[%s0 + $0x300] sm:$0xff]
  %v154 = vld [vmem:[%s0 + $0x308] sm:$0xff]
  %v155 = vld [vmem:[%s0 + $0x310] sm:$0xff]
  %v156 = vld [vmem:[%s0 + $0x318] sm:$0xff]
  %v157 = vld [vmem:[%s0 + $0x320] sm:$0xff]
  %v158 = vld [vmem:[%s0 + $0x328] sm:$0xff]
  %v159 = vld [vmem:[%s0 + $0x330] sm:$0xff]
  %v160 = vld [vmem:[%s0 + $0x338] sm:$0xff]
  %v161 = vld [vmem:[%s0 + $0x340] sm:$0xff]
  %v162 = vld [vmem:[%s0 + $0x348] sm:$0xff]
  %v163 = vld [vmem:[%s0 + $0x350] sm:$0xff]
  %v164 = vld [vmem:[%s0 + $0x358] sm:$0xff]
  %v165 = vld [vmem:[%s0 + $0x360] sm:$0xff]
  %v166 = vld [vmem:[%s0 + $0x368] sm:$0xff]
  %v167 = vld [vmem:[%s0 + $0x370] sm:$0xff]
  %v168 = vld [vmem:[%s0 + $0x378] sm:$0xff]
  %v169 = vld [vmem:[%s0 + $0x380] sm:$0xff]
  %v170 = vld [vmem:[%s0 + $0x388] sm:$0xff]
  %v171 = vld [vmem:[%s0 + $0x390] sm:$0xff]
  %v172 = vld [vmem:[%s0 + $0x398] sm:$0xff]
  %v173 = vld [vmem:[%s0 + $0x3a0] sm:$0xff]
  %v174 = vld [vmem:[%s0 + $0x3a8] sm:$0xff]
  %v175 = vld [vmem:[%s0 + $0x3b0] sm:$0xff]
  %v176 = vld [vmem:[%s0 + $0x3b8] sm:$0xff]
  %v177 = vld [vmem:[%s0 + $0x3c0] sm:$0xff]
  %v178 = vld [vmem:[%s0 + $0x3c8] sm:$0xff]
  %v179 = vld [vmem:[%s0 + $0x3d0] sm:$0xff]
  %v180 = vld [vmem:[%s0 + $0x3d8] sm:$0xff]
  %v181 = vld [vmem:[%s0 + $0x3e0] sm:$0xff]
  %v182 = vld [vmem:[%s0 + $0x3e8] sm:$0xff]
  %v183 = vld [vmem:[%s0 + $0x3f0] sm:$0xff]
  %v184 = vld [vmem:[%s0 + $0x3f8] sm:$0xff]
  %v185 = vld [vmem:[%s0 + $0x400] sm:$0xff]
  %v186 = vld [vmem:[%s0 + $0x408] sm:$0xff]
  %v187 = vld [vmem:[%s0 + $0x410] sm:$0xff]
  %v188 = vld [vmem:[%s0 + $0x418] sm:$0xff]
  %v189 = vld [vmem:[%s0 + $0x420] sm:$0xff]
  %v190 = vld [vmem:[%s0 + $0x428] sm:$0xff]
  %v191 = vld [vmem:[%s0 + $0x430] sm:$0xff]
  %v192 = vld [vmem:[%s0 + $0x438] sm:$0xff]
  %v193 = vld [vmem:[%s0 + $0x440] sm:$0xff]
  %v194 = vld [vmem:[%s0 + $0x448] sm:$0xff]
  %v195 = vld [vmem:[%s0 + $0x450] sm:$0xff]
  %v196 = vld [vmem:[%s0 + $0x458] sm:$0xff]
  %v197 = vld [vmem:[%s0 + $0x460] sm:$0xff]
  %v198 = vld [vmem:[%s0 + $0x468] sm:$0xff]
  %v199 = vld [vmem:[%s0 + $0x470] sm:$0xff]
  %v200 = vld [vmem:[%s0 + $0x478] sm:$0xff]
  %v201 = vld [vmem:[%s0 + $0x480] sm:$0xff]
  %v202 = vld [vmem:[%s0 + $0x488] sm:$0xff]
  %v203 = vld [vmem:[%s0 + $0x490] sm:$0xff]
  %v204 = vld [vmem:[%s0 + $0x498] sm:$0xff]
  %v205 = vld [vmem:[%s0 + $0x4a0] sm:$0xff]
  %v206 = vld [vmem:[%s0 + $0x4a8] sm:$0xff]
  %v207 = vld [vmem:[%s0 + $0x4b0] sm:$0xff]
  %v208 = vld [vmem:[%s0 + $0x4b8] sm:$0xff]
  %v209 = vld [vmem:[%s0 + $0x4c0] sm:$0xff]
  %v210 = vld [vmem:[%s0 + $0x4c8] sm:$0xff]
  %v211 = vld [vmem:[%s0 + $0x4d0] sm:$0xff]
  %v212 = vld [vmem:[%s0 + $0x4d8] sm:$0xff]
  %v213 = vld [vmem:[%s0 + $0x4e0] sm:$0xff]
  %v214 = vld [vmem:[%s0 + $0x4e8] sm:$0xff]
  %v215 = vld [vmem:[%s0 + $0x4f0] sm:$0xff]
  %v216 = vld [vmem:[%s0 + $0x4f8] sm:$0xff]
  %v217 = vld [vmem:[%s0 + $0x500] sm:$0xff]
  %v218 = vld [vmem:[%s0 + $0x508] sm:$0xff]
  %v219 = vld [vmem:[%s0 + $0x510] sm:$0xff]
  %v220 = vld [vmem:[%s0 + $0x518] sm:$0xff]
  %v221 = vld [vmem:[%s0 + $0x520] sm:$0xff]
  %v222 = vld [vmem:[%s0 + $0x528] sm:$0xff]
  %v223 = vld [vmem:[%s0 + $0x530] sm:$0xff]
  %v224 = vld [vmem:[%s0 + $0x538] sm:$0xff]
  %v225 = vld [vmem:[%s0 + $0x540] sm:$0xff]
  %v226 = vld [vmem:[%s0 + $0x548] sm:$0xff]
  %v227 = vld [vmem:[%s0 + $0x550] sm:$0xff]
  %v228 = vld [vmem:[%s0 + $0x558] sm:$0xff]
  %v229 = vld [vmem:[%s0 + $0x560] sm:$0xff]
  %v230 = vld [vmem:[%s0 + $0x568] sm:$0xff]
  %v231 = vld [vmem:[%s0 + $0x570] sm:$0xff]
  %v232 = vld [vmem:[%s0 + $0x578] sm:$0xff]
  %v233 = vld [vmem:[%s0 + $0x580] sm:$0xff]
  %v234 = vld [vmem:[%s0 + $0x588] sm:$0xff]
  %v235 = vld [vmem:[%s0 + $0x590] sm:$0xff]
  %v236 = vld [vmem:[%s0 + $0x598] sm:$0xff]
  %v237 = vld [vmem:[%s0 + $0x5a0] sm:$0xff]
  %v238 = vld [vmem:[%s0 + $0x5a8] sm:$0xff]
  %v239 = vld [vmem:[%s0 + $0x5b0] sm:$0xff]
  %v240 = vld [vmem:[%s0 + $0x5b8] sm:$0xff]
  %v241 = vld [vmem:[%s0 + $0x5c0] sm:$0xff]
  %v242 = vld [vmem:[%s0 + $0x5c8] sm:$0xff]
  %v243 = vld [vmem:[%s0 + $0x5d0] sm:$0xff]
  %v244 = vld [vmem:[%s0 + $0x5d8] sm:$0xff]
  %v245 = vld [vmem:[%s0 + $0x5e0] sm:$0xff]
  %v246 = vld [vmem:[%s0 + $0x5e8] sm:$0xff]
  %v247 = vld [vmem:[%s0 + $0x5f0] sm:$0xff]
  %v248 = vld [vmem:[%s0 + $0x5f8] sm:$0xff]
  %v249 = vld [vmem:[%s0 + $0x600] sm:$0xff]
  %v250 = vld [vmem:[%s0 + $0x608] sm:$0xff]
  %v251 = vld [vmem:[%s0 + $0x610] sm:$0xff]
  %v252 = vld [vmem:[%s0 + $0x618] sm:$0xff]
  %v253 = vld [vmem:[%s0 + $0x620] sm:$0xff]
  %v254 = vld [vmem:[%s0 + $0x628] sm:$0xff]
  %v255 = vld [vmem:[%s0 + $0x630] sm:$0xff]
  %v256 = vld [vmem:[%s0 + $0x638] sm:$0xff]
  %v257 = vld [vmem:[%s0 + $0x640] sm:$0xff]
  %v258 = vld [vmem:[%s0 + $0x648] sm:$0xff]
  %v259 = vld [vmem:[%s0 + $0x650] sm:$0xff]
  %v260 = vld [vmem:[%s0 + $0x658] sm:$0xff]
  %v261 = vld [vmem:[%s0 + $0x660] sm:$0xff]
  %v262 = vld [vmem:[%s0 + $0x668] sm:$0xff]
  %v263 = vld [vmem:[%s0 + $0x670] sm:$0xff]
  %v264 = vld [vmem:[%s0 + $0x678] sm:$0xff]
  %v265 = vld [vmem:[%s0 + $0x680] sm:$0xff]
  %v266 = vld [vmem:[%s0 + $0x688] sm:$0xff]
  %v267 = vld [vmem:[%s0 + $0x690] sm:$0xff]
  %v268 = vld [vmem:[%s0 + $0x698] sm:$0xff]
  %v269 = vld [vmem:[%s0 + $0x6a0] sm:$0xff]
  %v270 = vld [vmem:[%s0 + $0x6a8] sm:$0xff]
  %v271 = vld [vmem:[%s0 + $0x6b0] sm:$0xff]
  %v272 = vld [vmem:[%s0 + $0x6b8] sm:$0xff]
  %v273 = vld [vmem:[%s0 + $0x6c0] sm:$0xff]
  %v274 = vld [vmem:[%s0 + $0x6c8] sm:$0xff]
  %v275 = vld [vmem:[%s0 + $0x6d0] sm:$0xff]
  %v276 = vld [vmem:[%s0 + $0x6d8] sm:$0xff]
  %v277 = vld [vmem:[%s0 + $0x6e0] sm:$0xff]
  %v278 = vld [vmem:[%s0 + $0x6e8] sm:$0xff]
  %v279 = vld [vmem:[%s0 + $0x6f0] sm:$0xff]
  %v280 = vld [vmem:[%s0 + $0x6f8] sm:$0xff]
  %v281 = vld [vmem:[%s0 + $0x700] sm:$0xff]
  %v282 = vld [vmem:[%s0 + $0x708] sm:$0xff]
  %v283 = vld [vmem:[%s0 + $0x710] sm:$0xff]
  %v284 = vld [vmem:[%s0 + $0x718] sm:$0xff]
  %v285 = vld [vmem:[%s0 + $0x720] sm:$0xff]
  %v286 = vld [vmem:[%s0 + $0x728] sm:$0xff]
  %v287 = vld [vmem:[%s0 + $0x730] sm:$0xff]
  %v288 = vld [vmem:[%s0 + $0x738] sm:$0xff]
  %v289 = vld [vmem:[%s0 + $0x740] sm:$0xff]
  %v290 = vld [vmem:[%s0 + $0x748] sm:$0xff]
  %v291 = vld [vmem:[%s0 + $0x750] sm:$0xff]
  %v292 = vld [vmem:[%s0 + $0x758] sm:$0xff]
  %v293 = vld [vmem:[%s0 + $0x760] sm:$0xff]
  %v294 = vld [vmem:[%s0 + $0x768] sm:$0xff]
  %v295 = vld [vmem:[%s0 + $0x770] sm:$0xff]
  %v296 = vld [vmem:[%s0 + $0x778] sm:$0xff]
  %v297 = vld [vmem:[%s0 + $0x780] sm:$0xff]
  %v298 = vld [vmem:[%s0 + $0x788] sm:$0xff]
  %v299 = vld [vmem:[%s0 + $0x790] sm:$0xff]
  %v300 = vld [vmem:[%s0 + $0x798] sm:$0xff]
  %v301 = vld [vmem:[%s0 + $0x7a0] sm:$0xff]
  %v302 = vld [vmem:[%s0 + $0x7a8] sm:$0xff]
  %v303 = vld [vmem:[%s0 + $0x7b0] sm:$0xff]
  %v304 = vld [vmem:[%s0 + $0x7b8] sm:$0xff]
  %v305 = vld [vmem:[%s0 + $0x7c0] sm:$0xff]
  %v306 = vld [vmem:[%s0 + $0x7c8] sm:$0xff]
  %v307 = vld [vmem:[%s0 + $0x7d0] sm:$0xff]
  %v308 = vld [vmem:[%s0 + $0x7d8] sm:$0xff]
  %v309 = vld [vmem:[%s0 + $0x7e0] sm:$0xff]
  %v310 = vld [vmem:[%s0 + $0x7e8] sm:$0xff]
  %v311 = vld [vmem:[%s0 + $0x7f0] sm:$0xff]
  %v312 = vld [vmem:[%s0 + $0x7f8] sm:$0xff]
  %v313 = vld [vmem:[%s0 + $0x800] sm:$0xff]
  %v314 = vld [vmem:[%s0 + $0x808] sm:$0xff]
  %v315 = vld [vmem:[%s0 + $0x810] sm:$0xff]
  %v316 = vld [vmem:[%s0 + $0x818] sm:$0xff]
  %v317 = vld [vmem:[%s0 + $0x820] sm:$0xff]
  %v318 = vld [vmem:[%s0 + $0x828] sm:$0xff]
  %v319 = vld [vmem:[%s0 + $0x830] sm:$0xff]
  %v320 = vld [vmem:[%s0 + $0x838] sm:$0xff]
  %v321 = vld [vmem:[%s0 + $0x840] sm:$0xff]
  %v322 = vld [vmem:[%s0 + $0x848] sm:$0xff]
  %v323 = vld [vmem:[%s0 + $0x850] sm:$0xff]
  %v324 = vld [vmem:[%s0 + $0x858] sm:$0xff]
  %v325 = vld [vmem:[%s0 + $0x860] sm:$0xff]
  %v326 = vld [vmem:[%s0 + $0x868] sm:$0xff]
  %v327 = vld [vmem:[%s0 + $0x870] sm:$0xff]
  %v328 = vld [vmem:[%s0 + $0x878] sm:$0xff]
  %v329 = vld [vmem:[%s0 + $0x880] sm:$0xff]
  %v330 = vld [vmem:[%s0 + $0x888] sm:$0xff]
  %v331 = vld [vmem:[%s0 + $0x890] sm:$0xff]
  %v332 = vld [vmem:[%s0 + $0x898] sm:$0xff]
  %v333 = vld [vmem:[%s0 + $0x8a0] sm:$0xff]
  %v334 = vld [vmem:[%s0 + $0x8a8] sm:$0xff]
  %v335 = vld [vmem:[%s0 + $0x8b0] sm:$0xff]
  %v336 = vld [vmem:[%s0 + $0x8b8] sm:$0xff]
  %v337 = vld [vmem:[%s0 + $0x8c0] sm:$0xff]
  %v338 = vld [vmem:[%s0 + $0x8c8] sm:$0xff]
  %v339 = vld [vmem:[%s0 + $0x8d0] sm:$0xff]
  %v340 = vld [vmem:[%s0 + $0x8d8] sm:$0xff]
  %v341 = vld [vmem:[%s0 + $0x8e0] sm:$0xff]
  %v342 = vld [vmem:[%s0 + $0x8e8] sm:$0xff]
  %v343 = vld [vmem:[%s0 + $0x8f0] sm:$0xff]
  %v344 = vld [vmem:[%s0 + $0x8f8] sm:$0xff]
  %v345 = vld [vmem:[%s0 + $0x900] sm:$0xff]
  %v346 = vld [vmem:[%s0 + $0x908] sm:$0xff]
  %v347 = vld [vmem:[%s0 + $0x910] sm:$0xff]
  %v348 = vld [vmem:[%s0 + $0x918] sm:$0xff]
  %v349 = vld [vmem:[%s0 + $0x920] sm:$0xff]
  %v350 = vld [vmem:[%s0 + $0x928] sm:$0xff]
  %v351 = vld [vmem:[%s0 + $0x930] sm:$0xff]
  %v352 = vld [vmem:[%s0 + $0x938] sm:$0xff]
  %v353 = vld [vmem:[%s0 + $0x940] sm:$0xff]
  %v354 = vld [vmem:[%s0 + $0x948] sm:$0xff]
  %v355 = vld [vmem:[%s0 + $0x950] sm:$0xff]
  %v356 = vld [vmem:[%s0 + $0x958] sm:$0xff]
  %v357 = vld [vmem:[%s0 + $0x960] sm:$0xff]
  %v358 = vld [vmem:[%s0 + $0x968] sm:$0xff]
  %v359 = vld [vmem:[%s0 + $0x970] sm:$0xff]
  %v360 = vld [vmem:[%s0 + $0x978] sm:$0xff]
  %v361 = vld [vmem:[%s0 + $0x980] sm:$0xff]
  %v362 = vld [vmem:[%s0 + $0x988] sm:$0xff]
  %v363 = vld [vmem:[%s0 + $0x990] sm:$0xff]
  %v364 = vld [vmem:[%s0 + $0x998] sm:$0xff]
  %v365 = vld [vmem:[%s0 + $0x9a0] sm:$0xff]
  %v366 = vld [vmem:[%s0 + $0x9a8] sm:$0xff]
  %v367 = vld [vmem:[%s0 + $0x9b0] sm:$0xff]
  %v368 = vld [vmem:[%s0 + $0x9b8] sm:$0xff]
  %v369 = vld [vmem:[%s0 + $0x9c0] sm:$0xff]
  %v370 = vld [vmem:[%s0 + $0x9c8] sm:$0xff]
  %v371 = vld [vmem:[%s0 + $0x9d0] sm:$0xff]
  %v372 = vld [vmem:[%s0 + $0x9d8] sm:$0xff]
  %v373 = vld [vmem:[%s0 + $0x9e0] sm:$0xff]
  %v374 = vld [vmem:[%s0 + $0x9e8] sm:$0xff]
  %v375 = vld [vmem:[%s0 + $0x9f0] sm:$0xff]
  %v376 = vld [vmem:[%s0 + $0x9f8] sm:$0xff]
  %v377 = vld [vmem:[%s0 + $0xa00] sm:$0xff]
  %v378 = vld [vmem:[%s0 + $0xa08] sm:$0xff]
  %v379 = vld [vmem:[%s0 + $0xa10] sm:$0xff]
  %v380 = vld [vmem:[%s0 + $0xa18] sm:$0xff]
  %v381 = vld [vmem:[%s0 + $0xa20] sm:$0xff]
  %v382 = vld [vmem:[%s0 + $0xa28] sm:$0xff]
  %v383 = vld [vmem:[%s0 + $0xa30] sm:$0xff]
  %v384 = vld [vmem:[%s0 + $0xa38] sm:$0xff]
  %v385 = vld [vmem:[%s0 + $0xa40] sm:$0xff]
  %v386 = vld [vmem:[%s0 + $0xa48] sm:$0xff]
  %v387 = vld [vmem:[%s0 + $0xa50] sm:$0xff]
  %v388 = vld [vmem:[%s0 + $0xa58] sm:$0xff]
  %v389 = vld [vmem:[%s0 + $0xa60] sm:$0xff]
  %v390 = vld [vmem:[%s0 + $0xa68] sm:$0xff]
  %v391 = vld [vmem:[%s0 + $0xa70] sm:$0xff]
  %v392 = vld [vmem:[%s0 + $0xa78] sm:$0xff]
  %v393 = vpack.c.bf16 %v58, %v57
  %v394 = vpack.c.bf16 %v60, %v59
  %v395 = vpack.c.bf16 %v62, %v61
  %v396 = vpack.c.bf16 %v64, %v63
  %v397 = vpack.c.bf16 %v66, %v65
  %v398 = vpack.c.bf16 %v68, %v67
  %v399 = vpack.c.bf16 %v70, %v69
  %v400 = vpack.c.bf16 %v72, %v71
  %v401 = vpack.c.bf16 %v74, %v73
  %v402 = vpack.c.bf16 %v76, %v75
  %v403 = vpack.c.bf16 %v78, %v77
  %v404 = vpack.c.bf16 %v80, %v79
  %v405 = vpack.c.bf16 %v82, %v81
  %v406 = vpack.c.bf16 %v84, %v83
  %v407 = vpack.c.bf16 %v86, %v85
  %v408 = vpack.c.bf16 %v88, %v87
  %v409 = vpack.c.bf16 %v90, %v89
  %v410 = vpack.c.bf16 %v92, %v91
  %v411 = vpack.c.bf16 %v94, %v93
  %v412 = vpack.c.bf16 %v96, %v95
  %v413 = vpack.c.bf16 %v98, %v97
  %v414 = vpack.c.bf16 %v100, %v99
  %v415 = vpack.c.bf16 %v102, %v101
  %v416 = vpack.c.bf16 %v104, %v103
  %v417 = vpack.c.bf16 %v106, %v105
  %v418 = vpack.c.bf16 %v108, %v107
  %v419 = vpack.c.bf16 %v110, %v109
  %v420 = vpack.c.bf16 %v112, %v111
  %v421 = vpack.c.bf16 %v114, %v113
  %v422 = vpack.c.bf16 %v116, %v115
  %v423 = vpack.c.bf16 %v118, %v117
  %v424 = vpack.c.bf16 %v120, %v119
  %v425 = vpack.c.bf16 %v122, %v121
  %v426 = vpack.c.bf16 %v124, %v123
  %v427 = vpack.c.bf16 %v126, %v125
  %v428 = vpack.c.bf16 %v128, %v127
  %v429 = vpack.c.bf16 %v130, %v129
  %v430 = vpack.c.bf16 %v132, %v131
  %v431 = vpack.c.bf16 %v134, %v133
  %v432 = vpack.c.bf16 %v136, %v135
  %v433 = vpack.c.bf16 %v138, %v137
  %v434 = vpack.c.bf16 %v140, %v139
  %v435 = vpack.c.bf16 %v142, %v141
  %v436 = vpack.c.bf16 %v144, %v143
  %v437 = vpack.c.bf16 %v146, %v145
  %v438 = vpack.c.bf16 %v148, %v147
  %v439 = vpack.c.bf16 %v150, %v149
  %v440 = vpack.c.bf16 %v152, %v151
  %v441 = vpack.c.bf16 %v154, %v153
  %v442 = vpack.c.bf16 %v156, %v155
  %v443 = vpack.c.bf16 %v158, %v157
  %v444 = vpack.c.bf16 %v160, %v159
  %v445 = vpack.c.bf16 %v162, %v161
  %v446 = vpack.c.bf16 %v164, %v163
  %v447 = vpack.c.bf16 %v166, %v165
  %v448 = vpack.c.bf16 %v168, %v167
  %v449 = vpack.c.bf16 %v170, %v169
  %v450 = vpack.c.bf16 %v172, %v171
  %v451 = vpack.c.bf16 %v174, %v173
  %v452 = vpack.c.bf16 %v176, %v175
  %v453 = vpack.c.bf16 %v178, %v177
  %v454 = vpack.c.bf16 %v180, %v179
  %v455 = vpack.c.bf16 %v182, %v181
  %v456 = vpack.c.bf16 %v184, %v183
  %v457 = vpack.c.bf16 %v186, %v185
  %v458 = vpack.c.bf16 %v188, %v187
  %v459 = vpack.c.bf16 %v190, %v189
  %v460 = vpack.c.bf16 %v192, %v191
  %v461 = vpack.c.bf16 %v194, %v193
  %v462 = vpack.c.bf16 %v196, %v195
  %v463 = vpack.c.bf16 %v198, %v197
  %v464 = vpack.c.bf16 %v200, %v199
  %v465 = vpack.c.bf16 %v202, %v201
  %v466 = vpack.c.bf16 %v204, %v203
  %v467 = vpack.c.bf16 %v206, %v205
  %v468 = vpack.c.bf16 %v208, %v207
  %v469 = vpack.c.bf16 %v210, %v209
  %v470 = vpack.c.bf16 %v212, %v211
  %v471 = vpack.c.bf16 %v214, %v213
  %v472 = vpack.c.bf16 %v216, %v215
  %v473 = vpack.c.bf16 %v218, %v217
  %v474 = vpack.c.bf16 %v220, %v219
  %v475 = vpack.c.bf16 %v222, %v221
  %v476 = vpack.c.bf16 %v224, %v223
  %v477 = vpack.c.bf16 %v226, %v225
  %v478 = vpack.c.bf16 %v228, %v227
  %v479 = vpack.c.bf16 %v230, %v229
  %v480 = vpack.c.bf16 %v232, %v231
  %v481 = vpack.c.bf16 %v234, %v233
  %v482 = vpack.c.bf16 %v236, %v235
  %v483 = vpack.c.bf16 %v238, %v237
  %v484 = vpack.c.bf16 %v240, %v239
  %v485 = vpack.c.bf16 %v242, %v241
  %v486 = vpack.c.bf16 %v244, %v243
  %v487 = vpack.c.bf16 %v246, %v245
  %v488 = vpack.c.bf16 %v248, %v247
  %v489 = vpack.c.bf16 %v250, %v249
  %v490 = vpack.c.bf16 %v252, %v251
  %v491 = vpack.c.bf16 %v254, %v253
  %v492 = vpack.c.bf16 %v256, %v255
  %v493 = vpack.c.bf16 %v258, %v257
  %v494 = vpack.c.bf16 %v260, %v259
  %v495 = vpack.c.bf16 %v262, %v261
  %v496 = vpack.c.bf16 %v264, %v263
  %v497 = vpack.c.bf16 %v266, %v265
  %v498 = vpack.c.bf16 %v268, %v267
  %v499 = vpack.c.bf16 %v270, %v269
  %v500 = vpack.c.bf16 %v272, %v271
  %v501 = vpack.c.bf16 %v274, %v273
  %v502 = vpack.c.bf16 %v276, %v275
  %v503 = vpack.c.bf16 %v278, %v277
  %v504 = vpack.c.bf16 %v280, %v279
  %v505 = vpack.c.bf16 %v282, %v281
  %v506 = vpack.c.bf16 %v284, %v283
  %v507 = vpack.c.bf16 %v286, %v285
  %v508 = vpack.c.bf16 %v288, %v287
  %v509 = vpack.c.bf16 %v290, %v289
  %v510 = vpack.c.bf16 %v292, %v291
  %v511 = vpack.c.bf16 %v294, %v293
  %v512 = vpack.c.bf16 %v296, %v295
  %v513 = vpack.c.bf16 %v298, %v297
  %v514 = vpack.c.bf16 %v300, %v299
  %v515 = vpack.c.bf16 %v302, %v301
  %v516 = vpack.c.bf16 %v304, %v303
  %v517 = vpack.c.bf16 %v306, %v305
  %v518 = vpack.c.bf16 %v308, %v307
  %v519 = vpack.c.bf16 %v310, %v309
  %v520 = vpack.c.bf16 %v312, %v311
  %v521 = vpack.c.bf16 %v314, %v313
  %v522 = vpack.c.bf16 %v316, %v315
  %v523 = vpack.c.bf16 %v318, %v317
  %v524 = vpack.c.bf16 %v320, %v319
  %v525 = vpack.c.bf16 %v322, %v321
  %v526 = vpack.c.bf16 %v324, %v323
  %v527 = vpack.c.bf16 %v326, %v325
  %v528 = vpack.c.bf16 %v328, %v327
  %v529 = vpack.c.bf16 %v330, %v329
  %v530 = vpack.c.bf16 %v332, %v331
  %v531 = vpack.c.bf16 %v334, %v333
  %v532 = vpack.c.bf16 %v336, %v335
  %v533 = vpack.c.bf16 %v338, %v337
  %v534 = vpack.c.bf16 %v340, %v339
  %v535 = vpack.c.bf16 %v342, %v341
  %v536 = vpack.c.bf16 %v344, %v343
  %v537 = vpack.c.bf16 %v346, %v345
  %v538 = vpack.c.bf16 %v348, %v347
  %v539 = vpack.c.bf16 %v350, %v349
  %v540 = vpack.c.bf16 %v352, %v351
  %v541 = vpack.c.bf16 %v354, %v353
  %v542 = vpack.c.bf16 %v356, %v355
  %v543 = vpack.c.bf16 %v358, %v357
  %v544 = vpack.c.bf16 %v360, %v359
  %v545 = vpack.c.bf16 %v362, %v361
  %v546 = vpack.c.bf16 %v364, %v363
  %v547 = vpack.c.bf16 %v366, %v365
  %v548 = vpack.c.bf16 %v368, %v367
  %v549 = vpack.c.bf16 %v370, %v369
  %v550 = vpack.c.bf16 %v372, %v371
  %v551 = vpack.c.bf16 %v374, %v373
  %v552 = vpack.c.bf16 %v376, %v375
  %v553 = vpack.c.bf16 %v378, %v377
  %v554 = vpack.c.bf16 %v380, %v379
  %v555 = vpack.c.bf16 %v382, %v381
  %v556 = vpack.c.bf16 %v384, %v383
  %v557 = vpack.c.bf16 %v386, %v385
  %v558 = vpack.c.bf16 %v388, %v387
  %v559 = vpack.c.bf16 %v390, %v389
  %v560 = vpack.c.bf16 %v392, %v391
  %v561 = vld [vmem:[%s1] sm:$0xf]
  %vm562 = vcmask 64512
  %v564 = vsel %vm562, %v393, 0
  %v567 = vsel %vm562, %v394, 0
  %v570 = vsel %vm562, %v395, 0
  %v573 = vsel %vm562, %v396, 0
  %v576 = vsel %vm562, %v397, 0
  %v579 = vsel %vm562, %v398, 0
  %v582 = vsel %vm562, %v399, 0
  %v585 = vsel %vm562, %v400, 0
  %v588 = vsel %vm562, %v401, 0
  %v591 = vsel %vm562, %v402, 0
  %v594 = vsel %vm562, %v403, 0
  %v597 = vsel %vm562, %v404, 0
  %v600 = vsel %vm562, %v405, 0
  %v603 = vsel %vm562, %v406, 0
  %v606 = vsel %vm562, %v407, 0
  %v609 = vsel %vm562, %v408, 0
  %v612 = vsel %vm562, %v409, 0
  %v615 = vsel %vm562, %v410, 0
  %v618 = vsel %vm562, %v411, 0
  %v621 = vsel %vm562, %v412, 0
  %v624 = vsel %vm562, %v413, 0
  %v627 = vsel %vm562, %v414, 0
  %v630 = vsel %vm562, %v415, 0
  %v633 = vsel %vm562, %v416, 0
  %v636 = vsel %vm562, %v417, 0
  %v639 = vsel %vm562, %v418, 0
  %v642 = vsel %vm562, %v419, 0
  %v645 = vsel %vm562, %v420, 0
  %v648 = vsel %vm562, %v421, 0
  %v651 = vsel %vm562, %v422, 0
  %v654 = vsel %vm562, %v423, 0
  %v657 = vsel %vm562, %v424, 0
  %v660 = vsel %vm562, %v425, 0
  %v663 = vsel %vm562, %v426, 0
  %v666 = vsel %vm562, %v427, 0
  %v669 = vsel %vm562, %v428, 0
  %v672 = vsel %vm562, %v429, 0
  %v675 = vsel %vm562, %v430, 0
  %v678 = vsel %vm562, %v431, 0
  %v681 = vsel %vm562, %v432, 0
  %v684 = vsel %vm562, %v433, 0
  %v687 = vsel %vm562, %v434, 0
  %v690 = vsel %vm562, %v435, 0
  %v693 = vsel %vm562, %v436, 0
  %v696 = vsel %vm562, %v437, 0
  %v699 = vsel %vm562, %v438, 0
  %v702 = vsel %vm562, %v439, 0
  %v705 = vsel %vm562, %v440, 0
  %v708 = vsel %vm562, %v441, 0
  %v711 = vsel %vm562, %v442, 0
  %v714 = vsel %vm562, %v443, 0
  %v717 = vsel %vm562, %v444, 0
  %v720 = vsel %vm562, %v445, 0
  %v723 = vsel %vm562, %v446, 0
  %v726 = vsel %vm562, %v447, 0
  %v729 = vsel %vm562, %v448, 0
  %v732 = vsel %vm562, %v449, 0
  %v735 = vsel %vm562, %v450, 0
  %v738 = vsel %vm562, %v451, 0
  %v741 = vsel %vm562, %v452, 0
  %v744 = vsel %vm562, %v453, 0
  %v747 = vsel %vm562, %v454, 0
  %v750 = vsel %vm562, %v455, 0
  %v753 = vsel %vm562, %v456, 0
  %v756 = vsel %vm562, %v457, 0
  %v759 = vsel %vm562, %v458, 0
  %v762 = vsel %vm562, %v459, 0
  %v765 = vsel %vm562, %v460, 0
  %v768 = vsel %vm562, %v461, 0
  %v771 = vsel %vm562, %v462, 0
  %v774 = vsel %vm562, %v463, 0
  %v777 = vsel %vm562, %v464, 0
  %v780 = vsel %vm562, %v465, 0
  %v783 = vsel %vm562, %v466, 0
  %v786 = vsel %vm562, %v467, 0
  %v789 = vsel %vm562, %v468, 0
  %v792 = vsel %vm562, %v469, 0
  %v795 = vsel %vm562, %v470, 0
  %v798 = vsel %vm562, %v471, 0
  %v801 = vsel %vm562, %v472, 0
  %v804 = vsel %vm562, %v473, 0
  %v807 = vsel %vm562, %v474, 0
  %v810 = vsel %vm562, %v475, 0
  %v813 = vsel %vm562, %v476, 0
  %v816 = vsel %vm562, %v477, 0
  %v819 = vsel %vm562, %v478, 0
  %v822 = vsel %vm562, %v479, 0
  %v825 = vsel %vm562, %v480, 0
  %v828 = vsel %vm562, %v481, 0
  %v831 = vsel %vm562, %v482, 0
  %v834 = vsel %vm562, %v483, 0
  %v837 = vsel %vm562, %v484, 0
  %v840 = vsel %vm562, %v485, 0
  %v843 = vsel %vm562, %v486, 0
  %v846 = vsel %vm562, %v487, 0
  %v849 = vsel %vm562, %v488, 0
  %v852 = vsel %vm562, %v489, 0
  %v855 = vsel %vm562, %v490, 0
  %v858 = vsel %vm562, %v491, 0
  %v861 = vsel %vm562, %v492, 0
  %v864 = vsel %vm562, %v493, 0
  %v867 = vsel %vm562, %v494, 0
  %v870 = vsel %vm562, %v495, 0
  %v873 = vsel %vm562, %v496, 0
  %v876 = vsel %vm562, %v497, 0
  %v879 = vsel %vm562, %v498, 0
  %v882 = vsel %vm562, %v499, 0
  %v885 = vsel %vm562, %v500, 0
  %v888 = vsel %vm562, %v501, 0
  %v891 = vsel %vm562, %v502, 0
  %v894 = vsel %vm562, %v503, 0
  %v897 = vsel %vm562, %v504, 0
  %v900 = vsel %vm562, %v505, 0
  %v903 = vsel %vm562, %v506, 0
  %v906 = vsel %vm562, %v507, 0
  %v909 = vsel %vm562, %v508, 0
  %v912 = vsel %vm562, %v509, 0
  %v915 = vsel %vm562, %v510, 0
  %v918 = vsel %vm562, %v511, 0
  %v921 = vsel %vm562, %v512, 0
  %v924 = vsel %vm562, %v513, 0
  %v927 = vsel %vm562, %v514, 0
  %v930 = vsel %vm562, %v515, 0
  %v933 = vsel %vm562, %v516, 0
  %v936 = vsel %vm562, %v517, 0
  %v939 = vsel %vm562, %v518, 0
  %v942 = vsel %vm562, %v519, 0
  %v945 = vsel %vm562, %v520, 0
  %v948 = vsel %vm562, %v521, 0
  %v951 = vsel %vm562, %v522, 0
  %v954 = vsel %vm562, %v523, 0
  %v957 = vsel %vm562, %v524, 0
  %v960 = vsel %vm562, %v525, 0
  %v963 = vsel %vm562, %v526, 0
  %v966 = vsel %vm562, %v527, 0
  %v969 = vsel %vm562, %v528, 0
  %v972 = vsel %vm562, %v529, 0
  %v975 = vsel %vm562, %v530, 0
  %v978 = vsel %vm562, %v531, 0
  %v981 = vsel %vm562, %v532, 0
  %v984 = vsel %vm562, %v533, 0
  %v987 = vsel %vm562, %v534, 0
  %v990 = vsel %vm562, %v535, 0
  %v993 = vsel %vm562, %v536, 0
  %v996 = vsel %vm562, %v537, 0
  %v999 = vsel %vm562, %v538, 0
  %v1002 = vsel %vm562, %v539, 0
  %v1005 = vsel %vm562, %v540, 0
  %v1008 = vsel %vm562, %v541, 0
  %v1011 = vsel %vm562, %v542, 0
  %v1014 = vsel %vm562, %v543, 0
  %v1017 = vsel %vm562, %v544, 0
  %v1020 = vsel %vm562, %v545, 0
  %v1023 = vsel %vm562, %v546, 0
  %v1026 = vsel %vm562, %v547, 0
  %v1029 = vsel %vm562, %v548, 0
  %v1032 = vsel %vm562, %v549, 0
  %v1035 = vsel %vm562, %v550, 0
  %v1038 = vsel %vm562, %v551, 0
  %v1041 = vsel %vm562, %v552, 0
  %v1044 = vsel %vm562, %v553, 0
  %v1047 = vsel %vm562, %v554, 0
  %v1050 = vsel %vm562, %v555, 0
  %v1053 = vsel %vm562, %v556, 0
  %v1056 = vsel %vm562, %v557, 0
  %v1059 = vsel %vm562, %v558, 0
  %v1062 = vsel %vm562, %v559, 0
  %v1065 = vsel %vm562, %v560, 0
  %vm1067 = vcmask 1043456
  %v1069 = vsel %vm1067, %v561, 0
  %1071 = vmatprep.subr.bf16.mxu0 0
  %1072 = vmatpush1.bf16.msra.mxu0 0
  %1073 = vmatprep.subr.bf16.mxu0 0
  %1074 = vmatpush1.bf16.msra.mxu0 0
  %1075 = vmatprep.subr.bf16.mxu0 0
  %1076 = vmatpush1.bf16.msra.mxu0 0
  %1077 = vmatprep.subr.bf16.mxu0 0
  %1078 = vmatpush1.bf16.msra.mxu0 0
  %1079 = vmatprep.subr.bf16.mxu0 0
  %1080 = vmatpush1.bf16.msra.mxu0 0
  %1081 = vmatprep.subr.bf16.mxu0 0
  %1082 = vmatpush1.bf16.msra.mxu0 0
  %1083 = vmatprep.subr.bf16.mxu0 0
  %1084 = vmatpush1.bf16.msra.mxu0 0
  %1085 = vmatprep.subr.bf16.mxu0 0
  %1086 = vmatpush1.bf16.msra.mxu0 %v1069
  %1087 = vmatprep.subr.bf16.mxu0 0
  %1088 = vmatpush2.bf16.msra.mxu0 0
  %1089 = vmatprep.subr.bf16.mxu0 0
  %1090 = vmatpush2.bf16.msra.mxu0 0
  %1091 = vmatprep.subr.bf16.mxu0 0
  %1092 = vmatpush2.bf16.msra.mxu0 0
  %1093 = vmatprep.subr.bf16.mxu0 0
  %1094 = vmatpush2.bf16.msra.mxu0 0
  %1095 = vmatprep.subr.bf16.mxu0 0
  %1096 = vmatpush2.bf16.msra.mxu0 0
  %1097 = vmatprep.subr.bf16.mxu0 0
  %1098 = vmatpush2.bf16.msra.mxu0 0
  %1099 = vmatprep.subr.bf16.mxu0 0
  %1100 = vmatpush2.bf16.msra.mxu0 0
  %1101 = vmatprep.subr.bf16.mxu0 0
  %1102 = vmatpush2.bf16.msra.mxu0 0
  %1103 = vmatprep.mubr.bf16.mxu0 0
  %1104 = vmatmul.mubr.bf16.gmra.mxu0 %v564
  %v1105 = vpop.f32.mrf.mxu0
  %v1106 = vadd.f32 0.0, %v1105
  %v1107 = vpop.f32.mrf.mxu0
  %v1108 = vpop.f32.mrf.mxu0
  %v1109 = vadd.f32 0.0, %v1108
  %v1110 = vpop.f32.mrf.mxu0
  %1111 = vmatprep.mubr.bf16.mxu0 0
  %1112 = vmatmul.mubr.bf16.gmra.mxu0 %v567
  %v1113 = vpop.f32.mrf.mxu0
  %v1114 = vadd.f32 0.0, %v1113
  %v1115 = vpop.f32.mrf.mxu0
  %v1116 = vpop.f32.mrf.mxu0
  %v1117 = vadd.f32 0.0, %v1116
  %v1118 = vpop.f32.mrf.mxu0
  %1119 = vmatprep.mubr.bf16.mxu0 0
  %1120 = vmatmul.mubr.bf16.gmra.mxu0 %v570
  %v1121 = vpop.f32.mrf.mxu0
  %v1122 = vadd.f32 0.0, %v1121
  %v1123 = vpop.f32.mrf.mxu0
  %v1124 = vpop.f32.mrf.mxu0
  %v1125 = vadd.f32 0.0, %v1124
  %v1126 = vpop.f32.mrf.mxu0
  %1127 = vmatprep.mubr.bf16.mxu0 0
  %1128 = vmatmul.mubr.bf16.gmra.mxu0 %v573
  %v1129 = vpop.f32.mrf.mxu0
  %v1130 = vadd.f32 0.0, %v1129
  %v1131 = vpop.f32.mrf.mxu0
  %v1132 = vpop.f32.mrf.mxu0
  %v1133 = vadd.f32 0.0, %v1132
  %v1134 = vpop.f32.mrf.mxu0
  %1135 = vmatprep.mubr.bf16.mxu0 0
  %1136 = vmatmul.mubr.bf16.gmra.mxu0 %v576
  %v1137 = vpop.f32.mrf.mxu0
  %v1138 = vadd.f32 0.0, %v1137
  %v1139 = vpop.f32.mrf.mxu0
  %v1140 = vpop.f32.mrf.mxu0
  %v1141 = vadd.f32 0.0, %v1140
  %v1142 = vpop.f32.mrf.mxu0
  %1143 = vmatprep.mubr.bf16.mxu0 0
  %1144 = vmatmul.mubr.bf16.gmra.mxu0 %v579
  %v1145 = vpop.f32.mrf.mxu0
  %v1146 = vadd.f32 0.0, %v1145
  %v1147 = vpop.f32.mrf.mxu0
  %v1148 = vpop.f32.mrf.mxu0
  %v1149 = vadd.f32 0.0, %v1148
  %v1150 = vpop.f32.mrf.mxu0
  %1151 = vmatprep.mubr.bf16.mxu0 0
  %1152 = vmatmul.mubr.bf16.gmra.mxu0 %v582
  %v1153 = vpop.f32.mrf.mxu0
  %v1154 = vadd.f32 0.0, %v1153
  %v1155 = vpop.f32.mrf.mxu0
  %v1156 = vpop.f32.mrf.mxu0
  %v1157 = vadd.f32 0.0, %v1156
  %v1158 = vpop.f32.mrf.mxu0
  %1159 = vmatprep.mubr.bf16.mxu0 0
  %1160 = vmatmul.mubr.bf16.gmra.mxu0 %v585
  %v1161 = vpop.f32.mrf.mxu0
  %v1162 = vadd.f32 0.0, %v1161
  %v1163 = vpop.f32.mrf.mxu0
  %v1164 = vpop.f32.mrf.mxu0
  %v1165 = vadd.f32 0.0, %v1164
  %v1166 = vpop.f32.mrf.mxu0
  %1167 = vmatprep.mubr.bf16.mxu0 0
  %1168 = vmatmul.mubr.bf16.gmra.mxu0 %v588
  %v1169 = vpop.f32.mrf.mxu0
  %v1170 = vadd.f32 0.0, %v1169
  %v1171 = vpop.f32.mrf.mxu0
  %v1172 = vpop.f32.mrf.mxu0
  %v1173 = vadd.f32 0.0, %v1172
  %v1174 = vpop.f32.mrf.mxu0
  %1175 = vmatprep.mubr.bf16.mxu0 0
  %1176 = vmatmul.mubr.bf16.gmra.mxu0 %v591
  %v1177 = vpop.f32.mrf.mxu0
  %v1178 = vadd.f32 0.0, %v1177
  %v1179 = vpop.f32.mrf.mxu0
  %v1180 = vpop.f32.mrf.mxu0
  %v1181 = vadd.f32 0.0, %v1180
  %v1182 = vpop.f32.mrf.mxu0
  %1183 = vmatprep.mubr.bf16.mxu0 0
  %1184 = vmatmul.mubr.bf16.gmra.mxu0 %v594
  %v1185 = vpop.f32.mrf.mxu0
  %v1186 = vadd.f32 0.0, %v1185
  %v1187 = vpop.f32.mrf.mxu0
  %v1188 = vpop.f32.mrf.mxu0
  %v1189 = vadd.f32 0.0, %v1188
  %v1190 = vpop.f32.mrf.mxu0
  %1191 = vmatprep.mubr.bf16.mxu0 0
  %1192 = vmatmul.mubr.bf16.gmra.mxu0 %v597
  %v1193 = vpop.f32.mrf.mxu0
  %v1194 = vadd.f32 0.0, %v1193
  %v1195 = vpop.f32.mrf.mxu0
  %v1196 = vpop.f32.mrf.mxu0
  %v1197 = vadd.f32 0.0, %v1196
  %v1198 = vpop.f32.mrf.mxu0
  %1199 = vmatprep.mubr.bf16.mxu0 0
  %1200 = vmatmul.mubr.bf16.gmra.mxu0 %v600
  %v1201 = vpop.f32.mrf.mxu0
  %v1202 = vadd.f32 0.0, %v1201
  %v1203 = vpop.f32.mrf.mxu0
  %v1204 = vpop.f32.mrf.mxu0
  %v1205 = vadd.f32 0.0, %v1204
  %v1206 = vpop.f32.mrf.mxu0
  %1207 = vmatprep.mubr.bf16.mxu0 0
  %1208 = vmatmul.mubr.bf16.gmra.mxu0 %v603
  %v1209 = vpop.f32.mrf.mxu0
  %v1210 = vadd.f32 0.0, %v1209
  %v1211 = vpop.f32.mrf.mxu0
  %v1212 = vpop.f32.mrf.mxu0
  %v1213 = vadd.f32 0.0, %v1212
  %v1214 = vpop.f32.mrf.mxu0
  %1215 = vmatprep.mubr.bf16.mxu0 0
  %1216 = vmatmul.mubr.bf16.gmra.mxu0 %v606
  %v1217 = vpop.f32.mrf.mxu0
  %v1218 = vadd.f32 0.0, %v1217
  %v1219 = vpop.f32.mrf.mxu0
  %v1220 = vpop.f32.mrf.mxu0
  %v1221 = vadd.f32 0.0, %v1220
  %v1222 = vpop.f32.mrf.mxu0
  %1223 = vmatprep.mubr.bf16.mxu0 0
  %1224 = vmatmul.mubr.bf16.gmra.mxu0 %v609
  %v1225 = vpop.f32.mrf.mxu0
  %v1226 = vadd.f32 0.0, %v1225
  %v1227 = vpop.f32.mrf.mxu0
  %v1228 = vpop.f32.mrf.mxu0
  %v1229 = vadd.f32 0.0, %v1228
  %v1230 = vpop.f32.mrf.mxu0
  %1231 = vmatprep.mubr.bf16.mxu0 0
  %1232 = vmatmul.mubr.bf16.gmra.mxu0 %v612
  %v1233 = vpop.f32.mrf.mxu0
  %v1234 = vadd.f32 0.0, %v1233
  %v1235 = vpop.f32.mrf.mxu0
  %v1236 = vpop.f32.mrf.mxu0
  %v1237 = vadd.f32 0.0, %v1236
  %v1238 = vpop.f32.mrf.mxu0
  %1239 = vmatprep.mubr.bf16.mxu0 0
  %1240 = vmatmul.mubr.bf16.gmra.mxu0 %v615
  %v1241 = vpop.f32.mrf.mxu0
  %v1242 = vadd.f32 0.0, %v1241
  %v1243 = vpop.f32.mrf.mxu0
  %v1244 = vpop.f32.mrf.mxu0
  %v1245 = vadd.f32 0.0, %v1244
  %v1246 = vpop.f32.mrf.mxu0
  %1247 = vmatprep.mubr.bf16.mxu0 0
  %1248 = vmatmul.mubr.bf16.gmra.mxu0 %v618
  %v1249 = vpop.f32.mrf.mxu0
  %v1250 = vadd.f32 0.0, %v1249
  %v1251 = vpop.f32.mrf.mxu0
  %v1252 = vpop.f32.mrf.mxu0
  %v1253 = vadd.f32 0.0, %v1252
  %v1254 = vpop.f32.mrf.mxu0
  %1255 = vmatprep.mubr.bf16.mxu0 0
  %1256 = vmatmul.mubr.bf16.gmra.mxu0 %v621
  %v1257 = vpop.f32.mrf.mxu0
  %v1258 = vadd.f32 0.0, %v1257
  %v1259 = vpop.f32.mrf.mxu0
  %v1260 = vpop.f32.mrf.mxu0
  %v1261 = vadd.f32 0.0, %v1260
  %v1262 = vpop.f32.mrf.mxu0
  %1263 = vmatprep.mubr.bf16.mxu0 0
  %1264 = vmatmul.mubr.bf16.gmra.mxu0 %v624
  %v1265 = vpop.f32.mrf.mxu0
  %v1266 = vadd.f32 0.0, %v1265
  %v1267 = vpop.f32.mrf.mxu0
  %v1268 = vpop.f32.mrf.mxu0
  %v1269 = vadd.f32 0.0, %v1268
  %v1270 = vpop.f32.mrf.mxu0
  %1271 = vmatprep.mubr.bf16.mxu0 0
  %1272 = vmatmul.mubr.bf16.gmra.mxu0 %v627
  %v1273 = vpop.f32.mrf.mxu0
  %v1274 = vadd.f32 0.0, %v1273
  %v1275 = vpop.f32.mrf.mxu0
  %v1276 = vpop.f32.mrf.mxu0
  %v1277 = vadd.f32 0.0, %v1276
  %v1278 = vpop.f32.mrf.mxu0
  %1279 = vmatprep.mubr.bf16.mxu0 0
  %1280 = vmatmul.mubr.bf16.gmra.mxu0 %v630
  %v1281 = vpop.f32.mrf.mxu0
  %v1282 = vadd.f32 0.0, %v1281
  %v1283 = vpop.f32.mrf.mxu0
  %v1284 = vpop.f32.mrf.mxu0
  %v1285 = vadd.f32 0.0, %v1284
  %v1286 = vpop.f32.mrf.mxu0
  %1287 = vmatprep.mubr.bf16.mxu0 0
  %1288 = vmatmul.mubr.bf16.gmra.mxu0 %v633
  %v1289 = vpop.f32.mrf.mxu0
  %v1290 = vadd.f32 0.0, %v1289
  %v1291 = vpop.f32.mrf.mxu0
  %v1292 = vpop.f32.mrf.mxu0
  %v1293 = vadd.f32 0.0, %v1292
  %v1294 = vpop.f32.mrf.mxu0
  %1295 = vmatprep.mubr.bf16.mxu0 0
  %1296 = vmatmul.mubr.bf16.gmra.mxu0 %v636
  %v1297 = vpop.f32.mrf.mxu0
  %v1298 = vadd.f32 0.0, %v1297
  %v1299 = vpop.f32.mrf.mxu0
  %v1300 = vpop.f32.mrf.mxu0
  %v1301 = vadd.f32 0.0, %v1300
  %v1302 = vpop.f32.mrf.mxu0
  %1303 = vmatprep.mubr.bf16.mxu0 0
  %1304 = vmatmul.mubr.bf16.gmra.mxu0 %v639
  %v1305 = vpop.f32.mrf.mxu0
  %v1306 = vadd.f32 0.0, %v1305
  %v1307 = vpop.f32.mrf.mxu0
  %v1308 = vpop.f32.mrf.mxu0
  %v1309 = vadd.f32 0.0, %v1308
  %v1310 = vpop.f32.mrf.mxu0
  %1311 = vmatprep.mubr.bf16.mxu0 0
  %1312 = vmatmul.mubr.bf16.gmra.mxu0 %v642
  %v1313 = vpop.f32.mrf.mxu0
  %v1314 = vadd.f32 0.0, %v1313
  %v1315 = vpop.f32.mrf.mxu0
  %v1316 = vpop.f32.mrf.mxu0
  %v1317 = vadd.f32 0.0, %v1316
  %v1318 = vpop.f32.mrf.mxu0
  %1319 = vmatprep.mubr.bf16.mxu0 0
  %1320 = vmatmul.mubr.bf16.gmra.mxu0 %v645
  %v1321 = vpop.f32.mrf.mxu0
  %v1322 = vadd.f32 0.0, %v1321
  %v1323 = vpop.f32.mrf.mxu0
  %v1324 = vpop.f32.mrf.mxu0
  %v1325 = vadd.f32 0.0, %v1324
  %v1326 = vpop.f32.mrf.mxu0
  %1327 = vmatprep.mubr.bf16.mxu0 0
  %1328 = vmatmul.mubr.bf16.gmra.mxu0 %v648
  %v1329 = vpop.f32.mrf.mxu0
  %v1330 = vadd.f32 0.0, %v1329
  %v1331 = vpop.f32.mrf.mxu0
  %v1332 = vpop.f32.mrf.mxu0
  %v1333 = vadd.f32 0.0, %v1332
  %v1334 = vpop.f32.mrf.mxu0
  %1335 = vmatprep.mubr.bf16.mxu0 0
  %1336 = vmatmul.mubr.bf16.gmra.mxu0 %v651
  %v1337 = vpop.f32.mrf.mxu0
  %v1338 = vadd.f32 0.0, %v1337
  %v1339 = vpop.f32.mrf.mxu0
  %v1340 = vpop.f32.mrf.mxu0
  %v1341 = vadd.f32 0.0, %v1340
  %v1342 = vpop.f32.mrf.mxu0
  %1343 = vmatprep.mubr.bf16.mxu0 0
  %1344 = vmatmul.mubr.bf16.gmra.mxu0 %v654
  %v1345 = vpop.f32.mrf.mxu0
  %v1346 = vadd.f32 0.0, %v1345
  %v1347 = vpop.f32.mrf.mxu0
  %v1348 = vpop.f32.mrf.mxu0
  %v1349 = vadd.f32 0.0, %v1348
  %v1350 = vpop.f32.mrf.mxu0
  %1351 = vmatprep.mubr.bf16.mxu0 0
  %1352 = vmatmul.mubr.bf16.gmra.mxu0 %v657
  %v1353 = vpop.f32.mrf.mxu0
  %v1354 = vadd.f32 0.0, %v1353
  %v1355 = vpop.f32.mrf.mxu0
  %v1356 = vpop.f32.mrf.mxu0
  %v1357 = vadd.f32 0.0, %v1356
  %v1358 = vpop.f32.mrf.mxu0
  %1359 = vmatprep.mubr.bf16.mxu0 0
  %1360 = vmatmul.mubr.bf16.gmra.mxu0 %v660
  %v1361 = vpop.f32.mrf.mxu0
  %v1362 = vadd.f32 0.0, %v1361
  %v1363 = vpop.f32.mrf.mxu0
  %v1364 = vpop.f32.mrf.mxu0
  %v1365 = vadd.f32 0.0, %v1364
  %v1366 = vpop.f32.mrf.mxu0
  %1367 = vmatprep.mubr.bf16.mxu0 0
  %1368 = vmatmul.mubr.bf16.gmra.mxu0 %v663
  %v1369 = vpop.f32.mrf.mxu0
  %v1370 = vadd.f32 0.0, %v1369
  %v1371 = vpop.f32.mrf.mxu0
  %v1372 = vpop.f32.mrf.mxu0
  %v1373 = vadd.f32 0.0, %v1372
  %v1374 = vpop.f32.mrf.mxu0
  %1375 = vmatprep.mubr.bf16.mxu0 0
  %1376 = vmatmul.mubr.bf16.gmra.mxu0 %v666
  %v1377 = vpop.f32.mrf.mxu0
  %v1378 = vadd.f32 0.0, %v1377
  %v1379 = vpop.f32.mrf.mxu0
  %v1380 = vpop.f32.mrf.mxu0
  %v1381 = vadd.f32 0.0, %v1380
  %v1382 = vpop.f32.mrf.mxu0
  %1383 = vmatprep.mubr.bf16.mxu0 0
  %1384 = vmatmul.mubr.bf16.gmra.mxu0 %v669
  %v1385 = vpop.f32.mrf.mxu0
  %v1386 = vadd.f32 0.0, %v1385
  %v1387 = vpop.f32.mrf.mxu0
  %v1388 = vpop.f32.mrf.mxu0
  %v1389 = vadd.f32 0.0, %v1388
  %v1390 = vpop.f32.mrf.mxu0
  %1391 = vmatprep.mubr.bf16.mxu0 0
  %1392 = vmatmul.mubr.bf16.gmra.mxu0 %v672
  %v1393 = vpop.f32.mrf.mxu0
  %v1394 = vadd.f32 0.0, %v1393
  %v1395 = vpop.f32.mrf.mxu0
  %v1396 = vpop.f32.mrf.mxu0
  %v1397 = vadd.f32 0.0, %v1396
  %v1398 = vpop.f32.mrf.mxu0
  %1399 = vmatprep.mubr.bf16.mxu0 0
  %1400 = vmatmul.mubr.bf16.gmra.mxu0 %v675
  %v1401 = vpop.f32.mrf.mxu0
  %v1402 = vadd.f32 0.0, %v1401
  %v1403 = vpop.f32.mrf.mxu0
  %v1404 = vpop.f32.mrf.mxu0
  %v1405 = vadd.f32 0.0, %v1404
  %v1406 = vpop.f32.mrf.mxu0
  %1407 = vmatprep.mubr.bf16.mxu0 0
  %1408 = vmatmul.mubr.bf16.gmra.mxu0 %v678
  %v1409 = vpop.f32.mrf.mxu0
  %v1410 = vadd.f32 0.0, %v1409
  %v1411 = vpop.f32.mrf.mxu0
  %v1412 = vpop.f32.mrf.mxu0
  %v1413 = vadd.f32 0.0, %v1412
  %v1414 = vpop.f32.mrf.mxu0
  %1415 = vmatprep.mubr.bf16.mxu0 0
  %1416 = vmatmul.mubr.bf16.gmra.mxu0 %v681
  %v1417 = vpop.f32.mrf.mxu0
  %v1418 = vadd.f32 0.0, %v1417
  %v1419 = vpop.f32.mrf.mxu0
  %v1420 = vpop.f32.mrf.mxu0
  %v1421 = vadd.f32 0.0, %v1420
  %v1422 = vpop.f32.mrf.mxu0
  %1423 = vmatprep.mubr.bf16.mxu0 0
  %1424 = vmatmul.mubr.bf16.gmra.mxu0 %v684
  %v1425 = vpop.f32.mrf.mxu0
  %v1426 = vadd.f32 0.0, %v1425
  %v1427 = vpop.f32.mrf.mxu0
  %v1428 = vpop.f32.mrf.mxu0
  %v1429 = vadd.f32 0.0, %v1428
  %v1430 = vpop.f32.mrf.mxu0
  %1431 = vmatprep.mubr.bf16.mxu0 0
  %1432 = vmatmul.mubr.bf16.gmra.mxu0 %v687
  %v1433 = vpop.f32.mrf.mxu0
  %v1434 = vadd.f32 0.0, %v1433
  %v1435 = vpop.f32.mrf.mxu0
  %v1436 = vpop.f32.mrf.mxu0
  %v1437 = vadd.f32 0.0, %v1436
  %v1438 = vpop.f32.mrf.mxu0
  %1439 = vmatprep.mubr.bf16.mxu0 0
  %1440 = vmatmul.mubr.bf16.gmra.mxu0 %v690
  %v1441 = vpop.f32.mrf.mxu0
  %v1442 = vadd.f32 0.0, %v1441
  %v1443 = vpop.f32.mrf.mxu0
  %v1444 = vpop.f32.mrf.mxu0
  %v1445 = vadd.f32 0.0, %v1444
  %v1446 = vpop.f32.mrf.mxu0
  %1447 = vmatprep.mubr.bf16.mxu0 0
  %1448 = vmatmul.mubr.bf16.gmra.mxu0 %v693
  %v1449 = vpop.f32.mrf.mxu0
  %v1450 = vadd.f32 0.0, %v1449
  %v1451 = vpop.f32.mrf.mxu0
  %v1452 = vpop.f32.mrf.mxu0
  %v1453 = vadd.f32 0.0, %v1452
  %v1454 = vpop.f32.mrf.mxu0
  %1455 = vmatprep.mubr.bf16.mxu0 0
  %1456 = vmatmul.mubr.bf16.gmra.mxu0 %v696
  %v1457 = vpop.f32.mrf.mxu0
  %v1458 = vadd.f32 0.0, %v1457
  %v1459 = vpop.f32.mrf.mxu0
  %v1460 = vpop.f32.mrf.mxu0
  %v1461 = vadd.f32 0.0, %v1460
  %v1462 = vpop.f32.mrf.mxu0
  %1463 = vmatprep.mubr.bf16.mxu0 0
  %1464 = vmatmul.mubr.bf16.gmra.mxu0 %v699
  %v1465 = vpop.f32.mrf.mxu0
  %v1466 = vadd.f32 0.0, %v1465
  %v1467 = vpop.f32.mrf.mxu0
  %v1468 = vpop.f32.mrf.mxu0
  %v1469 = vadd.f32 0.0, %v1468
  %v1470 = vpop.f32.mrf.mxu0
  %1471 = vmatprep.mubr.bf16.mxu0 0
  %1472 = vmatmul.mubr.bf16.gmra.mxu0 %v702
  %v1473 = vpop.f32.mrf.mxu0
  %v1474 = vadd.f32 0.0, %v1473
  %v1475 = vpop.f32.mrf.mxu0
  %v1476 = vpop.f32.mrf.mxu0
  %v1477 = vadd.f32 0.0, %v1476
  %v1478 = vpop.f32.mrf.mxu0
  %1479 = vmatprep.mubr.bf16.mxu0 0
  %1480 = vmatmul.mubr.bf16.gmra.mxu0 %v705
  %v1481 = vpop.f32.mrf.mxu0
  %v1482 = vadd.f32 0.0, %v1481
  %v1483 = vpop.f32.mrf.mxu0
  %v1484 = vpop.f32.mrf.mxu0
  %v1485 = vadd.f32 0.0, %v1484
  %v1486 = vpop.f32.mrf.mxu0
  %1487 = vmatprep.mubr.bf16.mxu0 0
  %1488 = vmatmul.mubr.bf16.gmra.mxu0 %v708
  %v1489 = vpop.f32.mrf.mxu0
  %v1490 = vadd.f32 0.0, %v1489
  %v1491 = vpop.f32.mrf.mxu0
  %v1492 = vpop.f32.mrf.mxu0
  %v1493 = vadd.f32 0.0, %v1492
  %v1494 = vpop.f32.mrf.mxu0
  %1495 = vmatprep.mubr.bf16.mxu0 0
  %1496 = vmatmul.mubr.bf16.gmra.mxu0 %v711
  %v1497 = vpop.f32.mrf.mxu0
  %v1498 = vadd.f32 0.0, %v1497
  %v1499 = vpop.f32.mrf.mxu0
  %v1500 = vpop.f32.mrf.mxu0
  %v1501 = vadd.f32 0.0, %v1500
  %v1502 = vpop.f32.mrf.mxu0
  %1503 = vmatprep.mubr.bf16.mxu0 0
  %1504 = vmatmul.mubr.bf16.gmra.mxu0 %v714
  %v1505 = vpop.f32.mrf.mxu0
  %v1506 = vadd.f32 0.0, %v1505
  %v1507 = vpop.f32.mrf.mxu0
  %v1508 = vpop.f32.mrf.mxu0
  %v1509 = vadd.f32 0.0, %v1508
  %v1510 = vpop.f32.mrf.mxu0
  %1511 = vmatprep.mubr.bf16.mxu0 0
  %1512 = vmatmul.mubr.bf16.gmra.mxu0 %v717
  %v1513 = vpop.f32.mrf.mxu0
  %v1514 = vadd.f32 0.0, %v1513
  %v1515 = vpop.f32.mrf.mxu0
  %v1516 = vpop.f32.mrf.mxu0
  %v1517 = vadd.f32 0.0, %v1516
  %v1518 = vpop.f32.mrf.mxu0
  %1519 = vmatprep.mubr.bf16.mxu0 0
  %1520 = vmatmul.mubr.bf16.gmra.mxu0 %v720
  %v1521 = vpop.f32.mrf.mxu0
  %v1522 = vadd.f32 0.0, %v1521
  %v1523 = vpop.f32.mrf.mxu0
  %v1524 = vpop.f32.mrf.mxu0
  %v1525 = vadd.f32 0.0, %v1524
  %v1526 = vpop.f32.mrf.mxu0
  %1527 = vmatprep.mubr.bf16.mxu0 0
  %1528 = vmatmul.mubr.bf16.gmra.mxu0 %v723
  %v1529 = vpop.f32.mrf.mxu0
  %v1530 = vadd.f32 0.0, %v1529
  %v1531 = vpop.f32.mrf.mxu0
  %v1532 = vpop.f32.mrf.mxu0
  %v1533 = vadd.f32 0.0, %v1532
  %v1534 = vpop.f32.mrf.mxu0
  %1535 = vmatprep.mubr.bf16.mxu0 0
  %1536 = vmatmul.mubr.bf16.gmra.mxu0 %v726
  %v1537 = vpop.f32.mrf.mxu0
  %v1538 = vadd.f32 0.0, %v1537
  %v1539 = vpop.f32.mrf.mxu0
  %v1540 = vpop.f32.mrf.mxu0
  %v1541 = vadd.f32 0.0, %v1540
  %v1542 = vpop.f32.mrf.mxu0
  %1543 = vmatprep.mubr.bf16.mxu0 0
  %1544 = vmatmul.mubr.bf16.gmra.mxu0 %v729
  %v1545 = vpop.f32.mrf.mxu0
  %v1546 = vadd.f32 0.0, %v1545
  %v1547 = vpop.f32.mrf.mxu0
  %v1548 = vpop.f32.mrf.mxu0
  %v1549 = vadd.f32 0.0, %v1548
  %v1550 = vpop.f32.mrf.mxu0
  %1551 = vmatprep.mubr.bf16.mxu0 0
  %1552 = vmatmul.mubr.bf16.gmra.mxu0 %v732
  %v1553 = vpop.f32.mrf.mxu0
  %v1554 = vadd.f32 0.0, %v1553
  %v1555 = vpop.f32.mrf.mxu0
  %v1556 = vpop.f32.mrf.mxu0
  %v1557 = vadd.f32 0.0, %v1556
  %v1558 = vpop.f32.mrf.mxu0
  %1559 = vmatprep.mubr.bf16.mxu0 0
  %1560 = vmatmul.mubr.bf16.gmra.mxu0 %v735
  %v1561 = vpop.f32.mrf.mxu0
  %v1562 = vadd.f32 0.0, %v1561
  %v1563 = vpop.f32.mrf.mxu0
  %v1564 = vpop.f32.mrf.mxu0
  %v1565 = vadd.f32 0.0, %v1564
  %v1566 = vpop.f32.mrf.mxu0
  %1567 = vmatprep.mubr.bf16.mxu0 0
  %1568 = vmatmul.mubr.bf16.gmra.mxu0 %v738
  %v1569 = vpop.f32.mrf.mxu0
  %v1570 = vadd.f32 0.0, %v1569
  %v1571 = vpop.f32.mrf.mxu0
  %v1572 = vpop.f32.mrf.mxu0
  %v1573 = vadd.f32 0.0, %v1572
  %v1574 = vpop.f32.mrf.mxu0
  %1575 = vmatprep.mubr.bf16.mxu0 0
  %1576 = vmatmul.mubr.bf16.gmra.mxu0 %v741
  %v1577 = vpop.f32.mrf.mxu0
  %v1578 = vadd.f32 0.0, %v1577
  %v1579 = vpop.f32.mrf.mxu0
  %v1580 = vpop.f32.mrf.mxu0
  %v1581 = vadd.f32 0.0, %v1580
  %v1582 = vpop.f32.mrf.mxu0
  %1583 = vmatprep.mubr.bf16.mxu0 0
  %1584 = vmatmul.mubr.bf16.gmra.mxu0 %v744
  %v1585 = vpop.f32.mrf.mxu0
  %v1586 = vadd.f32 0.0, %v1585
  %v1587 = vpop.f32.mrf.mxu0
  %v1588 = vpop.f32.mrf.mxu0
  %v1589 = vadd.f32 0.0, %v1588
  %v1590 = vpop.f32.mrf.mxu0
  %1591 = vmatprep.mubr.bf16.mxu0 0
  %1592 = vmatmul.mubr.bf16.gmra.mxu0 %v747
  %v1593 = vpop.f32.mrf.mxu0
  %v1594 = vadd.f32 0.0, %v1593
  %v1595 = vpop.f32.mrf.mxu0
  %v1596 = vpop.f32.mrf.mxu0
  %v1597 = vadd.f32 0.0, %v1596
  %v1598 = vpop.f32.mrf.mxu0
  %1599 = vmatprep.mubr.bf16.mxu0 0
  %1600 = vmatmul.mubr.bf16.gmra.mxu0 %v750
  %v1601 = vpop.f32.mrf.mxu0
  %v1602 = vadd.f32 0.0, %v1601
  %v1603 = vpop.f32.mrf.mxu0
  %v1604 = vpop.f32.mrf.mxu0
  %v1605 = vadd.f32 0.0, %v1604
  %v1606 = vpop.f32.mrf.mxu0
  %1607 = vmatprep.mubr.bf16.mxu0 0
  %1608 = vmatmul.mubr.bf16.gmra.mxu0 %v753
  %v1609 = vpop.f32.mrf.mxu0
  %v1610 = vadd.f32 0.0, %v1609
  %v1611 = vpop.f32.mrf.mxu0
  %v1612 = vpop.f32.mrf.mxu0
  %v1613 = vadd.f32 0.0, %v1612
  %v1614 = vpop.f32.mrf.mxu0
  %1615 = vmatprep.mubr.bf16.mxu0 0
  %1616 = vmatmul.mubr.bf16.gmra.mxu0 %v756
  %v1617 = vpop.f32.mrf.mxu0
  %v1618 = vadd.f32 0.0, %v1617
  %v1619 = vpop.f32.mrf.mxu0
  %v1620 = vpop.f32.mrf.mxu0
  %v1621 = vadd.f32 0.0, %v1620
  %v1622 = vpop.f32.mrf.mxu0
  %1623 = vmatprep.mubr.bf16.mxu0 0
  %1624 = vmatmul.mubr.bf16.gmra.mxu0 %v759
  %v1625 = vpop.f32.mrf.mxu0
  %v1626 = vadd.f32 0.0, %v1625
  %v1627 = vpop.f32.mrf.mxu0
  %v1628 = vpop.f32.mrf.mxu0
  %v1629 = vadd.f32 0.0, %v1628
  %v1630 = vpop.f32.mrf.mxu0
  %1631 = vmatprep.mubr.bf16.mxu0 0
  %1632 = vmatmul.mubr.bf16.gmra.mxu0 %v762
  %v1633 = vpop.f32.mrf.mxu0
  %v1634 = vadd.f32 0.0, %v1633
  %v1635 = vpop.f32.mrf.mxu0
  %v1636 = vpop.f32.mrf.mxu0
  %v1637 = vadd.f32 0.0, %v1636
  %v1638 = vpop.f32.mrf.mxu0
  %1639 = vmatprep.mubr.bf16.mxu0 0
  %1640 = vmatmul.mubr.bf16.gmra.mxu0 %v765
  %v1641 = vpop.f32.mrf.mxu0
  %v1642 = vadd.f32 0.0, %v1641
  %v1643 = vpop.f32.mrf.mxu0
  %v1644 = vpop.f32.mrf.mxu0
  %v1645 = vadd.f32 0.0, %v1644
  %v1646 = vpop.f32.mrf.mxu0
  %1647 = vmatprep.mubr.bf16.mxu0 0
  %1648 = vmatmul.mubr.bf16.gmra.mxu0 %v768
  %v1649 = vpop.f32.mrf.mxu0
  %v1650 = vadd.f32 0.0, %v1649
  %v1651 = vpop.f32.mrf.mxu0
  %v1652 = vpop.f32.mrf.mxu0
  %v1653 = vadd.f32 0.0, %v1652
  %v1654 = vpop.f32.mrf.mxu0
  %1655 = vmatprep.mubr.bf16.mxu0 0
  %1656 = vmatmul.mubr.bf16.gmra.mxu0 %v771
  %v1657 = vpop.f32.mrf.mxu0
  %v1658 = vadd.f32 0.0, %v1657
  %v1659 = vpop.f32.mrf.mxu0
  %v1660 = vpop.f32.mrf.mxu0
  %v1661 = vadd.f32 0.0, %v1660
  %v1662 = vpop.f32.mrf.mxu0
  %1663 = vmatprep.mubr.bf16.mxu0 0
  %1664 = vmatmul.mubr.bf16.gmra.mxu0 %v774
  %v1665 = vpop.f32.mrf.mxu0
  %v1666 = vadd.f32 0.0, %v1665
  %v1667 = vpop.f32.mrf.mxu0
  %v1668 = vpop.f32.mrf.mxu0
  %v1669 = vadd.f32 0.0, %v1668
  %v1670 = vpop.f32.mrf.mxu0
  %1671 = vmatprep.mubr.bf16.mxu0 0
  %1672 = vmatmul.mubr.bf16.gmra.mxu0 %v777
  %v1673 = vpop.f32.mrf.mxu0
  %v1674 = vadd.f32 0.0, %v1673
  %v1675 = vpop.f32.mrf.mxu0
  %v1676 = vpop.f32.mrf.mxu0
  %v1677 = vadd.f32 0.0, %v1676
  %v1678 = vpop.f32.mrf.mxu0
  %1679 = vmatprep.mubr.bf16.mxu0 0
  %1680 = vmatmul.mubr.bf16.gmra.mxu0 %v780
  %v1681 = vpop.f32.mrf.mxu0
  %v1682 = vadd.f32 0.0, %v1681
  %v1683 = vpop.f32.mrf.mxu0
  %v1684 = vpop.f32.mrf.mxu0
  %v1685 = vadd.f32 0.0, %v1684
  %v1686 = vpop.f32.mrf.mxu0
  %1687 = vmatprep.mubr.bf16.mxu0 0
  %1688 = vmatmul.mubr.bf16.gmra.mxu0 %v783
  %v1689 = vpop.f32.mrf.mxu0
  %v1690 = vadd.f32 0.0, %v1689
  %v1691 = vpop.f32.mrf.mxu0
  %v1692 = vpop.f32.mrf.mxu0
  %v1693 = vadd.f32 0.0, %v1692
  %v1694 = vpop.f32.mrf.mxu0
  %1695 = vmatprep.mubr.bf16.mxu0 0
  %1696 = vmatmul.mubr.bf16.gmra.mxu0 %v786
  %v1697 = vpop.f32.mrf.mxu0
  %v1698 = vadd.f32 0.0, %v1697
  %v1699 = vpop.f32.mrf.mxu0
  %v1700 = vpop.f32.mrf.mxu0
  %v1701 = vadd.f32 0.0, %v1700
  %v1702 = vpop.f32.mrf.mxu0
  %1703 = vmatprep.mubr.bf16.mxu0 0
  %1704 = vmatmul.mubr.bf16.gmra.mxu0 %v789
  %v1705 = vpop.f32.mrf.mxu0
  %v1706 = vadd.f32 0.0, %v1705
  %v1707 = vpop.f32.mrf.mxu0
  %v1708 = vpop.f32.mrf.mxu0
  %v1709 = vadd.f32 0.0, %v1708
  %v1710 = vpop.f32.mrf.mxu0
  %1711 = vmatprep.mubr.bf16.mxu0 0
  %1712 = vmatmul.mubr.bf16.gmra.mxu0 %v792
  %v1713 = vpop.f32.mrf.mxu0
  %v1714 = vadd.f32 0.0, %v1713
  %v1715 = vpop.f32.mrf.mxu0
  %v1716 = vpop.f32.mrf.mxu0
  %v1717 = vadd.f32 0.0, %v1716
  %v1718 = vpop.f32.mrf.mxu0
  %1719 = vmatprep.mubr.bf16.mxu0 0
  %1720 = vmatmul.mubr.bf16.gmra.mxu0 %v795
  %v1721 = vpop.f32.mrf.mxu0
  %v1722 = vadd.f32 0.0, %v1721
  %v1723 = vpop.f32.mrf.mxu0
  %v1724 = vpop.f32.mrf.mxu0
  %v1725 = vadd.f32 0.0, %v1724
  %v1726 = vpop.f32.mrf.mxu0
  %1727 = vmatprep.mubr.bf16.mxu0 0
  %1728 = vmatmul.mubr.bf16.gmra.mxu0 %v798
  %v1729 = vpop.f32.mrf.mxu0
  %v1730 = vadd.f32 0.0, %v1729
  %v1731 = vpop.f32.mrf.mxu0
  %v1732 = vpop.f32.mrf.mxu0
  %v1733 = vadd.f32 0.0, %v1732
  %v1734 = vpop.f32.mrf.mxu0
  %1735 = vmatprep.mubr.bf16.mxu0 0
  %1736 = vmatmul.mubr.bf16.gmra.mxu0 %v801
  %v1737 = vpop.f32.mrf.mxu0
  %v1738 = vadd.f32 0.0, %v1737
  %v1739 = vpop.f32.mrf.mxu0
  %v1740 = vpop.f32.mrf.mxu0
  %v1741 = vadd.f32 0.0, %v1740
  %v1742 = vpop.f32.mrf.mxu0
  %1743 = vmatprep.mubr.bf16.mxu0 0
  %1744 = vmatmul.mubr.bf16.gmra.mxu0 %v804
  %v1745 = vpop.f32.mrf.mxu0
  %v1746 = vadd.f32 0.0, %v1745
  %v1747 = vpop.f32.mrf.mxu0
  %v1748 = vpop.f32.mrf.mxu0
  %v1749 = vadd.f32 0.0, %v1748
  %v1750 = vpop.f32.mrf.mxu0
  %1751 = vmatprep.mubr.bf16.mxu0 0
  %1752 = vmatmul.mubr.bf16.gmra.mxu0 %v807
  %v1753 = vpop.f32.mrf.mxu0
  %v1754 = vadd.f32 0.0, %v1753
  %v1755 = vpop.f32.mrf.mxu0
  %v1756 = vpop.f32.mrf.mxu0
  %v1757 = vadd.f32 0.0, %v1756
  %v1758 = vpop.f32.mrf.mxu0
  %1759 = vmatprep.mubr.bf16.mxu0 0
  %1760 = vmatmul.mubr.bf16.gmra.mxu0 %v810
  %v1761 = vpop.f32.mrf.mxu0
  %v1762 = vadd.f32 0.0, %v1761
  %v1763 = vpop.f32.mrf.mxu0
  %v1764 = vpop.f32.mrf.mxu0
  %v1765 = vadd.f32 0.0, %v1764
  %v1766 = vpop.f32.mrf.mxu0
  %1767 = vmatprep.mubr.bf16.mxu0 0
  %1768 = vmatmul.mubr.bf16.gmra.mxu0 %v813
  %v1769 = vpop.f32.mrf.mxu0
  %v1770 = vadd.f32 0.0, %v1769
  %v1771 = vpop.f32.mrf.mxu0
  %v1772 = vpop.f32.mrf.mxu0
  %v1773 = vadd.f32 0.0, %v1772
  %v1774 = vpop.f32.mrf.mxu0
  %1775 = vmatprep.mubr.bf16.mxu0 0
  %1776 = vmatmul.mubr.bf16.gmra.mxu0 %v816
  %v1777 = vpop.f32.mrf.mxu0
  %v1778 = vadd.f32 0.0, %v1777
  %v1779 = vpop.f32.mrf.mxu0
  %v1780 = vpop.f32.mrf.mxu0
  %v1781 = vadd.f32 0.0, %v1780
  %v1782 = vpop.f32.mrf.mxu0
  %1783 = vmatprep.mubr.bf16.mxu0 0
  %1784 = vmatmul.mubr.bf16.gmra.mxu0 %v819
  %v1785 = vpop.f32.mrf.mxu0
  %v1786 = vadd.f32 0.0, %v1785
  %v1787 = vpop.f32.mrf.mxu0
  %v1788 = vpop.f32.mrf.mxu0
  %v1789 = vadd.f32 0.0, %v1788
  %v1790 = vpop.f32.mrf.mxu0
  %1791 = vmatprep.mubr.bf16.mxu0 0
  %1792 = vmatmul.mubr.bf16.gmra.mxu0 %v822
  %v1793 = vpop.f32.mrf.mxu0
  %v1794 = vadd.f32 0.0, %v1793
  %v1795 = vpop.f32.mrf.mxu0
  %v1796 = vpop.f32.mrf.mxu0
  %v1797 = vadd.f32 0.0, %v1796
  %v1798 = vpop.f32.mrf.mxu0
  %1799 = vmatprep.mubr.bf16.mxu0 0
  %1800 = vmatmul.mubr.bf16.gmra.mxu0 %v825
  %v1801 = vpop.f32.mrf.mxu0
  %v1802 = vadd.f32 0.0, %v1801
  %v1803 = vpop.f32.mrf.mxu0
  %v1804 = vpop.f32.mrf.mxu0
  %v1805 = vadd.f32 0.0, %v1804
  %v1806 = vpop.f32.mrf.mxu0
  %1807 = vmatprep.mubr.bf16.mxu0 0
  %1808 = vmatmul.mubr.bf16.gmra.mxu0 %v828
  %v1809 = vpop.f32.mrf.mxu0
  %v1810 = vadd.f32 0.0, %v1809
  %v1811 = vpop.f32.mrf.mxu0
  %v1812 = vpop.f32.mrf.mxu0
  %v1813 = vadd.f32 0.0, %v1812
  %v1814 = vpop.f32.mrf.mxu0
  %1815 = vmatprep.mubr.bf16.mxu0 0
  %1816 = vmatmul.mubr.bf16.gmra.mxu0 %v831
  %v1817 = vpop.f32.mrf.mxu0
  %v1818 = vadd.f32 0.0, %v1817
  %v1819 = vpop.f32.mrf.mxu0
  %v1820 = vpop.f32.mrf.mxu0
  %v1821 = vadd.f32 0.0, %v1820
  %v1822 = vpop.f32.mrf.mxu0
  %1823 = vmatprep.mubr.bf16.mxu0 0
  %1824 = vmatmul.mubr.bf16.gmra.mxu0 %v834
  %v1825 = vpop.f32.mrf.mxu0
  %v1826 = vadd.f32 0.0, %v1825
  %v1827 = vpop.f32.mrf.mxu0
  %v1828 = vpop.f32.mrf.mxu0
  %v1829 = vadd.f32 0.0, %v1828
  %v1830 = vpop.f32.mrf.mxu0
  %1831 = vmatprep.mubr.bf16.mxu0 0
  %1832 = vmatmul.mubr.bf16.gmra.mxu0 %v837
  %v1833 = vpop.f32.mrf.mxu0
  %v1834 = vadd.f32 0.0, %v1833
  %v1835 = vpop.f32.mrf.mxu0
  %v1836 = vpop.f32.mrf.mxu0
  %v1837 = vadd.f32 0.0, %v1836
  %v1838 = vpop.f32.mrf.mxu0
  %1839 = vmatprep.mubr.bf16.mxu0 0
  %1840 = vmatmul.mubr.bf16.gmra.mxu0 %v840
  %v1841 = vpop.f32.mrf.mxu0
  %v1842 = vadd.f32 0.0, %v1841
  %v1843 = vpop.f32.mrf.mxu0
  %v1844 = vpop.f32.mrf.mxu0
  %v1845 = vadd.f32 0.0, %v1844
  %v1846 = vpop.f32.mrf.mxu0
  %1847 = vmatprep.mubr.bf16.mxu0 0
  %1848 = vmatmul.mubr.bf16.gmra.mxu0 %v843
  %v1849 = vpop.f32.mrf.mxu0
  %v1850 = vadd.f32 0.0, %v1849
  %v1851 = vpop.f32.mrf.mxu0
  %v1852 = vpop.f32.mrf.mxu0
  %v1853 = vadd.f32 0.0, %v1852
  %v1854 = vpop.f32.mrf.mxu0
  %1855 = vmatprep.mubr.bf16.mxu0 0
  %1856 = vmatmul.mubr.bf16.gmra.mxu0 %v846
  %v1857 = vpop.f32.mrf.mxu0
  %v1858 = vadd.f32 0.0, %v1857
  %v1859 = vpop.f32.mrf.mxu0
  %v1860 = vpop.f32.mrf.mxu0
  %v1861 = vadd.f32 0.0, %v1860
  %v1862 = vpop.f32.mrf.mxu0
  %1863 = vmatprep.mubr.bf16.mxu0 0
  %1864 = vmatmul.mubr.bf16.gmra.mxu0 %v849
  %v1865 = vpop.f32.mrf.mxu0
  %v1866 = vadd.f32 0.0, %v1865
  %v1867 = vpop.f32.mrf.mxu0
  %v1868 = vpop.f32.mrf.mxu0
  %v1869 = vadd.f32 0.0, %v1868
  %v1870 = vpop.f32.mrf.mxu0
  %1871 = vmatprep.mubr.bf16.mxu0 0
  %1872 = vmatmul.mubr.bf16.gmra.mxu0 %v852
  %v1873 = vpop.f32.mrf.mxu0
  %v1874 = vadd.f32 0.0, %v1873
  %v1875 = vpop.f32.mrf.mxu0
  %v1876 = vpop.f32.mrf.mxu0
  %v1877 = vadd.f32 0.0, %v1876
  %v1878 = vpop.f32.mrf.mxu0
  %1879 = vmatprep.mubr.bf16.mxu0 0
  %1880 = vmatmul.mubr.bf16.gmra.mxu0 %v855
  %v1881 = vpop.f32.mrf.mxu0
  %v1882 = vadd.f32 0.0, %v1881
  %v1883 = vpop.f32.mrf.mxu0
  %v1884 = vpop.f32.mrf.mxu0
  %v1885 = vadd.f32 0.0, %v1884
  %v1886 = vpop.f32.mrf.mxu0
  %1887 = vmatprep.mubr.bf16.mxu0 0
  %1888 = vmatmul.mubr.bf16.gmra.mxu0 %v858
  %v1889 = vpop.f32.mrf.mxu0
  %v1890 = vadd.f32 0.0, %v1889
  %v1891 = vpop.f32.mrf.mxu0
  %v1892 = vpop.f32.mrf.mxu0
  %v1893 = vadd.f32 0.0, %v1892
  %v1894 = vpop.f32.mrf.mxu0
  %1895 = vmatprep.mubr.bf16.mxu0 0
  %1896 = vmatmul.mubr.bf16.gmra.mxu0 %v861
  %v1897 = vpop.f32.mrf.mxu0
  %v1898 = vadd.f32 0.0, %v1897
  %v1899 = vpop.f32.mrf.mxu0
  %v1900 = vpop.f32.mrf.mxu0
  %v1901 = vadd.f32 0.0, %v1900
  %v1902 = vpop.f32.mrf.mxu0
  %1903 = vmatprep.mubr.bf16.mxu0 0
  %1904 = vmatmul.mubr.bf16.gmra.mxu0 %v864
  %v1905 = vpop.f32.mrf.mxu0
  %v1906 = vadd.f32 0.0, %v1905
  %v1907 = vpop.f32.mrf.mxu0
  %v1908 = vpop.f32.mrf.mxu0
  %v1909 = vadd.f32 0.0, %v1908
  %v1910 = vpop.f32.mrf.mxu0
  %1911 = vmatprep.mubr.bf16.mxu0 0
  %1912 = vmatmul.mubr.bf16.gmra.mxu0 %v867
  %v1913 = vpop.f32.mrf.mxu0
  %v1914 = vadd.f32 0.0, %v1913
  %v1915 = vpop.f32.mrf.mxu0
  %v1916 = vpop.f32.mrf.mxu0
  %v1917 = vadd.f32 0.0, %v1916
  %v1918 = vpop.f32.mrf.mxu0
  %1919 = vmatprep.mubr.bf16.mxu0 0
  %1920 = vmatmul.mubr.bf16.gmra.mxu0 %v870
  %v1921 = vpop.f32.mrf.mxu0
  %v1922 = vadd.f32 0.0, %v1921
  %v1923 = vpop.f32.mrf.mxu0
  %v1924 = vpop.f32.mrf.mxu0
  %v1925 = vadd.f32 0.0, %v1924
  %v1926 = vpop.f32.mrf.mxu0
  %1927 = vmatprep.mubr.bf16.mxu0 0
  %1928 = vmatmul.mubr.bf16.gmra.mxu0 %v873
  %v1929 = vpop.f32.mrf.mxu0
  %v1930 = vadd.f32 0.0, %v1929
  %v1931 = vpop.f32.mrf.mxu0
  %v1932 = vpop.f32.mrf.mxu0
  %v1933 = vadd.f32 0.0, %v1932
  %v1934 = vpop.f32.mrf.mxu0
  %1935 = vmatprep.mubr.bf16.mxu0 0
  %1936 = vmatmul.mubr.bf16.gmra.mxu0 %v876
  %v1937 = vpop.f32.mrf.mxu0
  %v1938 = vadd.f32 0.0, %v1937
  %v1939 = vpop.f32.mrf.mxu0
  %v1940 = vpop.f32.mrf.mxu0
  %v1941 = vadd.f32 0.0, %v1940
  %v1942 = vpop.f32.mrf.mxu0
  %1943 = vmatprep.mubr.bf16.mxu0 0
  %1944 = vmatmul.mubr.bf16.gmra.mxu0 %v879
  %v1945 = vpop.f32.mrf.mxu0
  %v1946 = vadd.f32 0.0, %v1945
  %v1947 = vpop.f32.mrf.mxu0
  %v1948 = vpop.f32.mrf.mxu0
  %v1949 = vadd.f32 0.0, %v1948
  %v1950 = vpop.f32.mrf.mxu0
  %1951 = vmatprep.mubr.bf16.mxu0 0
  %1952 = vmatmul.mubr.bf16.gmra.mxu0 %v882
  %v1953 = vpop.f32.mrf.mxu0
  %v1954 = vadd.f32 0.0, %v1953
  %v1955 = vpop.f32.mrf.mxu0
  %v1956 = vpop.f32.mrf.mxu0
  %v1957 = vadd.f32 0.0, %v1956
  %v1958 = vpop.f32.mrf.mxu0
  %1959 = vmatprep.mubr.bf16.mxu0 0
  %1960 = vmatmul.mubr.bf16.gmra.mxu0 %v885
  %v1961 = vpop.f32.mrf.mxu0
  %v1962 = vadd.f32 0.0, %v1961
  %v1963 = vpop.f32.mrf.mxu0
  %v1964 = vpop.f32.mrf.mxu0
  %v1965 = vadd.f32 0.0, %v1964
  %v1966 = vpop.f32.mrf.mxu0
  %1967 = vmatprep.mubr.bf16.mxu0 0
  %1968 = vmatmul.mubr.bf16.gmra.mxu0 %v888
  %v1969 = vpop.f32.mrf.mxu0
  %v1970 = vadd.f32 0.0, %v1969
  %v1971 = vpop.f32.mrf.mxu0
  %v1972 = vpop.f32.mrf.mxu0
  %v1973 = vadd.f32 0.0, %v1972
  %v1974 = vpop.f32.mrf.mxu0
  %1975 = vmatprep.mubr.bf16.mxu0 0
  %1976 = vmatmul.mubr.bf16.gmra.mxu0 %v891
  %v1977 = vpop.f32.mrf.mxu0
  %v1978 = vadd.f32 0.0, %v1977
  %v1979 = vpop.f32.mrf.mxu0
  %v1980 = vpop.f32.mrf.mxu0
  %v1981 = vadd.f32 0.0, %v1980
  %v1982 = vpop.f32.mrf.mxu0
  %1983 = vmatprep.mubr.bf16.mxu0 0
  %1984 = vmatmul.mubr.bf16.gmra.mxu0 %v894
  %v1985 = vpop.f32.mrf.mxu0
  %v1986 = vadd.f32 0.0, %v1985
  %v1987 = vpop.f32.mrf.mxu0
  %v1988 = vpop.f32.mrf.mxu0
  %v1989 = vadd.f32 0.0, %v1988
  %v1990 = vpop.f32.mrf.mxu0
  %1991 = vmatprep.mubr.bf16.mxu0 0
  %1992 = vmatmul.mubr.bf16.gmra.mxu0 %v897
  %v1993 = vpop.f32.mrf.mxu0
  %v1994 = vadd.f32 0.0, %v1993
  %v1995 = vpop.f32.mrf.mxu0
  %v1996 = vpop.f32.mrf.mxu0
  %v1997 = vadd.f32 0.0, %v1996
  %v1998 = vpop.f32.mrf.mxu0
  %1999 = vmatprep.mubr.bf16.mxu0 0
  %2000 = vmatmul.mubr.bf16.gmra.mxu0 %v900
  %v2001 = vpop.f32.mrf.mxu0
  %v2002 = vadd.f32 0.0, %v2001
  %v2003 = vpop.f32.mrf.mxu0
  %v2004 = vpop.f32.mrf.mxu0
  %v2005 = vadd.f32 0.0, %v2004
  %v2006 = vpop.f32.mrf.mxu0
  %2007 = vmatprep.mubr.bf16.mxu0 0
  %2008 = vmatmul.mubr.bf16.gmra.mxu0 %v903
  %v2009 = vpop.f32.mrf.mxu0
  %v2010 = vadd.f32 0.0, %v2009
  %v2011 = vpop.f32.mrf.mxu0
  %v2012 = vpop.f32.mrf.mxu0
  %v2013 = vadd.f32 0.0, %v2012
  %v2014 = vpop.f32.mrf.mxu0
  %2015 = vmatprep.mubr.bf16.mxu0 0
  %2016 = vmatmul.mubr.bf16.gmra.mxu0 %v906
  %v2017 = vpop.f32.mrf.mxu0
  %v2018 = vadd.f32 0.0, %v2017
  %v2019 = vpop.f32.mrf.mxu0
  %v2020 = vpop.f32.mrf.mxu0
  %v2021 = vadd.f32 0.0, %v2020
  %v2022 = vpop.f32.mrf.mxu0
  %2023 = vmatprep.mubr.bf16.mxu0 0
  %2024 = vmatmul.mubr.bf16.gmra.mxu0 %v909
  %v2025 = vpop.f32.mrf.mxu0
  %v2026 = vadd.f32 0.0, %v2025
  %v2027 = vpop.f32.mrf.mxu0
  %v2028 = vpop.f32.mrf.mxu0
  %v2029 = vadd.f32 0.0, %v2028
  %v2030 = vpop.f32.mrf.mxu0
  %2031 = vmatprep.mubr.bf16.mxu0 0
  %2032 = vmatmul.mubr.bf16.gmra.mxu0 %v912
  %v2033 = vpop.f32.mrf.mxu0
  %v2034 = vadd.f32 0.0, %v2033
  %v2035 = vpop.f32.mrf.mxu0
  %v2036 = vpop.f32.mrf.mxu0
  %v2037 = vadd.f32 0.0, %v2036
  %v2038 = vpop.f32.mrf.mxu0
  %2039 = vmatprep.mubr.bf16.mxu0 0
  %2040 = vmatmul.mubr.bf16.gmra.mxu0 %v915
  %v2041 = vpop.f32.mrf.mxu0
  %v2042 = vadd.f32 0.0, %v2041
  %v2043 = vpop.f32.mrf.mxu0
  %v2044 = vpop.f32.mrf.mxu0
  %v2045 = vadd.f32 0.0, %v2044
  %v2046 = vpop.f32.mrf.mxu0
  %2047 = vmatprep.mubr.bf16.mxu0 0
  %2048 = vmatmul.mubr.bf16.gmra.mxu0 %v918
  %v2049 = vpop.f32.mrf.mxu0
  %v2050 = vadd.f32 0.0, %v2049
  %v2051 = vpop.f32.mrf.mxu0
  %v2052 = vpop.f32.mrf.mxu0
  %v2053 = vadd.f32 0.0, %v2052
  %v2054 = vpop.f32.mrf.mxu0
  %2055 = vmatprep.mubr.bf16.mxu0 0
  %2056 = vmatmul.mubr.bf16.gmra.mxu0 %v921
  %v2057 = vpop.f32.mrf.mxu0
  %v2058 = vadd.f32 0.0, %v2057
  %v2059 = vpop.f32.mrf.mxu0
  %v2060 = vpop.f32.mrf.mxu0
  %v2061 = vadd.f32 0.0, %v2060
  %v2062 = vpop.f32.mrf.mxu0
  %2063 = vmatprep.mubr.bf16.mxu0 0
  %2064 = vmatmul.mubr.bf16.gmra.mxu0 %v924
  %v2065 = vpop.f32.mrf.mxu0
  %v2066 = vadd.f32 0.0, %v2065
  %v2067 = vpop.f32.mrf.mxu0
  %v2068 = vpop.f32.mrf.mxu0
  %v2069 = vadd.f32 0.0, %v2068
  %v2070 = vpop.f32.mrf.mxu0
  %2071 = vmatprep.mubr.bf16.mxu0 0
  %2072 = vmatmul.mubr.bf16.gmra.mxu0 %v927
  %v2073 = vpop.f32.mrf.mxu0
  %v2074 = vadd.f32 0.0, %v2073
  %v2075 = vpop.f32.mrf.mxu0
  %v2076 = vpop.f32.mrf.mxu0
  %v2077 = vadd.f32 0.0, %v2076
  %v2078 = vpop.f32.mrf.mxu0
  %2079 = vmatprep.mubr.bf16.mxu0 0
  %2080 = vmatmul.mubr.bf16.gmra.mxu0 %v930
  %v2081 = vpop.f32.mrf.mxu0
  %v2082 = vadd.f32 0.0, %v2081
  %v2083 = vpop.f32.mrf.mxu0
  %v2084 = vpop.f32.mrf.mxu0
  %v2085 = vadd.f32 0.0, %v2084
  %v2086 = vpop.f32.mrf.mxu0
  %2087 = vmatprep.mubr.bf16.mxu0 0
  %2088 = vmatmul.mubr.bf16.gmra.mxu0 %v933
  %v2089 = vpop.f32.mrf.mxu0
  %v2090 = vadd.f32 0.0, %v2089
  %v2091 = vpop.f32.mrf.mxu0
  %v2092 = vpop.f32.mrf.mxu0
  %v2093 = vadd.f32 0.0, %v2092
  %v2094 = vpop.f32.mrf.mxu0
  %2095 = vmatprep.mubr.bf16.mxu0 0
  %2096 = vmatmul.mubr.bf16.gmra.mxu0 %v936
  %v2097 = vpop.f32.mrf.mxu0
  %v2098 = vadd.f32 0.0, %v2097
  %v2099 = vpop.f32.mrf.mxu0
  %v2100 = vpop.f32.mrf.mxu0
  %v2101 = vadd.f32 0.0, %v2100
  %v2102 = vpop.f32.mrf.mxu0
  %2103 = vmatprep.mubr.bf16.mxu0 0
  %2104 = vmatmul.mubr.bf16.gmra.mxu0 %v939
  %v2105 = vpop.f32.mrf.mxu0
  %v2106 = vadd.f32 0.0, %v2105
  %v2107 = vpop.f32.mrf.mxu0
  %v2108 = vpop.f32.mrf.mxu0
  %v2109 = vadd.f32 0.0, %v2108
  %v2110 = vpop.f32.mrf.mxu0
  %2111 = vmatprep.mubr.bf16.mxu0 0
  %2112 = vmatmul.mubr.bf16.gmra.mxu0 %v942
  %v2113 = vpop.f32.mrf.mxu0
  %v2114 = vadd.f32 0.0, %v2113
  %v2115 = vpop.f32.mrf.mxu0
  %v2116 = vpop.f32.mrf.mxu0
  %v2117 = vadd.f32 0.0, %v2116
  %v2118 = vpop.f32.mrf.mxu0
  %2119 = vmatprep.mubr.bf16.mxu0 0
  %2120 = vmatmul.mubr.bf16.gmra.mxu0 %v945
  %v2121 = vpop.f32.mrf.mxu0
  %v2122 = vadd.f32 0.0, %v2121
  %v2123 = vpop.f32.mrf.mxu0
  %v2124 = vpop.f32.mrf.mxu0
  %v2125 = vadd.f32 0.0, %v2124
  %v2126 = vpop.f32.mrf.mxu0
  %2127 = vmatprep.mubr.bf16.mxu0 0
  %2128 = vmatmul.mubr.bf16.gmra.mxu0 %v948
  %v2129 = vpop.f32.mrf.mxu0
  %v2130 = vadd.f32 0.0, %v2129
  %v2131 = vpop.f32.mrf.mxu0
  %v2132 = vpop.f32.mrf.mxu0
  %v2133 = vadd.f32 0.0, %v2132
  %v2134 = vpop.f32.mrf.mxu0
  %2135 = vmatprep.mubr.bf16.mxu0 0
  %2136 = vmatmul.mubr.bf16.gmra.mxu0 %v951
  %v2137 = vpop.f32.mrf.mxu0
  %v2138 = vadd.f32 0.0, %v2137
  %v2139 = vpop.f32.mrf.mxu0
  %v2140 = vpop.f32.mrf.mxu0
  %v2141 = vadd.f32 0.0, %v2140
  %v2142 = vpop.f32.mrf.mxu0
  %2143 = vmatprep.mubr.bf16.mxu0 0
  %2144 = vmatmul.mubr.bf16.gmra.mxu0 %v954
  %v2145 = vpop.f32.mrf.mxu0
  %v2146 = vadd.f32 0.0, %v2145
  %v2147 = vpop.f32.mrf.mxu0
  %v2148 = vpop.f32.mrf.mxu0
  %v2149 = vadd.f32 0.0, %v2148
  %v2150 = vpop.f32.mrf.mxu0
  %2151 = vmatprep.mubr.bf16.mxu0 0
  %2152 = vmatmul.mubr.bf16.gmra.mxu0 %v957
  %v2153 = vpop.f32.mrf.mxu0
  %v2154 = vadd.f32 0.0, %v2153
  %v2155 = vpop.f32.mrf.mxu0
  %v2156 = vpop.f32.mrf.mxu0
  %v2157 = vadd.f32 0.0, %v2156
  %v2158 = vpop.f32.mrf.mxu0
  %2159 = vmatprep.mubr.bf16.mxu0 0
  %2160 = vmatmul.mubr.bf16.gmra.mxu0 %v960
  %v2161 = vpop.f32.mrf.mxu0
  %v2162 = vadd.f32 0.0, %v2161
  %v2163 = vpop.f32.mrf.mxu0
  %v2164 = vpop.f32.mrf.mxu0
  %v2165 = vadd.f32 0.0, %v2164
  %v2166 = vpop.f32.mrf.mxu0
  %2167 = vmatprep.mubr.bf16.mxu0 0
  %2168 = vmatmul.mubr.bf16.gmra.mxu0 %v963
  %v2169 = vpop.f32.mrf.mxu0
  %v2170 = vadd.f32 0.0, %v2169
  %v2171 = vpop.f32.mrf.mxu0
  %v2172 = vpop.f32.mrf.mxu0
  %v2173 = vadd.f32 0.0, %v2172
  %v2174 = vpop.f32.mrf.mxu0
  %2175 = vmatprep.mubr.bf16.mxu0 0
  %2176 = vmatmul.mubr.bf16.gmra.mxu0 %v966
  %v2177 = vpop.f32.mrf.mxu0
  %v2178 = vadd.f32 0.0, %v2177
  %v2179 = vpop.f32.mrf.mxu0
  %v2180 = vpop.f32.mrf.mxu0
  %v2181 = vadd.f32 0.0, %v2180
  %v2182 = vpop.f32.mrf.mxu0
  %2183 = vmatprep.mubr.bf16.mxu0 0
  %2184 = vmatmul.mubr.bf16.gmra.mxu0 %v969
  %v2185 = vpop.f32.mrf.mxu0
  %v2186 = vadd.f32 0.0, %v2185
  %v2187 = vpop.f32.mrf.mxu0
  %v2188 = vpop.f32.mrf.mxu0
  %v2189 = vadd.f32 0.0, %v2188
  %v2190 = vpop.f32.mrf.mxu0
  %2191 = vmatprep.mubr.bf16.mxu0 0
  %2192 = vmatmul.mubr.bf16.gmra.mxu0 %v972
  %v2193 = vpop.f32.mrf.mxu0
  %v2194 = vadd.f32 0.0, %v2193
  %v2195 = vpop.f32.mrf.mxu0
  %v2196 = vpop.f32.mrf.mxu0
  %v2197 = vadd.f32 0.0, %v2196
  %v2198 = vpop.f32.mrf.mxu0
  %2199 = vmatprep.mubr.bf16.mxu0 0
  %2200 = vmatmul.mubr.bf16.gmra.mxu0 %v975
  %v2201 = vpop.f32.mrf.mxu0
  %v2202 = vadd.f32 0.0, %v2201
  %v2203 = vpop.f32.mrf.mxu0
  %v2204 = vpop.f32.mrf.mxu0
  %v2205 = vadd.f32 0.0, %v2204
  %v2206 = vpop.f32.mrf.mxu0
  %2207 = vmatprep.mubr.bf16.mxu0 0
  %2208 = vmatmul.mubr.bf16.gmra.mxu0 %v978
  %v2209 = vpop.f32.mrf.mxu0
  %v2210 = vadd.f32 0.0, %v2209
  %v2211 = vpop.f32.mrf.mxu0
  %v2212 = vpop.f32.mrf.mxu0
  %v2213 = vadd.f32 0.0, %v2212
  %v2214 = vpop.f32.mrf.mxu0
  %2215 = vmatprep.mubr.bf16.mxu0 0
  %2216 = vmatmul.mubr.bf16.gmra.mxu0 %v981
  %v2217 = vpop.f32.mrf.mxu0
  %v2218 = vadd.f32 0.0, %v2217
  %v2219 = vpop.f32.mrf.mxu0
  %v2220 = vpop.f32.mrf.mxu0
  %v2221 = vadd.f32 0.0, %v2220
  %v2222 = vpop.f32.mrf.mxu0
  %2223 = vmatprep.mubr.bf16.mxu0 0
  %2224 = vmatmul.mubr.bf16.gmra.mxu0 %v984
  %v2225 = vpop.f32.mrf.mxu0
  %v2226 = vadd.f32 0.0, %v2225
  %v2227 = vpop.f32.mrf.mxu0
  %v2228 = vpop.f32.mrf.mxu0
  %v2229 = vadd.f32 0.0, %v2228
  %v2230 = vpop.f32.mrf.mxu0
  %2231 = vmatprep.mubr.bf16.mxu0 0
  %2232 = vmatmul.mubr.bf16.gmra.mxu0 %v987
  %v2233 = vpop.f32.mrf.mxu0
  %v2234 = vadd.f32 0.0, %v2233
  %v2235 = vpop.f32.mrf.mxu0
  %v2236 = vpop.f32.mrf.mxu0
  %v2237 = vadd.f32 0.0, %v2236
  %v2238 = vpop.f32.mrf.mxu0
  %2239 = vmatprep.mubr.bf16.mxu0 0
  %2240 = vmatmul.mubr.bf16.gmra.mxu0 %v990
  %v2241 = vpop.f32.mrf.mxu0
  %v2242 = vadd.f32 0.0, %v2241
  %v2243 = vpop.f32.mrf.mxu0
  %v2244 = vpop.f32.mrf.mxu0
  %v2245 = vadd.f32 0.0, %v2244
  %v2246 = vpop.f32.mrf.mxu0
  %2247 = vmatprep.mubr.bf16.mxu0 0
  %2248 = vmatmul.mubr.bf16.gmra.mxu0 %v993
  %v2249 = vpop.f32.mrf.mxu0
  %v2250 = vadd.f32 0.0, %v2249
  %v2251 = vpop.f32.mrf.mxu0
  %v2252 = vpop.f32.mrf.mxu0
  %v2253 = vadd.f32 0.0, %v2252
  %v2254 = vpop.f32.mrf.mxu0
  %2255 = vmatprep.mubr.bf16.mxu0 0
  %2256 = vmatmul.mubr.bf16.gmra.mxu0 %v996
  %v2257 = vpop.f32.mrf.mxu0
  %v2258 = vadd.f32 0.0, %v2257
  %v2259 = vpop.f32.mrf.mxu0
  %v2260 = vpop.f32.mrf.mxu0
  %v2261 = vadd.f32 0.0, %v2260
  %v2262 = vpop.f32.mrf.mxu0
  %2263 = vmatprep.mubr.bf16.mxu0 0
  %2264 = vmatmul.mubr.bf16.gmra.mxu0 %v999
  %v2265 = vpop.f32.mrf.mxu0
  %v2266 = vadd.f32 0.0, %v2265
  %v2267 = vpop.f32.mrf.mxu0
  %v2268 = vpop.f32.mrf.mxu0
  %v2269 = vadd.f32 0.0, %v2268
  %v2270 = vpop.f32.mrf.mxu0
  %2271 = vmatprep.mubr.bf16.mxu0 0
  %2272 = vmatmul.mubr.bf16.gmra.mxu0 %v1002
  %v2273 = vpop.f32.mrf.mxu0
  %v2274 = vadd.f32 0.0, %v2273
  %v2275 = vpop.f32.mrf.mxu0
  %v2276 = vpop.f32.mrf.mxu0
  %v2277 = vadd.f32 0.0, %v2276
  %v2278 = vpop.f32.mrf.mxu0
  %2279 = vmatprep.mubr.bf16.mxu0 0
  %2280 = vmatmul.mubr.bf16.gmra.mxu0 %v1005
  %v2281 = vpop.f32.mrf.mxu0
  %v2282 = vadd.f32 0.0, %v2281
  %v2283 = vpop.f32.mrf.mxu0
  %v2284 = vpop.f32.mrf.mxu0
  %v2285 = vadd.f32 0.0, %v2284
  %v2286 = vpop.f32.mrf.mxu0
  %2287 = vmatprep.mubr.bf16.mxu0 0
  %2288 = vmatmul.mubr.bf16.gmra.mxu0 %v1008
  %v2289 = vpop.f32.mrf.mxu0
  %v2290 = vadd.f32 0.0, %v2289
  %v2291 = vpop.f32.mrf.mxu0
  %v2292 = vpop.f32.mrf.mxu0
  %v2293 = vadd.f32 0.0, %v2292
  %v2294 = vpop.f32.mrf.mxu0
  %2295 = vmatprep.mubr.bf16.mxu0 0
  %2296 = vmatmul.mubr.bf16.gmra.mxu0 %v1011
  %v2297 = vpop.f32.mrf.mxu0
  %v2298 = vadd.f32 0.0, %v2297
  %v2299 = vpop.f32.mrf.mxu0
  %v2300 = vpop.f32.mrf.mxu0
  %v2301 = vadd.f32 0.0, %v2300
  %v2302 = vpop.f32.mrf.mxu0
  %2303 = vmatprep.mubr.bf16.mxu0 0
  %2304 = vmatmul.mubr.bf16.gmra.mxu0 %v1014
  %v2305 = vpop.f32.mrf.mxu0
  %v2306 = vadd.f32 0.0, %v2305
  %v2307 = vpop.f32.mrf.mxu0
  %v2308 = vpop.f32.mrf.mxu0
  %v2309 = vadd.f32 0.0, %v2308
  %v2310 = vpop.f32.mrf.mxu0
  %2311 = vmatprep.mubr.bf16.mxu0 0
  %2312 = vmatmul.mubr.bf16.gmra.mxu0 %v1017
  %v2313 = vpop.f32.mrf.mxu0
  %v2314 = vadd.f32 0.0, %v2313
  %v2315 = vpop.f32.mrf.mxu0
  %v2316 = vpop.f32.mrf.mxu0
  %v2317 = vadd.f32 0.0, %v2316
  %v2318 = vpop.f32.mrf.mxu0
  %2319 = vmatprep.mubr.bf16.mxu0 0
  %2320 = vmatmul.mubr.bf16.gmra.mxu0 %v1020
  %v2321 = vpop.f32.mrf.mxu0
  %v2322 = vadd.f32 0.0, %v2321
  %v2323 = vpop.f32.mrf.mxu0
  %v2324 = vpop.f32.mrf.mxu0
  %v2325 = vadd.f32 0.0, %v2324
  %v2326 = vpop.f32.mrf.mxu0
  %2327 = vmatprep.mubr.bf16.mxu0 0
  %2328 = vmatmul.mubr.bf16.gmra.mxu0 %v1023
  %v2329 = vpop.f32.mrf.mxu0
  %v2330 = vadd.f32 0.0, %v2329
  %v2331 = vpop.f32.mrf.mxu0
  %v2332 = vpop.f32.mrf.mxu0
  %v2333 = vadd.f32 0.0, %v2332
  %v2334 = vpop.f32.mrf.mxu0
  %2335 = vmatprep.mubr.bf16.mxu0 0
  %2336 = vmatmul.mubr.bf16.gmra.mxu0 %v1026
  %v2337 = vpop.f32.mrf.mxu0
  %v2338 = vadd.f32 0.0, %v2337
  %v2339 = vpop.f32.mrf.mxu0
  %v2340 = vpop.f32.mrf.mxu0
  %v2341 = vadd.f32 0.0, %v2340
  %v2342 = vpop.f32.mrf.mxu0
  %2343 = vmatprep.mubr.bf16.mxu0 0
  %2344 = vmatmul.mubr.bf16.gmra.mxu0 %v1029
  %v2345 = vpop.f32.mrf.mxu0
  %v2346 = vadd.f32 0.0, %v2345
  %v2347 = vpop.f32.mrf.mxu0
  %v2348 = vpop.f32.mrf.mxu0
  %v2349 = vadd.f32 0.0, %v2348
  %v2350 = vpop.f32.mrf.mxu0
  %2351 = vmatprep.mubr.bf16.mxu0 0
  %2352 = vmatmul.mubr.bf16.gmra.mxu0 %v1032
  %v2353 = vpop.f32.mrf.mxu0
  %v2354 = vadd.f32 0.0, %v2353
  %v2355 = vpop.f32.mrf.mxu0
  %v2356 = vpop.f32.mrf.mxu0
  %v2357 = vadd.f32 0.0, %v2356
  %v2358 = vpop.f32.mrf.mxu0
  %2359 = vmatprep.mubr.bf16.mxu0 0
  %2360 = vmatmul.mubr.bf16.gmra.mxu0 %v1035
  %v2361 = vpop.f32.mrf.mxu0
  %v2362 = vadd.f32 0.0, %v2361
  %v2363 = vpop.f32.mrf.mxu0
  %v2364 = vpop.f32.mrf.mxu0
  %v2365 = vadd.f32 0.0, %v2364
  %v2366 = vpop.f32.mrf.mxu0
  %2367 = vmatprep.mubr.bf16.mxu0 0
  %2368 = vmatmul.mubr.bf16.gmra.mxu0 %v1038
  %v2369 = vpop.f32.mrf.mxu0
  %v2370 = vadd.f32 0.0, %v2369
  %v2371 = vpop.f32.mrf.mxu0
  %v2372 = vpop.f32.mrf.mxu0
  %v2373 = vadd.f32 0.0, %v2372
  %v2374 = vpop.f32.mrf.mxu0
  %2375 = vmatprep.mubr.bf16.mxu0 0
  %2376 = vmatmul.mubr.bf16.gmra.mxu0 %v1041
  %v2377 = vpop.f32.mrf.mxu0
  %v2378 = vadd.f32 0.0, %v2377
  %v2379 = vpop.f32.mrf.mxu0
  %v2380 = vpop.f32.mrf.mxu0
  %v2381 = vadd.f32 0.0, %v2380
  %v2382 = vpop.f32.mrf.mxu0
  %2383 = vmatprep.mubr.bf16.mxu0 0
  %2384 = vmatmul.mubr.bf16.gmra.mxu0 %v1044
  %v2385 = vpop.f32.mrf.mxu0
  %v2386 = vadd.f32 0.0, %v2385
  %v2387 = vpop.f32.mrf.mxu0
  %v2388 = vpop.f32.mrf.mxu0
  %v2389 = vadd.f32 0.0, %v2388
  %v2390 = vpop.f32.mrf.mxu0
  %2391 = vmatprep.mubr.bf16.mxu0 0
  %2392 = vmatmul.mubr.bf16.gmra.mxu0 %v1047
  %v2393 = vpop.f32.mrf.mxu0
  %v2394 = vadd.f32 0.0, %v2393
  %v2395 = vpop.f32.mrf.mxu0
  %v2396 = vpop.f32.mrf.mxu0
  %v2397 = vadd.f32 0.0, %v2396
  %v2398 = vpop.f32.mrf.mxu0
  %2399 = vmatprep.mubr.bf16.mxu0 0
  %2400 = vmatmul.mubr.bf16.gmra.mxu0 %v1050
  %v2401 = vpop.f32.mrf.mxu0
  %v2402 = vadd.f32 0.0, %v2401
  %v2403 = vpop.f32.mrf.mxu0
  %v2404 = vpop.f32.mrf.mxu0
  %v2405 = vadd.f32 0.0, %v2404
  %v2406 = vpop.f32.mrf.mxu0
  %2407 = vmatprep.mubr.bf16.mxu0 0
  %2408 = vmatmul.mubr.bf16.gmra.mxu0 %v1053
  %v2409 = vpop.f32.mrf.mxu0
  %v2410 = vadd.f32 0.0, %v2409
  %v2411 = vpop.f32.mrf.mxu0
  %v2412 = vpop.f32.mrf.mxu0
  %v2413 = vadd.f32 0.0, %v2412
  %v2414 = vpop.f32.mrf.mxu0
  %2415 = vmatprep.mubr.bf16.mxu0 0
  %2416 = vmatmul.mubr.bf16.gmra.mxu0 %v1056
  %v2417 = vpop.f32.mrf.mxu0
  %v2418 = vadd.f32 0.0, %v2417
  %v2419 = vpop.f32.mrf.mxu0
  %v2420 = vpop.f32.mrf.mxu0
  %v2421 = vadd.f32 0.0, %v2420
  %v2422 = vpop.f32.mrf.mxu0
  %2423 = vmatprep.mubr.bf16.mxu0 0
  %2424 = vmatmul.mubr.bf16.gmra.mxu0 %v1059
  %v2425 = vpop.f32.mrf.mxu0
  %v2426 = vadd.f32 0.0, %v2425
  %v2427 = vpop.f32.mrf.mxu0
  %v2428 = vpop.f32.mrf.mxu0
  %v2429 = vadd.f32 0.0, %v2428
  %v2430 = vpop.f32.mrf.mxu0
  %2431 = vmatprep.mubr.bf16.mxu0 0
  %2432 = vmatmul.mubr.bf16.gmra.mxu0 %v1062
  %v2433 = vpop.f32.mrf.mxu0
  %v2434 = vadd.f32 0.0, %v2433
  %v2435 = vpop.f32.mrf.mxu0
  %v2436 = vpop.f32.mrf.mxu0
  %v2437 = vadd.f32 0.0, %v2436
  %v2438 = vpop.f32.mrf.mxu0
  %2439 = vmatprep.mubr.bf16.mxu0 0
  %2440 = vmatmul.mubr.bf16.gmra.mxu0 %v1065
  %v2441 = vpop.f32.mrf.mxu0
  %v2442 = vadd.f32 0.0, %v2441
  %v2443 = vpop.f32.mrf.mxu0
  %v2444 = vpop.f32.mrf.mxu0
  %v2445 = vadd.f32 0.0, %v2444
  %v2446 = vpop.f32.mrf.mxu0
  %2447 = vdwg.mxu0
  %2448 = vst [vmem:[#allocation2] sm:$0xff] %v1106
  %2449 = vst [vmem:[#allocation2 + $0x8] sm:$0xff] %v1109
  %2450 = vst [vmem:[#allocation2 + $0x10] sm:$0xff] %v1114
  %2451 = vst [vmem:[#allocation2 + $0x18] sm:$0xff] %v1117
  %2452 = vst [vmem:[#allocation2 + $0x20] sm:$0xff] %v1122
  %2453 = vst [vmem:[#allocation2 + $0x28] sm:$0xff] %v1125
  %2454 = vst [vmem:[#allocation2 + $0x30] sm:$0xff] %v1130
  %2455 = vst [vmem:[#allocation2 + $0x38] sm:$0xff] %v1133
  %2456 = vst [vmem:[#allocation2 + $0x40] sm:$0xff] %v1138
  %2457 = vst [vmem:[#allocation2 + $0x48] sm:$0xff] %v1141
  %2458 = vst [vmem:[#allocation2 + $0x50] sm:$0xff] %v1146
  %2459 = vst [vmem:[#allocation2 + $0x58] sm:$0xff] %v1149
  %2460 = vst [vmem:[#allocation2 + $0x60] sm:$0xff] %v1154
  %2461 = vst [vmem:[#allocation2 + $0x68] sm:$0xff] %v1157
  %2462 = vst [vmem:[#allocation2 + $0x70] sm:$0xff] %v1162
  %2463 = vst [vmem:[#allocation2 + $0x78] sm:$0xff] %v1165
  %2464 = vst [vmem:[#allocation2 + $0x80] sm:$0xff] %v1170
  %2465 = vst [vmem:[#allocation2 + $0x88] sm:$0xff] %v1173
  %2466 = vst [vmem:[#allocation2 + $0x90] sm:$0xff] %v1178
  %2467 = vst [vmem:[#allocation2 + $0x98] sm:$0xff] %v1181
  %2468 = vst [vmem:[#allocation2 + $0xa0] sm:$0xff] %v1186
  %2469 = vst [vmem:[#allocation2 + $0xa8] sm:$0xff] %v1189
  %2470 = vst [vmem:[#allocation2 + $0xb0] sm:$0xff] %v1194
  %2471 = vst [vmem:[#allocation2 + $0xb8] sm:$0xff] %v1197
  %2472 = vst [vmem:[#allocation2 + $0xc0] sm:$0xff] %v1202
  %2473 = vst [vmem:[#allocation2 + $0xc8] sm:$0xff] %v1205
  %2474 = vst [vmem:[#allocation2 + $0xd0] sm:$0xff] %v1210
  %2475 = vst [vmem:[#allocation2 + $0xd8] sm:$0xff] %v1213
  %2476 = vst [vmem:[#allocation2 + $0xe0] sm:$0xff] %v1218
  %2477 = vst [vmem:[#allocation2 + $0xe8] sm:$0xff] %v1221
  %2478 = vst [vmem:[#allocation2 + $0xf0] sm:$0xff] %v1226
  %2479 = vst [vmem:[#allocation2 + $0xf8] sm:$0xff] %v1229
  %2480 = vst [vmem:[#allocation2 + $0x100] sm:$0xff] %v1234
  %2481 = vst [vmem:[#allocation2 + $0x108] sm:$0xff] %v1237
  %2482 = vst [vmem:[#allocation2 + $0x110] sm:$0xff] %v1242
  %2483 = vst [vmem:[#allocation2 + $0x118] sm:$0xff] %v1245
  %2484 = vst [vmem:[#allocation2 + $0x120] sm:$0xff] %v1250
  %2485 = vst [vmem:[#allocation2 + $0x128] sm:$0xff] %v1253
  %2486 = vst [vmem:[#allocation2 + $0x130] sm:$0xff] %v1258
  %2487 = vst [vmem:[#allocation2 + $0x138] sm:$0xff] %v1261
  %2488 = vst [vmem:[#allocation2 + $0x140] sm:$0xff] %v1266
  %2489 = vst [vmem:[#allocation2 + $0x148] sm:$0xff] %v1269
  %2490 = vst [vmem:[#allocation2 + $0x150] sm:$0xff] %v1274
  %2491 = vst [vmem:[#allocation2 + $0x158] sm:$0xff] %v1277
  %2492 = vst [vmem:[#allocation2 + $0x160] sm:$0xff] %v1282
  %2493 = vst [vmem:[#allocation2 + $0x168] sm:$0xff] %v1285
  %2494 = vst [vmem:[#allocation2 + $0x170] sm:$0xff] %v1290
  %2495 = vst [vmem:[#allocation2 + $0x178] sm:$0xff] %v1293
  %2496 = vst [vmem:[#allocation2 + $0x180] sm:$0xff] %v1298
  %2497 = vst [vmem:[#allocation2 + $0x188] sm:$0xff] %v1301
  %2498 = vst [vmem:[#allocation2 + $0x190] sm:$0xff] %v1306
  %2499 = vst [vmem:[#allocation2 + $0x198] sm:$0xff] %v1309
  %2500 = vst [vmem:[#allocation2 + $0x1a0] sm:$0xff] %v1314
  %2501 = vst [vmem:[#allocation2 + $0x1a8] sm:$0xff] %v1317
  %2502 = vst [vmem:[#allocation2 + $0x1b0] sm:$0xff] %v1322
  %2503 = vst [vmem:[#allocation2 + $0x1b8] sm:$0xff] %v1325
  %2504 = vst [vmem:[#allocation2 + $0x1c0] sm:$0xff] %v1330
  %2505 = vst [vmem:[#allocation2 + $0x1c8] sm:$0xff] %v1333
  %2506 = vst [vmem:[#allocation2 + $0x1d0] sm:$0xff] %v1338
  %2507 = vst [vmem:[#allocation2 + $0x1d8] sm:$0xff] %v1341
  %2508 = vst [vmem:[#allocation2 + $0x1e0] sm:$0xff] %v1346
  %2509 = vst [vmem:[#allocation2 + $0x1e8] sm:$0xff] %v1349
  %2510 = vst [vmem:[#allocation2 + $0x1f0] sm:$0xff] %v1354
  %2511 = vst [vmem:[#allocation2 + $0x1f8] sm:$0xff] %v1357
  %2512 = vst [vmem:[#allocation2 + $0x200] sm:$0xff] %v1362
  %2513 = vst [vmem:[#allocation2 + $0x208] sm:$0xff] %v1365
  %2514 = vst [vmem:[#allocation2 + $0x210] sm:$0xff] %v1370
  %2515 = vst [vmem:[#allocation2 + $0x218] sm:$0xff] %v1373
  %2516 = vst [vmem:[#allocation2 + $0x220] sm:$0xff] %v1378
  %2517 = vst [vmem:[#allocation2 + $0x228] sm:$0xff] %v1381
  %2518 = vst [vmem:[#allocation2 + $0x230] sm:$0xff] %v1386
  %2519 = vst [vmem:[#allocation2 + $0x238] sm:$0xff] %v1389
  %2520 = vst [vmem:[#allocation2 + $0x240] sm:$0xff] %v1394
  %2521 = vst [vmem:[#allocation2 + $0x248] sm:$0xff] %v1397
  %2522 = vst [vmem:[#allocation2 + $0x250] sm:$0xff] %v1402
  %2523 = vst [vmem:[#allocation2 + $0x258] sm:$0xff] %v1405
  %2524 = vst [vmem:[#allocation2 + $0x260] sm:$0xff] %v1410
  %2525 = vst [vmem:[#allocation2 + $0x268] sm:$0xff] %v1413
  %2526 = vst [vmem:[#allocation2 + $0x270] sm:$0xff] %v1418
  %2527 = vst [vmem:[#allocation2 + $0x278] sm:$0xff] %v1421
  %2528 = vst [vmem:[#allocation2 + $0x280] sm:$0xff] %v1426
  %2529 = vst [vmem:[#allocation2 + $0x288] sm:$0xff] %v1429
  %2530 = vst [vmem:[#allocation2 + $0x290] sm:$0xff] %v1434
  %2531 = vst [vmem:[#allocation2 + $0x298] sm:$0xff] %v1437
  %2532 = vst [vmem:[#allocation2 + $0x2a0] sm:$0xff] %v1442
  %2533 = vst [vmem:[#allocation2 + $0x2a8] sm:$0xff] %v1445
  %2534 = vst [vmem:[#allocation2 + $0x2b0] sm:$0xff] %v1450
  %2535 = vst [vmem:[#allocation2 + $0x2b8] sm:$0xff] %v1453
  %2536 = vst [vmem:[#allocation2 + $0x2c0] sm:$0xff] %v1458
  %2537 = vst [vmem:[#allocation2 + $0x2c8] sm:$0xff] %v1461
  %2538 = vst [vmem:[#allocation2 + $0x2d0] sm:$0xff] %v1466
  %2539 = vst [vmem:[#allocation2 + $0x2d8] sm:$0xff] %v1469
  %2540 = vst [vmem:[#allocation2 + $0x2e0] sm:$0xff] %v1474
  %2541 = vst [vmem:[#allocation2 + $0x2e8] sm:$0xff] %v1477
  %2542 = vst [vmem:[#allocation2 + $0x2f0] sm:$0xff] %v1482
  %2543 = vst [vmem:[#allocation2 + $0x2f8] sm:$0xff] %v1485
  %2544 = vst [vmem:[#allocation2 + $0x300] sm:$0xff] %v1490
  %2545 = vst [vmem:[#allocation2 + $0x308] sm:$0xff] %v1493
  %2546 = vst [vmem:[#allocation2 + $0x310] sm:$0xff] %v1498
  %2547 = vst [vmem:[#allocation2 + $0x318] sm:$0xff] %v1501
  %2548 = vst [vmem:[#allocation2 + $0x320] sm:$0xff] %v1506
  %2549 = vst [vmem:[#allocation2 + $0x328] sm:$0xff] %v1509
  %2550 = vst [vmem:[#allocation2 + $0x330] sm:$0xff] %v1514
  %2551 = vst [vmem:[#allocation2 + $0x338] sm:$0xff] %v1517
  %2552 = vst [vmem:[#allocation2 + $0x340] sm:$0xff] %v1522
  %2553 = vst [vmem:[#allocation2 + $0x348] sm:$0xff] %v1525
  %2554 = vst [vmem:[#allocation2 + $0x350] sm:$0xff] %v1530
  %2555 = vst [vmem:[#allocation2 + $0x358] sm:$0xff] %v1533
  %2556 = vst [vmem:[#allocation2 + $0x360] sm:$0xff] %v1538
  %2557 = vst [vmem:[#allocation2 + $0x368] sm:$0xff] %v1541
  %2558 = vst [vmem:[#allocation2 + $0x370] sm:$0xff] %v1546
  %2559 = vst [vmem:[#allocation2 + $0x378] sm:$0xff] %v1549
  %2560 = vst [vmem:[#allocation2 + $0x380] sm:$0xff] %v1554
  %2561 = vst [vmem:[#allocation2 + $0x388] sm:$0xff] %v1557
  %2562 = vst [vmem:[#allocation2 + $0x390] sm:$0xff] %v1562
  %2563 = vst [vmem:[#allocation2 + $0x398] sm:$0xff] %v1565
  %2564 = vst [vmem:[#allocation2 + $0x3a0] sm:$0xff] %v1570
  %2565 = vst [vmem:[#allocation2 + $0x3a8] sm:$0xff] %v1573
  %2566 = vst [vmem:[#allocation2 + $0x3b0] sm:$0xff] %v1578
  %2567 = vst [vmem:[#allocation2 + $0x3b8] sm:$0xff] %v1581
  %2568 = vst [vmem:[#allocation2 + $0x3c0] sm:$0xff] %v1586
  %2569 = vst [vmem:[#allocation2 + $0x3c8] sm:$0xff] %v1589
  %2570 = vst [vmem:[#allocation2 + $0x3d0] sm:$0xff] %v1594
  %2571 = vst [vmem:[#allocation2 + $0x3d8] sm:$0xff] %v1597
  %2572 = vst [vmem:[#allocation2 + $0x3e0] sm:$0xff] %v1602
  %2573 = vst [vmem:[#allocation2 + $0x3e8] sm:$0xff] %v1605
  %2574 = vst [vmem:[#allocation2 + $0x3f0] sm:$0xff] %v1610
  %2575 = vst [vmem:[#allocation2 + $0x3f8] sm:$0xff] %v1613
  %2576 = vst [vmem:[#allocation2 + $0x400] sm:$0xff] %v1618
  %2577 = vst [vmem:[#allocation2 + $0x408] sm:$0xff] %v1621
  %2578 = vst [vmem:[#allocation2 + $0x410] sm:$0xff] %v1626
  %2579 = vst [vmem:[#allocation2 + $0x418] sm:$0xff] %v1629
  %2580 = vst [vmem:[#allocation2 + $0x420] sm:$0xff] %v1634
  %2581 = vst [vmem:[#allocation2 + $0x428] sm:$0xff] %v1637
  %2582 = vst [vmem:[#allocation2 + $0x430] sm:$0xff] %v1642
  %2583 = vst [vmem:[#allocation2 + $0x438] sm:$0xff] %v1645
  %2584 = vst [vmem:[#allocation2 + $0x440] sm:$0xff] %v1650
  %2585 = vst [vmem:[#allocation2 + $0x448] sm:$0xff] %v1653
  %2586 = vst [vmem:[#allocation2 + $0x450] sm:$0xff] %v1658
  %2587 = vst [vmem:[#allocation2 + $0x458] sm:$0xff] %v1661
  %2588 = vst [vmem:[#allocation2 + $0x460] sm:$0xff] %v1666
  %2589 = vst [vmem:[#allocation2 + $0x468] sm:$0xff] %v1669
  %2590 = vst [vmem:[#allocation2 + $0x470] sm:$0xff] %v1674
  %2591 = vst [vmem:[#allocation2 + $0x478] sm:$0xff] %v1677
  %2592 = vst [vmem:[#allocation2 + $0x480] sm:$0xff] %v1682
  %2593 = vst [vmem:[#allocation2 + $0x488] sm:$0xff] %v1685
  %2594 = vst [vmem:[#allocation2 + $0x490] sm:$0xff] %v1690
  %2595 = vst [vmem:[#allocation2 + $0x498] sm:$0xff] %v1693
  %2596 = vst [vmem:[#allocation2 + $0x4a0] sm:$0xff] %v1698
  %2597 = vst [vmem:[#allocation2 + $0x4a8] sm:$0xff] %v1701
  %2598 = vst [vmem:[#allocation2 + $0x4b0] sm:$0xff] %v1706
  %2599 = vst [vmem:[#allocation2 + $0x4b8] sm:$0xff] %v1709
  %2600 = vst [vmem:[#allocation2 + $0x4c0] sm:$0xff] %v1714
  %2601 = vst [vmem:[#allocation2 + $0x4c8] sm:$0xff] %v1717
  %2602 = vst [vmem:[#allocation2 + $0x4d0] sm:$0xff] %v1722
  %2603 = vst [vmem:[#allocation2 + $0x4d8] sm:$0xff] %v1725
  %2604 = vst [vmem:[#allocation2 + $0x4e0] sm:$0xff] %v1730
  %2605 = vst [vmem:[#allocation2 + $0x4e8] sm:$0xff] %v1733
  %2606 = vst [vmem:[#allocation2 + $0x4f0] sm:$0xff] %v1738
  %2607 = vst [vmem:[#allocation2 + $0x4f8] sm:$0xff] %v1741
  %2608 = vst [vmem:[#allocation2 + $0x500] sm:$0xff] %v1746
  %2609 = vst [vmem:[#allocation2 + $0x508] sm:$0xff] %v1749
  %2610 = vst [vmem:[#allocation2 + $0x510] sm:$0xff] %v1754
  %2611 = vst [vmem:[#allocation2 + $0x518] sm:$0xff] %v1757
  %2612 = vst [vmem:[#allocation2 + $0x520] sm:$0xff] %v1762
  %2613 = vst [vmem:[#allocation2 + $0x528] sm:$0xff] %v1765
  %2614 = vst [vmem:[#allocation2 + $0x530] sm:$0xff] %v1770
  %2615 = vst [vmem:[#allocation2 + $0x538] sm:$0xff] %v1773
  %2616 = vst [vmem:[#allocation2 + $0x540] sm:$0xff] %v1778
  %2617 = vst [vmem:[#allocation2 + $0x548] sm:$0xff] %v1781
  %2618 = vst [vmem:[#allocation2 + $0x550] sm:$0xff] %v1786
  %2619 = vst [vmem:[#allocation2 + $0x558] sm:$0xff] %v1789
  %2620 = vst [vmem:[#allocation2 + $0x560] sm:$0xff] %v1794
  %2621 = vst [vmem:[#allocation2 + $0x568] sm:$0xff] %v1797
  %2622 = vst [vmem:[#allocation2 + $0x570] sm:$0xff] %v1802
  %2623 = vst [vmem:[#allocation2 + $0x578] sm:$0xff] %v1805
  %2624 = vst [vmem:[#allocation2 + $0x580] sm:$0xff] %v1810
  %2625 = vst [vmem:[#allocation2 + $0x588] sm:$0xff] %v1813
  %2626 = vst [vmem:[#allocation2 + $0x590] sm:$0xff] %v1818
  %2627 = vst [vmem:[#allocation2 + $0x598] sm:$0xff] %v1821
  %2628 = vst [vmem:[#allocation2 + $0x5a0] sm:$0xff] %v1826
  %2629 = vst [vmem:[#allocation2 + $0x5a8] sm:$0xff] %v1829
  %2630 = vst [vmem:[#allocation2 + $0x5b0] sm:$0xff] %v1834
  %2631 = vst [vmem:[#allocation2 + $0x5b8] sm:$0xff] %v1837
  %2632 = vst [vmem:[#allocation2 + $0x5c0] sm:$0xff] %v1842
  %2633 = vst [vmem:[#allocation2 + $0x5c8] sm:$0xff] %v1845
  %2634 = vst [vmem:[#allocation2 + $0x5d0] sm:$0xff] %v1850
  %2635 = vst [vmem:[#allocation2 + $0x5d8] sm:$0xff] %v1853
  %2636 = vst [vmem:[#allocation2 + $0x5e0] sm:$0xff] %v1858
  %2637 = vst [vmem:[#allocation2 + $0x5e8] sm:$0xff] %v1861
  %2638 = vst [vmem:[#allocation2 + $0x5f0] sm:$0xff] %v1866
  %2639 = vst [vmem:[#allocation2 + $0x5f8] sm:$0xff] %v1869
  %2640 = vst [vmem:[#allocation2 + $0x600] sm:$0xff] %v1874
  %2641 = vst [vmem:[#allocation2 + $0x608] sm:$0xff] %v1877
  %2642 = vst [vmem:[#allocation2 + $0x610] sm:$0xff] %v1882
  %2643 = vst [vmem:[#allocation2 + $0x618] sm:$0xff] %v1885
  %2644 = vst [vmem:[#allocation2 + $0x620] sm:$0xff] %v1890
  %2645 = vst [vmem:[#allocation2 + $0x628] sm:$0xff] %v1893
  %2646 = vst [vmem:[#allocation2 + $0x630] sm:$0xff] %v1898
  %2647 = vst [vmem:[#allocation2 + $0x638] sm:$0xff] %v1901
  %2648 = vst [vmem:[#allocation2 + $0x640] sm:$0xff] %v1906
  %2649 = vst [vmem:[#allocation2 + $0x648] sm:$0xff] %v1909
  %2650 = vst [vmem:[#allocation2 + $0x650] sm:$0xff] %v1914
  %2651 = vst [vmem:[#allocation2 + $0x658] sm:$0xff] %v1917
  %2652 = vst [vmem:[#allocation2 + $0x660] sm:$0xff] %v1922
  %2653 = vst [vmem:[#allocation2 + $0x668] sm:$0xff] %v1925
  %2654 = vst [vmem:[#allocation2 + $0x670] sm:$0xff] %v1930
  %2655 = vst [vmem:[#allocation2 + $0x678] sm:$0xff] %v1933
  %2656 = vst [vmem:[#allocation2 + $0x680] sm:$0xff] %v1938
  %2657 = vst [vmem:[#allocation2 + $0x688] sm:$0xff] %v1941
  %2658 = vst [vmem:[#allocation2 + $0x690] sm:$0xff] %v1946
  %2659 = vst [vmem:[#allocation2 + $0x698] sm:$0xff] %v1949
  %2660 = vst [vmem:[#allocation2 + $0x6a0] sm:$0xff] %v1954
  %2661 = vst [vmem:[#allocation2 + $0x6a8] sm:$0xff] %v1957
  %2662 = vst [vmem:[#allocation2 + $0x6b0] sm:$0xff] %v1962
  %2663 = vst [vmem:[#allocation2 + $0x6b8] sm:$0xff] %v1965
  %2664 = vst [vmem:[#allocation2 + $0x6c0] sm:$0xff] %v1970
  %2665 = vst [vmem:[#allocation2 + $0x6c8] sm:$0xff] %v1973
  %2666 = vst [vmem:[#allocation2 + $0x6d0] sm:$0xff] %v1978
  %2667 = vst [vmem:[#allocation2 + $0x6d8] sm:$0xff] %v1981
  %2668 = vst [vmem:[#allocation2 + $0x6e0] sm:$0xff] %v1986
  %2669 = vst [vmem:[#allocation2 + $0x6e8] sm:$0xff] %v1989
  %2670 = vst [vmem:[#allocation2 + $0x6f0] sm:$0xff] %v1994
  %2671 = vst [vmem:[#allocation2 + $0x6f8] sm:$0xff] %v1997
  %2672 = vst [vmem:[#allocation2 + $0x700] sm:$0xff] %v2002
  %2673 = vst [vmem:[#allocation2 + $0x708] sm:$0xff] %v2005
  %2674 = vst [vmem:[#allocation2 + $0x710] sm:$0xff] %v2010
  %2675 = vst [vmem:[#allocation2 + $0x718] sm:$0xff] %v2013
  %2676 = vst [vmem:[#allocation2 + $0x720] sm:$0xff] %v2018
  %2677 = vst [vmem:[#allocation2 + $0x728] sm:$0xff] %v2021
  %2678 = vst [vmem:[#allocation2 + $0x730] sm:$0xff] %v2026
  %2679 = vst [vmem:[#allocation2 + $0x738] sm:$0xff] %v2029
  %2680 = vst [vmem:[#allocation2 + $0x740] sm:$0xff] %v2034
  %2681 = vst [vmem:[#allocation2 + $0x748] sm:$0xff] %v2037
  %2682 = vst [vmem:[#allocation2 + $0x750] sm:$0xff] %v2042
  %2683 = vst [vmem:[#allocation2 + $0x758] sm:$0xff] %v2045
  %2684 = vst [vmem:[#allocation2 + $0x760] sm:$0xff] %v2050
  %2685 = vst [vmem:[#allocation2 + $0x768] sm:$0xff] %v2053
  %2686 = vst [vmem:[#allocation2 + $0x770] sm:$0xff] %v2058
  %2687 = vst [vmem:[#allocation2 + $0x778] sm:$0xff] %v2061
  %2688 = vst [vmem:[#allocation2 + $0x780] sm:$0xff] %v2066
  %2689 = vst [vmem:[#allocation2 + $0x788] sm:$0xff] %v2069
  %2690 = vst [vmem:[#allocation2 + $0x790] sm:$0xff] %v2074
  %2691 = vst [vmem:[#allocation2 + $0x798] sm:$0xff] %v2077
  %2692 = vst [vmem:[#allocation2 + $0x7a0] sm:$0xff] %v2082
  %2693 = vst [vmem:[#allocation2 + $0x7a8] sm:$0xff] %v2085
  %2694 = vst [vmem:[#allocation2 + $0x7b0] sm:$0xff] %v2090
  %2695 = vst [vmem:[#allocation2 + $0x7b8] sm:$0xff] %v2093
  %2696 = vst [vmem:[#allocation2 + $0x7c0] sm:$0xff] %v2098
  %2697 = vst [vmem:[#allocation2 + $0x7c8] sm:$0xff] %v2101
  %2698 = vst [vmem:[#allocation2 + $0x7d0] sm:$0xff] %v2106
  %2699 = vst [vmem:[#allocation2 + $0x7d8] sm:$0xff] %v2109
  %2700 = vst [vmem:[#allocation2 + $0x7e0] sm:$0xff] %v2114
  %2701 = vst [vmem:[#allocation2 + $0x7e8] sm:$0xff] %v2117
  %2702 = vst [vmem:[#allocation2 + $0x7f0] sm:$0xff] %v2122
  %2703 = vst [vmem:[#allocation2 + $0x7f8] sm:$0xff] %v2125
  %2704 = vst [vmem:[#allocation2 + $0x800] sm:$0xff] %v2130
  %2705 = vst [vmem:[#allocation2 + $0x808] sm:$0xff] %v2133
  %2706 = vst [vmem:[#allocation2 + $0x810] sm:$0xff] %v2138
  %2707 = vst [vmem:[#allocation2 + $0x818] sm:$0xff] %v2141
  %2708 = vst [vmem:[#allocation2 + $0x820] sm:$0xff] %v2146
  %2709 = vst [vmem:[#allocation2 + $0x828] sm:$0xff] %v2149
  %2710 = vst [vmem:[#allocation2 + $0x830] sm:$0xff] %v2154
  %2711 = vst [vmem:[#allocation2 + $0x838] sm:$0xff] %v2157
  %2712 = vst [vmem:[#allocation2 + $0x840] sm:$0xff] %v2162
  %2713 = vst [vmem:[#allocation2 + $0x848] sm:$0xff] %v2165
  %2714 = vst [vmem:[#allocation2 + $0x850] sm:$0xff] %v2170
  %2715 = vst [vmem:[#allocation2 + $0x858] sm:$0xff] %v2173
  %2716 = vst [vmem:[#allocation2 + $0x860] sm:$0xff] %v2178
  %2717 = vst [vmem:[#allocation2 + $0x868] sm:$0xff] %v2181
  %2718 = vst [vmem:[#allocation2 + $0x870] sm:$0xff] %v2186
  %2719 = vst [vmem:[#allocation2 + $0x878] sm:$0xff] %v2189
  %2720 = vst [vmem:[#allocation2 + $0x880] sm:$0xff] %v2194
  %2721 = vst [vmem:[#allocation2 + $0x888] sm:$0xff] %v2197
  %2722 = vst [vmem:[#allocation2 + $0x890] sm:$0xff] %v2202
  %2723 = vst [vmem:[#allocation2 + $0x898] sm:$0xff] %v2205
  %2724 = vst [vmem:[#allocation2 + $0x8a0] sm:$0xff] %v2210
  %2725 = vst [vmem:[#allocation2 + $0x8a8] sm:$0xff] %v2213
  %2726 = vst [vmem:[#allocation2 + $0x8b0] sm:$0xff] %v2218
  %2727 = vst [vmem:[#allocation2 + $0x8b8] sm:$0xff] %v2221
  %2728 = vst [vmem:[#allocation2 + $0x8c0] sm:$0xff] %v2226
  %2729 = vst [vmem:[#allocation2 + $0x8c8] sm:$0xff] %v2229
  %2730 = vst [vmem:[#allocation2 + $0x8d0] sm:$0xff] %v2234
  %2731 = vst [vmem:[#allocation2 + $0x8d8] sm:$0xff] %v2237
  %2732 = vst [vmem:[#allocation2 + $0x8e0] sm:$0xff] %v2242
  %2733 = vst [vmem:[#allocation2 + $0x8e8] sm:$0xff] %v2245
  %2734 = vst [vmem:[#allocation2 + $0x8f0] sm:$0xff] %v2250
  %2735 = vst [vmem:[#allocation2 + $0x8f8] sm:$0xff] %v2253
  %2736 = vst [vmem:[#allocation2 + $0x900] sm:$0xff] %v2258
  %2737 = vst [vmem:[#allocation2 + $0x908] sm:$0xff] %v2261
  %2738 = vst [vmem:[#allocation2 + $0x910] sm:$0xff] %v2266
  %2739 = vst [vmem:[#allocation2 + $0x918] sm:$0xff] %v2269
  %2740 = vst [vmem:[#allocation2 + $0x920] sm:$0xff] %v2274
  %2741 = vst [vmem:[#allocation2 + $0x928] sm:$0xff] %v2277
  %2742 = vst [vmem:[#allocation2 + $0x930] sm:$0xff] %v2282
  %2743 = vst [vmem:[#allocation2 + $0x938] sm:$0xff] %v2285
  %2744 = vst [vmem:[#allocation2 + $0x940] sm:$0xff] %v2290
  %2745 = vst [vmem:[#allocation2 + $0x948] sm:$0xff] %v2293
  %2746 = vst [vmem:[#allocation2 + $0x950] sm:$0xff] %v2298
  %2747 = vst [vmem:[#allocation2 + $0x958] sm:$0xff] %v2301
  %2748 = vst [vmem:[#allocation2 + $0x960] sm:$0xff] %v2306
  %2749 = vst [vmem:[#allocation2 + $0x968] sm:$0xff] %v2309
  %2750 = vst [vmem:[#allocation2 + $0x970] sm:$0xff] %v2314
  %2751 = vst [vmem:[#allocation2 + $0x978] sm:$0xff] %v2317
  %2752 = vst [vmem:[#allocation2 + $0x980] sm:$0xff] %v2322
  %2753 = vst [vmem:[#allocation2 + $0x988] sm:$0xff] %v2325
  %2754 = vst [vmem:[#allocation2 + $0x990] sm:$0xff] %v2330
  %2755 = vst [vmem:[#allocation2 + $0x998] sm:$0xff] %v2333
  %2756 = vst [vmem:[#allocation2 + $0x9a0] sm:$0xff] %v2338
  %2757 = vst [vmem:[#allocation2 + $0x9a8] sm:$0xff] %v2341
  %2758 = vst [vmem:[#allocation2 + $0x9b0] sm:$0xff] %v2346
  %2759 = vst [vmem:[#allocation2 + $0x9b8] sm:$0xff] %v2349
  %2760 = vst [vmem:[#allocation2 + $0x9c0] sm:$0xff] %v2354
  %2761 = vst [vmem:[#allocation2 + $0x9c8] sm:$0xff] %v2357
  %2762 = vst [vmem:[#allocation2 + $0x9d0] sm:$0xff] %v2362
  %2763 = vst [vmem:[#allocation2 + $0x9d8] sm:$0xff] %v2365
  %2764 = vst [vmem:[#allocation2 + $0x9e0] sm:$0xff] %v2370
  %2765 = vst [vmem:[#allocation2 + $0x9e8] sm:$0xff] %v2373
  %2766 = vst [vmem:[#allocation2 + $0x9f0] sm:$0xff] %v2378
  %2767 = vst [vmem:[#allocation2 + $0x9f8] sm:$0xff] %v2381
  %2768 = vst [vmem:[#allocation2 + $0xa00] sm:$0xff] %v2386
  %2769 = vst [vmem:[#allocation2 + $0xa08] sm:$0xff] %v2389
  %2770 = vst [vmem:[#allocation2 + $0xa10] sm:$0xff] %v2394
  %2771 = vst [vmem:[#allocation2 + $0xa18] sm:$0xff] %v2397
  %2772 = vst [vmem:[#allocation2 + $0xa20] sm:$0xff] %v2402
  %2773 = vst [vmem:[#allocation2 + $0xa28] sm:$0xff] %v2405
  %2774 = vst [vmem:[#allocation2 + $0xa30] sm:$0xff] %v2410
  %2775 = vst [vmem:[#allocation2 + $0xa38] sm:$0xff] %v2413
  %2776 = vst [vmem:[#allocation2 + $0xa40] sm:$0xff] %v2418
  %2777 = vst [vmem:[#allocation2 + $0xa48] sm:$0xff] %v2421
  %2778 = vst [vmem:[#allocation2 + $0xa50] sm:$0xff] %v2426
  %2779 = vst [vmem:[#allocation2 + $0xa58] sm:$0xff] %v2429
  %2780 = vst [vmem:[#allocation2 + $0xa60] sm:$0xff] %v2434
  %2781 = vst [vmem:[#allocation2 + $0xa68] sm:$0xff] %v2437
  %2782 = vst [vmem:[#allocation2 + $0xa70] sm:$0xff] %v2442
  %2783 = vst [vmem:[#allocation2 + $0xa78] sm:$0xff] %v2445
  %vm2784 = vcmask 261120
  %2785 = vst.msk [vmem:[#allocation5] sm:$0xff] %vm2784, 0.0
  %2786 = vst.msk [vmem:[#allocation6] sm:$0xff] %vm2784, 0.0
  %v2787 = vld [vmem:[%s2] sm:$0xf]
  %v2788 = vld [vmem:[%s2 + $0x4] sm:$0xf]
  %v2789 = vld [vmem:[%s2 + $0x8] sm:$0xf]
  %v2790 = vld [vmem:[%s2 + $0xc] sm:$0xf]
  loop: start=0, step=1, limit=42
  $region50: #{bilstm2_forward.1} parent=0 // loop_pre_header
    _
  $region51: #{bilstm2_forward.1} parent=0 // loop_header
    %s2792 = sphi 0, %s2796
    %p2793 = scmp.ge.s32.totalorder %s2792, 42
  $region52: #{bilstm2_forward.1} parent=0 // loop_header_branch
    %2795 = sbr.rel (%p2793) target = $region56
  $region53: #{bilstm2_forward.1} parent=0 // loop_body
    %s2797 = smul.u32 %s2792, 8
    %s2798 = smul.u32 %s2792, 64
    %s2799 = ssub.s32 335, %s2797
    %s2800 = smul.u32 %s2799, 8
    %s2801 = scalar_lea.vmem [#allocation2], %s2798
    %v2802 = vld [vmem:[%s2801] sm:$0xff]
    %s2803 = scalar_lea.vmem [#allocation2], %s2800
    %v2804 = vld [vmem:[%s2803] sm:$0xff]
    %v2805 = vsel %vm56, %v2802, %v2804
    %v2806 = vld [vmem:[#allocation5] sm:$0xff]
    %v2807 = vpack.c.bf16 %v2806, %v2806
    %v2812 = vunpack.c.l.b16 %v2787
    %v2813 = vunpack.c.l.b16 %v2788
    %v2814 = vunpack.c.l.b16 %v2789
    %v2815 = vunpack.c.l.b16 %v2790
    %v2816 = vpack.c.b16 %v2813, %v2812
    %v2817 = vpack.c.b16 %v2815, %v2814
    %v2821 = vsel %vm2784, %v2807, 0
    %2823 = vmatprep.subr.bf16.mxu0 0
    %2824 = vmatpush1.bf16.msra.mxu0 0
    %2825 = vmatprep.subr.bf16.mxu0 0
    %2826 = vmatpush1.bf16.msra.mxu0 0
    %2827 = vmatprep.subr.bf16.mxu0 0
    %2828 = vmatpush1.bf16.msra.mxu0 0
    %2829 = vmatprep.subr.bf16.mxu0 0
    %2830 = vmatpush1.bf16.msra.mxu0 0
    %2831 = vmatprep.subr.bf16.mxu0 0
    %2832 = vmatpush1.bf16.msra.mxu0 0
    %2833 = vmatprep.subr.bf16.mxu0 0
    %2834 = vmatpush1.bf16.msra.mxu0 0
    %2835 = vmatprep.subr.bf16.mxu0 0
    %2836 = vmatpush1.bf16.msra.mxu0 %v2817
    %2837 = vmatprep.subr.bf16.mxu0 0
    %2838 = vmatpush1.bf16.msra.mxu0 %v2816
    %2839 = vmatprep.subr.bf16.mxu0 0
    %2840 = vmatpush2.bf16.msra.mxu0 0
    %2841 = vmatprep.subr.bf16.mxu0 0
    %2842 = vmatpush2.bf16.msra.mxu0 0
    %2843 = vmatprep.subr.bf16.mxu0 0
    %2844 = vmatpush2.bf16.msra.mxu0 0
    %2845 = vmatprep.subr.bf16.mxu0 0
    %2846 = vmatpush2.bf16.msra.mxu0 0
    %2847 = vmatprep.subr.bf16.mxu0 0
    %2848 = vmatpush2.bf16.msra.mxu0 0
    %2849 = vmatprep.subr.bf16.mxu0 0
    %2850 = vmatpush2.bf16.msra.mxu0 0
    %2851 = vmatprep.subr.bf16.mxu0 0
    %2852 = vmatpush2.bf16.msra.mxu0 0
    %2853 = vmatprep.subr.bf16.mxu0 0
    %2854 = vmatpush2.bf16.msra.mxu0 0
    %2855 = vmatprep.mubr.bf16.mxu0 0
    %2856 = vmatmul.mubr.bf16.gmra.mxu0 %v2821
    %v2857 = vpop.f32.mrf.mxu0
    %v2858 = vadd.f32 0.0, %v2857
    %v2859 = vpop.f32.mrf.mxu0
    %v2860 = vpop.f32.mrf.mxu0
    %v2861 = vpop.f32.mrf.mxu0
    %2862 = vdwg.mxu0
    %v2863 = vadd.f32 %v2805, %v2858
    %v2864 = vxor.u32 %v2863, 2147483648
    %v2865 = vmul.f32 %v2864, 1.442695
    %v2866 = vpow.pop %v2865
    %v2867 = vadd.f32 %v2866, 1.0
    %v2868 = vrcp.pop %v2867
    %v2869 = vmul.f32 1.0, %v2868
    %v2870 = vtanh.pop %v2863
    %v2871 = vld [vmem:[#allocation6] sm:$0xff]
    %2873 = vrot.lane.b32.xlu0 %v2871, 32
    %v2874 = vpop.permute.xlu0 %2873
    %v2876 = vmul.f32 %v2869, %v2874
    %2878 = vrot.lane.b32.xlu0 %v2870, 64
    %v2879 = vpop.permute.xlu0 %2878
    %v2881 = vmul.f32 %v2869, %v2879
    %2883 = vrot.lane.b32.xlu0 %v2881, 32
    %v2884 = vpop.permute.xlu0 %2883
    %v2886 = vadd.f32 %v2876, %v2884
    %v2887 = vtanh.pop %v2886
    %2889 = vrot.lane.b32.xlu0 %v2887, 64
    %v2890 = vpop.permute.xlu0 %2889
    %v2892 = vmul.f32 %v2869, %v2890
    %2894 = vrot.lane.b32.xlu0 %v2886, 96
    %v2895 = vpop.permute.xlu0 %2894
    %2897 = vst.msk [vmem:[#allocation6] sm:$0xff] %vm2784, %v2895
    %2899 = vrot.lane.b32.xlu0 %v2892, 32
    %v2900 = vpop.permute.xlu0 %2899
    %2902 = vst.msk [vmem:[#allocation5] sm:$0xff] %vm2784, %v2900
    %s2903 = scalar_lea.vmem [#allocation3], %s2798
    %vm2904 = vcmask 130048
    %2905 = vst.msk [vmem:[%s2903] sm:$0xff] %vm2904, %v2900
    %s2906 = scalar_lea.vmem [#allocation3], %s2800
    %vm2907 = vcmask 261248
    %2908 = vst.msk [vmem:[%s2906] sm:$0xff] %vm2907, %v2900
    %s2909 = sadd.s32 %s2797, 1
    %s2910 = smul.u32 %s2909, 8
    %s2911 = ssub.s32 334, %s2797
    %s2912 = smul.u32 %s2911, 8
    %s2913 = scalar_lea.vmem [#allocation2], %s2910
    %v2914 = vld [vmem:[%s2913] sm:$0xff]
    %s2915 = scalar_lea.vmem [#allocation2], %s2912
    %v2916 = vld [vmem:[%s2915] sm:$0xff]
    %v2917 = vsel %vm56, %v2914, %v2916
    %v2918 = vld [vmem:[#allocation5] sm:$0xff]
    %v2919 = vpack.c.bf16 %v2918, %v2918
    %v2921 = vsel %vm2784, %v2919, 0
    %2923 = vmatprep.subr.bf16.mxu0 0
    %2924 = vmatpush1.bf16.msra.mxu0 0
    %2925 = vmatprep.subr.bf16.mxu0 0
    %2926 = vmatpush1.bf16.msra.mxu0 0
    %2927 = vmatprep.subr.bf16.mxu0 0
    %2928 = vmatpush1.bf16.msra.mxu0 0
    %2929 = vmatprep.subr.bf16.mxu0 0
    %2930 = vmatpush1.bf16.msra.mxu0 0
    %2931 = vmatprep.subr.bf16.mxu0 0
    %2932 = vmatpush1.bf16.msra.mxu0 0
    %2933 = vmatprep.subr.bf16.mxu0 0
    %2934 = vmatpush1.bf16.msra.mxu0 0
    %2935 = vmatprep.subr.bf16.mxu0 0
    %2936 = vmatpush1.bf16.msra.mxu0 %v2817
    %2937 = vmatprep.subr.bf16.mxu0 0
    %2938 = vmatpush1.bf16.msra.mxu0 %v2816
    %2939 = vmatprep.subr.bf16.mxu0 0
    %2940 = vmatpush2.bf16.msra.mxu0 0
    %2941 = vmatprep.subr.bf16.mxu0 0
    %2942 = vmatpush2.bf16.msra.mxu0 0
    %2943 = vmatprep.subr.bf16.mxu0 0
    %2944 = vmatpush2.bf16.msra.mxu0 0
    %2945 = vmatprep.subr.bf16.mxu0 0
    %2946 = vmatpush2.bf16.msra.mxu0 0
    %2947 = vmatprep.subr.bf16.mxu0 0
    %2948 = vmatpush2.bf16.msra.mxu0 0
    %2949 = vmatprep.subr.bf16.mxu0 0
    %2950 = vmatpush2.bf16.msra.mxu0 0
    %2951 = vmatprep.subr.bf16.mxu0 0
    %2952 = vmatpush2.bf16.msra.mxu0 0
    %2953 = vmatprep.subr.bf16.mxu0 0
    %2954 = vmatpush2.bf16.msra.mxu0 0
    %2955 = vmatprep.mubr.bf16.mxu0 0
    %2956 = vmatmul.mubr.bf16.gmra.mxu0 %v2921
    %v2957 = vpop.f32.mrf.mxu0
    %v2958 = vadd.f32 0.0, %v2957
    %v2959 = vpop.f32.mrf.mxu0
    %v2960 = vpop.f32.mrf.mxu0
    %v2961 = vpop.f32.mrf.mxu0
    %2962 = vdwg.mxu0
    %v2963 = vadd.f32 %v2917, %v2958
    %v2964 = vxor.u32 %v2963, 2147483648
    %v2965 = vmul.f32 %v2964, 1.442695
    %v2966 = vpow.pop %v2965
    %v2967 = vadd.f32 %v2966, 1.0
    %v2968 = vrcp.pop %v2967
    %v2969 = vmul.f32 1.0, %v2968
    %v2970 = vtanh.pop %v2963
    %v2971 = vld [vmem:[#allocation6] sm:$0xff]
    %2973 = vrot.lane.b32.xlu0 %v2971, 32
    %v2974 = vpop.permute.xlu0 %2973
    %v2976 = vmul.f32 %v2969, %v2974
    %2978 = vrot.lane.b32.xlu0 %v2970, 64
    %v2979 = vpop.permute.xlu0 %2978
    %v2981 = vmul.f32 %v2969, %v2979
    %2983 = vrot.lane.b32.xlu0 %v2981, 32
    %v2984 = vpop.permute.xlu0 %2983
    %v2986 = vadd.f32 %v2976, %v2984
    %v2987 = vtanh.pop %v2986
    %2989 = vrot.lane.b32.xlu0 %v2987, 64
    %v2990 = vpop.permute.xlu0 %2989
    %v2992 = vmul.f32 %v2969, %v2990
    %2994 = vrot.lane.b32.xlu0 %v2986, 96
    %v2995 = vpop.permute.xlu0 %2994
    %2997 = vst.msk [vmem:[#allocation6] sm:$0xff] %vm2784, %v2995
    %2999 = vrot.lane.b32.xlu0 %v2992, 32
    %v3000 = vpop.permute.xlu0 %2999
    %3002 = vst.msk [vmem:[#allocation5] sm:$0xff] %vm2784, %v3000
    %s3003 = scalar_lea.vmem [#allocation3], %s2910
    %3004 = vst.msk [vmem:[%s3003] sm:$0xff] %vm2904, %v3000
    %s3005 = scalar_lea.vmem [#allocation3], %s2912
    %3006 = vst.msk [vmem:[%s3005] sm:$0xff] %vm2907, %v3000
    %s3007 = sadd.s32 %s2797, 2
    %s3008 = smul.u32 %s3007, 8
    %s3009 = ssub.s32 333, %s2797
    %s3010 = smul.u32 %s3009, 8
    %s3011 = scalar_lea.vmem [#allocation2], %s3008
    %v3012 = vld [vmem:[%s3011] sm:$0xff]
    %s3013 = scalar_lea.vmem [#allocation2], %s3010
    %v3014 = vld [vmem:[%s3013] sm:$0xff]
    %v3015 = vsel %vm56, %v3012, %v3014
    %v3016 = vld [vmem:[#allocation5] sm:$0xff]
    %v3017 = vpack.c.bf16 %v3016, %v3016
    %v3019 = vsel %vm2784, %v3017, 0
    %3021 = vmatprep.subr.bf16.mxu0 0
    %3022 = vmatpush1.bf16.msra.mxu0 0
    %3023 = vmatprep.subr.bf16.mxu0 0
    %3024 = vmatpush1.bf16.msra.mxu0 0
    %3025 = vmatprep.subr.bf16.mxu0 0
    %3026 = vmatpush1.bf16.msra.mxu0 0
    %3027 = vmatprep.subr.bf16.mxu0 0
    %3028 = vmatpush1.bf16.msra.mxu0 0
    %3029 = vmatprep.subr.bf16.mxu0 0
    %3030 = vmatpush1.bf16.msra.mxu0 0
    %3031 = vmatprep.subr.bf16.mxu0 0
    %3032 = vmatpush1.bf16.msra.mxu0 0
    %3033 = vmatprep.subr.bf16.mxu0 0
    %3034 = vmatpush1.bf16.msra.mxu0 %v2817
    %3035 = vmatprep.subr.bf16.mxu0 0
    %3036 = vmatpush1.bf16.msra.mxu0 %v2816
    %3037 = vmatprep.subr.bf16.mxu0 0
    %3038 = vmatpush2.bf16.msra.mxu0 0
    %3039 = vmatprep.subr.bf16.mxu0 0
    %3040 = vmatpush2.bf16.msra.mxu0 0
    %3041 = vmatprep.subr.bf16.mxu0 0
    %3042 = vmatpush2.bf16.msra.mxu0 0
    %3043 = vmatprep.subr.bf16.mxu0 0
    %3044 = vmatpush2.bf16.msra.mxu0 0
    %3045 = vmatprep.subr.bf16.mxu0 0
    %3046 = vmatpush2.bf16.msra.mxu0 0
    %3047 = vmatprep.subr.bf16.mxu0 0
    %3048 = vmatpush2.bf16.msra.mxu0 0
    %3049 = vmatprep.subr.bf16.mxu0 0
    %3050 = vmatpush2.bf16.msra.mxu0 0
    %3051 = vmatprep.subr.bf16.mxu0 0
    %3052 = vmatpush2.bf16.msra.mxu0 0
    %3053 = vmatprep.mubr.bf16.mxu0 0
    %3054 = vmatmul.mubr.bf16.gmra.mxu0 %v3019
    %v3055 = vpop.f32.mrf.mxu0
    %v3056 = vadd.f32 0.0, %v3055
    %v3057 = vpop.f32.mrf.mxu0
    %v3058 = vpop.f32.mrf.mxu0
    %v3059 = vpop.f32.mrf.mxu0
    %3060 = vdwg.mxu0
    %v3061 = vadd.f32 %v3015, %v3056
    %v3062 = vxor.u32 %v3061, 2147483648
    %v3063 = vmul.f32 %v3062, 1.442695
    %v3064 = vpow.pop %v3063
    %v3065 = vadd.f32 %v3064, 1.0
    %v3066 = vrcp.pop %v3065
    %v3067 = vmul.f32 1.0, %v3066
    %v3068 = vtanh.pop %v3061
    %v3069 = vld [vmem:[#allocation6] sm:$0xff]
    %3071 = vrot.lane.b32.xlu0 %v3069, 32
    %v3072 = vpop.permute.xlu0 %3071
    %v3074 = vmul.f32 %v3067, %v3072
    %3076 = vrot.lane.b32.xlu0 %v3068, 64
    %v3077 = vpop.permute.xlu0 %3076
    %v3079 = vmul.f32 %v3067, %v3077
    %3081 = vrot.lane.b32.xlu0 %v3079, 32
    %v3082 = vpop.permute.xlu0 %3081
    %v3084 = vadd.f32 %v3074, %v3082
    %v3085 = vtanh.pop %v3084
    %3087 = vrot.lane.b32.xlu0 %v3085, 64
    %v3088 = vpop.permute.xlu0 %3087
    %v3090 = vmul.f32 %v3067, %v3088
    %3092 = vrot.lane.b32.xlu0 %v3084, 96
    %v3093 = vpop.permute.xlu0 %3092
    %3095 = vst.msk [vmem:[#allocation6] sm:$0xff] %vm2784, %v3093
    %3097 = vrot.lane.b32.xlu0 %v3090, 32
    %v3098 = vpop.permute.xlu0 %3097
    %3100 = vst.msk [vmem:[#allocation5] sm:$0xff] %vm2784, %v3098
    %s3101 = scalar_lea.vmem [#allocation3], %s3008
    %3102 = vst.msk [vmem:[%s3101] sm:$0xff] %vm2904, %v3098
    %s3103 = scalar_lea.vmem [#allocation3], %s3010
    %3104 = vst.msk [vmem:[%s3103] sm:$0xff] %vm2907, %v3098
    %s3105 = sadd.s32 %s2797, 3
    %s3106 = smul.u32 %s3105, 8
    %s3107 = ssub.s32 332, %s2797
    %s3108 = smul.u32 %s3107, 8
    %s3109 = scalar_lea.vmem [#allocation2], %s3106
    %v3110 = vld [vmem:[%s3109] sm:$0xff]
    %s3111 = scalar_lea.vmem [#allocation2], %s3108
    %v3112 = vld [vmem:[%s3111] sm:$0xff]
    %v3113 = vsel %vm56, %v3110, %v3112
    %v3114 = vld [vmem:[#allocation5] sm:$0xff]
    %v3115 = vpack.c.bf16 %v3114, %v3114
    %v3117 = vsel %vm2784, %v3115, 0
    %3119 = vmatprep.subr.bf16.mxu0 0
    %3120 = vmatpush1.bf16.msra.mxu0 0
    %3121 = vmatprep.subr.bf16.mxu0 0
    %3122 = vmatpush1.bf16.msra.mxu0 0
    %3123 = vmatprep.subr.bf16.mxu0 0
    %3124 = vmatpush1.bf16.msra.mxu0 0
    %3125 = vmatprep.subr.bf16.mxu0 0
    %3126 = vmatpush1.bf16.msra.mxu0 0
    %3127 = vmatprep.subr.bf16.mxu0 0
    %3128 = vmatpush1.bf16.msra.mxu0 0
    %3129 = vmatprep.subr.bf16.mxu0 0
    %3130 = vmatpush1.bf16.msra.mxu0 0
    %3131 = vmatprep.subr.bf16.mxu0 0
    %3132 = vmatpush1.bf16.msra.mxu0 %v2817
    %3133 = vmatprep.subr.bf16.mxu0 0
    %3134 = vmatpush1.bf16.msra.mxu0 %v2816
    %3135 = vmatprep.subr.bf16.mxu0 0
    %3136 = vmatpush2.bf16.msra.mxu0 0
    %3137 = vmatprep.subr.bf16.mxu0 0
    %3138 = vmatpush2.bf16.msra.mxu0 0
    %3139 = vmatprep.subr.bf16.mxu0 0
    %3140 = vmatpush2.bf16.msra.mxu0 0
    %3141 = vmatprep.subr.bf16.mxu0 0
    %3142 = vmatpush2.bf16.msra.mxu0 0
    %3143 = vmatprep.subr.bf16.mxu0 0
    %3144 = vmatpush2.bf16.msra.mxu0 0
    %3145 = vmatprep.subr.bf16.mxu0 0
    %3146 = vmatpush2.bf16.msra.mxu0 0
    %3147 = vmatprep.subr.bf16.mxu0 0
    %3148 = vmatpush2.bf16.msra.mxu0 0
    %3149 = vmatprep.subr.bf16.mxu0 0
    %3150 = vmatpush2.bf16.msra.mxu0 0
    %3151 = vmatprep.mubr.bf16.mxu0 0
    %3152 = vmatmul.mubr.bf16.gmra.mxu0 %v3117
    %v3153 = vpop.f32.mrf.mxu0
    %v3154 = vadd.f32 0.0, %v3153
    %v3155 = vpop.f32.mrf.mxu0
    %v3156 = vpop.f32.mrf.mxu0
    %v3157 = vpop.f32.mrf.mxu0
    %3158 = vdwg.mxu0
    %v3159 = vadd.f32 %v3113, %v3154
    %v3160 = vxor.u32 %v3159, 2147483648
    %v3161 = vmul.f32 %v3160, 1.442695
    %v3162 = vpow.pop %v3161
    %v3163 = vadd.f32 %v3162, 1.0
    %v3164 = vrcp.pop %v3163
    %v3165 = vmul.f32 1.0, %v3164
    %v3166 = vtanh.pop %v3159
    %v3167 = vld [vmem:[#allocation6] sm:$0xff]
    %3169 = vrot.lane.b32.xlu0 %v3167, 32
    %v3170 = vpop.permute.xlu0 %3169
    %v3172 = vmul.f32 %v3165, %v3170
    %3174 = vrot.lane.b32.xlu0 %v3166, 64
    %v3175 = vpop.permute.xlu0 %3174
    %v3177 = vmul.f32 %v3165, %v3175
    %3179 = vrot.lane.b32.xlu0 %v3177, 32
    %v3180 = vpop.permute.xlu0 %3179
    %v3182 = vadd.f32 %v3172, %v3180
    %v3183 = vtanh.pop %v3182
    %3185 = vrot.lane.b32.xlu0 %v3183, 64
    %v3186 = vpop.permute.xlu0 %3185
    %v3188 = vmul.f32 %v3165, %v3186
    %3190 = vrot.lane.b32.xlu0 %v3182, 96
    %v3191 = vpop.permute.xlu0 %3190
    %3193 = vst.msk [vmem:[#allocation6] sm:$0xff] %vm2784, %v3191
    %3195 = vrot.lane.b32.xlu0 %v3188, 32
    %v3196 = vpop.permute.xlu0 %3195
    %3198 = vst.msk [vmem:[#allocation5] sm:$0xff] %vm2784, %v3196
    %s3199 = scalar_lea.vmem [#allocation3], %s3106
    %3200 = vst.msk [vmem:[%s3199] sm:$0xff] %vm2904, %v3196
    %s3201 = scalar_lea.vmem [#allocation3], %s3108
    %3202 = vst.msk [vmem:[%s3201] sm:$0xff] %vm2907, %v3196
    %s3203 = sadd.s32 %s2797, 4
    %s3204 = smul.u32 %s3203, 8
    %s3205 = ssub.s32 331, %s2797
    %s3206 = smul.u32 %s3205, 8
    %s3207 = scalar_lea.vmem [#allocation2], %s3204
    %v3208 = vld [vmem:[%s3207] sm:$0xff]
    %s3209 = scalar_lea.vmem [#allocation2], %s3206
    %v3210 = vld [vmem:[%s3209] sm:$0xff]
    %v3211 = vsel %vm56, %v3208, %v3210
    %v3212 = vld [vmem:[#allocation5] sm:$0xff]
    %v3213 = vpack.c.bf16 %v3212, %v3212
    %v3215 = vsel %vm2784, %v3213, 0
    %3217 = vmatprep.subr.bf16.mxu0 0
    %3218 = vmatpush1.bf16.msra.mxu0 0
    %3219 = vmatprep.subr.bf16.mxu0 0
    %3220 = vmatpush1.bf16.msra.mxu0 0
    %3221 = vmatprep.subr.bf16.mxu0 0
    %3222 = vmatpush1.bf16.msra.mxu0 0
    %3223 = vmatprep.subr.bf16.mxu0 0
    %3224 = vmatpush1.bf16.msra.mxu0 0
    %3225 = vmatprep.subr.bf16.mxu0 0
    %3226 = vmatpush1.bf16.msra.mxu0 0
    %3227 = vmatprep.subr.bf16.mxu0 0
    %3228 = vmatpush1.bf16.msra.mxu0 0
    %3229 = vmatprep.subr.bf16.mxu0 0
    %3230 = vmatpush1.bf16.msra.mxu0 %v2817
    %3231 = vmatprep.subr.bf16.mxu0 0
    %3232 = vmatpush1.bf16.msra.mxu0 %v2816
    %3233 = vmatprep.subr.bf16.mxu0 0
    %3234 = vmatpush2.bf16.msra.mxu0 0
    %3235 = vmatprep.subr.bf16.mxu0 0
    %3236 = vmatpush2.bf16.msra.mxu0 0
    %3237 = vmatprep.subr.bf16.mxu0 0
    %3238 = vmatpush2.bf16.msra.mxu0 0
    %3239 = vmatprep.subr.bf16.mxu0 0
    %3240 = vmatpush2.bf16.msra.mxu0 0
    %3241 = vmatprep.subr.bf16.mxu0 0
    %3242 = vmatpush2.bf16.msra.mxu0 0
    %3243 = vmatprep.subr.bf16.mxu0 0
    %3244 = vmatpush2.bf16.msra.mxu0 0
    %3245 = vmatprep.subr.bf16.mxu0 0
    %3246 = vmatpush2.bf16.msra.mxu0 0
    %3247 = vmatprep.subr.bf16.mxu0 0
    %3248 = vmatpush2.bf16.msra.mxu0 0
    %3249 = vmatprep.mubr.bf16.mxu0 0
    %3250 = vmatmul.mubr.bf16.gmra.mxu0 %v3215
    %v3251 = vpop.f32.mrf.mxu0
    %v3252 = vadd.f32 0.0, %v3251
    %v3253 = vpop.f32.mrf.mxu0
    %v3254 = vpop.f32.mrf.mxu0
    %v3255 = vpop.f32.mrf.mxu0
    %3256 = vdwg.mxu0
    %v3257 = vadd.f32 %v3211, %v3252
    %v3258 = vxor.u32 %v3257, 2147483648
    %v3259 = vmul.f32 %v3258, 1.442695
    %v3260 = vpow.pop %v3259
    %v3261 = vadd.f32 %v3260, 1.0
    %v3262 = vrcp.pop %v3261
    %v3263 = vmul.f32 1.0, %v3262
    %v3264 = vtanh.pop %v3257
    %v3265 = vld [vmem:[#allocation6] sm:$0xff]
    %3267 = vrot.lane.b32.xlu0 %v3265, 32
    %v3268 = vpop.permute.xlu0 %3267
    %v3270 = vmul.f32 %v3263, %v3268
    %3272 = vrot.lane.b32.xlu0 %v3264, 64
    %v3273 = vpop.permute.xlu0 %3272
    %v3275 = vmul.f32 %v3263, %v3273
    %3277 = vrot.lane.b32.xlu0 %v3275, 32
    %v3278 = vpop.permute.xlu0 %3277
    %v3280 = vadd.f32 %v3270, %v3278
    %v3281 = vtanh.pop %v3280
    %3283 = vrot.lane.b32.xlu0 %v3281, 64
    %v3284 = vpop.permute.xlu0 %3283
    %v3286 = vmul.f32 %v3263, %v3284
    %3288 = vrot.lane.b32.xlu0 %v3280, 96
    %v3289 = vpop.permute.xlu0 %3288
    %3291 = vst.msk [vmem:[#allocation6] sm:$0xff] %vm2784, %v3289
    %3293 = vrot.lane.b32.xlu0 %v3286, 32
    %v3294 = vpop.permute.xlu0 %3293
    %3296 = vst.msk [vmem:[#allocation5] sm:$0xff] %vm2784, %v3294
    %s3297 = scalar_lea.vmem [#allocation3], %s3204
    %3298 = vst.msk [vmem:[%s3297] sm:$0xff] %vm2904, %v3294
    %s3299 = scalar_lea.vmem [#allocation3], %s3206
    %3300 = vst.msk [vmem:[%s3299] sm:$0xff] %vm2907, %v3294
    %s3301 = sadd.s32 %s2797, 5
    %s3302 = smul.u32 %s3301, 8
    %s3303 = ssub.s32 330, %s2797
    %s3304 = smul.u32 %s3303, 8
    %s3305 = scalar_lea.vmem [#allocation2], %s3302
    %v3306 = vld [vmem:[%s3305] sm:$0xff]
    %s3307 = scalar_lea.vmem [#allocation2], %s3304
    %v3308 = vld [vmem:[%s3307] sm:$0xff]
    %v3309 = vsel %vm56, %v3306, %v3308
    %v3310 = vld [vmem:[#allocation5] sm:$0xff]
    %v3311 = vpack.c.bf16 %v3310, %v3310
    %v3313 = vsel %vm2784, %v3311, 0
    %3315 = vmatprep.subr.bf16.mxu0 0
    %3316 = vmatpush1.bf16.msra.mxu0 0
    %3317 = vmatprep.subr.bf16.mxu0 0
    %3318 = vmatpush1.bf16.msra.mxu0 0
    %3319 = vmatprep.subr.bf16.mxu0 0
    %3320 = vmatpush1.bf16.msra.mxu0 0
    %3321 = vmatprep.subr.bf16.mxu0 0
    %3322 = vmatpush1.bf16.msra.mxu0 0
    %3323 = vmatprep.subr.bf16.mxu0 0
    %3324 = vmatpush1.bf16.msra.mxu0 0
    %3325 = vmatprep.subr.bf16.mxu0 0
    %3326 = vmatpush1.bf16.msra.mxu0 0
    %3327 = vmatprep.subr.bf16.mxu0 0
    %3328 = vmatpush1.bf16.msra.mxu0 %v2817
    %3329 = vmatprep.subr.bf16.mxu0 0
    %3330 = vmatpush1.bf16.msra.mxu0 %v2816
    %3331 = vmatprep.subr.bf16.mxu0 0
    %3332 = vmatpush2.bf16.msra.mxu0 0
    %3333 = vmatprep.subr.bf16.mxu0 0
    %3334 = vmatpush2.bf16.msra.mxu0 0
    %3335 = vmatprep.subr.bf16.mxu0 0
    %3336 = vmatpush2.bf16.msra.mxu0 0
    %3337 = vmatprep.subr.bf16.mxu0 0
    %3338 = vmatpush2.bf16.msra.mxu0 0
    %3339 = vmatprep.subr.bf16.mxu0 0
    %3340 = vmatpush2.bf16.msra.mxu0 0
    %3341 = vmatprep.subr.bf16.mxu0 0
    %3342 = vmatpush2.bf16.msra.mxu0 0
    %3343 = vmatprep.subr.bf16.mxu0 0
    %3344 = vmatpush2.bf16.msra.mxu0 0
    %3345 = vmatprep.subr.bf16.mxu0 0
    %3346 = vmatpush2.bf16.msra.mxu0 0
    %3347 = vmatprep.mubr.bf16.mxu0 0
    %3348 = vmatmul.mubr.bf16.gmra.mxu0 %v3313
    %v3349 = vpop.f32.mrf.mxu0
    %v3350 = vadd.f32 0.0, %v3349
    %v3351 = vpop.f32.mrf.mxu0
    %v3352 = vpop.f32.mrf.mxu0
    %v3353 = vpop.f32.mrf.mxu0
    %3354 = vdwg.mxu0
    %v3355 = vadd.f32 %v3309, %v3350
    %v3356 = vxor.u32 %v3355, 2147483648
    %v3357 = vmul.f32 %v3356, 1.442695
    %v3358 = vpow.pop %v3357
    %v3359 = vadd.f32 %v3358, 1.0
    %v3360 = vrcp.pop %v3359
    %v3361 = vmul.f32 1.0, %v3360
    %v3362 = vtanh.pop %v3355
    %v3363 = vld [vmem:[#allocation6] sm:$0xff]
    %3365 = vrot.lane.b32.xlu0 %v3363, 32
    %v3366 = vpop.permute.xlu0 %3365
    %v3368 = vmul.f32 %v3361, %v3366
    %3370 = vrot.lane.b32.xlu0 %v3362, 64
    %v3371 = vpop.permute.xlu0 %3370
    %v3373 = vmul.f32 %v3361, %v3371
    %3375 = vrot.lane.b32.xlu0 %v3373, 32
    %v3376 = vpop.permute.xlu0 %3375
    %v3378 = vadd.f32 %v3368, %v3376
    %v3379 = vtanh.pop %v3378
    %3381 = vrot.lane.b32.xlu0 %v3379, 64
    %v3382 = vpop.permute.xlu0 %3381
    %v3384 = vmul.f32 %v3361, %v3382
    %3386 = vrot.lane.b32.xlu0 %v3378, 96
    %v3387 = vpop.permute.xlu0 %3386
    %3389 = vst.msk [vmem:[#allocation6] sm:$0xff] %vm2784, %v3387
    %3391 = vrot.lane.b32.xlu0 %v3384, 32
    %v3392 = vpop.permute.xlu0 %3391
    %3394 = vst.msk [vmem:[#allocation5] sm:$0xff] %vm2784, %v3392
    %s3395 = scalar_lea.vmem [#allocation3], %s3302
    %3396 = vst.msk [vmem:[%s3395] sm:$0xff] %vm2904, %v3392
    %s3397 = scalar_lea.vmem [#allocation3], %s3304
    %3398 = vst.msk [vmem:[%s3397] sm:$0xff] %vm2907, %v3392
    %s3399 = sadd.s32 %s2797, 6
    %s3400 = smul.u32 %s3399, 8
    %s3401 = ssub.s32 329, %s2797
    %s3402 = smul.u32 %s3401, 8
    %s3403 = scalar_lea.vmem [#allocation2], %s3400
    %v3404 = vld [vmem:[%s3403] sm:$0xff]
    %s3405 = scalar_lea.vmem [#allocation2], %s3402
    %v3406 = vld [vmem:[%s3405] sm:$0xff]
    %v3407 = vsel %vm56, %v3404, %v3406
    %v3408 = vld [vmem:[#allocation5] sm:$0xff]
    %v3409 = vpack.c.bf16 %v3408, %v3408
    %v3411 = vsel %vm2784, %v3409, 0
    %3413 = vmatprep.subr.bf16.mxu0 0
    %3414 = vmatpush1.bf16.msra.mxu0 0
    %3415 = vmatprep.subr.bf16.mxu0 0
    %3416 = vmatpush1.bf16.msra.mxu0 0
    %3417 = vmatprep.subr.bf16.mxu0 0
    %3418 = vmatpush1.bf16.msra.mxu0 0
    %3419 = vmatprep.subr.bf16.mxu0 0
    %3420 = vmatpush1.bf16.msra.mxu0 0
    %3421 = vmatprep.subr.bf16.mxu0 0
    %3422 = vmatpush1.bf16.msra.mxu0 0
    %3423 = vmatprep.subr.bf16.mxu0 0
    %3424 = vmatpush1.bf16.msra.mxu0 0
    %3425 = vmatprep.subr.bf16.mxu0 0
    %3426 = vmatpush1.bf16.msra.mxu0 %v2817
    %3427 = vmatprep.subr.bf16.mxu0 0
    %3428 = vmatpush1.bf16.msra.mxu0 %v2816
    %3429 = vmatprep.subr.bf16.mxu0 0
    %3430 = vmatpush2.bf16.msra.mxu0 0
    %3431 = vmatprep.subr.bf16.mxu0 0
    %3432 = vmatpush2.bf16.msra.mxu0 0
    %3433 = vmatprep.subr.bf16.mxu0 0
    %3434 = vmatpush2.bf16.msra.mxu0 0
    %3435 = vmatprep.subr.bf16.mxu0 0
    %3436 = vmatpush2.bf16.msra.mxu0 0
    %3437 = vmatprep.subr.bf16.mxu0 0
    %3438 = vmatpush2.bf16.msra.mxu0 0
    %3439 = vmatprep.subr.bf16.mxu0 0
    %3440 = vmatpush2.bf16.msra.mxu0 0
    %3441 = vmatprep.subr.bf16.mxu0 0
    %3442 = vmatpush2.bf16.msra.mxu0 0
    %3443 = vmatprep.subr.bf16.mxu0 0
    %3444 = vmatpush2.bf16.msra.mxu0 0
    %3445 = vmatprep.mubr.bf16.mxu0 0
    %3446 = vmatmul.mubr.bf16.gmra.mxu0 %v3411
    %v3447 = vpop.f32.mrf.mxu0
    %v3448 = vadd.f32 0.0, %v3447
    %v3449 = vpop.f32.mrf.mxu0
    %v3450 = vpop.f32.mrf.mxu0
    %v3451 = vpop.f32.mrf.mxu0
    %3452 = vdwg.mxu0
    %v3453 = vadd.f32 %v3407, %v3448
    %v3454 = vxor.u32 %v3453, 2147483648
    %v3455 = vmul.f32 %v3454, 1.442695
    %v3456 = vpow.pop %v3455
    %v3457 = vadd.f32 %v3456, 1.0
    %v3458 = vrcp.pop %v3457
    %v3459 = vmul.f32 1.0, %v3458
    %v3460 = vtanh.pop %v3453
    %v3461 = vld [vmem:[#allocation6] sm:$0xff]
    %3463 = vrot.lane.b32.xlu0 %v3461, 32
    %v3464 = vpop.permute.xlu0 %3463
    %v3466 = vmul.f32 %v3459, %v3464
    %3468 = vrot.lane.b32.xlu0 %v3460, 64
    %v3469 = vpop.permute.xlu0 %3468
    %v3471 = vmul.f32 %v3459, %v3469
    %3473 = vrot.lane.b32.xlu0 %v3471, 32
    %v3474 = vpop.permute.xlu0 %3473
    %v3476 = vadd.f32 %v3466, %v3474
    %v3477 = vtanh.pop %v3476
    %3479 = vrot.lane.b32.xlu0 %v3477, 64
    %v3480 = vpop.permute.xlu0 %3479
    %v3482 = vmul.f32 %v3459, %v3480
    %3484 = vrot.lane.b32.xlu0 %v3476, 96
    %v3485 = vpop.permute.xlu0 %3484
    %3487 = vst.msk [vmem:[#allocation6] sm:$0xff] %vm2784, %v3485
    %3489 = vrot.lane.b32.xlu0 %v3482, 32
    %v3490 = vpop.permute.xlu0 %3489
    %3492 = vst.msk [vmem:[#allocation5] sm:$0xff] %vm2784, %v3490
    %s3493 = scalar_lea.vmem [#allocation3], %s3400
    %3494 = vst.msk [vmem:[%s3493] sm:$0xff] %vm2904, %v3490
    %s3495 = scalar_lea.vmem [#allocation3], %s3402
    %3496 = vst.msk [vmem:[%s3495] sm:$0xff] %vm2907, %v3490
    %s3497 = sadd.s32 %s2797, 7
    %s3498 = smul.u32 %s3497, 8
    %s3499 = ssub.s32 328, %s2797
    %s3500 = smul.u32 %s3499, 8
    %s3501 = scalar_lea.vmem [#allocation2], %s3498
    %v3502 = vld [vmem:[%s3501] sm:$0xff]
    %s3503 = scalar_lea.vmem [#allocation2], %s3500
    %v3504 = vld [vmem:[%s3503] sm:$0xff]
    %v3505 = vsel %vm56, %v3502, %v3504
    %v3506 = vld [vmem:[#allocation5] sm:$0xff]
    %v3507 = vpack.c.bf16 %v3506, %v3506
    %v3509 = vsel %vm2784, %v3507, 0
    %3511 = vmatprep.subr.bf16.mxu0 0
    %3512 = vmatpush1.bf16.msra.mxu0 0
    %3513 = vmatprep.subr.bf16.mxu0 0
    %3514 = vmatpush1.bf16.msra.mxu0 0
    %3515 = vmatprep.subr.bf16.mxu0 0
    %3516 = vmatpush1.bf16.msra.mxu0 0
    %3517 = vmatprep.subr.bf16.mxu0 0
    %3518 = vmatpush1.bf16.msra.mxu0 0
    %3519 = vmatprep.subr.bf16.mxu0 0
    %3520 = vmatpush1.bf16.msra.mxu0 0
    %3521 = vmatprep.subr.bf16.mxu0 0
    %3522 = vmatpush1.bf16.msra.mxu0 0
    %3523 = vmatprep.subr.bf16.mxu0 0
    %3524 = vmatpush1.bf16.msra.mxu0 %v2817
    %3525 = vmatprep.subr.bf16.mxu0 0
    %3526 = vmatpush1.bf16.msra.mxu0 %v2816
    %3527 = vmatprep.subr.bf16.mxu0 0
    %3528 = vmatpush2.bf16.msra.mxu0 0
    %3529 = vmatprep.subr.bf16.mxu0 0
    %3530 = vmatpush2.bf16.msra.mxu0 0
    %3531 = vmatprep.subr.bf16.mxu0 0
    %3532 = vmatpush2.bf16.msra.mxu0 0
    %3533 = vmatprep.subr.bf16.mxu0 0
    %3534 = vmatpush2.bf16.msra.mxu0 0
    %3535 = vmatprep.subr.bf16.mxu0 0
    %3536 = vmatpush2.bf16.msra.mxu0 0
    %3537 = vmatprep.subr.bf16.mxu0 0
    %3538 = vmatpush2.bf16.msra.mxu0 0
    %3539 = vmatprep.subr.bf16.mxu0 0
    %3540 = vmatpush2.bf16.msra.mxu0 0
    %3541 = vmatprep.subr.bf16.mxu0 0
    %3542 = vmatpush2.bf16.msra.mxu0 0
    %3543 = vmatprep.mubr.bf16.mxu0 0
    %3544 = vmatmul.mubr.bf16.gmra.mxu0 %v3509
    %v3545 = vpop.f32.mrf.mxu0
    %v3546 = vadd.f32 0.0, %v3545
    %v3547 = vpop.f32.mrf.mxu0
    %v3548 = vpop.f32.mrf.mxu0
    %v3549 = vpop.f32.mrf.mxu0
    %3550 = vdwg.mxu0
    %v3551 = vadd.f32 %v3505, %v3546
    %v3552 = vxor.u32 %v3551, 2147483648
    %v3553 = vmul.f32 %v3552, 1.442695
    %v3554 = vpow.pop %v3553
    %v3555 = vadd.f32 %v3554, 1.0
    %v3556 = vrcp.pop %v3555
    %v3557 = vmul.f32 1.0, %v3556
    %v3558 = vtanh.pop %v3551
    %v3559 = vld [vmem:[#allocation6] sm:$0xff]
    %3561 = vrot.lane.b32.xlu0 %v3559, 32
    %v3562 = vpop.permute.xlu0 %3561
    %v3564 = vmul.f32 %v3557, %v3562
    %3566 = vrot.lane.b32.xlu0 %v3558, 64
    %v3567 = vpop.permute.xlu0 %3566
    %v3569 = vmul.f32 %v3557, %v3567
    %3571 = vrot.lane.b32.xlu0 %v3569, 32
    %v3572 = vpop.permute.xlu0 %3571
    %v3574 = vadd.f32 %v3564, %v3572
    %v3575 = vtanh.pop %v3574
    %3577 = vrot.lane.b32.xlu0 %v3575, 64
    %v3578 = vpop.permute.xlu0 %3577
    %v3580 = vmul.f32 %v3557, %v3578
    %3582 = vrot.lane.b32.xlu0 %v3574, 96
    %v3583 = vpop.permute.xlu0 %3582
    %3585 = vst.msk [vmem:[#allocation6] sm:$0xff] %vm2784, %v3583
    %3587 = vrot.lane.b32.xlu0 %v3580, 32
    %v3588 = vpop.permute.xlu0 %3587
    %3590 = vst.msk [vmem:[#allocation5] sm:$0xff] %vm2784, %v3588
    %s3591 = scalar_lea.vmem [#allocation3], %s3498
    %3592 = vst.msk [vmem:[%s3591] sm:$0xff] %vm2904, %v3588
    %s3593 = scalar_lea.vmem [#allocation3], %s3500
    %3594 = vst.msk [vmem:[%s3593] sm:$0xff] %vm2907, %v3588
  $region54: #{bilstm2_forward.1} parent=0 // loop_footer
    %s2796 = sadd.s32 1, %s2792
  $region55: #{bilstm2_forward.1} parent=0 // loop_footer_branch
    %2791 = sbr.rel target = $region51
  $region56: #{bilstm2_forward.1} parent=0 // loop_exit
    _
  %v3595 = vld [vmem:[#allocation3] sm:$0xff]
  %v3596 = vld [vmem:[#allocation3 + $0x8] sm:$0xff]
  %v3597 = vld [vmem:[#allocation3 + $0x10] sm:$0xff]
  %v3598 = vld [vmem:[#allocation3 + $0x18] sm:$0xff]
  %v3599 = vld [vmem:[#allocation3 + $0x20] sm:$0xff]
  %v3600 = vld [vmem:[#allocation3 + $0x28] sm:$0xff]
  %v3601 = vld [vmem:[#allocation3 + $0x30] sm:$0xff]
  %v3602 = vld [vmem:[#allocation3 + $0x38] sm:$0xff]
  %v3603 = vld [vmem:[#allocation3 + $0x40] sm:$0xff]
  %v3604 = vld [vmem:[#allocation3 + $0x48] sm:$0xff]
  %v3605 = vld [vmem:[#allocation3 + $0x50] sm:$0xff]
  %v3606 = vld [vmem:[#allocation3 + $0x58] sm:$0xff]
  %v3607 = vld [vmem:[#allocation3 + $0x60] sm:$0xff]
  %v3608 = vld [vmem:[#allocation3 + $0x68] sm:$0xff]
  %v3609 = vld [vmem:[#allocation3 + $0x70] sm:$0xff]
  %v3610 = vld [vmem:[#allocation3 + $0x78] sm:$0xff]
  %v3611 = vld [vmem:[#allocation3 + $0x80] sm:$0xff]
  %v3612 = vld [vmem:[#allocation3 + $0x88] sm:$0xff]
  %v3613 = vld [vmem:[#allocation3 + $0x90] sm:$0xff]
  %v3614 = vld [vmem:[#allocation3 + $0x98] sm:$0xff]
  %v3615 = vld [vmem:[#allocation3 + $0xa0] sm:$0xff]
  %v3616 = vld [vmem:[#allocation3 + $0xa8] sm:$0xff]
  %v3617 = vld [vmem:[#allocation3 + $0xb0] sm:$0xff]
  %v3618 = vld [vmem:[#allocation3 + $0xb8] sm:$0xff]
  %v3619 = vld [vmem:[#allocation3 + $0xc0] sm:$0xff]
  %v3620 = vld [vmem:[#allocation3 + $0xc8] sm:$0xff]
  %v3621 = vld [vmem:[#allocation3 + $0xd0] sm:$0xff]
  %v3622 = vld [vmem:[#allocation3 + $0xd8] sm:$0xff]
  %v3623 = vld [vmem:[#allocation3 + $0xe0] sm:$0xff]
  %v3624 = vld [vmem:[#allocation3 + $0xe8] sm:$0xff]
  %v3625 = vld [vmem:[#allocation3 + $0xf0] sm:$0xff]
  %v3626 = vld [vmem:[#allocation3 + $0xf8] sm:$0xff]
  %v3627 = vld [vmem:[#allocation3 + $0x100] sm:$0xff]
  %v3628 = vld [vmem:[#allocation3 + $0x108] sm:$0xff]
  %v3629 = vld [vmem:[#allocation3 + $0x110] sm:$0xff]
  %v3630 = vld [vmem:[#allocation3 + $0x118] sm:$0xff]
  %v3631 = vld [vmem:[#allocation3 + $0x120] sm:$0xff]
  %v3632 = vld [vmem:[#allocation3 + $0x128] sm:$0xff]
  %v3633 = vld [vmem:[#allocation3 + $0x130] sm:$0xff]
  %v3634 = vld [vmem:[#allocation3 + $0x138] sm:$0xff]
  %v3635 = vld [vmem:[#allocation3 + $0x140] sm:$0xff]
  %v3636 = vld [vmem:[#allocation3 + $0x148] sm:$0xff]
  %v3637 = vld [vmem:[#allocation3 + $0x150] sm:$0xff]
  %v3638 = vld [vmem:[#allocation3 + $0x158] sm:$0xff]
  %v3639 = vld [vmem:[#allocation3 + $0x160] sm:$0xff]
  %v3640 = vld [vmem:[#allocation3 + $0x168] sm:$0xff]
  %v3641 = vld [vmem:[#allocation3 + $0x170] sm:$0xff]
  %v3642 = vld [vmem:[#allocation3 + $0x178] sm:$0xff]
  %v3643 = vld [vmem:[#allocation3 + $0x180] sm:$0xff]
  %v3644 = vld [vmem:[#allocation3 + $0x188] sm:$0xff]
  %v3645 = vld [vmem:[#allocation3 + $0x190] sm:$0xff]
  %v3646 = vld [vmem:[#allocation3 + $0x198] sm:$0xff]
  %v3647 = vld [vmem:[#allocation3 + $0x1a0] sm:$0xff]
  %v3648 = vld [vmem:[#allocation3 + $0x1a8] sm:$0xff]
  %v3649 = vld [vmem:[#allocation3 + $0x1b0] sm:$0xff]
  %v3650 = vld [vmem:[#allocation3 + $0x1b8] sm:$0xff]
  %v3651 = vld [vmem:[#allocation3 + $0x1c0] sm:$0xff]
  %v3652 = vld [vmem:[#allocation3 + $0x1c8] sm:$0xff]
  %v3653 = vld [vmem:[#allocation3 + $0x1d0] sm:$0xff]
  %v3654 = vld [vmem:[#allocation3 + $0x1d8] sm:$0xff]
  %v3655 = vld [vmem:[#allocation3 + $0x1e0] sm:$0xff]
  %v3656 = vld [vmem:[#allocation3 + $0x1e8] sm:$0xff]
  %v3657 = vld [vmem:[#allocation3 + $0x1f0] sm:$0xff]
  %v3658 = vld [vmem:[#allocation3 + $0x1f8] sm:$0xff]
  %v3659 = vld [vmem:[#allocation3 + $0x200] sm:$0xff]
  %v3660 = vld [vmem:[#allocation3 + $0x208] sm:$0xff]
  %v3661 = vld [vmem:[#allocation3 + $0x210] sm:$0xff]
  %v3662 = vld [vmem:[#allocation3 + $0x218] sm:$0xff]
  %v3663 = vld [vmem:[#allocation3 + $0x220] sm:$0xff]
  %v3664 = vld [vmem:[#allocation3 + $0x228] sm:$0xff]
  %v3665 = vld [vmem:[#allocation3 + $0x230] sm:$0xff]
  %v3666 = vld [vmem:[#allocation3 + $0x238] sm:$0xff]
  %v3667 = vld [vmem:[#allocation3 + $0x240] sm:$0xff]
  %v3668 = vld [vmem:[#allocation3 + $0x248] sm:$0xff]
  %v3669 = vld [vmem:[#allocation3 + $0x250] sm:$0xff]
  %v3670 = vld [vmem:[#allocation3 + $0x258] sm:$0xff]
  %v3671 = vld [vmem:[#allocation3 + $0x260] sm:$0xff]
  %v3672 = vld [vmem:[#allocation3 + $0x268] sm:$0xff]
  %v3673 = vld [vmem:[#allocation3 + $0x270] sm:$0xff]
  %v3674 = vld [vmem:[#allocation3 + $0x278] sm:$0xff]
  %v3675 = vld [vmem:[#allocation3 + $0x280] sm:$0xff]
  %v3676 = vld [vmem:[#allocation3 + $0x288] sm:$0xff]
  %v3677 = vld [vmem:[#allocation3 + $0x290] sm:$0xff]
  %v3678 = vld [vmem:[#allocation3 + $0x298] sm:$0xff]
  %v3679 = vld [vmem:[#allocation3 + $0x2a0] sm:$0xff]
  %v3680 = vld [vmem:[#allocation3 + $0x2a8] sm:$0xff]
  %v3681 = vld [vmem:[#allocation3 + $0x2b0] sm:$0xff]
  %v3682 = vld [vmem:[#allocation3 + $0x2b8] sm:$0xff]
  %v3683 = vld [vmem:[#allocation3 + $0x2c0] sm:$0xff]
  %v3684 = vld [vmem:[#allocation3 + $0x2c8] sm:$0xff]
  %v3685 = vld [vmem:[#allocation3 + $0x2d0] sm:$0xff]
  %v3686 = vld [vmem:[#allocation3 + $0x2d8] sm:$0xff]
  %v3687 = vld [vmem:[#allocation3 + $0x2e0] sm:$0xff]
  %v3688 = vld [vmem:[#allocation3 + $0x2e8] sm:$0xff]
  %v3689 = vld [vmem:[#allocation3 + $0x2f0] sm:$0xff]
  %v3690 = vld [vmem:[#allocation3 + $0x2f8] sm:$0xff]
  %v3691 = vld [vmem:[#allocation3 + $0x300] sm:$0xff]
  %v3692 = vld [vmem:[#allocation3 + $0x308] sm:$0xff]
  %v3693 = vld [vmem:[#allocation3 + $0x310] sm:$0xff]
  %v3694 = vld [vmem:[#allocation3 + $0x318] sm:$0xff]
  %v3695 = vld [vmem:[#allocation3 + $0x320] sm:$0xff]
  %v3696 = vld [vmem:[#allocation3 + $0x328] sm:$0xff]
  %v3697 = vld [vmem:[#allocation3 + $0x330] sm:$0xff]
  %v3698 = vld [vmem:[#allocation3 + $0x338] sm:$0xff]
  %v3699 = vld [vmem:[#allocation3 + $0x340] sm:$0xff]
  %v3700 = vld [vmem:[#allocation3 + $0x348] sm:$0xff]
  %v3701 = vld [vmem:[#allocation3 + $0x350] sm:$0xff]
  %v3702 = vld [vmem:[#allocation3 + $0x358] sm:$0xff]
  %v3703 = vld [vmem:[#allocation3 + $0x360] sm:$0xff]
  %v3704 = vld [vmem:[#allocation3 + $0x368] sm:$0xff]
  %v3705 = vld [vmem:[#allocation3 + $0x370] sm:$0xff]
  %v3706 = vld [vmem:[#allocation3 + $0x378] sm:$0xff]
  %v3707 = vld [vmem:[#allocation3 + $0x380] sm:$0xff]
  %v3708 = vld [vmem:[#allocation3 + $0x388] sm:$0xff]
  %v3709 = vld [vmem:[#allocation3 + $0x390] sm:$0xff]
  %v3710 = vld [vmem:[#allocation3 + $0x398] sm:$0xff]
  %v3711 = vld [vmem:[#allocation3 + $0x3a0] sm:$0xff]
  %v3712 = vld [vmem:[#allocation3 + $0x3a8] sm:$0xff]
  %v3713 = vld [vmem:[#allocation3 + $0x3b0] sm:$0xff]
  %v3714 = vld [vmem:[#allocation3 + $0x3b8] sm:$0xff]
  %v3715 = vld [vmem:[#allocation3 + $0x3c0] sm:$0xff]
  %v3716 = vld [vmem:[#allocation3 + $0x3c8] sm:$0xff]
  %v3717 = vld [vmem:[#allocation3 + $0x3d0] sm:$0xff]
  %v3718 = vld [vmem:[#allocation3 + $0x3d8] sm:$0xff]
  %v3719 = vld [vmem:[#allocation3 + $0x3e0] sm:$0xff]
  %v3720 = vld [vmem:[#allocation3 + $0x3e8] sm:$0xff]
  %v3721 = vld [vmem:[#allocation3 + $0x3f0] sm:$0xff]
  %v3722 = vld [vmem:[#allocation3 + $0x3f8] sm:$0xff]
  %v3723 = vld [vmem:[#allocation3 + $0x400] sm:$0xff]
  %v3724 = vld [vmem:[#allocation3 + $0x408] sm:$0xff]
  %v3725 = vld [vmem:[#allocation3 + $0x410] sm:$0xff]
  %v3726 = vld [vmem:[#allocation3 + $0x418] sm:$0xff]
  %v3727 = vld [vmem:[#allocation3 + $0x420] sm:$0xff]
  %v3728 = vld [vmem:[#allocation3 + $0x428] sm:$0xff]
  %v3729 = vld [vmem:[#allocation3 + $0x430] sm:$0xff]
  %v3730 = vld [vmem:[#allocation3 + $0x438] sm:$0xff]
  %v3731 = vld [vmem:[#allocation3 + $0x440] sm:$0xff]
  %v3732 = vld [vmem:[#allocation3 + $0x448] sm:$0xff]
  %v3733 = vld [vmem:[#allocation3 + $0x450] sm:$0xff]
  %v3734 = vld [vmem:[#allocation3 + $0x458] sm:$0xff]
  %v3735 = vld [vmem:[#allocation3 + $0x460] sm:$0xff]
  %v3736 = vld [vmem:[#allocation3 + $0x468] sm:$0xff]
  %v3737 = vld [vmem:[#allocation3 + $0x470] sm:$0xff]
  %v3738 = vld [vmem:[#allocation3 + $0x478] sm:$0xff]
  %v3739 = vld [vmem:[#allocation3 + $0x480] sm:$0xff]
  %v3740 = vld [vmem:[#allocation3 + $0x488] sm:$0xff]
  %v3741 = vld [vmem:[#allocation3 + $0x490] sm:$0xff]
  %v3742 = vld [vmem:[#allocation3 + $0x498] sm:$0xff]
  %v3743 = vld [vmem:[#allocation3 + $0x4a0] sm:$0xff]
  %v3744 = vld [vmem:[#allocation3 + $0x4a8] sm:$0xff]
  %v3745 = vld [vmem:[#allocation3 + $0x4b0] sm:$0xff]
  %v3746 = vld [vmem:[#allocation3 + $0x4b8] sm:$0xff]
  %v3747 = vld [vmem:[#allocation3 + $0x4c0] sm:$0xff]
  %v3748 = vld [vmem:[#allocation3 + $0x4c8] sm:$0xff]
  %v3749 = vld [vmem:[#allocation3 + $0x4d0] sm:$0xff]
  %v3750 = vld [vmem:[#allocation3 + $0x4d8] sm:$0xff]
  %v3751 = vld [vmem:[#allocation3 + $0x4e0] sm:$0xff]
  %v3752 = vld [vmem:[#allocation3 + $0x4e8] sm:$0xff]
  %v3753 = vld [vmem:[#allocation3 + $0x4f0] sm:$0xff]
  %v3754 = vld [vmem:[#allocation3 + $0x4f8] sm:$0xff]
  %v3755 = vld [vmem:[#allocation3 + $0x500] sm:$0xff]
  %v3756 = vld [vmem:[#allocation3 + $0x508] sm:$0xff]
  %v3757 = vld [vmem:[#allocation3 + $0x510] sm:$0xff]
  %v3758 = vld [vmem:[#allocation3 + $0x518] sm:$0xff]
  %v3759 = vld [vmem:[#allocation3 + $0x520] sm:$0xff]
  %v3760 = vld [vmem:[#allocation3 + $0x528] sm:$0xff]
  %v3761 = vld [vmem:[#allocation3 + $0x530] sm:$0xff]
  %v3762 = vld [vmem:[#allocation3 + $0x538] sm:$0xff]
  %v3763 = vld [vmem:[#allocation3 + $0x540] sm:$0xff]
  %v3764 = vld [vmem:[#allocation3 + $0x548] sm:$0xff]
  %v3765 = vld [vmem:[#allocation3 + $0x550] sm:$0xff]
  %v3766 = vld [vmem:[#allocation3 + $0x558] sm:$0xff]
  %v3767 = vld [vmem:[#allocation3 + $0x560] sm:$0xff]
  %v3768 = vld [vmem:[#allocation3 + $0x568] sm:$0xff]
  %v3769 = vld [vmem:[#allocation3 + $0x570] sm:$0xff]
  %v3770 = vld [vmem:[#allocation3 + $0x578] sm:$0xff]
  %v3771 = vld [vmem:[#allocation3 + $0x580] sm:$0xff]
  %v3772 = vld [vmem:[#allocation3 + $0x588] sm:$0xff]
  %v3773 = vld [vmem:[#allocation3 + $0x590] sm:$0xff]
  %v3774 = vld [vmem:[#allocation3 + $0x598] sm:$0xff]
  %v3775 = vld [vmem:[#allocation3 + $0x5a0] sm:$0xff]
  %v3776 = vld [vmem:[#allocation3 + $0x5a8] sm:$0xff]
  %v3777 = vld [vmem:[#allocation3 + $0x5b0] sm:$0xff]
  %v3778 = vld [vmem:[#allocation3 + $0x5b8] sm:$0xff]
  %v3779 = vld [vmem:[#allocation3 + $0x5c0] sm:$0xff]
  %v3780 = vld [vmem:[#allocation3 + $0x5c8] sm:$0xff]
  %v3781 = vld [vmem:[#allocation3 + $0x5d0] sm:$0xff]
  %v3782 = vld [vmem:[#allocation3 + $0x5d8] sm:$0xff]
  %v3783 = vld [vmem:[#allocation3 + $0x5e0] sm:$0xff]
  %v3784 = vld [vmem:[#allocation3 + $0x5e8] sm:$0xff]
  %v3785 = vld [vmem:[#allocation3 + $0x5f0] sm:$0xff]
  %v3786 = vld [vmem:[#allocation3 + $0x5f8] sm:$0xff]
  %v3787 = vld [vmem:[#allocation3 + $0x600] sm:$0xff]
  %v3788 = vld [vmem:[#allocation3 + $0x608] sm:$0xff]
  %v3789 = vld [vmem:[#allocation3 + $0x610] sm:$0xff]
  %v3790 = vld [vmem:[#allocation3 + $0x618] sm:$0xff]
  %v3791 = vld [vmem:[#allocation3 + $0x620] sm:$0xff]
  %v3792 = vld [vmem:[#allocation3 + $0x628] sm:$0xff]
  %v3793 = vld [vmem:[#allocation3 + $0x630] sm:$0xff]
  %v3794 = vld [vmem:[#allocation3 + $0x638] sm:$0xff]
  %v3795 = vld [vmem:[#allocation3 + $0x640] sm:$0xff]
  %v3796 = vld [vmem:[#allocation3 + $0x648] sm:$0xff]
  %v3797 = vld [vmem:[#allocation3 + $0x650] sm:$0xff]
  %v3798 = vld [vmem:[#allocation3 + $0x658] sm:$0xff]
  %v3799 = vld [vmem:[#allocation3 + $0x660] sm:$0xff]
  %v3800 = vld [vmem:[#allocation3 + $0x668] sm:$0xff]
  %v3801 = vld [vmem:[#allocation3 + $0x670] sm:$0xff]
  %v3802 = vld [vmem:[#allocation3 + $0x678] sm:$0xff]
  %v3803 = vld [vmem:[#allocation3 + $0x680] sm:$0xff]
  %v3804 = vld [vmem:[#allocation3 + $0x688] sm:$0xff]
  %v3805 = vld [vmem:[#allocation3 + $0x690] sm:$0xff]
  %v3806 = vld [vmem:[#allocation3 + $0x698] sm:$0xff]
  %v3807 = vld [vmem:[#allocation3 + $0x6a0] sm:$0xff]
  %v3808 = vld [vmem:[#allocation3 + $0x6a8] sm:$0xff]
  %v3809 = vld [vmem:[#allocation3 + $0x6b0] sm:$0xff]
  %v3810 = vld [vmem:[#allocation3 + $0x6b8] sm:$0xff]
  %v3811 = vld [vmem:[#allocation3 + $0x6c0] sm:$0xff]
  %v3812 = vld [vmem:[#allocation3 + $0x6c8] sm:$0xff]
  %v3813 = vld [vmem:[#allocation3 + $0x6d0] sm:$0xff]
  %v3814 = vld [vmem:[#allocation3 + $0x6d8] sm:$0xff]
  %v3815 = vld [vmem:[#allocation3 + $0x6e0] sm:$0xff]
  %v3816 = vld [vmem:[#allocation3 + $0x6e8] sm:$0xff]
  %v3817 = vld [vmem:[#allocation3 + $0x6f0] sm:$0xff]
  %v3818 = vld [vmem:[#allocation3 + $0x6f8] sm:$0xff]
  %v3819 = vld [vmem:[#allocation3 + $0x700] sm:$0xff]
  %v3820 = vld [vmem:[#allocation3 + $0x708] sm:$0xff]
  %v3821 = vld [vmem:[#allocation3 + $0x710] sm:$0xff]
  %v3822 = vld [vmem:[#allocation3 + $0x718] sm:$0xff]
  %v3823 = vld [vmem:[#allocation3 + $0x720] sm:$0xff]
  %v3824 = vld [vmem:[#allocation3 + $0x728] sm:$0xff]
  %v3825 = vld [vmem:[#allocation3 + $0x730] sm:$0xff]
  %v3826 = vld [vmem:[#allocation3 + $0x738] sm:$0xff]
  %v3827 = vld [vmem:[#allocation3 + $0x740] sm:$0xff]
  %v3828 = vld [vmem:[#allocation3 + $0x748] sm:$0xff]
  %v3829 = vld [vmem:[#allocation3 + $0x750] sm:$0xff]
  %v3830 = vld [vmem:[#allocation3 + $0x758] sm:$0xff]
  %v3831 = vld [vmem:[#allocation3 + $0x760] sm:$0xff]
  %v3832 = vld [vmem:[#allocation3 + $0x768] sm:$0xff]
  %v3833 = vld [vmem:[#allocation3 + $0x770] sm:$0xff]
  %v3834 = vld [vmem:[#allocation3 + $0x778] sm:$0xff]
  %v3835 = vld [vmem:[#allocation3 + $0x780] sm:$0xff]
  %v3836 = vld [vmem:[#allocation3 + $0x788] sm:$0xff]
  %v3837 = vld [vmem:[#allocation3 + $0x790] sm:$0xff]
  %v3838 = vld [vmem:[#allocation3 + $0x798] sm:$0xff]
  %v3839 = vld [vmem:[#allocation3 + $0x7a0] sm:$0xff]
  %v3840 = vld [vmem:[#allocation3 + $0x7a8] sm:$0xff]
  %v3841 = vld [vmem:[#allocation3 + $0x7b0] sm:$0xff]
  %v3842 = vld [vmem:[#allocation3 + $0x7b8] sm:$0xff]
  %v3843 = vld [vmem:[#allocation3 + $0x7c0] sm:$0xff]
  %v3844 = vld [vmem:[#allocation3 + $0x7c8] sm:$0xff]
  %v3845 = vld [vmem:[#allocation3 + $0x7d0] sm:$0xff]
  %v3846 = vld [vmem:[#allocation3 + $0x7d8] sm:$0xff]
  %v3847 = vld [vmem:[#allocation3 + $0x7e0] sm:$0xff]
  %v3848 = vld [vmem:[#allocation3 + $0x7e8] sm:$0xff]
  %v3849 = vld [vmem:[#allocation3 + $0x7f0] sm:$0xff]
  %v3850 = vld [vmem:[#allocation3 + $0x7f8] sm:$0xff]
  %v3851 = vld [vmem:[#allocation3 + $0x800] sm:$0xff]
  %v3852 = vld [vmem:[#allocation3 + $0x808] sm:$0xff]
  %v3853 = vld [vmem:[#allocation3 + $0x810] sm:$0xff]
  %v3854 = vld [vmem:[#allocation3 + $0x818] sm:$0xff]
  %v3855 = vld [vmem:[#allocation3 + $0x820] sm:$0xff]
  %v3856 = vld [vmem:[#allocation3 + $0x828] sm:$0xff]
  %v3857 = vld [vmem:[#allocation3 + $0x830] sm:$0xff]
  %v3858 = vld [vmem:[#allocation3 + $0x838] sm:$0xff]
  %v3859 = vld [vmem:[#allocation3 + $0x840] sm:$0xff]
  %v3860 = vld [vmem:[#allocation3 + $0x848] sm:$0xff]
  %v3861 = vld [vmem:[#allocation3 + $0x850] sm:$0xff]
  %v3862 = vld [vmem:[#allocation3 + $0x858] sm:$0xff]
  %v3863 = vld [vmem:[#allocation3 + $0x860] sm:$0xff]
  %v3864 = vld [vmem:[#allocation3 + $0x868] sm:$0xff]
  %v3865 = vld [vmem:[#allocation3 + $0x870] sm:$0xff]
  %v3866 = vld [vmem:[#allocation3 + $0x878] sm:$0xff]
  %v3867 = vld [vmem:[#allocation3 + $0x880] sm:$0xff]
  %v3868 = vld [vmem:[#allocation3 + $0x888] sm:$0xff]
  %v3869 = vld [vmem:[#allocation3 + $0x890] sm:$0xff]
  %v3870 = vld [vmem:[#allocation3 + $0x898] sm:$0xff]
  %v3871 = vld [vmem:[#allocation3 + $0x8a0] sm:$0xff]
  %v3872 = vld [vmem:[#allocation3 + $0x8a8] sm:$0xff]
  %v3873 = vld [vmem:[#allocation3 + $0x8b0] sm:$0xff]
  %v3874 = vld [vmem:[#allocation3 + $0x8b8] sm:$0xff]
  %v3875 = vld [vmem:[#allocation3 + $0x8c0] sm:$0xff]
  %v3876 = vld [vmem:[#allocation3 + $0x8c8] sm:$0xff]
  %v3877 = vld [vmem:[#allocation3 + $0x8d0] sm:$0xff]
  %v3878 = vld [vmem:[#allocation3 + $0x8d8] sm:$0xff]
  %v3879 = vld [vmem:[#allocation3 + $0x8e0] sm:$0xff]
  %v3880 = vld [vmem:[#allocation3 + $0x8e8] sm:$0xff]
  %v3881 = vld [vmem:[#allocation3 + $0x8f0] sm:$0xff]
  %v3882 = vld [vmem:[#allocation3 + $0x8f8] sm:$0xff]
  %v3883 = vld [vmem:[#allocation3 + $0x900] sm:$0xff]
  %v3884 = vld [vmem:[#allocation3 + $0x908] sm:$0xff]
  %v3885 = vld [vmem:[#allocation3 + $0x910] sm:$0xff]
  %v3886 = vld [vmem:[#allocation3 + $0x918] sm:$0xff]
  %v3887 = vld [vmem:[#allocation3 + $0x920] sm:$0xff]
  %v3888 = vld [vmem:[#allocation3 + $0x928] sm:$0xff]
  %v3889 = vld [vmem:[#allocation3 + $0x930] sm:$0xff]
  %v3890 = vld [vmem:[#allocation3 + $0x938] sm:$0xff]
  %v3891 = vld [vmem:[#allocation3 + $0x940] sm:$0xff]
  %v3892 = vld [vmem:[#allocation3 + $0x948] sm:$0xff]
  %v3893 = vld [vmem:[#allocation3 + $0x950] sm:$0xff]
  %v3894 = vld [vmem:[#allocation3 + $0x958] sm:$0xff]
  %v3895 = vld [vmem:[#allocation3 + $0x960] sm:$0xff]
  %v3896 = vld [vmem:[#allocation3 + $0x968] sm:$0xff]
  %v3897 = vld [vmem:[#allocation3 + $0x970] sm:$0xff]
  %v3898 = vld [vmem:[#allocation3 + $0x978] sm:$0xff]
  %v3899 = vld [vmem:[#allocation3 + $0x980] sm:$0xff]
  %v3900 = vld [vmem:[#allocation3 + $0x988] sm:$0xff]
  %v3901 = vld [vmem:[#allocation3 + $0x990] sm:$0xff]
  %v3902 = vld [vmem:[#allocation3 + $0x998] sm:$0xff]
  %v3903 = vld [vmem:[#allocation3 + $0x9a0] sm:$0xff]
  %v3904 = vld [vmem:[#allocation3 + $0x9a8] sm:$0xff]
  %v3905 = vld [vmem:[#allocation3 + $0x9b0] sm:$0xff]
  %v3906 = vld [vmem:[#allocation3 + $0x9b8] sm:$0xff]
  %v3907 = vld [vmem:[#allocation3 + $0x9c0] sm:$0xff]
  %v3908 = vld [vmem:[#allocation3 + $0x9c8] sm:$0xff]
  %v3909 = vld [vmem:[#allocation3 + $0x9d0] sm:$0xff]
  %v3910 = vld [vmem:[#allocation3 + $0x9d8] sm:$0xff]
  %v3911 = vld [vmem:[#allocation3 + $0x9e0] sm:$0xff]
  %v3912 = vld [vmem:[#allocation3 + $0x9e8] sm:$0xff]
  %v3913 = vld [vmem:[#allocation3 + $0x9f0] sm:$0xff]
  %v3914 = vld [vmem:[#allocation3 + $0x9f8] sm:$0xff]
  %v3915 = vld [vmem:[#allocation3 + $0xa00] sm:$0xff]
  %v3916 = vld [vmem:[#allocation3 + $0xa08] sm:$0xff]
  %v3917 = vld [vmem:[#allocation3 + $0xa10] sm:$0xff]
  %v3918 = vld [vmem:[#allocation3 + $0xa18] sm:$0xff]
  %v3919 = vld [vmem:[#allocation3 + $0xa20] sm:$0xff]
  %v3920 = vld [vmem:[#allocation3 + $0xa28] sm:$0xff]
  %v3921 = vld [vmem:[#allocation3 + $0xa30] sm:$0xff]
  %v3922 = vld [vmem:[#allocation3 + $0xa38] sm:$0xff]
  %v3923 = vld [vmem:[#allocation3 + $0xa40] sm:$0xff]
  %v3924 = vld [vmem:[#allocation3 + $0xa48] sm:$0xff]
  %v3925 = vld [vmem:[#allocation3 + $0xa50] sm:$0xff]
  %v3926 = vld [vmem:[#allocation3 + $0xa58] sm:$0xff]
  %v3927 = vld [vmem:[#allocation3 + $0xa60] sm:$0xff]
  %v3928 = vld [vmem:[#allocation3 + $0xa68] sm:$0xff]
  %v3929 = vld [vmem:[#allocation3 + $0xa70] sm:$0xff]
  %v3930 = vld [vmem:[#allocation3 + $0xa78] sm:$0xff]
  %v3931 = vpack.c.bf16 %v3596, %v3595
  %v3932 = vpack.c.bf16 %v3598, %v3597
  %v3933 = vpack.c.bf16 %v3600, %v3599
  %v3934 = vpack.c.bf16 %v3602, %v3601
  %v3935 = vpack.c.bf16 %v3604, %v3603
  %v3936 = vpack.c.bf16 %v3606, %v3605
  %v3937 = vpack.c.bf16 %v3608, %v3607
  %v3938 = vpack.c.bf16 %v3610, %v3609
  %v3939 = vpack.c.bf16 %v3612, %v3611
  %v3940 = vpack.c.bf16 %v3614, %v3613
  %v3941 = vpack.c.bf16 %v3616, %v3615
  %v3942 = vpack.c.bf16 %v3618, %v3617
  %v3943 = vpack.c.bf16 %v3620, %v3619
  %v3944 = vpack.c.bf16 %v3622, %v3621
  %v3945 = vpack.c.bf16 %v3624, %v3623
  %v3946 = vpack.c.bf16 %v3626, %v3625
  %v3947 = vpack.c.bf16 %v3628, %v3627
  %v3948 = vpack.c.bf16 %v3630, %v3629
  %v3949 = vpack.c.bf16 %v3632, %v3631
  %v3950 = vpack.c.bf16 %v3634, %v3633
  %v3951 = vpack.c.bf16 %v3636, %v3635
  %v3952 = vpack.c.bf16 %v3638, %v3637
  %v3953 = vpack.c.bf16 %v3640, %v3639
  %v3954 = vpack.c.bf16 %v3642, %v3641
  %v3955 = vpack.c.bf16 %v3644, %v3643
  %v3956 = vpack.c.bf16 %v3646, %v3645
  %v3957 = vpack.c.bf16 %v3648, %v3647
  %v3958 = vpack.c.bf16 %v3650, %v3649
  %v3959 = vpack.c.bf16 %v3652, %v3651
  %v3960 = vpack.c.bf16 %v3654, %v3653
  %v3961 = vpack.c.bf16 %v3656, %v3655
  %v3962 = vpack.c.bf16 %v3658, %v3657
  %v3963 = vpack.c.bf16 %v3660, %v3659
  %v3964 = vpack.c.bf16 %v3662, %v3661
  %v3965 = vpack.c.bf16 %v3664, %v3663
  %v3966 = vpack.c.bf16 %v3666, %v3665
  %v3967 = vpack.c.bf16 %v3668, %v3667
  %v3968 = vpack.c.bf16 %v3670, %v3669
  %v3969 = vpack.c.bf16 %v3672, %v3671
  %v3970 = vpack.c.bf16 %v3674, %v3673
  %v3971 = vpack.c.bf16 %v3676, %v3675
  %v3972 = vpack.c.bf16 %v3678, %v3677
  %v3973 = vpack.c.bf16 %v3680, %v3679
  %v3974 = vpack.c.bf16 %v3682, %v3681
  %v3975 = vpack.c.bf16 %v3684, %v3683
  %v3976 = vpack.c.bf16 %v3686, %v3685
  %v3977 = vpack.c.bf16 %v3688, %v3687
  %v3978 = vpack.c.bf16 %v3690, %v3689
  %v3979 = vpack.c.bf16 %v3692, %v3691
  %v3980 = vpack.c.bf16 %v3694, %v3693
  %v3981 = vpack.c.bf16 %v3696, %v3695
  %v3982 = vpack.c.bf16 %v3698, %v3697
  %v3983 = vpack.c.bf16 %v3700, %v3699
  %v3984 = vpack.c.bf16 %v3702, %v3701
  %v3985 = vpack.c.bf16 %v3704, %v3703
  %v3986 = vpack.c.bf16 %v3706, %v3705
  %v3987 = vpack.c.bf16 %v3708, %v3707
  %v3988 = vpack.c.bf16 %v3710, %v3709
  %v3989 = vpack.c.bf16 %v3712, %v3711
  %v3990 = vpack.c.bf16 %v3714, %v3713
  %v3991 = vpack.c.bf16 %v3716, %v3715
  %v3992 = vpack.c.bf16 %v3718, %v3717
  %v3993 = vpack.c.bf16 %v3720, %v3719
  %v3994 = vpack.c.bf16 %v3722, %v3721
  %v3995 = vpack.c.bf16 %v3724, %v3723
  %v3996 = vpack.c.bf16 %v3726, %v3725
  %v3997 = vpack.c.bf16 %v3728, %v3727
  %v3998 = vpack.c.bf16 %v3730, %v3729
  %v3999 = vpack.c.bf16 %v3732, %v3731
  %v4000 = vpack.c.bf16 %v3734, %v3733
  %v4001 = vpack.c.bf16 %v3736, %v3735
  %v4002 = vpack.c.bf16 %v3738, %v3737
  %v4003 = vpack.c.bf16 %v3740, %v3739
  %v4004 = vpack.c.bf16 %v3742, %v3741
  %v4005 = vpack.c.bf16 %v3744, %v3743
  %v4006 = vpack.c.bf16 %v3746, %v3745
  %v4007 = vpack.c.bf16 %v3748, %v3747
  %v4008 = vpack.c.bf16 %v3750, %v3749
  %v4009 = vpack.c.bf16 %v3752, %v3751
  %v4010 = vpack.c.bf16 %v3754, %v3753
  %v4011 = vpack.c.bf16 %v3756, %v3755
  %v4012 = vpack.c.bf16 %v3758, %v3757
  %v4013 = vpack.c.bf16 %v3760, %v3759
  %v4014 = vpack.c.bf16 %v3762, %v3761
  %v4015 = vpack.c.bf16 %v3764, %v3763
  %v4016 = vpack.c.bf16 %v3766, %v3765
  %v4017 = vpack.c.bf16 %v3768, %v3767
  %v4018 = vpack.c.bf16 %v3770, %v3769
  %v4019 = vpack.c.bf16 %v3772, %v3771
  %v4020 = vpack.c.bf16 %v3774, %v3773
  %v4021 = vpack.c.bf16 %v3776, %v3775
  %v4022 = vpack.c.bf16 %v3778, %v3777
  %v4023 = vpack.c.bf16 %v3780, %v3779
  %v4024 = vpack.c.bf16 %v3782, %v3781
  %v4025 = vpack.c.bf16 %v3784, %v3783
  %v4026 = vpack.c.bf16 %v3786, %v3785
  %v4027 = vpack.c.bf16 %v3788, %v3787
  %v4028 = vpack.c.bf16 %v3790, %v3789
  %v4029 = vpack.c.bf16 %v3792, %v3791
  %v4030 = vpack.c.bf16 %v3794, %v3793
  %v4031 = vpack.c.bf16 %v3796, %v3795
  %v4032 = vpack.c.bf16 %v3798, %v3797
  %v4033 = vpack.c.bf16 %v3800, %v3799
  %v4034 = vpack.c.bf16 %v3802, %v3801
  %v4035 = vpack.c.bf16 %v3804, %v3803
  %v4036 = vpack.c.bf16 %v3806, %v3805
  %v4037 = vpack.c.bf16 %v3808, %v3807
  %v4038 = vpack.c.bf16 %v3810, %v3809
  %v4039 = vpack.c.bf16 %v3812, %v3811
  %v4040 = vpack.c.bf16 %v3814, %v3813
  %v4041 = vpack.c.bf16 %v3816, %v3815
  %v4042 = vpack.c.bf16 %v3818, %v3817
  %v4043 = vpack.c.bf16 %v3820, %v3819
  %v4044 = vpack.c.bf16 %v3822, %v3821
  %v4045 = vpack.c.bf16 %v3824, %v3823
  %v4046 = vpack.c.bf16 %v3826, %v3825
  %v4047 = vpack.c.bf16 %v3828, %v3827
  %v4048 = vpack.c.bf16 %v3830, %v3829
  %v4049 = vpack.c.bf16 %v3832, %v3831
  %v4050 = vpack.c.bf16 %v3834, %v3833
  %v4051 = vpack.c.bf16 %v3836, %v3835
  %v4052 = vpack.c.bf16 %v3838, %v3837
  %v4053 = vpack.c.bf16 %v3840, %v3839
  %v4054 = vpack.c.bf16 %v3842, %v3841
  %v4055 = vpack.c.bf16 %v3844, %v3843
  %v4056 = vpack.c.bf16 %v3846, %v3845
  %v4057 = vpack.c.bf16 %v3848, %v3847
  %v4058 = vpack.c.bf16 %v3850, %v3849
  %v4059 = vpack.c.bf16 %v3852, %v3851
  %v4060 = vpack.c.bf16 %v3854, %v3853
  %v4061 = vpack.c.bf16 %v3856, %v3855
  %v4062 = vpack.c.bf16 %v3858, %v3857
  %v4063 = vpack.c.bf16 %v3860, %v3859
  %v4064 = vpack.c.bf16 %v3862, %v3861
  %v4065 = vpack.c.bf16 %v3864, %v3863
  %v4066 = vpack.c.bf16 %v3866, %v3865
  %v4067 = vpack.c.bf16 %v3868, %v3867
  %v4068 = vpack.c.bf16 %v3870, %v3869
  %v4069 = vpack.c.bf16 %v3872, %v3871
  %v4070 = vpack.c.bf16 %v3874, %v3873
  %v4071 = vpack.c.bf16 %v3876, %v3875
  %v4072 = vpack.c.bf16 %v3878, %v3877
  %v4073 = vpack.c.bf16 %v3880, %v3879
  %v4074 = vpack.c.bf16 %v3882, %v3881
  %v4075 = vpack.c.bf16 %v3884, %v3883
  %v4076 = vpack.c.bf16 %v3886, %v3885
  %v4077 = vpack.c.bf16 %v3888, %v3887
  %v4078 = vpack.c.bf16 %v3890, %v3889
  %v4079 = vpack.c.bf16 %v3892, %v3891
  %v4080 = vpack.c.bf16 %v3894, %v3893
  %v4081 = vpack.c.bf16 %v3896, %v3895
  %v4082 = vpack.c.bf16 %v3898, %v3897
  %v4083 = vpack.c.bf16 %v3900, %v3899
  %v4084 = vpack.c.bf16 %v3902, %v3901
  %v4085 = vpack.c.bf16 %v3904, %v3903
  %v4086 = vpack.c.bf16 %v3906, %v3905
  %v4087 = vpack.c.bf16 %v3908, %v3907
  %v4088 = vpack.c.bf16 %v3910, %v3909
  %v4089 = vpack.c.bf16 %v3912, %v3911
  %v4090 = vpack.c.bf16 %v3914, %v3913
  %v4091 = vpack.c.bf16 %v3916, %v3915
  %v4092 = vpack.c.bf16 %v3918, %v3917
  %v4093 = vpack.c.bf16 %v3920, %v3919
  %v4094 = vpack.c.bf16 %v3922, %v3921
  %v4095 = vpack.c.bf16 %v3924, %v3923
  %v4096 = vpack.c.bf16 %v3926, %v3925
  %v4097 = vpack.c.bf16 %v3928, %v3927
  %v4098 = vpack.c.bf16 %v3930, %v3929
  %v4099 = vld [vmem:[%s3] sm:$0xf]
  %v4100 = vld [vmem:[%s3 + $0x4] sm:$0xf]
  %v4101 = vld [vmem:[%s3 + $0x8] sm:$0xf]
  %v4102 = vld [vmem:[%s3 + $0xc] sm:$0xf]
  %v4107 = vunpack.c.l.b16 %v4099
  %v4108 = vunpack.c.l.b16 %v4100
  %v4109 = vunpack.c.l.b16 %v4101
  %v4110 = vunpack.c.l.b16 %v4102
  %v4111 = vpack.c.b16 %v4108, %v4107
  %v4112 = vpack.c.b16 %v4110, %v4109
  %v4116 = vsel %vm2784, %v3931, 0
  %v4119 = vsel %vm2784, %v3932, 0
  %v4122 = vsel %vm2784, %v3933, 0
  %v4125 = vsel %vm2784, %v3934, 0
  %v4128 = vsel %vm2784, %v3935, 0
  %v4131 = vsel %vm2784, %v3936, 0
  %v4134 = vsel %vm2784, %v3937, 0
  %v4137 = vsel %vm2784, %v3938, 0
  %v4140 = vsel %vm2784, %v3939, 0
  %v4143 = vsel %vm2784, %v3940, 0
  %v4146 = vsel %vm2784, %v3941, 0
  %v4149 = vsel %vm2784, %v3942, 0
  %v4152 = vsel %vm2784, %v3943, 0
  %v4155 = vsel %vm2784, %v3944, 0
  %v4158 = vsel %vm2784, %v3945, 0
  %v4161 = vsel %vm2784, %v3946, 0
  %v4164 = vsel %vm2784, %v3947, 0
  %v4167 = vsel %vm2784, %v3948, 0
  %v4170 = vsel %vm2784, %v3949, 0
  %v4173 = vsel %vm2784, %v3950, 0
  %v4176 = vsel %vm2784, %v3951, 0
  %v4179 = vsel %vm2784, %v3952, 0
  %v4182 = vsel %vm2784, %v3953, 0
  %v4185 = vsel %vm2784, %v3954, 0
  %v4188 = vsel %vm2784, %v3955, 0
  %v4191 = vsel %vm2784, %v3956, 0
  %v4194 = vsel %vm2784, %v3957, 0
  %v4197 = vsel %vm2784, %v3958, 0
  %v4200 = vsel %vm2784, %v3959, 0
  %v4203 = vsel %vm2784, %v3960, 0
  %v4206 = vsel %vm2784, %v3961, 0
  %v4209 = vsel %vm2784, %v3962, 0
  %v4212 = vsel %vm2784, %v3963, 0
  %v4215 = vsel %vm2784, %v3964, 0
  %v4218 = vsel %vm2784, %v3965, 0
  %v4221 = vsel %vm2784, %v3966, 0
  %v4224 = vsel %vm2784, %v3967, 0
  %v4227 = vsel %vm2784, %v3968, 0
  %v4230 = vsel %vm2784, %v3969, 0
  %v4233 = vsel %vm2784, %v3970, 0
  %v4236 = vsel %vm2784, %v3971, 0
  %v4239 = vsel %vm2784, %v3972, 0
  %v4242 = vsel %vm2784, %v3973, 0
  %v4245 = vsel %vm2784, %v3974, 0
  %v4248 = vsel %vm2784, %v3975, 0
  %v4251 = vsel %vm2784, %v3976, 0
  %v4254 = vsel %vm2784, %v3977, 0
  %v4257 = vsel %vm2784, %v3978, 0
  %v4260 = vsel %vm2784, %v3979, 0
  %v4263 = vsel %vm2784, %v3980, 0
  %v4266 = vsel %vm2784, %v3981, 0
  %v4269 = vsel %vm2784, %v3982, 0
  %v4272 = vsel %vm2784, %v3983, 0
  %v4275 = vsel %vm2784, %v3984, 0
  %v4278 = vsel %vm2784, %v3985, 0
  %v4281 = vsel %vm2784, %v3986, 0
  %v4284 = vsel %vm2784, %v3987, 0
  %v4287 = vsel %vm2784, %v3988, 0
  %v4290 = vsel %vm2784, %v3989, 0
  %v4293 = vsel %vm2784, %v3990, 0
  %v4296 = vsel %vm2784, %v3991, 0
  %v4299 = vsel %vm2784, %v3992, 0
  %v4302 = vsel %vm2784, %v3993, 0
  %v4305 = vsel %vm2784, %v3994, 0
  %v4308 = vsel %vm2784, %v3995, 0
  %v4311 = vsel %vm2784, %v3996, 0
  %v4314 = vsel %vm2784, %v3997, 0
  %v4317 = vsel %vm2784, %v3998, 0
  %v4320 = vsel %vm2784, %v3999, 0
  %v4323 = vsel %vm2784, %v4000, 0
  %v4326 = vsel %vm2784, %v4001, 0
  %v4329 = vsel %vm2784, %v4002, 0
  %v4332 = vsel %vm2784, %v4003, 0
  %v4335 = vsel %vm2784, %v4004, 0
  %v4338 = vsel %vm2784, %v4005, 0
  %v4341 = vsel %vm2784, %v4006, 0
  %v4344 = vsel %vm2784, %v4007, 0
  %v4347 = vsel %vm2784, %v4008, 0
  %v4350 = vsel %vm2784, %v4009, 0
  %v4353 = vsel %vm2784, %v4010, 0
  %v4356 = vsel %vm2784, %v4011, 0
  %v4359 = vsel %vm2784, %v4012, 0
  %v4362 = vsel %vm2784, %v4013, 0
  %v4365 = vsel %vm2784, %v4014, 0
  %v4368 = vsel %vm2784, %v4015, 0
  %v4371 = vsel %vm2784, %v4016, 0
  %v4374 = vsel %vm2784, %v4017, 0
  %v4377 = vsel %vm2784, %v4018, 0
  %v4380 = vsel %vm2784, %v4019, 0
  %v4383 = vsel %vm2784, %v4020, 0
  %v4386 = vsel %vm2784, %v4021, 0
  %v4389 = vsel %vm2784, %v4022, 0
  %v4392 = vsel %vm2784, %v4023, 0
  %v4395 = vsel %vm2784, %v4024, 0
  %v4398 = vsel %vm2784, %v4025, 0
  %v4401 = vsel %vm2784, %v4026, 0
  %v4404 = vsel %vm2784, %v4027, 0
  %v4407 = vsel %vm2784, %v4028, 0
  %v4410 = vsel %vm2784, %v4029, 0
  %v4413 = vsel %vm2784, %v4030, 0
  %v4416 = vsel %vm2784, %v4031, 0
  %v4419 = vsel %vm2784, %v4032, 0
  %v4422 = vsel %vm2784, %v4033, 0
  %v4425 = vsel %vm2784, %v4034, 0
  %v4428 = vsel %vm2784, %v4035, 0
  %v4431 = vsel %vm2784, %v4036, 0
  %v4434 = vsel %vm2784, %v4037, 0
  %v4437 = vsel %vm2784, %v4038, 0
  %v4440 = vsel %vm2784, %v4039, 0
  %v4443 = vsel %vm2784, %v4040, 0
  %v4446 = vsel %vm2784, %v4041, 0
  %v4449 = vsel %vm2784, %v4042, 0
  %v4452 = vsel %vm2784, %v4043, 0
  %v4455 = vsel %vm2784, %v4044, 0
  %v4458 = vsel %vm2784, %v4045, 0
  %v4461 = vsel %vm2784, %v4046, 0
  %v4464 = vsel %vm2784, %v4047, 0
  %v4467 = vsel %vm2784, %v4048, 0
  %v4470 = vsel %vm2784, %v4049, 0
  %v4473 = vsel %vm2784, %v4050, 0
  %v4476 = vsel %vm2784, %v4051, 0
  %v4479 = vsel %vm2784, %v4052, 0
  %v4482 = vsel %vm2784, %v4053, 0
  %v4485 = vsel %vm2784, %v4054, 0
  %v4488 = vsel %vm2784, %v4055, 0
  %v4491 = vsel %vm2784, %v4056, 0
  %v4494 = vsel %vm2784, %v4057, 0
  %v4497 = vsel %vm2784, %v4058, 0
  %v4500 = vsel %vm2784, %v4059, 0
  %v4503 = vsel %vm2784, %v4060, 0
  %v4506 = vsel %vm2784, %v4061, 0
  %v4509 = vsel %vm2784, %v4062, 0
  %v4512 = vsel %vm2784, %v4063, 0
  %v4515 = vsel %vm2784, %v4064, 0
  %v4518 = vsel %vm2784, %v4065, 0
  %v4521 = vsel %vm2784, %v4066, 0
  %v4524 = vsel %vm2784, %v4067, 0
  %v4527 = vsel %vm2784, %v4068, 0
  %v4530 = vsel %vm2784, %v4069, 0
  %v4533 = vsel %vm2784, %v4070, 0
  %v4536 = vsel %vm2784, %v4071, 0
  %v4539 = vsel %vm2784, %v4072, 0
  %v4542 = vsel %vm2784, %v4073, 0
  %v4545 = vsel %vm2784, %v4074, 0
  %v4548 = vsel %vm2784, %v4075, 0
  %v4551 = vsel %vm2784, %v4076, 0
  %v4554 = vsel %vm2784, %v4077, 0
  %v4557 = vsel %vm2784, %v4078, 0
  %v4560 = vsel %vm2784, %v4079, 0
  %v4563 = vsel %vm2784, %v4080, 0
  %v4566 = vsel %vm2784, %v4081, 0
  %v4569 = vsel %vm2784, %v4082, 0
  %v4572 = vsel %vm2784, %v4083, 0
  %v4575 = vsel %vm2784, %v4084, 0
  %v4578 = vsel %vm2784, %v4085, 0
  %v4581 = vsel %vm2784, %v4086, 0
  %v4584 = vsel %vm2784, %v4087, 0
  %v4587 = vsel %vm2784, %v4088, 0
  %v4590 = vsel %vm2784, %v4089, 0
  %v4593 = vsel %vm2784, %v4090, 0
  %v4596 = vsel %vm2784, %v4091, 0
  %v4599 = vsel %vm2784, %v4092, 0
  %v4602 = vsel %vm2784, %v4093, 0
  %v4605 = vsel %vm2784, %v4094, 0
  %v4608 = vsel %vm2784, %v4095, 0
  %v4611 = vsel %vm2784, %v4096, 0
  %v4614 = vsel %vm2784, %v4097, 0
  %v4617 = vsel %vm2784, %v4098, 0
  %4619 = vmatprep.subr.bf16.mxu0 0
  %4620 = vmatpush1.bf16.msra.mxu0 0
  %4621 = vmatprep.subr.bf16.mxu0 0
  %4622 = vmatpush1.bf16.msra.mxu0 0
  %4623 = vmatprep.subr.bf16.mxu0 0
  %4624 = vmatpush1.bf16.msra.mxu0 0
  %4625 = vmatprep.subr.bf16.mxu0 0
  %4626 = vmatpush1.bf16.msra.mxu0 0
  %4627 = vmatprep.subr.bf16.mxu0 0
  %4628 = vmatpush1.bf16.msra.mxu0 0
  %4629 = vmatprep.subr.bf16.mxu0 0
  %4630 = vmatpush1.bf16.msra.mxu0 0
  %4631 = vmatprep.subr.bf16.mxu0 0
  %4632 = vmatpush1.bf16.msra.mxu0 %v4112
  %4633 = vmatprep.subr.bf16.mxu0 0
  %4634 = vmatpush1.bf16.msra.mxu0 %v4111
  %4635 = vmatprep.subr.bf16.mxu0 0
  %4636 = vmatpush2.bf16.msra.mxu0 0
  %4637 = vmatprep.subr.bf16.mxu0 0
  %4638 = vmatpush2.bf16.msra.mxu0 0
  %4639 = vmatprep.subr.bf16.mxu0 0
  %4640 = vmatpush2.bf16.msra.mxu0 0
  %4641 = vmatprep.subr.bf16.mxu0 0
  %4642 = vmatpush2.bf16.msra.mxu0 0
  %4643 = vmatprep.subr.bf16.mxu0 0
  %4644 = vmatpush2.bf16.msra.mxu0 0
  %4645 = vmatprep.subr.bf16.mxu0 0
  %4646 = vmatpush2.bf16.msra.mxu0 0
  %4647 = vmatprep.subr.bf16.mxu0 0
  %4648 = vmatpush2.bf16.msra.mxu0 0
  %4649 = vmatprep.subr.bf16.mxu0 0
  %4650 = vmatpush2.bf16.msra.mxu0 0
  %4651 = vmatprep.mubr.bf16.mxu0 0
  %4652 = vmatmul.mubr.bf16.gmra.mxu0 %v4116
  %v4653 = vpop.f32.mrf.mxu0
  %v4654 = vadd.f32 0.0, %v4653
  %v4655 = vpop.f32.mrf.mxu0
  %v4656 = vpop.f32.mrf.mxu0
  %v4657 = vadd.f32 0.0, %v4656
  %v4658 = vpop.f32.mrf.mxu0
  %4659 = vmatprep.mubr.bf16.mxu0 0
  %4660 = vmatmul.mubr.bf16.gmra.mxu0 %v4119
  %v4661 = vpop.f32.mrf.mxu0
  %v4662 = vadd.f32 0.0, %v4661
  %v4663 = vpop.f32.mrf.mxu0
  %v4664 = vpop.f32.mrf.mxu0
  %v4665 = vadd.f32 0.0, %v4664
  %v4666 = vpop.f32.mrf.mxu0
  %4667 = vmatprep.mubr.bf16.mxu0 0
  %4668 = vmatmul.mubr.bf16.gmra.mxu0 %v4122
  %v4669 = vpop.f32.mrf.mxu0
  %v4670 = vadd.f32 0.0, %v4669
  %v4671 = vpop.f32.mrf.mxu0
  %v4672 = vpop.f32.mrf.mxu0
  %v4673 = vadd.f32 0.0, %v4672
  %v4674 = vpop.f32.mrf.mxu0
  %4675 = vmatprep.mubr.bf16.mxu0 0
  %4676 = vmatmul.mubr.bf16.gmra.mxu0 %v4125
  %v4677 = vpop.f32.mrf.mxu0
  %v4678 = vadd.f32 0.0, %v4677
  %v4679 = vpop.f32.mrf.mxu0
  %v4680 = vpop.f32.mrf.mxu0
  %v4681 = vadd.f32 0.0, %v4680
  %v4682 = vpop.f32.mrf.mxu0
  %4683 = vmatprep.mubr.bf16.mxu0 0
  %4684 = vmatmul.mubr.bf16.gmra.mxu0 %v4128
  %v4685 = vpop.f32.mrf.mxu0
  %v4686 = vadd.f32 0.0, %v4685
  %v4687 = vpop.f32.mrf.mxu0
  %v4688 = vpop.f32.mrf.mxu0
  %v4689 = vadd.f32 0.0, %v4688
  %v4690 = vpop.f32.mrf.mxu0
  %4691 = vmatprep.mubr.bf16.mxu0 0
  %4692 = vmatmul.mubr.bf16.gmra.mxu0 %v4131
  %v4693 = vpop.f32.mrf.mxu0
  %v4694 = vadd.f32 0.0, %v4693
  %v4695 = vpop.f32.mrf.mxu0
  %v4696 = vpop.f32.mrf.mxu0
  %v4697 = vadd.f32 0.0, %v4696
  %v4698 = vpop.f32.mrf.mxu0
  %4699 = vmatprep.mubr.bf16.mxu0 0
  %4700 = vmatmul.mubr.bf16.gmra.mxu0 %v4134
  %v4701 = vpop.f32.mrf.mxu0
  %v4702 = vadd.f32 0.0, %v4701
  %v4703 = vpop.f32.mrf.mxu0
  %v4704 = vpop.f32.mrf.mxu0
  %v4705 = vadd.f32 0.0, %v4704
  %v4706 = vpop.f32.mrf.mxu0
  %4707 = vmatprep.mubr.bf16.mxu0 0
  %4708 = vmatmul.mubr.bf16.gmra.mxu0 %v4137
  %v4709 = vpop.f32.mrf.mxu0
  %v4710 = vadd.f32 0.0, %v4709
  %v4711 = vpop.f32.mrf.mxu0
  %v4712 = vpop.f32.mrf.mxu0
  %v4713 = vadd.f32 0.0, %v4712
  %v4714 = vpop.f32.mrf.mxu0
  %4715 = vmatprep.mubr.bf16.mxu0 0
  %4716 = vmatmul.mubr.bf16.gmra.mxu0 %v4140
  %v4717 = vpop.f32.mrf.mxu0
  %v4718 = vadd.f32 0.0, %v4717
  %v4719 = vpop.f32.mrf.mxu0
  %v4720 = vpop.f32.mrf.mxu0
  %v4721 = vadd.f32 0.0, %v4720
  %v4722 = vpop.f32.mrf.mxu0
  %4723 = vmatprep.mubr.bf16.mxu0 0
  %4724 = vmatmul.mubr.bf16.gmra.mxu0 %v4143
  %v4725 = vpop.f32.mrf.mxu0
  %v4726 = vadd.f32 0.0, %v4725
  %v4727 = vpop.f32.mrf.mxu0
  %v4728 = vpop.f32.mrf.mxu0
  %v4729 = vadd.f32 0.0, %v4728
  %v4730 = vpop.f32.mrf.mxu0
  %4731 = vmatprep.mubr.bf16.mxu0 0
  %4732 = vmatmul.mubr.bf16.gmra.mxu0 %v4146
  %v4733 = vpop.f32.mrf.mxu0
  %v4734 = vadd.f32 0.0, %v4733
  %v4735 = vpop.f32.mrf.mxu0
  %v4736 = vpop.f32.mrf.mxu0
  %v4737 = vadd.f32 0.0, %v4736
  %v4738 = vpop.f32.mrf.mxu0
  %4739 = vmatprep.mubr.bf16.mxu0 0
  %4740 = vmatmul.mubr.bf16.gmra.mxu0 %v4149
  %v4741 = vpop.f32.mrf.mxu0
  %v4742 = vadd.f32 0.0, %v4741
  %v4743 = vpop.f32.mrf.mxu0
  %v4744 = vpop.f32.mrf.mxu0
  %v4745 = vadd.f32 0.0, %v4744
  %v4746 = vpop.f32.mrf.mxu0
  %4747 = vmatprep.mubr.bf16.mxu0 0
  %4748 = vmatmul.mubr.bf16.gmra.mxu0 %v4152
  %v4749 = vpop.f32.mrf.mxu0
  %v4750 = vadd.f32 0.0, %v4749
  %v4751 = vpop.f32.mrf.mxu0
  %v4752 = vpop.f32.mrf.mxu0
  %v4753 = vadd.f32 0.0, %v4752
  %v4754 = vpop.f32.mrf.mxu0
  %4755 = vmatprep.mubr.bf16.mxu0 0
  %4756 = vmatmul.mubr.bf16.gmra.mxu0 %v4155
  %v4757 = vpop.f32.mrf.mxu0
  %v4758 = vadd.f32 0.0, %v4757
  %v4759 = vpop.f32.mrf.mxu0
  %v4760 = vpop.f32.mrf.mxu0
  %v4761 = vadd.f32 0.0, %v4760
  %v4762 = vpop.f32.mrf.mxu0
  %4763 = vmatprep.mubr.bf16.mxu0 0
  %4764 = vmatmul.mubr.bf16.gmra.mxu0 %v4158
  %v4765 = vpop.f32.mrf.mxu0
  %v4766 = vadd.f32 0.0, %v4765
  %v4767 = vpop.f32.mrf.mxu0
  %v4768 = vpop.f32.mrf.mxu0
  %v4769 = vadd.f32 0.0, %v4768
  %v4770 = vpop.f32.mrf.mxu0
  %4771 = vmatprep.mubr.bf16.mxu0 0
  %4772 = vmatmul.mubr.bf16.gmra.mxu0 %v4161
  %v4773 = vpop.f32.mrf.mxu0
  %v4774 = vadd.f32 0.0, %v4773
  %v4775 = vpop.f32.mrf.mxu0
  %v4776 = vpop.f32.mrf.mxu0
  %v4777 = vadd.f32 0.0, %v4776
  %v4778 = vpop.f32.mrf.mxu0
  %4779 = vmatprep.mubr.bf16.mxu0 0
  %4780 = vmatmul.mubr.bf16.gmra.mxu0 %v4164
  %v4781 = vpop.f32.mrf.mxu0
  %v4782 = vadd.f32 0.0, %v4781
  %v4783 = vpop.f32.mrf.mxu0
  %v4784 = vpop.f32.mrf.mxu0
  %v4785 = vadd.f32 0.0, %v4784
  %v4786 = vpop.f32.mrf.mxu0
  %4787 = vmatprep.mubr.bf16.mxu0 0
  %4788 = vmatmul.mubr.bf16.gmra.mxu0 %v4167
  %v4789 = vpop.f32.mrf.mxu0
  %v4790 = vadd.f32 0.0, %v4789
  %v4791 = vpop.f32.mrf.mxu0
  %v4792 = vpop.f32.mrf.mxu0
  %v4793 = vadd.f32 0.0, %v4792
  %v4794 = vpop.f32.mrf.mxu0
  %4795 = vmatprep.mubr.bf16.mxu0 0
  %4796 = vmatmul.mubr.bf16.gmra.mxu0 %v4170
  %v4797 = vpop.f32.mrf.mxu0
  %v4798 = vadd.f32 0.0, %v4797
  %v4799 = vpop.f32.mrf.mxu0
  %v4800 = vpop.f32.mrf.mxu0
  %v4801 = vadd.f32 0.0, %v4800
  %v4802 = vpop.f32.mrf.mxu0
  %4803 = vmatprep.mubr.bf16.mxu0 0
  %4804 = vmatmul.mubr.bf16.gmra.mxu0 %v4173
  %v4805 = vpop.f32.mrf.mxu0
  %v4806 = vadd.f32 0.0, %v4805
  %v4807 = vpop.f32.mrf.mxu0
  %v4808 = vpop.f32.mrf.mxu0
  %v4809 = vadd.f32 0.0, %v4808
  %v4810 = vpop.f32.mrf.mxu0
  %4811 = vmatprep.mubr.bf16.mxu0 0
  %4812 = vmatmul.mubr.bf16.gmra.mxu0 %v4176
  %v4813 = vpop.f32.mrf.mxu0
  %v4814 = vadd.f32 0.0, %v4813
  %v4815 = vpop.f32.mrf.mxu0
  %v4816 = vpop.f32.mrf.mxu0
  %v4817 = vadd.f32 0.0, %v4816
  %v4818 = vpop.f32.mrf.mxu0
  %4819 = vmatprep.mubr.bf16.mxu0 0
  %4820 = vmatmul.mubr.bf16.gmra.mxu0 %v4179
  %v4821 = vpop.f32.mrf.mxu0
  %v4822 = vadd.f32 0.0, %v4821
  %v4823 = vpop.f32.mrf.mxu0
  %v4824 = vpop.f32.mrf.mxu0
  %v4825 = vadd.f32 0.0, %v4824
  %v4826 = vpop.f32.mrf.mxu0
  %4827 = vmatprep.mubr.bf16.mxu0 0
  %4828 = vmatmul.mubr.bf16.gmra.mxu0 %v4182
  %v4829 = vpop.f32.mrf.mxu0
  %v4830 = vadd.f32 0.0, %v4829
  %v4831 = vpop.f32.mrf.mxu0
  %v4832 = vpop.f32.mrf.mxu0
  %v4833 = vadd.f32 0.0, %v4832
  %v4834 = vpop.f32.mrf.mxu0
  %4835 = vmatprep.mubr.bf16.mxu0 0
  %4836 = vmatmul.mubr.bf16.gmra.mxu0 %v4185
  %v4837 = vpop.f32.mrf.mxu0
  %v4838 = vadd.f32 0.0, %v4837
  %v4839 = vpop.f32.mrf.mxu0
  %v4840 = vpop.f32.mrf.mxu0
  %v4841 = vadd.f32 0.0, %v4840
  %v4842 = vpop.f32.mrf.mxu0
  %4843 = vmatprep.mubr.bf16.mxu0 0
  %4844 = vmatmul.mubr.bf16.gmra.mxu0 %v4188
  %v4845 = vpop.f32.mrf.mxu0
  %v4846 = vadd.f32 0.0, %v4845
  %v4847 = vpop.f32.mrf.mxu0
  %v4848 = vpop.f32.mrf.mxu0
  %v4849 = vadd.f32 0.0, %v4848
  %v4850 = vpop.f32.mrf.mxu0
  %4851 = vmatprep.mubr.bf16.mxu0 0
  %4852 = vmatmul.mubr.bf16.gmra.mxu0 %v4191
  %v4853 = vpop.f32.mrf.mxu0
  %v4854 = vadd.f32 0.0, %v4853
  %v4855 = vpop.f32.mrf.mxu0
  %v4856 = vpop.f32.mrf.mxu0
  %v4857 = vadd.f32 0.0, %v4856
  %v4858 = vpop.f32.mrf.mxu0
  %4859 = vmatprep.mubr.bf16.mxu0 0
  %4860 = vmatmul.mubr.bf16.gmra.mxu0 %v4194
  %v4861 = vpop.f32.mrf.mxu0
  %v4862 = vadd.f32 0.0, %v4861
  %v4863 = vpop.f32.mrf.mxu0
  %v4864 = vpop.f32.mrf.mxu0
  %v4865 = vadd.f32 0.0, %v4864
  %v4866 = vpop.f32.mrf.mxu0
  %4867 = vmatprep.mubr.bf16.mxu0 0
  %4868 = vmatmul.mubr.bf16.gmra.mxu0 %v4197
  %v4869 = vpop.f32.mrf.mxu0
  %v4870 = vadd.f32 0.0, %v4869
  %v4871 = vpop.f32.mrf.mxu0
  %v4872 = vpop.f32.mrf.mxu0
  %v4873 = vadd.f32 0.0, %v4872
  %v4874 = vpop.f32.mrf.mxu0
  %4875 = vmatprep.mubr.bf16.mxu0 0
  %4876 = vmatmul.mubr.bf16.gmra.mxu0 %v4200
  %v4877 = vpop.f32.mrf.mxu0
  %v4878 = vadd.f32 0.0, %v4877
  %v4879 = vpop.f32.mrf.mxu0
  %v4880 = vpop.f32.mrf.mxu0
  %v4881 = vadd.f32 0.0, %v4880
  %v4882 = vpop.f32.mrf.mxu0
  %4883 = vmatprep.mubr.bf16.mxu0 0
  %4884 = vmatmul.mubr.bf16.gmra.mxu0 %v4203
  %v4885 = vpop.f32.mrf.mxu0
  %v4886 = vadd.f32 0.0, %v4885
  %v4887 = vpop.f32.mrf.mxu0
  %v4888 = vpop.f32.mrf.mxu0
  %v4889 = vadd.f32 0.0, %v4888
  %v4890 = vpop.f32.mrf.mxu0
  %4891 = vmatprep.mubr.bf16.mxu0 0
  %4892 = vmatmul.mubr.bf16.gmra.mxu0 %v4206
  %v4893 = vpop.f32.mrf.mxu0
  %v4894 = vadd.f32 0.0, %v4893
  %v4895 = vpop.f32.mrf.mxu0
  %v4896 = vpop.f32.mrf.mxu0
  %v4897 = vadd.f32 0.0, %v4896
  %v4898 = vpop.f32.mrf.mxu0
  %4899 = vmatprep.mubr.bf16.mxu0 0
  %4900 = vmatmul.mubr.bf16.gmra.mxu0 %v4209
  %v4901 = vpop.f32.mrf.mxu0
  %v4902 = vadd.f32 0.0, %v4901
  %v4903 = vpop.f32.mrf.mxu0
  %v4904 = vpop.f32.mrf.mxu0
  %v4905 = vadd.f32 0.0, %v4904
  %v4906 = vpop.f32.mrf.mxu0
  %4907 = vmatprep.mubr.bf16.mxu0 0
  %4908 = vmatmul.mubr.bf16.gmra.mxu0 %v4212
  %v4909 = vpop.f32.mrf.mxu0
  %v4910 = vadd.f32 0.0, %v4909
  %v4911 = vpop.f32.mrf.mxu0
  %v4912 = vpop.f32.mrf.mxu0
  %v4913 = vadd.f32 0.0, %v4912
  %v4914 = vpop.f32.mrf.mxu0
  %4915 = vmatprep.mubr.bf16.mxu0 0
  %4916 = vmatmul.mubr.bf16.gmra.mxu0 %v4215
  %v4917 = vpop.f32.mrf.mxu0
  %v4918 = vadd.f32 0.0, %v4917
  %v4919 = vpop.f32.mrf.mxu0
  %v4920 = vpop.f32.mrf.mxu0
  %v4921 = vadd.f32 0.0, %v4920
  %v4922 = vpop.f32.mrf.mxu0
  %4923 = vmatprep.mubr.bf16.mxu0 0
  %4924 = vmatmul.mubr.bf16.gmra.mxu0 %v4218
  %v4925 = vpop.f32.mrf.mxu0
  %v4926 = vadd.f32 0.0, %v4925
  %v4927 = vpop.f32.mrf.mxu0
  %v4928 = vpop.f32.mrf.mxu0
  %v4929 = vadd.f32 0.0, %v4928
  %v4930 = vpop.f32.mrf.mxu0
  %4931 = vmatprep.mubr.bf16.mxu0 0
  %4932 = vmatmul.mubr.bf16.gmra.mxu0 %v4221
  %v4933 = vpop.f32.mrf.mxu0
  %v4934 = vadd.f32 0.0, %v4933
  %v4935 = vpop.f32.mrf.mxu0
  %v4936 = vpop.f32.mrf.mxu0
  %v4937 = vadd.f32 0.0, %v4936
  %v4938 = vpop.f32.mrf.mxu0
  %4939 = vmatprep.mubr.bf16.mxu0 0
  %4940 = vmatmul.mubr.bf16.gmra.mxu0 %v4224
  %v4941 = vpop.f32.mrf.mxu0
  %v4942 = vadd.f32 0.0, %v4941
  %v4943 = vpop.f32.mrf.mxu0
  %v4944 = vpop.f32.mrf.mxu0
  %v4945 = vadd.f32 0.0, %v4944
  %v4946 = vpop.f32.mrf.mxu0
  %4947 = vmatprep.mubr.bf16.mxu0 0
  %4948 = vmatmul.mubr.bf16.gmra.mxu0 %v4227
  %v4949 = vpop.f32.mrf.mxu0
  %v4950 = vadd.f32 0.0, %v4949
  %v4951 = vpop.f32.mrf.mxu0
  %v4952 = vpop.f32.mrf.mxu0
  %v4953 = vadd.f32 0.0, %v4952
  %v4954 = vpop.f32.mrf.mxu0
  %4955 = vmatprep.mubr.bf16.mxu0 0
  %4956 = vmatmul.mubr.bf16.gmra.mxu0 %v4230
  %v4957 = vpop.f32.mrf.mxu0
  %v4958 = vadd.f32 0.0, %v4957
  %v4959 = vpop.f32.mrf.mxu0
  %v4960 = vpop.f32.mrf.mxu0
  %v4961 = vadd.f32 0.0, %v4960
  %v4962 = vpop.f32.mrf.mxu0
  %4963 = vmatprep.mubr.bf16.mxu0 0
  %4964 = vmatmul.mubr.bf16.gmra.mxu0 %v4233
  %v4965 = vpop.f32.mrf.mxu0
  %v4966 = vadd.f32 0.0, %v4965
  %v4967 = vpop.f32.mrf.mxu0
  %v4968 = vpop.f32.mrf.mxu0
  %v4969 = vadd.f32 0.0, %v4968
  %v4970 = vpop.f32.mrf.mxu0
  %4971 = vmatprep.mubr.bf16.mxu0 0
  %4972 = vmatmul.mubr.bf16.gmra.mxu0 %v4236
  %v4973 = vpop.f32.mrf.mxu0
  %v4974 = vadd.f32 0.0, %v4973
  %v4975 = vpop.f32.mrf.mxu0
  %v4976 = vpop.f32.mrf.mxu0
  %v4977 = vadd.f32 0.0, %v4976
  %v4978 = vpop.f32.mrf.mxu0
  %4979 = vmatprep.mubr.bf16.mxu0 0
  %4980 = vmatmul.mubr.bf16.gmra.mxu0 %v4239
  %v4981 = vpop.f32.mrf.mxu0
  %v4982 = vadd.f32 0.0, %v4981
  %v4983 = vpop.f32.mrf.mxu0
  %v4984 = vpop.f32.mrf.mxu0
  %v4985 = vadd.f32 0.0, %v4984
  %v4986 = vpop.f32.mrf.mxu0
  %4987 = vmatprep.mubr.bf16.mxu0 0
  %4988 = vmatmul.mubr.bf16.gmra.mxu0 %v4242
  %v4989 = vpop.f32.mrf.mxu0
  %v4990 = vadd.f32 0.0, %v4989
  %v4991 = vpop.f32.mrf.mxu0
  %v4992 = vpop.f32.mrf.mxu0
  %v4993 = vadd.f32 0.0, %v4992
  %v4994 = vpop.f32.mrf.mxu0
  %4995 = vmatprep.mubr.bf16.mxu0 0
  %4996 = vmatmul.mubr.bf16.gmra.mxu0 %v4245
  %v4997 = vpop.f32.mrf.mxu0
  %v4998 = vadd.f32 0.0, %v4997
  %v4999 = vpop.f32.mrf.mxu0
  %v5000 = vpop.f32.mrf.mxu0
  %v5001 = vadd.f32 0.0, %v5000
  %v5002 = vpop.f32.mrf.mxu0
  %5003 = vmatprep.mubr.bf16.mxu0 0
  %5004 = vmatmul.mubr.bf16.gmra.mxu0 %v4248
  %v5005 = vpop.f32.mrf.mxu0
  %v5006 = vadd.f32 0.0, %v5005
  %v5007 = vpop.f32.mrf.mxu0
  %v5008 = vpop.f32.mrf.mxu0
  %v5009 = vadd.f32 0.0, %v5008
  %v5010 = vpop.f32.mrf.mxu0
  %5011 = vmatprep.mubr.bf16.mxu0 0
  %5012 = vmatmul.mubr.bf16.gmra.mxu0 %v4251
  %v5013 = vpop.f32.mrf.mxu0
  %v5014 = vadd.f32 0.0, %v5013
  %v5015 = vpop.f32.mrf.mxu0
  %v5016 = vpop.f32.mrf.mxu0
  %v5017 = vadd.f32 0.0, %v5016
  %v5018 = vpop.f32.mrf.mxu0
  %5019 = vmatprep.mubr.bf16.mxu0 0
  %5020 = vmatmul.mubr.bf16.gmra.mxu0 %v4254
  %v5021 = vpop.f32.mrf.mxu0
  %v5022 = vadd.f32 0.0, %v5021
  %v5023 = vpop.f32.mrf.mxu0
  %v5024 = vpop.f32.mrf.mxu0
  %v5025 = vadd.f32 0.0, %v5024
  %v5026 = vpop.f32.mrf.mxu0
  %5027 = vmatprep.mubr.bf16.mxu0 0
  %5028 = vmatmul.mubr.bf16.gmra.mxu0 %v4257
  %v5029 = vpop.f32.mrf.mxu0
  %v5030 = vadd.f32 0.0, %v5029
  %v5031 = vpop.f32.mrf.mxu0
  %v5032 = vpop.f32.mrf.mxu0
  %v5033 = vadd.f32 0.0, %v5032
  %v5034 = vpop.f32.mrf.mxu0
  %5035 = vmatprep.mubr.bf16.mxu0 0
  %5036 = vmatmul.mubr.bf16.gmra.mxu0 %v4260
  %v5037 = vpop.f32.mrf.mxu0
  %v5038 = vadd.f32 0.0, %v5037
  %v5039 = vpop.f32.mrf.mxu0
  %v5040 = vpop.f32.mrf.mxu0
  %v5041 = vadd.f32 0.0, %v5040
  %v5042 = vpop.f32.mrf.mxu0
  %5043 = vmatprep.mubr.bf16.mxu0 0
  %5044 = vmatmul.mubr.bf16.gmra.mxu0 %v4263
  %v5045 = vpop.f32.mrf.mxu0
  %v5046 = vadd.f32 0.0, %v5045
  %v5047 = vpop.f32.mrf.mxu0
  %v5048 = vpop.f32.mrf.mxu0
  %v5049 = vadd.f32 0.0, %v5048
  %v5050 = vpop.f32.mrf.mxu0
  %5051 = vmatprep.mubr.bf16.mxu0 0
  %5052 = vmatmul.mubr.bf16.gmra.mxu0 %v4266
  %v5053 = vpop.f32.mrf.mxu0
  %v5054 = vadd.f32 0.0, %v5053
  %v5055 = vpop.f32.mrf.mxu0
  %v5056 = vpop.f32.mrf.mxu0
  %v5057 = vadd.f32 0.0, %v5056
  %v5058 = vpop.f32.mrf.mxu0
  %5059 = vmatprep.mubr.bf16.mxu0 0
  %5060 = vmatmul.mubr.bf16.gmra.mxu0 %v4269
  %v5061 = vpop.f32.mrf.mxu0
  %v5062 = vadd.f32 0.0, %v5061
  %v5063 = vpop.f32.mrf.mxu0
  %v5064 = vpop.f32.mrf.mxu0
  %v5065 = vadd.f32 0.0, %v5064
  %v5066 = vpop.f32.mrf.mxu0
  %5067 = vmatprep.mubr.bf16.mxu0 0
  %5068 = vmatmul.mubr.bf16.gmra.mxu0 %v4272
  %v5069 = vpop.f32.mrf.mxu0
  %v5070 = vadd.f32 0.0, %v5069
  %v5071 = vpop.f32.mrf.mxu0
  %v5072 = vpop.f32.mrf.mxu0
  %v5073 = vadd.f32 0.0, %v5072
  %v5074 = vpop.f32.mrf.mxu0
  %5075 = vmatprep.mubr.bf16.mxu0 0
  %5076 = vmatmul.mubr.bf16.gmra.mxu0 %v4275
  %v5077 = vpop.f32.mrf.mxu0
  %v5078 = vadd.f32 0.0, %v5077
  %v5079 = vpop.f32.mrf.mxu0
  %v5080 = vpop.f32.mrf.mxu0
  %v5081 = vadd.f32 0.0, %v5080
  %v5082 = vpop.f32.mrf.mxu0
  %5083 = vmatprep.mubr.bf16.mxu0 0
  %5084 = vmatmul.mubr.bf16.gmra.mxu0 %v4278
  %v5085 = vpop.f32.mrf.mxu0
  %v5086 = vadd.f32 0.0, %v5085
  %v5087 = vpop.f32.mrf.mxu0
  %v5088 = vpop.f32.mrf.mxu0
  %v5089 = vadd.f32 0.0, %v5088
  %v5090 = vpop.f32.mrf.mxu0
  %5091 = vmatprep.mubr.bf16.mxu0 0
  %5092 = vmatmul.mubr.bf16.gmra.mxu0 %v4281
  %v5093 = vpop.f32.mrf.mxu0
  %v5094 = vadd.f32 0.0, %v5093
  %v5095 = vpop.f32.mrf.mxu0
  %v5096 = vpop.f32.mrf.mxu0
  %v5097 = vadd.f32 0.0, %v5096
  %v5098 = vpop.f32.mrf.mxu0
  %5099 = vmatprep.mubr.bf16.mxu0 0
  %5100 = vmatmul.mubr.bf16.gmra.mxu0 %v4284
  %v5101 = vpop.f32.mrf.mxu0
  %v5102 = vadd.f32 0.0, %v5101
  %v5103 = vpop.f32.mrf.mxu0
  %v5104 = vpop.f32.mrf.mxu0
  %v5105 = vadd.f32 0.0, %v5104
  %v5106 = vpop.f32.mrf.mxu0
  %5107 = vmatprep.mubr.bf16.mxu0 0
  %5108 = vmatmul.mubr.bf16.gmra.mxu0 %v4287
  %v5109 = vpop.f32.mrf.mxu0
  %v5110 = vadd.f32 0.0, %v5109
  %v5111 = vpop.f32.mrf.mxu0
  %v5112 = vpop.f32.mrf.mxu0
  %v5113 = vadd.f32 0.0, %v5112
  %v5114 = vpop.f32.mrf.mxu0
  %5115 = vmatprep.mubr.bf16.mxu0 0
  %5116 = vmatmul.mubr.bf16.gmra.mxu0 %v4290
  %v5117 = vpop.f32.mrf.mxu0
  %v5118 = vadd.f32 0.0, %v5117
  %v5119 = vpop.f32.mrf.mxu0
  %v5120 = vpop.f32.mrf.mxu0
  %v5121 = vadd.f32 0.0, %v5120
  %v5122 = vpop.f32.mrf.mxu0
  %5123 = vmatprep.mubr.bf16.mxu0 0
  %5124 = vmatmul.mubr.bf16.gmra.mxu0 %v4293
  %v5125 = vpop.f32.mrf.mxu0
  %v5126 = vadd.f32 0.0, %v5125
  %v5127 = vpop.f32.mrf.mxu0
  %v5128 = vpop.f32.mrf.mxu0
  %v5129 = vadd.f32 0.0, %v5128
  %v5130 = vpop.f32.mrf.mxu0
  %5131 = vmatprep.mubr.bf16.mxu0 0
  %5132 = vmatmul.mubr.bf16.gmra.mxu0 %v4296
  %v5133 = vpop.f32.mrf.mxu0
  %v5134 = vadd.f32 0.0, %v5133
  %v5135 = vpop.f32.mrf.mxu0
  %v5136 = vpop.f32.mrf.mxu0
  %v5137 = vadd.f32 0.0, %v5136
  %v5138 = vpop.f32.mrf.mxu0
  %5139 = vmatprep.mubr.bf16.mxu0 0
  %5140 = vmatmul.mubr.bf16.gmra.mxu0 %v4299
  %v5141 = vpop.f32.mrf.mxu0
  %v5142 = vadd.f32 0.0, %v5141
  %v5143 = vpop.f32.mrf.mxu0
  %v5144 = vpop.f32.mrf.mxu0
  %v5145 = vadd.f32 0.0, %v5144
  %v5146 = vpop.f32.mrf.mxu0
  %5147 = vmatprep.mubr.bf16.mxu0 0
  %5148 = vmatmul.mubr.bf16.gmra.mxu0 %v4302
  %v5149 = vpop.f32.mrf.mxu0
  %v5150 = vadd.f32 0.0, %v5149
  %v5151 = vpop.f32.mrf.mxu0
  %v5152 = vpop.f32.mrf.mxu0
  %v5153 = vadd.f32 0.0, %v5152
  %v5154 = vpop.f32.mrf.mxu0
  %5155 = vmatprep.mubr.bf16.mxu0 0
  %5156 = vmatmul.mubr.bf16.gmra.mxu0 %v4305
  %v5157 = vpop.f32.mrf.mxu0
  %v5158 = vadd.f32 0.0, %v5157
  %v5159 = vpop.f32.mrf.mxu0
  %v5160 = vpop.f32.mrf.mxu0
  %v5161 = vadd.f32 0.0, %v5160
  %v5162 = vpop.f32.mrf.mxu0
  %5163 = vmatprep.mubr.bf16.mxu0 0
  %5164 = vmatmul.mubr.bf16.gmra.mxu0 %v4308
  %v5165 = vpop.f32.mrf.mxu0
  %v5166 = vadd.f32 0.0, %v5165
  %v5167 = vpop.f32.mrf.mxu0
  %v5168 = vpop.f32.mrf.mxu0
  %v5169 = vadd.f32 0.0, %v5168
  %v5170 = vpop.f32.mrf.mxu0
  %5171 = vmatprep.mubr.bf16.mxu0 0
  %5172 = vmatmul.mubr.bf16.gmra.mxu0 %v4311
  %v5173 = vpop.f32.mrf.mxu0
  %v5174 = vadd.f32 0.0, %v5173
  %v5175 = vpop.f32.mrf.mxu0
  %v5176 = vpop.f32.mrf.mxu0
  %v5177 = vadd.f32 0.0, %v5176
  %v5178 = vpop.f32.mrf.mxu0
  %5179 = vmatprep.mubr.bf16.mxu0 0
  %5180 = vmatmul.mubr.bf16.gmra.mxu0 %v4314
  %v5181 = vpop.f32.mrf.mxu0
  %v5182 = vadd.f32 0.0, %v5181
  %v5183 = vpop.f32.mrf.mxu0
  %v5184 = vpop.f32.mrf.mxu0
  %v5185 = vadd.f32 0.0, %v5184
  %v5186 = vpop.f32.mrf.mxu0
  %5187 = vmatprep.mubr.bf16.mxu0 0
  %5188 = vmatmul.mubr.bf16.gmra.mxu0 %v4317
  %v5189 = vpop.f32.mrf.mxu0
  %v5190 = vadd.f32 0.0, %v5189
  %v5191 = vpop.f32.mrf.mxu0
  %v5192 = vpop.f32.mrf.mxu0
  %v5193 = vadd.f32 0.0, %v5192
  %v5194 = vpop.f32.mrf.mxu0
  %5195 = vmatprep.mubr.bf16.mxu0 0
  %5196 = vmatmul.mubr.bf16.gmra.mxu0 %v4320
  %v5197 = vpop.f32.mrf.mxu0
  %v5198 = vadd.f32 0.0, %v5197
  %v5199 = vpop.f32.mrf.mxu0
  %v5200 = vpop.f32.mrf.mxu0
  %v5201 = vadd.f32 0.0, %v5200
  %v5202 = vpop.f32.mrf.mxu0
  %5203 = vmatprep.mubr.bf16.mxu0 0
  %5204 = vmatmul.mubr.bf16.gmra.mxu0 %v4323
  %v5205 = vpop.f32.mrf.mxu0
  %v5206 = vadd.f32 0.0, %v5205
  %v5207 = vpop.f32.mrf.mxu0
  %v5208 = vpop.f32.mrf.mxu0
  %v5209 = vadd.f32 0.0, %v5208
  %v5210 = vpop.f32.mrf.mxu0
  %5211 = vmatprep.mubr.bf16.mxu0 0
  %5212 = vmatmul.mubr.bf16.gmra.mxu0 %v4326
  %v5213 = vpop.f32.mrf.mxu0
  %v5214 = vadd.f32 0.0, %v5213
  %v5215 = vpop.f32.mrf.mxu0
  %v5216 = vpop.f32.mrf.mxu0
  %v5217 = vadd.f32 0.0, %v5216
  %v5218 = vpop.f32.mrf.mxu0
  %5219 = vmatprep.mubr.bf16.mxu0 0
  %5220 = vmatmul.mubr.bf16.gmra.mxu0 %v4329
  %v5221 = vpop.f32.mrf.mxu0
  %v5222 = vadd.f32 0.0, %v5221
  %v5223 = vpop.f32.mrf.mxu0
  %v5224 = vpop.f32.mrf.mxu0
  %v5225 = vadd.f32 0.0, %v5224
  %v5226 = vpop.f32.mrf.mxu0
  %5227 = vmatprep.mubr.bf16.mxu0 0
  %5228 = vmatmul.mubr.bf16.gmra.mxu0 %v4332
  %v5229 = vpop.f32.mrf.mxu0
  %v5230 = vadd.f32 0.0, %v5229
  %v5231 = vpop.f32.mrf.mxu0
  %v5232 = vpop.f32.mrf.mxu0
  %v5233 = vadd.f32 0.0, %v5232
  %v5234 = vpop.f32.mrf.mxu0
  %5235 = vmatprep.mubr.bf16.mxu0 0
  %5236 = vmatmul.mubr.bf16.gmra.mxu0 %v4335
  %v5237 = vpop.f32.mrf.mxu0
  %v5238 = vadd.f32 0.0, %v5237
  %v5239 = vpop.f32.mrf.mxu0
  %v5240 = vpop.f32.mrf.mxu0
  %v5241 = vadd.f32 0.0, %v5240
  %v5242 = vpop.f32.mrf.mxu0
  %5243 = vmatprep.mubr.bf16.mxu0 0
  %5244 = vmatmul.mubr.bf16.gmra.mxu0 %v4338
  %v5245 = vpop.f32.mrf.mxu0
  %v5246 = vadd.f32 0.0, %v5245
  %v5247 = vpop.f32.mrf.mxu0
  %v5248 = vpop.f32.mrf.mxu0
  %v5249 = vadd.f32 0.0, %v5248
  %v5250 = vpop.f32.mrf.mxu0
  %5251 = vmatprep.mubr.bf16.mxu0 0
  %5252 = vmatmul.mubr.bf16.gmra.mxu0 %v4341
  %v5253 = vpop.f32.mrf.mxu0
  %v5254 = vadd.f32 0.0, %v5253
  %v5255 = vpop.f32.mrf.mxu0
  %v5256 = vpop.f32.mrf.mxu0
  %v5257 = vadd.f32 0.0, %v5256
  %v5258 = vpop.f32.mrf.mxu0
  %5259 = vmatprep.mubr.bf16.mxu0 0
  %5260 = vmatmul.mubr.bf16.gmra.mxu0 %v4344
  %v5261 = vpop.f32.mrf.mxu0
  %v5262 = vadd.f32 0.0, %v5261
  %v5263 = vpop.f32.mrf.mxu0
  %v5264 = vpop.f32.mrf.mxu0
  %v5265 = vadd.f32 0.0, %v5264
  %v5266 = vpop.f32.mrf.mxu0
  %5267 = vmatprep.mubr.bf16.mxu0 0
  %5268 = vmatmul.mubr.bf16.gmra.mxu0 %v4347
  %v5269 = vpop.f32.mrf.mxu0
  %v5270 = vadd.f32 0.0, %v5269
  %v5271 = vpop.f32.mrf.mxu0
  %v5272 = vpop.f32.mrf.mxu0
  %v5273 = vadd.f32 0.0, %v5272
  %v5274 = vpop.f32.mrf.mxu0
  %5275 = vmatprep.mubr.bf16.mxu0 0
  %5276 = vmatmul.mubr.bf16.gmra.mxu0 %v4350
  %v5277 = vpop.f32.mrf.mxu0
  %v5278 = vadd.f32 0.0, %v5277
  %v5279 = vpop.f32.mrf.mxu0
  %v5280 = vpop.f32.mrf.mxu0
  %v5281 = vadd.f32 0.0, %v5280
  %v5282 = vpop.f32.mrf.mxu0
  %5283 = vmatprep.mubr.bf16.mxu0 0
  %5284 = vmatmul.mubr.bf16.gmra.mxu0 %v4353
  %v5285 = vpop.f32.mrf.mxu0
  %v5286 = vadd.f32 0.0, %v5285
  %v5287 = vpop.f32.mrf.mxu0
  %v5288 = vpop.f32.mrf.mxu0
  %v5289 = vadd.f32 0.0, %v5288
  %v5290 = vpop.f32.mrf.mxu0
  %5291 = vmatprep.mubr.bf16.mxu0 0
  %5292 = vmatmul.mubr.bf16.gmra.mxu0 %v4356
  %v5293 = vpop.f32.mrf.mxu0
  %v5294 = vadd.f32 0.0, %v5293
  %v5295 = vpop.f32.mrf.mxu0
  %v5296 = vpop.f32.mrf.mxu0
  %v5297 = vadd.f32 0.0, %v5296
  %v5298 = vpop.f32.mrf.mxu0
  %5299 = vmatprep.mubr.bf16.mxu0 0
  %5300 = vmatmul.mubr.bf16.gmra.mxu0 %v4359
  %v5301 = vpop.f32.mrf.mxu0
  %v5302 = vadd.f32 0.0, %v5301
  %v5303 = vpop.f32.mrf.mxu0
  %v5304 = vpop.f32.mrf.mxu0
  %v5305 = vadd.f32 0.0, %v5304
  %v5306 = vpop.f32.mrf.mxu0
  %5307 = vmatprep.mubr.bf16.mxu0 0
  %5308 = vmatmul.mubr.bf16.gmra.mxu0 %v4362
  %v5309 = vpop.f32.mrf.mxu0
  %v5310 = vadd.f32 0.0, %v5309
  %v5311 = vpop.f32.mrf.mxu0
  %v5312 = vpop.f32.mrf.mxu0
  %v5313 = vadd.f32 0.0, %v5312
  %v5314 = vpop.f32.mrf.mxu0
  %5315 = vmatprep.mubr.bf16.mxu0 0
  %5316 = vmatmul.mubr.bf16.gmra.mxu0 %v4365
  %v5317 = vpop.f32.mrf.mxu0
  %v5318 = vadd.f32 0.0, %v5317
  %v5319 = vpop.f32.mrf.mxu0
  %v5320 = vpop.f32.mrf.mxu0
  %v5321 = vadd.f32 0.0, %v5320
  %v5322 = vpop.f32.mrf.mxu0
  %5323 = vmatprep.mubr.bf16.mxu0 0
  %5324 = vmatmul.mubr.bf16.gmra.mxu0 %v4368
  %v5325 = vpop.f32.mrf.mxu0
  %v5326 = vadd.f32 0.0, %v5325
  %v5327 = vpop.f32.mrf.mxu0
  %v5328 = vpop.f32.mrf.mxu0
  %v5329 = vadd.f32 0.0, %v5328
  %v5330 = vpop.f32.mrf.mxu0
  %5331 = vmatprep.mubr.bf16.mxu0 0
  %5332 = vmatmul.mubr.bf16.gmra.mxu0 %v4371
  %v5333 = vpop.f32.mrf.mxu0
  %v5334 = vadd.f32 0.0, %v5333
  %v5335 = vpop.f32.mrf.mxu0
  %v5336 = vpop.f32.mrf.mxu0
  %v5337 = vadd.f32 0.0, %v5336
  %v5338 = vpop.f32.mrf.mxu0
  %5339 = vmatprep.mubr.bf16.mxu0 0
  %5340 = vmatmul.mubr.bf16.gmra.mxu0 %v4374
  %v5341 = vpop.f32.mrf.mxu0
  %v5342 = vadd.f32 0.0, %v5341
  %v5343 = vpop.f32.mrf.mxu0
  %v5344 = vpop.f32.mrf.mxu0
  %v5345 = vadd.f32 0.0, %v5344
  %v5346 = vpop.f32.mrf.mxu0
  %5347 = vmatprep.mubr.bf16.mxu0 0
  %5348 = vmatmul.mubr.bf16.gmra.mxu0 %v4377
  %v5349 = vpop.f32.mrf.mxu0
  %v5350 = vadd.f32 0.0, %v5349
  %v5351 = vpop.f32.mrf.mxu0
  %v5352 = vpop.f32.mrf.mxu0
  %v5353 = vadd.f32 0.0, %v5352
  %v5354 = vpop.f32.mrf.mxu0
  %5355 = vmatprep.mubr.bf16.mxu0 0
  %5356 = vmatmul.mubr.bf16.gmra.mxu0 %v4380
  %v5357 = vpop.f32.mrf.mxu0
  %v5358 = vadd.f32 0.0, %v5357
  %v5359 = vpop.f32.mrf.mxu0
  %v5360 = vpop.f32.mrf.mxu0
  %v5361 = vadd.f32 0.0, %v5360
  %v5362 = vpop.f32.mrf.mxu0
  %5363 = vmatprep.mubr.bf16.mxu0 0
  %5364 = vmatmul.mubr.bf16.gmra.mxu0 %v4383
  %v5365 = vpop.f32.mrf.mxu0
  %v5366 = vadd.f32 0.0, %v5365
  %v5367 = vpop.f32.mrf.mxu0
  %v5368 = vpop.f32.mrf.mxu0
  %v5369 = vadd.f32 0.0, %v5368
  %v5370 = vpop.f32.mrf.mxu0
  %5371 = vmatprep.mubr.bf16.mxu0 0
  %5372 = vmatmul.mubr.bf16.gmra.mxu0 %v4386
  %v5373 = vpop.f32.mrf.mxu0
  %v5374 = vadd.f32 0.0, %v5373
  %v5375 = vpop.f32.mrf.mxu0
  %v5376 = vpop.f32.mrf.mxu0
  %v5377 = vadd.f32 0.0, %v5376
  %v5378 = vpop.f32.mrf.mxu0
  %5379 = vmatprep.mubr.bf16.mxu0 0
  %5380 = vmatmul.mubr.bf16.gmra.mxu0 %v4389
  %v5381 = vpop.f32.mrf.mxu0
  %v5382 = vadd.f32 0.0, %v5381
  %v5383 = vpop.f32.mrf.mxu0
  %v5384 = vpop.f32.mrf.mxu0
  %v5385 = vadd.f32 0.0, %v5384
  %v5386 = vpop.f32.mrf.mxu0
  %5387 = vmatprep.mubr.bf16.mxu0 0
  %5388 = vmatmul.mubr.bf16.gmra.mxu0 %v4392
  %v5389 = vpop.f32.mrf.mxu0
  %v5390 = vadd.f32 0.0, %v5389
  %v5391 = vpop.f32.mrf.mxu0
  %v5392 = vpop.f32.mrf.mxu0
  %v5393 = vadd.f32 0.0, %v5392
  %v5394 = vpop.f32.mrf.mxu0
  %5395 = vmatprep.mubr.bf16.mxu0 0
  %5396 = vmatmul.mubr.bf16.gmra.mxu0 %v4395
  %v5397 = vpop.f32.mrf.mxu0
  %v5398 = vadd.f32 0.0, %v5397
  %v5399 = vpop.f32.mrf.mxu0
  %v5400 = vpop.f32.mrf.mxu0
  %v5401 = vadd.f32 0.0, %v5400
  %v5402 = vpop.f32.mrf.mxu0
  %5403 = vmatprep.mubr.bf16.mxu0 0
  %5404 = vmatmul.mubr.bf16.gmra.mxu0 %v4398
  %v5405 = vpop.f32.mrf.mxu0
  %v5406 = vadd.f32 0.0, %v5405
  %v5407 = vpop.f32.mrf.mxu0
  %v5408 = vpop.f32.mrf.mxu0
  %v5409 = vadd.f32 0.0, %v5408
  %v5410 = vpop.f32.mrf.mxu0
  %5411 = vmatprep.mubr.bf16.mxu0 0
  %5412 = vmatmul.mubr.bf16.gmra.mxu0 %v4401
  %v5413 = vpop.f32.mrf.mxu0
  %v5414 = vadd.f32 0.0, %v5413
  %v5415 = vpop.f32.mrf.mxu0
  %v5416 = vpop.f32.mrf.mxu0
  %v5417 = vadd.f32 0.0, %v5416
  %v5418 = vpop.f32.mrf.mxu0
  %5419 = vmatprep.mubr.bf16.mxu0 0
  %5420 = vmatmul.mubr.bf16.gmra.mxu0 %v4404
  %v5421 = vpop.f32.mrf.mxu0
  %v5422 = vadd.f32 0.0, %v5421
  %v5423 = vpop.f32.mrf.mxu0
  %v5424 = vpop.f32.mrf.mxu0
  %v5425 = vadd.f32 0.0, %v5424
  %v5426 = vpop.f32.mrf.mxu0
  %5427 = vmatprep.mubr.bf16.mxu0 0
  %5428 = vmatmul.mubr.bf16.gmra.mxu0 %v4407
  %v5429 = vpop.f32.mrf.mxu0
  %v5430 = vadd.f32 0.0, %v5429
  %v5431 = vpop.f32.mrf.mxu0
  %v5432 = vpop.f32.mrf.mxu0
  %v5433 = vadd.f32 0.0, %v5432
  %v5434 = vpop.f32.mrf.mxu0
  %5435 = vmatprep.mubr.bf16.mxu0 0
  %5436 = vmatmul.mubr.bf16.gmra.mxu0 %v4410
  %v5437 = vpop.f32.mrf.mxu0
  %v5438 = vadd.f32 0.0, %v5437
  %v5439 = vpop.f32.mrf.mxu0
  %v5440 = vpop.f32.mrf.mxu0
  %v5441 = vadd.f32 0.0, %v5440
  %v5442 = vpop.f32.mrf.mxu0
  %5443 = vmatprep.mubr.bf16.mxu0 0
  %5444 = vmatmul.mubr.bf16.gmra.mxu0 %v4413
  %v5445 = vpop.f32.mrf.mxu0
  %v5446 = vadd.f32 0.0, %v5445
  %v5447 = vpop.f32.mrf.mxu0
  %v5448 = vpop.f32.mrf.mxu0
  %v5449 = vadd.f32 0.0, %v5448
  %v5450 = vpop.f32.mrf.mxu0
  %5451 = vmatprep.mubr.bf16.mxu0 0
  %5452 = vmatmul.mubr.bf16.gmra.mxu0 %v4416
  %v5453 = vpop.f32.mrf.mxu0
  %v5454 = vadd.f32 0.0, %v5453
  %v5455 = vpop.f32.mrf.mxu0
  %v5456 = vpop.f32.mrf.mxu0
  %v5457 = vadd.f32 0.0, %v5456
  %v5458 = vpop.f32.mrf.mxu0
  %5459 = vmatprep.mubr.bf16.mxu0 0
  %5460 = vmatmul.mubr.bf16.gmra.mxu0 %v4419
  %v5461 = vpop.f32.mrf.mxu0
  %v5462 = vadd.f32 0.0, %v5461
  %v5463 = vpop.f32.mrf.mxu0
  %v5464 = vpop.f32.mrf.mxu0
  %v5465 = vadd.f32 0.0, %v5464
  %v5466 = vpop.f32.mrf.mxu0
  %5467 = vmatprep.mubr.bf16.mxu0 0
  %5468 = vmatmul.mubr.bf16.gmra.mxu0 %v4422
  %v5469 = vpop.f32.mrf.mxu0
  %v5470 = vadd.f32 0.0, %v5469
  %v5471 = vpop.f32.mrf.mxu0
  %v5472 = vpop.f32.mrf.mxu0
  %v5473 = vadd.f32 0.0, %v5472
  %v5474 = vpop.f32.mrf.mxu0
  %5475 = vmatprep.mubr.bf16.mxu0 0
  %5476 = vmatmul.mubr.bf16.gmra.mxu0 %v4425
  %v5477 = vpop.f32.mrf.mxu0
  %v5478 = vadd.f32 0.0, %v5477
  %v5479 = vpop.f32.mrf.mxu0
  %v5480 = vpop.f32.mrf.mxu0
  %v5481 = vadd.f32 0.0, %v5480
  %v5482 = vpop.f32.mrf.mxu0
  %5483 = vmatprep.mubr.bf16.mxu0 0
  %5484 = vmatmul.mubr.bf16.gmra.mxu0 %v4428
  %v5485 = vpop.f32.mrf.mxu0
  %v5486 = vadd.f32 0.0, %v5485
  %v5487 = vpop.f32.mrf.mxu0
  %v5488 = vpop.f32.mrf.mxu0
  %v5489 = vadd.f32 0.0, %v5488
  %v5490 = vpop.f32.mrf.mxu0
  %5491 = vmatprep.mubr.bf16.mxu0 0
  %5492 = vmatmul.mubr.bf16.gmra.mxu0 %v4431
  %v5493 = vpop.f32.mrf.mxu0
  %v5494 = vadd.f32 0.0, %v5493
  %v5495 = vpop.f32.mrf.mxu0
  %v5496 = vpop.f32.mrf.mxu0
  %v5497 = vadd.f32 0.0, %v5496
  %v5498 = vpop.f32.mrf.mxu0
  %5499 = vmatprep.mubr.bf16.mxu0 0
  %5500 = vmatmul.mubr.bf16.gmra.mxu0 %v4434
  %v5501 = vpop.f32.mrf.mxu0
  %v5502 = vadd.f32 0.0, %v5501
  %v5503 = vpop.f32.mrf.mxu0
  %v5504 = vpop.f32.mrf.mxu0
  %v5505 = vadd.f32 0.0, %v5504
  %v5506 = vpop.f32.mrf.mxu0
  %5507 = vmatprep.mubr.bf16.mxu0 0
  %5508 = vmatmul.mubr.bf16.gmra.mxu0 %v4437
  %v5509 = vpop.f32.mrf.mxu0
  %v5510 = vadd.f32 0.0, %v5509
  %v5511 = vpop.f32.mrf.mxu0
  %v5512 = vpop.f32.mrf.mxu0
  %v5513 = vadd.f32 0.0, %v5512
  %v5514 = vpop.f32.mrf.mxu0
  %5515 = vmatprep.mubr.bf16.mxu0 0
  %5516 = vmatmul.mubr.bf16.gmra.mxu0 %v4440
  %v5517 = vpop.f32.mrf.mxu0
  %v5518 = vadd.f32 0.0, %v5517
  %v5519 = vpop.f32.mrf.mxu0
  %v5520 = vpop.f32.mrf.mxu0
  %v5521 = vadd.f32 0.0, %v5520
  %v5522 = vpop.f32.mrf.mxu0
  %5523 = vmatprep.mubr.bf16.mxu0 0
  %5524 = vmatmul.mubr.bf16.gmra.mxu0 %v4443
  %v5525 = vpop.f32.mrf.mxu0
  %v5526 = vadd.f32 0.0, %v5525
  %v5527 = vpop.f32.mrf.mxu0
  %v5528 = vpop.f32.mrf.mxu0
  %v5529 = vadd.f32 0.0, %v5528
  %v5530 = vpop.f32.mrf.mxu0
  %5531 = vmatprep.mubr.bf16.mxu0 0
  %5532 = vmatmul.mubr.bf16.gmra.mxu0 %v4446
  %v5533 = vpop.f32.mrf.mxu0
  %v5534 = vadd.f32 0.0, %v5533
  %v5535 = vpop.f32.mrf.mxu0
  %v5536 = vpop.f32.mrf.mxu0
  %v5537 = vadd.f32 0.0, %v5536
  %v5538 = vpop.f32.mrf.mxu0
  %5539 = vmatprep.mubr.bf16.mxu0 0
  %5540 = vmatmul.mubr.bf16.gmra.mxu0 %v4449
  %v5541 = vpop.f32.mrf.mxu0
  %v5542 = vadd.f32 0.0, %v5541
  %v5543 = vpop.f32.mrf.mxu0
  %v5544 = vpop.f32.mrf.mxu0
  %v5545 = vadd.f32 0.0, %v5544
  %v5546 = vpop.f32.mrf.mxu0
  %5547 = vmatprep.mubr.bf16.mxu0 0
  %5548 = vmatmul.mubr.bf16.gmra.mxu0 %v4452
  %v5549 = vpop.f32.mrf.mxu0
  %v5550 = vadd.f32 0.0, %v5549
  %v5551 = vpop.f32.mrf.mxu0
  %v5552 = vpop.f32.mrf.mxu0
  %v5553 = vadd.f32 0.0, %v5552
  %v5554 = vpop.f32.mrf.mxu0
  %5555 = vmatprep.mubr.bf16.mxu0 0
  %5556 = vmatmul.mubr.bf16.gmra.mxu0 %v4455
  %v5557 = vpop.f32.mrf.mxu0
  %v5558 = vadd.f32 0.0, %v5557
  %v5559 = vpop.f32.mrf.mxu0
  %v5560 = vpop.f32.mrf.mxu0
  %v5561 = vadd.f32 0.0, %v5560
  %v5562 = vpop.f32.mrf.mxu0
  %5563 = vmatprep.mubr.bf16.mxu0 0
  %5564 = vmatmul.mubr.bf16.gmra.mxu0 %v4458
  %v5565 = vpop.f32.mrf.mxu0
  %v5566 = vadd.f32 0.0, %v5565
  %v5567 = vpop.f32.mrf.mxu0
  %v5568 = vpop.f32.mrf.mxu0
  %v5569 = vadd.f32 0.0, %v5568
  %v5570 = vpop.f32.mrf.mxu0
  %5571 = vmatprep.mubr.bf16.mxu0 0
  %5572 = vmatmul.mubr.bf16.gmra.mxu0 %v4461
  %v5573 = vpop.f32.mrf.mxu0
  %v5574 = vadd.f32 0.0, %v5573
  %v5575 = vpop.f32.mrf.mxu0
  %v5576 = vpop.f32.mrf.mxu0
  %v5577 = vadd.f32 0.0, %v5576
  %v5578 = vpop.f32.mrf.mxu0
  %5579 = vmatprep.mubr.bf16.mxu0 0
  %5580 = vmatmul.mubr.bf16.gmra.mxu0 %v4464
  %v5581 = vpop.f32.mrf.mxu0
  %v5582 = vadd.f32 0.0, %v5581
  %v5583 = vpop.f32.mrf.mxu0
  %v5584 = vpop.f32.mrf.mxu0
  %v5585 = vadd.f32 0.0, %v5584
  %v5586 = vpop.f32.mrf.mxu0
  %5587 = vmatprep.mubr.bf16.mxu0 0
  %5588 = vmatmul.mubr.bf16.gmra.mxu0 %v4467
  %v5589 = vpop.f32.mrf.mxu0
  %v5590 = vadd.f32 0.0, %v5589
  %v5591 = vpop.f32.mrf.mxu0
  %v5592 = vpop.f32.mrf.mxu0
  %v5593 = vadd.f32 0.0, %v5592
  %v5594 = vpop.f32.mrf.mxu0
  %5595 = vmatprep.mubr.bf16.mxu0 0
  %5596 = vmatmul.mubr.bf16.gmra.mxu0 %v4470
  %v5597 = vpop.f32.mrf.mxu0
  %v5598 = vadd.f32 0.0, %v5597
  %v5599 = vpop.f32.mrf.mxu0
  %v5600 = vpop.f32.mrf.mxu0
  %v5601 = vadd.f32 0.0, %v5600
  %v5602 = vpop.f32.mrf.mxu0
  %5603 = vmatprep.mubr.bf16.mxu0 0
  %5604 = vmatmul.mubr.bf16.gmra.mxu0 %v4473
  %v5605 = vpop.f32.mrf.mxu0
  %v5606 = vadd.f32 0.0, %v5605
  %v5607 = vpop.f32.mrf.mxu0
  %v5608 = vpop.f32.mrf.mxu0
  %v5609 = vadd.f32 0.0, %v5608
  %v5610 = vpop.f32.mrf.mxu0
  %5611 = vmatprep.mubr.bf16.mxu0 0
  %5612 = vmatmul.mubr.bf16.gmra.mxu0 %v4476
  %v5613 = vpop.f32.mrf.mxu0
  %v5614 = vadd.f32 0.0, %v5613
  %v5615 = vpop.f32.mrf.mxu0
  %v5616 = vpop.f32.mrf.mxu0
  %v5617 = vadd.f32 0.0, %v5616
  %v5618 = vpop.f32.mrf.mxu0
  %5619 = vmatprep.mubr.bf16.mxu0 0
  %5620 = vmatmul.mubr.bf16.gmra.mxu0 %v4479
  %v5621 = vpop.f32.mrf.mxu0
  %v5622 = vadd.f32 0.0, %v5621
  %v5623 = vpop.f32.mrf.mxu0
  %v5624 = vpop.f32.mrf.mxu0
  %v5625 = vadd.f32 0.0, %v5624
  %v5626 = vpop.f32.mrf.mxu0
  %5627 = vmatprep.mubr.bf16.mxu0 0
  %5628 = vmatmul.mubr.bf16.gmra.mxu0 %v4482
  %v5629 = vpop.f32.mrf.mxu0
  %v5630 = vadd.f32 0.0, %v5629
  %v5631 = vpop.f32.mrf.mxu0
  %v5632 = vpop.f32.mrf.mxu0
  %v5633 = vadd.f32 0.0, %v5632
  %v5634 = vpop.f32.mrf.mxu0
  %5635 = vmatprep.mubr.bf16.mxu0 0
  %5636 = vmatmul.mubr.bf16.gmra.mxu0 %v4485
  %v5637 = vpop.f32.mrf.mxu0
  %v5638 = vadd.f32 0.0, %v5637
  %v5639 = vpop.f32.mrf.mxu0
  %v5640 = vpop.f32.mrf.mxu0
  %v5641 = vadd.f32 0.0, %v5640
  %v5642 = vpop.f32.mrf.mxu0
  %5643 = vmatprep.mubr.bf16.mxu0 0
  %5644 = vmatmul.mubr.bf16.gmra.mxu0 %v4488
  %v5645 = vpop.f32.mrf.mxu0
  %v5646 = vadd.f32 0.0, %v5645
  %v5647 = vpop.f32.mrf.mxu0
  %v5648 = vpop.f32.mrf.mxu0
  %v5649 = vadd.f32 0.0, %v5648
  %v5650 = vpop.f32.mrf.mxu0
  %5651 = vmatprep.mubr.bf16.mxu0 0
  %5652 = vmatmul.mubr.bf16.gmra.mxu0 %v4491
  %v5653 = vpop.f32.mrf.mxu0
  %v5654 = vadd.f32 0.0, %v5653
  %v5655 = vpop.f32.mrf.mxu0
  %v5656 = vpop.f32.mrf.mxu0
  %v5657 = vadd.f32 0.0, %v5656
  %v5658 = vpop.f32.mrf.mxu0
  %5659 = vmatprep.mubr.bf16.mxu0 0
  %5660 = vmatmul.mubr.bf16.gmra.mxu0 %v4494
  %v5661 = vpop.f32.mrf.mxu0
  %v5662 = vadd.f32 0.0, %v5661
  %v5663 = vpop.f32.mrf.mxu0
  %v5664 = vpop.f32.mrf.mxu0
  %v5665 = vadd.f32 0.0, %v5664
  %v5666 = vpop.f32.mrf.mxu0
  %5667 = vmatprep.mubr.bf16.mxu0 0
  %5668 = vmatmul.mubr.bf16.gmra.mxu0 %v4497
  %v5669 = vpop.f32.mrf.mxu0
  %v5670 = vadd.f32 0.0, %v5669
  %v5671 = vpop.f32.mrf.mxu0
  %v5672 = vpop.f32.mrf.mxu0
  %v5673 = vadd.f32 0.0, %v5672
  %v5674 = vpop.f32.mrf.mxu0
  %5675 = vmatprep.mubr.bf16.mxu0 0
  %5676 = vmatmul.mubr.bf16.gmra.mxu0 %v4500
  %v5677 = vpop.f32.mrf.mxu0
  %v5678 = vadd.f32 0.0, %v5677
  %v5679 = vpop.f32.mrf.mxu0
  %v5680 = vpop.f32.mrf.mxu0
  %v5681 = vadd.f32 0.0, %v5680
  %v5682 = vpop.f32.mrf.mxu0
  %5683 = vmatprep.mubr.bf16.mxu0 0
  %5684 = vmatmul.mubr.bf16.gmra.mxu0 %v4503
  %v5685 = vpop.f32.mrf.mxu0
  %v5686 = vadd.f32 0.0, %v5685
  %v5687 = vpop.f32.mrf.mxu0
  %v5688 = vpop.f32.mrf.mxu0
  %v5689 = vadd.f32 0.0, %v5688
  %v5690 = vpop.f32.mrf.mxu0
  %5691 = vmatprep.mubr.bf16.mxu0 0
  %5692 = vmatmul.mubr.bf16.gmra.mxu0 %v4506
  %v5693 = vpop.f32.mrf.mxu0
  %v5694 = vadd.f32 0.0, %v5693
  %v5695 = vpop.f32.mrf.mxu0
  %v5696 = vpop.f32.mrf.mxu0
  %v5697 = vadd.f32 0.0, %v5696
  %v5698 = vpop.f32.mrf.mxu0
  %5699 = vmatprep.mubr.bf16.mxu0 0
  %5700 = vmatmul.mubr.bf16.gmra.mxu0 %v4509
  %v5701 = vpop.f32.mrf.mxu0
  %v5702 = vadd.f32 0.0, %v5701
  %v5703 = vpop.f32.mrf.mxu0
  %v5704 = vpop.f32.mrf.mxu0
  %v5705 = vadd.f32 0.0, %v5704
  %v5706 = vpop.f32.mrf.mxu0
  %5707 = vmatprep.mubr.bf16.mxu0 0
  %5708 = vmatmul.mubr.bf16.gmra.mxu0 %v4512
  %v5709 = vpop.f32.mrf.mxu0
  %v5710 = vadd.f32 0.0, %v5709
  %v5711 = vpop.f32.mrf.mxu0
  %v5712 = vpop.f32.mrf.mxu0
  %v5713 = vadd.f32 0.0, %v5712
  %v5714 = vpop.f32.mrf.mxu0
  %5715 = vmatprep.mubr.bf16.mxu0 0
  %5716 = vmatmul.mubr.bf16.gmra.mxu0 %v4515
  %v5717 = vpop.f32.mrf.mxu0
  %v5718 = vadd.f32 0.0, %v5717
  %v5719 = vpop.f32.mrf.mxu0
  %v5720 = vpop.f32.mrf.mxu0
  %v5721 = vadd.f32 0.0, %v5720
  %v5722 = vpop.f32.mrf.mxu0
  %5723 = vmatprep.mubr.bf16.mxu0 0
  %5724 = vmatmul.mubr.bf16.gmra.mxu0 %v4518
  %v5725 = vpop.f32.mrf.mxu0
  %v5726 = vadd.f32 0.0, %v5725
  %v5727 = vpop.f32.mrf.mxu0
  %v5728 = vpop.f32.mrf.mxu0
  %v5729 = vadd.f32 0.0, %v5728
  %v5730 = vpop.f32.mrf.mxu0
  %5731 = vmatprep.mubr.bf16.mxu0 0
  %5732 = vmatmul.mubr.bf16.gmra.mxu0 %v4521
  %v5733 = vpop.f32.mrf.mxu0
  %v5734 = vadd.f32 0.0, %v5733
  %v5735 = vpop.f32.mrf.mxu0
  %v5736 = vpop.f32.mrf.mxu0
  %v5737 = vadd.f32 0.0, %v5736
  %v5738 = vpop.f32.mrf.mxu0
  %5739 = vmatprep.mubr.bf16.mxu0 0
  %5740 = vmatmul.mubr.bf16.gmra.mxu0 %v4524
  %v5741 = vpop.f32.mrf.mxu0
  %v5742 = vadd.f32 0.0, %v5741
  %v5743 = vpop.f32.mrf.mxu0
  %v5744 = vpop.f32.mrf.mxu0
  %v5745 = vadd.f32 0.0, %v5744
  %v5746 = vpop.f32.mrf.mxu0
  %5747 = vmatprep.mubr.bf16.mxu0 0
  %5748 = vmatmul.mubr.bf16.gmra.mxu0 %v4527
  %v5749 = vpop.f32.mrf.mxu0
  %v5750 = vadd.f32 0.0, %v5749
  %v5751 = vpop.f32.mrf.mxu0
  %v5752 = vpop.f32.mrf.mxu0
  %v5753 = vadd.f32 0.0, %v5752
  %v5754 = vpop.f32.mrf.mxu0
  %5755 = vmatprep.mubr.bf16.mxu0 0
  %5756 = vmatmul.mubr.bf16.gmra.mxu0 %v4530
  %v5757 = vpop.f32.mrf.mxu0
  %v5758 = vadd.f32 0.0, %v5757
  %v5759 = vpop.f32.mrf.mxu0
  %v5760 = vpop.f32.mrf.mxu0
  %v5761 = vadd.f32 0.0, %v5760
  %v5762 = vpop.f32.mrf.mxu0
  %5763 = vmatprep.mubr.bf16.mxu0 0
  %5764 = vmatmul.mubr.bf16.gmra.mxu0 %v4533
  %v5765 = vpop.f32.mrf.mxu0
  %v5766 = vadd.f32 0.0, %v5765
  %v5767 = vpop.f32.mrf.mxu0
  %v5768 = vpop.f32.mrf.mxu0
  %v5769 = vadd.f32 0.0, %v5768
  %v5770 = vpop.f32.mrf.mxu0
  %5771 = vmatprep.mubr.bf16.mxu0 0
  %5772 = vmatmul.mubr.bf16.gmra.mxu0 %v4536
  %v5773 = vpop.f32.mrf.mxu0
  %v5774 = vadd.f32 0.0, %v5773
  %v5775 = vpop.f32.mrf.mxu0
  %v5776 = vpop.f32.mrf.mxu0
  %v5777 = vadd.f32 0.0, %v5776
  %v5778 = vpop.f32.mrf.mxu0
  %5779 = vmatprep.mubr.bf16.mxu0 0
  %5780 = vmatmul.mubr.bf16.gmra.mxu0 %v4539
  %v5781 = vpop.f32.mrf.mxu0
  %v5782 = vadd.f32 0.0, %v5781
  %v5783 = vpop.f32.mrf.mxu0
  %v5784 = vpop.f32.mrf.mxu0
  %v5785 = vadd.f32 0.0, %v5784
  %v5786 = vpop.f32.mrf.mxu0
  %5787 = vmatprep.mubr.bf16.mxu0 0
  %5788 = vmatmul.mubr.bf16.gmra.mxu0 %v4542
  %v5789 = vpop.f32.mrf.mxu0
  %v5790 = vadd.f32 0.0, %v5789
  %v5791 = vpop.f32.mrf.mxu0
  %v5792 = vpop.f32.mrf.mxu0
  %v5793 = vadd.f32 0.0, %v5792
  %v5794 = vpop.f32.mrf.mxu0
  %5795 = vmatprep.mubr.bf16.mxu0 0
  %5796 = vmatmul.mubr.bf16.gmra.mxu0 %v4545
  %v5797 = vpop.f32.mrf.mxu0
  %v5798 = vadd.f32 0.0, %v5797
  %v5799 = vpop.f32.mrf.mxu0
  %v5800 = vpop.f32.mrf.mxu0
  %v5801 = vadd.f32 0.0, %v5800
  %v5802 = vpop.f32.mrf.mxu0
  %5803 = vmatprep.mubr.bf16.mxu0 0
  %5804 = vmatmul.mubr.bf16.gmra.mxu0 %v4548
  %v5805 = vpop.f32.mrf.mxu0
  %v5806 = vadd.f32 0.0, %v5805
  %v5807 = vpop.f32.mrf.mxu0
  %v5808 = vpop.f32.mrf.mxu0
  %v5809 = vadd.f32 0.0, %v5808
  %v5810 = vpop.f32.mrf.mxu0
  %5811 = vmatprep.mubr.bf16.mxu0 0
  %5812 = vmatmul.mubr.bf16.gmra.mxu0 %v4551
  %v5813 = vpop.f32.mrf.mxu0
  %v5814 = vadd.f32 0.0, %v5813
  %v5815 = vpop.f32.mrf.mxu0
  %v5816 = vpop.f32.mrf.mxu0
  %v5817 = vadd.f32 0.0, %v5816
  %v5818 = vpop.f32.mrf.mxu0
  %5819 = vmatprep.mubr.bf16.mxu0 0
  %5820 = vmatmul.mubr.bf16.gmra.mxu0 %v4554
  %v5821 = vpop.f32.mrf.mxu0
  %v5822 = vadd.f32 0.0, %v5821
  %v5823 = vpop.f32.mrf.mxu0
  %v5824 = vpop.f32.mrf.mxu0
  %v5825 = vadd.f32 0.0, %v5824
  %v5826 = vpop.f32.mrf.mxu0
  %5827 = vmatprep.mubr.bf16.mxu0 0
  %5828 = vmatmul.mubr.bf16.gmra.mxu0 %v4557
  %v5829 = vpop.f32.mrf.mxu0
  %v5830 = vadd.f32 0.0, %v5829
  %v5831 = vpop.f32.mrf.mxu0
  %v5832 = vpop.f32.mrf.mxu0
  %v5833 = vadd.f32 0.0, %v5832
  %v5834 = vpop.f32.mrf.mxu0
  %5835 = vmatprep.mubr.bf16.mxu0 0
  %5836 = vmatmul.mubr.bf16.gmra.mxu0 %v4560
  %v5837 = vpop.f32.mrf.mxu0
  %v5838 = vadd.f32 0.0, %v5837
  %v5839 = vpop.f32.mrf.mxu0
  %v5840 = vpop.f32.mrf.mxu0
  %v5841 = vadd.f32 0.0, %v5840
  %v5842 = vpop.f32.mrf.mxu0
  %5843 = vmatprep.mubr.bf16.mxu0 0
  %5844 = vmatmul.mubr.bf16.gmra.mxu0 %v4563
  %v5845 = vpop.f32.mrf.mxu0
  %v5846 = vadd.f32 0.0, %v5845
  %v5847 = vpop.f32.mrf.mxu0
  %v5848 = vpop.f32.mrf.mxu0
  %v5849 = vadd.f32 0.0, %v5848
  %v5850 = vpop.f32.mrf.mxu0
  %5851 = vmatprep.mubr.bf16.mxu0 0
  %5852 = vmatmul.mubr.bf16.gmra.mxu0 %v4566
  %v5853 = vpop.f32.mrf.mxu0
  %v5854 = vadd.f32 0.0, %v5853
  %v5855 = vpop.f32.mrf.mxu0
  %v5856 = vpop.f32.mrf.mxu0
  %v5857 = vadd.f32 0.0, %v5856
  %v5858 = vpop.f32.mrf.mxu0
  %5859 = vmatprep.mubr.bf16.mxu0 0
  %5860 = vmatmul.mubr.bf16.gmra.mxu0 %v4569
  %v5861 = vpop.f32.mrf.mxu0
  %v5862 = vadd.f32 0.0, %v5861
  %v5863 = vpop.f32.mrf.mxu0
  %v5864 = vpop.f32.mrf.mxu0
  %v5865 = vadd.f32 0.0, %v5864
  %v5866 = vpop.f32.mrf.mxu0
  %5867 = vmatprep.mubr.bf16.mxu0 0
  %5868 = vmatmul.mubr.bf16.gmra.mxu0 %v4572
  %v5869 = vpop.f32.mrf.mxu0
  %v5870 = vadd.f32 0.0, %v5869
  %v5871 = vpop.f32.mrf.mxu0
  %v5872 = vpop.f32.mrf.mxu0
  %v5873 = vadd.f32 0.0, %v5872
  %v5874 = vpop.f32.mrf.mxu0
  %5875 = vmatprep.mubr.bf16.mxu0 0
  %5876 = vmatmul.mubr.bf16.gmra.mxu0 %v4575
  %v5877 = vpop.f32.mrf.mxu0
  %v5878 = vadd.f32 0.0, %v5877
  %v5879 = vpop.f32.mrf.mxu0
  %v5880 = vpop.f32.mrf.mxu0
  %v5881 = vadd.f32 0.0, %v5880
  %v5882 = vpop.f32.mrf.mxu0
  %5883 = vmatprep.mubr.bf16.mxu0 0
  %5884 = vmatmul.mubr.bf16.gmra.mxu0 %v4578
  %v5885 = vpop.f32.mrf.mxu0
  %v5886 = vadd.f32 0.0, %v5885
  %v5887 = vpop.f32.mrf.mxu0
  %v5888 = vpop.f32.mrf.mxu0
  %v5889 = vadd.f32 0.0, %v5888
  %v5890 = vpop.f32.mrf.mxu0
  %5891 = vmatprep.mubr.bf16.mxu0 0
  %5892 = vmatmul.mubr.bf16.gmra.mxu0 %v4581
  %v5893 = vpop.f32.mrf.mxu0
  %v5894 = vadd.f32 0.0, %v5893
  %v5895 = vpop.f32.mrf.mxu0
  %v5896 = vpop.f32.mrf.mxu0
  %v5897 = vadd.f32 0.0, %v5896
  %v5898 = vpop.f32.mrf.mxu0
  %5899 = vmatprep.mubr.bf16.mxu0 0
  %5900 = vmatmul.mubr.bf16.gmra.mxu0 %v4584
  %v5901 = vpop.f32.mrf.mxu0
  %v5902 = vadd.f32 0.0, %v5901
  %v5903 = vpop.f32.mrf.mxu0
  %v5904 = vpop.f32.mrf.mxu0
  %v5905 = vadd.f32 0.0, %v5904
  %v5906 = vpop.f32.mrf.mxu0
  %5907 = vmatprep.mubr.bf16.mxu0 0
  %5908 = vmatmul.mubr.bf16.gmra.mxu0 %v4587
  %v5909 = vpop.f32.mrf.mxu0
  %v5910 = vadd.f32 0.0, %v5909
  %v5911 = vpop.f32.mrf.mxu0
  %v5912 = vpop.f32.mrf.mxu0
  %v5913 = vadd.f32 0.0, %v5912
  %v5914 = vpop.f32.mrf.mxu0
  %5915 = vmatprep.mubr.bf16.mxu0 0
  %5916 = vmatmul.mubr.bf16.gmra.mxu0 %v4590
  %v5917 = vpop.f32.mrf.mxu0
  %v5918 = vadd.f32 0.0, %v5917
  %v5919 = vpop.f32.mrf.mxu0
  %v5920 = vpop.f32.mrf.mxu0
  %v5921 = vadd.f32 0.0, %v5920
  %v5922 = vpop.f32.mrf.mxu0
  %5923 = vmatprep.mubr.bf16.mxu0 0
  %5924 = vmatmul.mubr.bf16.gmra.mxu0 %v4593
  %v5925 = vpop.f32.mrf.mxu0
  %v5926 = vadd.f32 0.0, %v5925
  %v5927 = vpop.f32.mrf.mxu0
  %v5928 = vpop.f32.mrf.mxu0
  %v5929 = vadd.f32 0.0, %v5928
  %v5930 = vpop.f32.mrf.mxu0
  %5931 = vmatprep.mubr.bf16.mxu0 0
  %5932 = vmatmul.mubr.bf16.gmra.mxu0 %v4596
  %v5933 = vpop.f32.mrf.mxu0
  %v5934 = vadd.f32 0.0, %v5933
  %v5935 = vpop.f32.mrf.mxu0
  %v5936 = vpop.f32.mrf.mxu0
  %v5937 = vadd.f32 0.0, %v5936
  %v5938 = vpop.f32.mrf.mxu0
  %5939 = vmatprep.mubr.bf16.mxu0 0
  %5940 = vmatmul.mubr.bf16.gmra.mxu0 %v4599
  %v5941 = vpop.f32.mrf.mxu0
  %v5942 = vadd.f32 0.0, %v5941
  %v5943 = vpop.f32.mrf.mxu0
  %v5944 = vpop.f32.mrf.mxu0
  %v5945 = vadd.f32 0.0, %v5944
  %v5946 = vpop.f32.mrf.mxu0
  %5947 = vmatprep.mubr.bf16.mxu0 0
  %5948 = vmatmul.mubr.bf16.gmra.mxu0 %v4602
  %v5949 = vpop.f32.mrf.mxu0
  %v5950 = vadd.f32 0.0, %v5949
  %v5951 = vpop.f32.mrf.mxu0
  %v5952 = vpop.f32.mrf.mxu0
  %v5953 = vadd.f32 0.0, %v5952
  %v5954 = vpop.f32.mrf.mxu0
  %5955 = vmatprep.mubr.bf16.mxu0 0
  %5956 = vmatmul.mubr.bf16.gmra.mxu0 %v4605
  %v5957 = vpop.f32.mrf.mxu0
  %v5958 = vadd.f32 0.0, %v5957
  %v5959 = vpop.f32.mrf.mxu0
  %v5960 = vpop.f32.mrf.mxu0
  %v5961 = vadd.f32 0.0, %v5960
  %v5962 = vpop.f32.mrf.mxu0
  %5963 = vmatprep.mubr.bf16.mxu0 0
  %5964 = vmatmul.mubr.bf16.gmra.mxu0 %v4608
  %v5965 = vpop.f32.mrf.mxu0
  %v5966 = vadd.f32 0.0, %v5965
  %v5967 = vpop.f32.mrf.mxu0
  %v5968 = vpop.f32.mrf.mxu0
  %v5969 = vadd.f32 0.0, %v5968
  %v5970 = vpop.f32.mrf.mxu0
  %5971 = vmatprep.mubr.bf16.mxu0 0
  %5972 = vmatmul.mubr.bf16.gmra.mxu0 %v4611
  %v5973 = vpop.f32.mrf.mxu0
  %v5974 = vadd.f32 0.0, %v5973
  %v5975 = vpop.f32.mrf.mxu0
  %v5976 = vpop.f32.mrf.mxu0
  %v5977 = vadd.f32 0.0, %v5976
  %v5978 = vpop.f32.mrf.mxu0
  %5979 = vmatprep.mubr.bf16.mxu0 0
  %5980 = vmatmul.mubr.bf16.gmra.mxu0 %v4614
  %v5981 = vpop.f32.mrf.mxu0
  %v5982 = vadd.f32 0.0, %v5981
  %v5983 = vpop.f32.mrf.mxu0
  %v5984 = vpop.f32.mrf.mxu0
  %v5985 = vadd.f32 0.0, %v5984
  %v5986 = vpop.f32.mrf.mxu0
  %5987 = vmatprep.mubr.bf16.mxu0 0
  %5988 = vmatmul.mubr.bf16.gmra.mxu0 %v4617
  %v5989 = vpop.f32.mrf.mxu0
  %v5990 = vadd.f32 0.0, %v5989
  %v5991 = vpop.f32.mrf.mxu0
  %v5992 = vpop.f32.mrf.mxu0
  %v5993 = vadd.f32 0.0, %v5992
  %v5994 = vpop.f32.mrf.mxu0
  %5995 = vdwg.mxu0
  %5996 = vst [vmem:[#allocation2] sm:$0xff] %v4654
  %5997 = vst [vmem:[#allocation2 + $0x8] sm:$0xff] %v4657
  %5998 = vst [vmem:[#allocation2 + $0x10] sm:$0xff] %v4662
  %5999 = vst [vmem:[#allocation2 + $0x18] sm:$0xff] %v4665
  %6000 = vst [vmem:[#allocation2 + $0x20] sm:$0xff] %v4670
  %6001 = vst [vmem:[#allocation2 + $0x28] sm:$0xff] %v4673
  %6002 = vst [vmem:[#allocation2 + $0x30] sm:$0xff] %v4678
  %6003 = vst [vmem:[#allocation2 + $0x38] sm:$0xff] %v4681
  %6004 = vst [vmem:[#allocation2 + $0x40] sm:$0xff] %v4686
  %6005 = vst [vmem:[#allocation2 + $0x48] sm:$0xff] %v4689
  %6006 = vst [vmem:[#allocation2 + $0x50] sm:$0xff] %v4694
  %6007 = vst [vmem:[#allocation2 + $0x58] sm:$0xff] %v4697
  %6008 = vst [vmem:[#allocation2 + $0x60] sm:$0xff] %v4702
  %6009 = vst [vmem:[#allocation2 + $0x68] sm:$0xff] %v4705
  %6010 = vst [vmem:[#allocation2 + $0x70] sm:$0xff] %v4710
  %6011 = vst [vmem:[#allocation2 + $0x78] sm:$0xff] %v4713
  %6012 = vst [vmem:[#allocation2 + $0x80] sm:$0xff] %v4718
  %6013 = vst [vmem:[#allocation2 + $0x88] sm:$0xff] %v4721
  %6014 = vst [vmem:[#allocation2 + $0x90] sm:$0xff] %v4726
  %6015 = vst [vmem:[#allocation2 + $0x98] sm:$0xff] %v4729
  %6016 = vst [vmem:[#allocation2 + $0xa0] sm:$0xff] %v4734
  %6017 = vst [vmem:[#allocation2 + $0xa8] sm:$0xff] %v4737
  %6018 = vst [vmem:[#allocation2 + $0xb0] sm:$0xff] %v4742
  %6019 = vst [vmem:[#allocation2 + $0xb8] sm:$0xff] %v4745
  %6020 = vst [vmem:[#allocation2 + $0xc0] sm:$0xff] %v4750
  %6021 = vst [vmem:[#allocation2 + $0xc8] sm:$0xff] %v4753
  %6022 = vst [vmem:[#allocation2 + $0xd0] sm:$0xff] %v4758
  %6023 = vst [vmem:[#allocation2 + $0xd8] sm:$0xff] %v4761
  %6024 = vst [vmem:[#allocation2 + $0xe0] sm:$0xff] %v4766
  %6025 = vst [vmem:[#allocation2 + $0xe8] sm:$0xff] %v4769
  %6026 = vst [vmem:[#allocation2 + $0xf0] sm:$0xff] %v4774
  %6027 = vst [vmem:[#allocation2 + $0xf8] sm:$0xff] %v4777
  %6028 = vst [vmem:[#allocation2 + $0x100] sm:$0xff] %v4782
  %6029 = vst [vmem:[#allocation2 + $0x108] sm:$0xff] %v4785
  %6030 = vst [vmem:[#allocation2 + $0x110] sm:$0xff] %v4790
  %6031 = vst [vmem:[#allocation2 + $0x118] sm:$0xff] %v4793
  %6032 = vst [vmem:[#allocation2 + $0x120] sm:$0xff] %v4798
  %6033 = vst [vmem:[#allocation2 + $0x128] sm:$0xff] %v4801
  %6034 = vst [vmem:[#allocation2 + $0x130] sm:$0xff] %v4806
  %6035 = vst [vmem:[#allocation2 + $0x138] sm:$0xff] %v4809
  %6036 = vst [vmem:[#allocation2 + $0x140] sm:$0xff] %v4814
  %6037 = vst [vmem:[#allocation2 + $0x148] sm:$0xff] %v4817
  %6038 = vst [vmem:[#allocation2 + $0x150] sm:$0xff] %v4822
  %6039 = vst [vmem:[#allocation2 + $0x158] sm:$0xff] %v4825
  %6040 = vst [vmem:[#allocation2 + $0x160] sm:$0xff] %v4830
  %6041 = vst [vmem:[#allocation2 + $0x168] sm:$0xff] %v4833
  %6042 = vst [vmem:[#allocation2 + $0x170] sm:$0xff] %v4838
  %6043 = vst [vmem:[#allocation2 + $0x178] sm:$0xff] %v4841
  %6044 = vst [vmem:[#allocation2 + $0x180] sm:$0xff] %v4846
  %6045 = vst [vmem:[#allocation2 + $0x188] sm:$0xff] %v4849
  %6046 = vst [vmem:[#allocation2 + $0x190] sm:$0xff] %v4854
  %6047 = vst [vmem:[#allocation2 + $0x198] sm:$0xff] %v4857
  %6048 = vst [vmem:[#allocation2 + $0x1a0] sm:$0xff] %v4862
  %6049 = vst [vmem:[#allocation2 + $0x1a8] sm:$0xff] %v4865
  %6050 = vst [vmem:[#allocation2 + $0x1b0] sm:$0xff] %v4870
  %6051 = vst [vmem:[#allocation2 + $0x1b8] sm:$0xff] %v4873
  %6052 = vst [vmem:[#allocation2 + $0x1c0] sm:$0xff] %v4878
  %6053 = vst [vmem:[#allocation2 + $0x1c8] sm:$0xff] %v4881
  %6054 = vst [vmem:[#allocation2 + $0x1d0] sm:$0xff] %v4886
  %6055 = vst [vmem:[#allocation2 + $0x1d8] sm:$0xff] %v4889
  %6056 = vst [vmem:[#allocation2 + $0x1e0] sm:$0xff] %v4894
  %6057 = vst [vmem:[#allocation2 + $0x1e8] sm:$0xff] %v4897
  %6058 = vst [vmem:[#allocation2 + $0x1f0] sm:$0xff] %v4902
  %6059 = vst [vmem:[#allocation2 + $0x1f8] sm:$0xff] %v4905
  %6060 = vst [vmem:[#allocation2 + $0x200] sm:$0xff] %v4910
  %6061 = vst [vmem:[#allocation2 + $0x208] sm:$0xff] %v4913
  %6062 = vst [vmem:[#allocation2 + $0x210] sm:$0xff] %v4918
  %6063 = vst [vmem:[#allocation2 + $0x218] sm:$0xff] %v4921
  %6064 = vst [vmem:[#allocation2 + $0x220] sm:$0xff] %v4926
  %6065 = vst [vmem:[#allocation2 + $0x228] sm:$0xff] %v4929
  %6066 = vst [vmem:[#allocation2 + $0x230] sm:$0xff] %v4934
  %6067 = vst [vmem:[#allocation2 + $0x238] sm:$0xff] %v4937
  %6068 = vst [vmem:[#allocation2 + $0x240] sm:$0xff] %v4942
  %6069 = vst [vmem:[#allocation2 + $0x248] sm:$0xff] %v4945
  %6070 = vst [vmem:[#allocation2 + $0x250] sm:$0xff] %v4950
  %6071 = vst [vmem:[#allocation2 + $0x258] sm:$0xff] %v4953
  %6072 = vst [vmem:[#allocation2 + $0x260] sm:$0xff] %v4958
  %6073 = vst [vmem:[#allocation2 + $0x268] sm:$0xff] %v4961
  %6074 = vst [vmem:[#allocation2 + $0x270] sm:$0xff] %v4966
  %6075 = vst [vmem:[#allocation2 + $0x278] sm:$0xff] %v4969
  %6076 = vst [vmem:[#allocation2 + $0x280] sm:$0xff] %v4974
  %6077 = vst [vmem:[#allocation2 + $0x288] sm:$0xff] %v4977
  %6078 = vst [vmem:[#allocation2 + $0x290] sm:$0xff] %v4982
  %6079 = vst [vmem:[#allocation2 + $0x298] sm:$0xff] %v4985
  %6080 = vst [vmem:[#allocation2 + $0x2a0] sm:$0xff] %v4990
  %6081 = vst [vmem:[#allocation2 + $0x2a8] sm:$0xff] %v4993
  %6082 = vst [vmem:[#allocation2 + $0x2b0] sm:$0xff] %v4998
  %6083 = vst [vmem:[#allocation2 + $0x2b8] sm:$0xff] %v5001
  %6084 = vst [vmem:[#allocation2 + $0x2c0] sm:$0xff] %v5006
  %6085 = vst [vmem:[#allocation2 + $0x2c8] sm:$0xff] %v5009
  %6086 = vst [vmem:[#allocation2 + $0x2d0] sm:$0xff] %v5014
  %6087 = vst [vmem:[#allocation2 + $0x2d8] sm:$0xff] %v5017
  %6088 = vst [vmem:[#allocation2 + $0x2e0] sm:$0xff] %v5022
  %6089 = vst [vmem:[#allocation2 + $0x2e8] sm:$0xff] %v5025
  %6090 = vst [vmem:[#allocation2 + $0x2f0] sm:$0xff] %v5030
  %6091 = vst [vmem:[#allocation2 + $0x2f8] sm:$0xff] %v5033
  %6092 = vst [vmem:[#allocation2 + $0x300] sm:$0xff] %v5038
  %6093 = vst [vmem:[#allocation2 + $0x308] sm:$0xff] %v5041
  %6094 = vst [vmem:[#allocation2 + $0x310] sm:$0xff] %v5046
  %6095 = vst [vmem:[#allocation2 + $0x318] sm:$0xff] %v5049
  %6096 = vst [vmem:[#allocation2 + $0x320] sm:$0xff] %v5054
  %6097 = vst [vmem:[#allocation2 + $0x328] sm:$0xff] %v5057
  %6098 = vst [vmem:[#allocation2 + $0x330] sm:$0xff] %v5062
  %6099 = vst [vmem:[#allocation2 + $0x338] sm:$0xff] %v5065
  %6100 = vst [vmem:[#allocation2 + $0x340] sm:$0xff] %v5070
  %6101 = vst [vmem:[#allocation2 + $0x348] sm:$0xff] %v5073
  %6102 = vst [vmem:[#allocation2 + $0x350] sm:$0xff] %v5078
  %6103 = vst [vmem:[#allocation2 + $0x358] sm:$0xff] %v5081
  %6104 = vst [vmem:[#allocation2 + $0x360] sm:$0xff] %v5086
  %6105 = vst [vmem:[#allocation2 + $0x368] sm:$0xff] %v5089
  %6106 = vst [vmem:[#allocation2 + $0x370] sm:$0xff] %v5094
  %6107 = vst [vmem:[#allocation2 + $0x378] sm:$0xff] %v5097
  %6108 = vst [vmem:[#allocation2 + $0x380] sm:$0xff] %v5102
  %6109 = vst [vmem:[#allocation2 + $0x388] sm:$0xff] %v5105
  %6110 = vst [vmem:[#allocation2 + $0x390] sm:$0xff] %v5110
  %6111 = vst [vmem:[#allocation2 + $0x398] sm:$0xff] %v5113
  %6112 = vst [vmem:[#allocation2 + $0x3a0] sm:$0xff] %v5118
  %6113 = vst [vmem:[#allocation2 + $0x3a8] sm:$0xff] %v5121
  %6114 = vst [vmem:[#allocation2 + $0x3b0] sm:$0xff] %v5126
  %6115 = vst [vmem:[#allocation2 + $0x3b8] sm:$0xff] %v5129
  %6116 = vst [vmem:[#allocation2 + $0x3c0] sm:$0xff] %v5134
  %6117 = vst [vmem:[#allocation2 + $0x3c8] sm:$0xff] %v5137
  %6118 = vst [vmem:[#allocation2 + $0x3d0] sm:$0xff] %v5142
  %6119 = vst [vmem:[#allocation2 + $0x3d8] sm:$0xff] %v5145
  %6120 = vst [vmem:[#allocation2 + $0x3e0] sm:$0xff] %v5150
  %6121 = vst [vmem:[#allocation2 + $0x3e8] sm:$0xff] %v5153
  %6122 = vst [vmem:[#allocation2 + $0x3f0] sm:$0xff] %v5158
  %6123 = vst [vmem:[#allocation2 + $0x3f8] sm:$0xff] %v5161
  %6124 = vst [vmem:[#allocation2 + $0x400] sm:$0xff] %v5166
  %6125 = vst [vmem:[#allocation2 + $0x408] sm:$0xff] %v5169
  %6126 = vst [vmem:[#allocation2 + $0x410] sm:$0xff] %v5174
  %6127 = vst [vmem:[#allocation2 + $0x418] sm:$0xff] %v5177
  %6128 = vst [vmem:[#allocation2 + $0x420] sm:$0xff] %v5182
  %6129 = vst [vmem:[#allocation2 + $0x428] sm:$0xff] %v5185
  %6130 = vst [vmem:[#allocation2 + $0x430] sm:$0xff] %v5190
  %6131 = vst [vmem:[#allocation2 + $0x438] sm:$0xff] %v5193
  %6132 = vst [vmem:[#allocation2 + $0x440] sm:$0xff] %v5198
  %6133 = vst [vmem:[#allocation2 + $0x448] sm:$0xff] %v5201
  %6134 = vst [vmem:[#allocation2 + $0x450] sm:$0xff] %v5206
  %6135 = vst [vmem:[#allocation2 + $0x458] sm:$0xff] %v5209
  %6136 = vst [vmem:[#allocation2 + $0x460] sm:$0xff] %v5214
  %6137 = vst [vmem:[#allocation2 + $0x468] sm:$0xff] %v5217
  %6138 = vst [vmem:[#allocation2 + $0x470] sm:$0xff] %v5222
  %6139 = vst [vmem:[#allocation2 + $0x478] sm:$0xff] %v5225
  %6140 = vst [vmem:[#allocation2 + $0x480] sm:$0xff] %v5230
  %6141 = vst [vmem:[#allocation2 + $0x488] sm:$0xff] %v5233
  %6142 = vst [vmem:[#allocation2 + $0x490] sm:$0xff] %v5238
  %6143 = vst [vmem:[#allocation2 + $0x498] sm:$0xff] %v5241
  %6144 = vst [vmem:[#allocation2 + $0x4a0] sm:$0xff] %v5246
  %6145 = vst [vmem:[#allocation2 + $0x4a8] sm:$0xff] %v5249
  %6146 = vst [vmem:[#allocation2 + $0x4b0] sm:$0xff] %v5254
  %6147 = vst [vmem:[#allocation2 + $0x4b8] sm:$0xff] %v5257
  %6148 = vst [vmem:[#allocation2 + $0x4c0] sm:$0xff] %v5262
  %6149 = vst [vmem:[#allocation2 + $0x4c8] sm:$0xff] %v5265
  %6150 = vst [vmem:[#allocation2 + $0x4d0] sm:$0xff] %v5270
  %6151 = vst [vmem:[#allocation2 + $0x4d8] sm:$0xff] %v5273
  %6152 = vst [vmem:[#allocation2 + $0x4e0] sm:$0xff] %v5278
  %6153 = vst [vmem:[#allocation2 + $0x4e8] sm:$0xff] %v5281
  %6154 = vst [vmem:[#allocation2 + $0x4f0] sm:$0xff] %v5286
  %6155 = vst [vmem:[#allocation2 + $0x4f8] sm:$0xff] %v5289
  %6156 = vst [vmem:[#allocation2 + $0x500] sm:$0xff] %v5294
  %6157 = vst [vmem:[#allocation2 + $0x508] sm:$0xff] %v5297
  %6158 = vst [vmem:[#allocation2 + $0x510] sm:$0xff] %v5302
  %6159 = vst [vmem:[#allocation2 + $0x518] sm:$0xff] %v5305
  %6160 = vst [vmem:[#allocation2 + $0x520] sm:$0xff] %v5310
  %6161 = vst [vmem:[#allocation2 + $0x528] sm:$0xff] %v5313
  %6162 = vst [vmem:[#allocation2 + $0x530] sm:$0xff] %v5318
  %6163 = vst [vmem:[#allocation2 + $0x538] sm:$0xff] %v5321
  %6164 = vst [vmem:[#allocation2 + $0x540] sm:$0xff] %v5326
  %6165 = vst [vmem:[#allocation2 + $0x548] sm:$0xff] %v5329
  %6166 = vst [vmem:[#allocation2 + $0x550] sm:$0xff] %v5334
  %6167 = vst [vmem:[#allocation2 + $0x558] sm:$0xff] %v5337
  %6168 = vst [vmem:[#allocation2 + $0x560] sm:$0xff] %v5342
  %6169 = vst [vmem:[#allocation2 + $0x568] sm:$0xff] %v5345
  %6170 = vst [vmem:[#allocation2 + $0x570] sm:$0xff] %v5350
  %6171 = vst [vmem:[#allocation2 + $0x578] sm:$0xff] %v5353
  %6172 = vst [vmem:[#allocation2 + $0x580] sm:$0xff] %v5358
  %6173 = vst [vmem:[#allocation2 + $0x588] sm:$0xff] %v5361
  %6174 = vst [vmem:[#allocation2 + $0x590] sm:$0xff] %v5366
  %6175 = vst [vmem:[#allocation2 + $0x598] sm:$0xff] %v5369
  %6176 = vst [vmem:[#allocation2 + $0x5a0] sm:$0xff] %v5374
  %6177 = vst [vmem:[#allocation2 + $0x5a8] sm:$0xff] %v5377
  %6178 = vst [vmem:[#allocation2 + $0x5b0] sm:$0xff] %v5382
  %6179 = vst [vmem:[#allocation2 + $0x5b8] sm:$0xff] %v5385
  %6180 = vst [vmem:[#allocation2 + $0x5c0] sm:$0xff] %v5390
  %6181 = vst [vmem:[#allocation2 + $0x5c8] sm:$0xff] %v5393
  %6182 = vst [vmem:[#allocation2 + $0x5d0] sm:$0xff] %v5398
  %6183 = vst [vmem:[#allocation2 + $0x5d8] sm:$0xff] %v5401
  %6184 = vst [vmem:[#allocation2 + $0x5e0] sm:$0xff] %v5406
  %6185 = vst [vmem:[#allocation2 + $0x5e8] sm:$0xff] %v5409
  %6186 = vst [vmem:[#allocation2 + $0x5f0] sm:$0xff] %v5414
  %6187 = vst [vmem:[#allocation2 + $0x5f8] sm:$0xff] %v5417
  %6188 = vst [vmem:[#allocation2 + $0x600] sm:$0xff] %v5422
  %6189 = vst [vmem:[#allocation2 + $0x608] sm:$0xff] %v5425
  %6190 = vst [vmem:[#allocation2 + $0x610] sm:$0xff] %v5430
  %6191 = vst [vmem:[#allocation2 + $0x618] sm:$0xff] %v5433
  %6192 = vst [vmem:[#allocation2 + $0x620] sm:$0xff] %v5438
  %6193 = vst [vmem:[#allocation2 + $0x628] sm:$0xff] %v5441
  %6194 = vst [vmem:[#allocation2 + $0x630] sm:$0xff] %v5446
  %6195 = vst [vmem:[#allocation2 + $0x638] sm:$0xff] %v5449
  %6196 = vst [vmem:[#allocation2 + $0x640] sm:$0xff] %v5454
  %6197 = vst [vmem:[#allocation2 + $0x648] sm:$0xff] %v5457
  %6198 = vst [vmem:[#allocation2 + $0x650] sm:$0xff] %v5462
  %6199 = vst [vmem:[#allocation2 + $0x658] sm:$0xff] %v5465
  %6200 = vst [vmem:[#allocation2 + $0x660] sm:$0xff] %v5470
  %6201 = vst [vmem:[#allocation2 + $0x668] sm:$0xff] %v5473
  %6202 = vst [vmem:[#allocation2 + $0x670] sm:$0xff] %v5478
  %6203 = vst [vmem:[#allocation2 + $0x678] sm:$0xff] %v5481
  %6204 = vst [vmem:[#allocation2 + $0x680] sm:$0xff] %v5486
  %6205 = vst [vmem:[#allocation2 + $0x688] sm:$0xff] %v5489
  %6206 = vst [vmem:[#allocation2 + $0x690] sm:$0xff] %v5494
  %6207 = vst [vmem:[#allocation2 + $0x698] sm:$0xff] %v5497
  %6208 = vst [vmem:[#allocation2 + $0x6a0] sm:$0xff] %v5502
  %6209 = vst [vmem:[#allocation2 + $0x6a8] sm:$0xff] %v5505
  %6210 = vst [vmem:[#allocation2 + $0x6b0] sm:$0xff] %v5510
  %6211 = vst [vmem:[#allocation2 + $0x6b8] sm:$0xff] %v5513
  %6212 = vst [vmem:[#allocation2 + $0x6c0] sm:$0xff] %v5518
  %6213 = vst [vmem:[#allocation2 + $0x6c8] sm:$0xff] %v5521
  %6214 = vst [vmem:[#allocation2 + $0x6d0] sm:$0xff] %v5526
  %6215 = vst [vmem:[#allocation2 + $0x6d8] sm:$0xff] %v5529
  %6216 = vst [vmem:[#allocation2 + $0x6e0] sm:$0xff] %v5534
  %6217 = vst [vmem:[#allocation2 + $0x6e8] sm:$0xff] %v5537
  %6218 = vst [vmem:[#allocation2 + $0x6f0] sm:$0xff] %v5542
  %6219 = vst [vmem:[#allocation2 + $0x6f8] sm:$0xff] %v5545
  %6220 = vst [vmem:[#allocation2 + $0x700] sm:$0xff] %v5550
  %6221 = vst [vmem:[#allocation2 + $0x708] sm:$0xff] %v5553
  %6222 = vst [vmem:[#allocation2 + $0x710] sm:$0xff] %v5558
  %6223 = vst [vmem:[#allocation2 + $0x718] sm:$0xff] %v5561
  %6224 = vst [vmem:[#allocation2 + $0x720] sm:$0xff] %v5566
  %6225 = vst [vmem:[#allocation2 + $0x728] sm:$0xff] %v5569
  %6226 = vst [vmem:[#allocation2 + $0x730] sm:$0xff] %v5574
  %6227 = vst [vmem:[#allocation2 + $0x738] sm:$0xff] %v5577
  %6228 = vst [vmem:[#allocation2 + $0x740] sm:$0xff] %v5582
  %6229 = vst [vmem:[#allocation2 + $0x748] sm:$0xff] %v5585
  %6230 = vst [vmem:[#allocation2 + $0x750] sm:$0xff] %v5590
  %6231 = vst [vmem:[#allocation2 + $0x758] sm:$0xff] %v5593
  %6232 = vst [vmem:[#allocation2 + $0x760] sm:$0xff] %v5598
  %6233 = vst [vmem:[#allocation2 + $0x768] sm:$0xff] %v5601
  %6234 = vst [vmem:[#allocation2 + $0x770] sm:$0xff] %v5606
  %6235 = vst [vmem:[#allocation2 + $0x778] sm:$0xff] %v5609
  %6236 = vst [vmem:[#allocation2 + $0x780] sm:$0xff] %v5614
  %6237 = vst [vmem:[#allocation2 + $0x788] sm:$0xff] %v5617
  %6238 = vst [vmem:[#allocation2 + $0x790] sm:$0xff] %v5622
  %6239 = vst [vmem:[#allocation2 + $0x798] sm:$0xff] %v5625
  %6240 = vst [vmem:[#allocation2 + $0x7a0] sm:$0xff] %v5630
  %6241 = vst [vmem:[#allocation2 + $0x7a8] sm:$0xff] %v5633
  %6242 = vst [vmem:[#allocation2 + $0x7b0] sm:$0xff] %v5638
  %6243 = vst [vmem:[#allocation2 + $0x7b8] sm:$0xff] %v5641
  %6244 = vst [vmem:[#allocation2 + $0x7c0] sm:$0xff] %v5646
  %6245 = vst [vmem:[#allocation2 + $0x7c8] sm:$0xff] %v5649
  %6246 = vst [vmem:[#allocation2 + $0x7d0] sm:$0xff] %v5654
  %6247 = vst [vmem:[#allocation2 + $0x7d8] sm:$0xff] %v5657
  %6248 = vst [vmem:[#allocation2 + $0x7e0] sm:$0xff] %v5662
  %6249 = vst [vmem:[#allocation2 + $0x7e8] sm:$0xff] %v5665
  %6250 = vst [vmem:[#allocation2 + $0x7f0] sm:$0xff] %v5670
  %6251 = vst [vmem:[#allocation2 + $0x7f8] sm:$0xff] %v5673
  %6252 = vst [vmem:[#allocation2 + $0x800] sm:$0xff] %v5678
  %6253 = vst [vmem:[#allocation2 + $0x808] sm:$0xff] %v5681
  %6254 = vst [vmem:[#allocation2 + $0x810] sm:$0xff] %v5686
  %6255 = vst [vmem:[#allocation2 + $0x818] sm:$0xff] %v5689
  %6256 = vst [vmem:[#allocation2 + $0x820] sm:$0xff] %v5694
  %6257 = vst [vmem:[#allocation2 + $0x828] sm:$0xff] %v5697
  %6258 = vst [vmem:[#allocation2 + $0x830] sm:$0xff] %v5702
  %6259 = vst [vmem:[#allocation2 + $0x838] sm:$0xff] %v5705
  %6260 = vst [vmem:[#allocation2 + $0x840] sm:$0xff] %v5710
  %6261 = vst [vmem:[#allocation2 + $0x848] sm:$0xff] %v5713
  %6262 = vst [vmem:[#allocation2 + $0x850] sm:$0xff] %v5718
  %6263 = vst [vmem:[#allocation2 + $0x858] sm:$0xff] %v5721
  %6264 = vst [vmem:[#allocation2 + $0x860] sm:$0xff] %v5726
  %6265 = vst [vmem:[#allocation2 + $0x868] sm:$0xff] %v5729
  %6266 = vst [vmem:[#allocation2 + $0x870] sm:$0xff] %v5734
  %6267 = vst [vmem:[#allocation2 + $0x878] sm:$0xff] %v5737
  %6268 = vst [vmem:[#allocation2 + $0x880] sm:$0xff] %v5742
  %6269 = vst [vmem:[#allocation2 + $0x888] sm:$0xff] %v5745
  %6270 = vst [vmem:[#allocation2 + $0x890] sm:$0xff] %v5750
  %6271 = vst [vmem:[#allocation2 + $0x898] sm:$0xff] %v5753
  %6272 = vst [vmem:[#allocation2 + $0x8a0] sm:$0xff] %v5758
  %6273 = vst [vmem:[#allocation2 + $0x8a8] sm:$0xff] %v5761
  %6274 = vst [vmem:[#allocation2 + $0x8b0] sm:$0xff] %v5766
  %6275 = vst [vmem:[#allocation2 + $0x8b8] sm:$0xff] %v5769
  %6276 = vst [vmem:[#allocation2 + $0x8c0] sm:$0xff] %v5774
  %6277 = vst [vmem:[#allocation2 + $0x8c8] sm:$0xff] %v5777
  %6278 = vst [vmem:[#allocation2 + $0x8d0] sm:$0xff] %v5782
  %6279 = vst [vmem:[#allocation2 + $0x8d8] sm:$0xff] %v5785
  %6280 = vst [vmem:[#allocation2 + $0x8e0] sm:$0xff] %v5790
  %6281 = vst [vmem:[#allocation2 + $0x8e8] sm:$0xff] %v5793
  %6282 = vst [vmem:[#allocation2 + $0x8f0] sm:$0xff] %v5798
  %6283 = vst [vmem:[#allocation2 + $0x8f8] sm:$0xff] %v5801
  %6284 = vst [vmem:[#allocation2 + $0x900] sm:$0xff] %v5806
  %6285 = vst [vmem:[#allocation2 + $0x908] sm:$0xff] %v5809
  %6286 = vst [vmem:[#allocation2 + $0x910] sm:$0xff] %v5814
  %6287 = vst [vmem:[#allocation2 + $0x918] sm:$0xff] %v5817
  %6288 = vst [vmem:[#allocation2 + $0x920] sm:$0xff] %v5822
  %6289 = vst [vmem:[#allocation2 + $0x928] sm:$0xff] %v5825
  %6290 = vst [vmem:[#allocation2 + $0x930] sm:$0xff] %v5830
  %6291 = vst [vmem:[#allocation2 + $0x938] sm:$0xff] %v5833
  %6292 = vst [vmem:[#allocation2 + $0x940] sm:$0xff] %v5838
  %6293 = vst [vmem:[#allocation2 + $0x948] sm:$0xff] %v5841
  %6294 = vst [vmem:[#allocation2 + $0x950] sm:$0xff] %v5846
  %6295 = vst [vmem:[#allocation2 + $0x958] sm:$0xff] %v5849
  %6296 = vst [vmem:[#allocation2 + $0x960] sm:$0xff] %v5854
  %6297 = vst [vmem:[#allocation2 + $0x968] sm:$0xff] %v5857
  %6298 = vst [vmem:[#allocation2 + $0x970] sm:$0xff] %v5862
  %6299 = vst [vmem:[#allocation2 + $0x978] sm:$0xff] %v5865
  %6300 = vst [vmem:[#allocation2 + $0x980] sm:$0xff] %v5870
  %6301 = vst [vmem:[#allocation2 + $0x988] sm:$0xff] %v5873
  %6302 = vst [vmem:[#allocation2 + $0x990] sm:$0xff] %v5878
  %6303 = vst [vmem:[#allocation2 + $0x998] sm:$0xff] %v5881
  %6304 = vst [vmem:[#allocation2 + $0x9a0] sm:$0xff] %v5886
  %6305 = vst [vmem:[#allocation2 + $0x9a8] sm:$0xff] %v5889
  %6306 = vst [vmem:[#allocation2 + $0x9b0] sm:$0xff] %v5894
  %6307 = vst [vmem:[#allocation2 + $0x9b8] sm:$0xff] %v5897
  %6308 = vst [vmem:[#allocation2 + $0x9c0] sm:$0xff] %v5902
  %6309 = vst [vmem:[#allocation2 + $0x9c8] sm:$0xff] %v5905
  %6310 = vst [vmem:[#allocation2 + $0x9d0] sm:$0xff] %v5910
  %6311 = vst [vmem:[#allocation2 + $0x9d8] sm:$0xff] %v5913
  %6312 = vst [vmem:[#allocation2 + $0x9e0] sm:$0xff] %v5918
  %6313 = vst [vmem:[#allocation2 + $0x9e8] sm:$0xff] %v5921
  %6314 = vst [vmem:[#allocation2 + $0x9f0] sm:$0xff] %v5926
  %6315 = vst [vmem:[#allocation2 + $0x9f8] sm:$0xff] %v5929
  %6316 = vst [vmem:[#allocation2 + $0xa00] sm:$0xff] %v5934
  %6317 = vst [vmem:[#allocation2 + $0xa08] sm:$0xff] %v5937
  %6318 = vst [vmem:[#allocation2 + $0xa10] sm:$0xff] %v5942
  %6319 = vst [vmem:[#allocation2 + $0xa18] sm:$0xff] %v5945
  %6320 = vst [vmem:[#allocation2 + $0xa20] sm:$0xff] %v5950
  %6321 = vst [vmem:[#allocation2 + $0xa28] sm:$0xff] %v5953
  %6322 = vst [vmem:[#allocation2 + $0xa30] sm:$0xff] %v5958
  %6323 = vst [vmem:[#allocation2 + $0xa38] sm:$0xff] %v5961
  %6324 = vst [vmem:[#allocation2 + $0xa40] sm:$0xff] %v5966
  %6325 = vst [vmem:[#allocation2 + $0xa48] sm:$0xff] %v5969
  %6326 = vst [vmem:[#allocation2 + $0xa50] sm:$0xff] %v5974
  %6327 = vst [vmem:[#allocation2 + $0xa58] sm:$0xff] %v5977
  %6328 = vst [vmem:[#allocation2 + $0xa60] sm:$0xff] %v5982
  %6329 = vst [vmem:[#allocation2 + $0xa68] sm:$0xff] %v5985
  %6330 = vst [vmem:[#allocation2 + $0xa70] sm:$0xff] %v5990
  %6331 = vst [vmem:[#allocation2 + $0xa78] sm:$0xff] %v5993
  %6332 = vst.msk [vmem:[#allocation5] sm:$0xff] %vm2784, 0.0
  %6333 = vst.msk [vmem:[#allocation6] sm:$0xff] %vm2784, 0.0
  %v6334 = vld [vmem:[%s4] sm:$0xf]
  %v6335 = vld [vmem:[%s4 + $0x4] sm:$0xf]
  %v6336 = vld [vmem:[%s4 + $0x8] sm:$0xf]
  %v6337 = vld [vmem:[%s4 + $0xc] sm:$0xf]
  loop: start=0, step=1, limit=42
  $region57: #{bilstm2_forward.1} parent=0 // loop_pre_header
    _
  $region58: #{bilstm2_forward.1} parent=0 // loop_header
    %s6339 = sphi 0, %s6343
    %p6340 = scmp.ge.s32.totalorder %s6339, 42
  $region59: #{bilstm2_forward.1} parent=0 // loop_header_branch
    %6342 = sbr.rel (%p6340) target = $region63
  $region60: #{bilstm2_forward.1} parent=0 // loop_body
    %s6344 = smul.u32 %s6339, 8
    %s6345 = smul.u32 %s6339, 64
    %s6346 = ssub.s32 335, %s6344
    %s6347 = smul.u32 %s6346, 8
    %s6348 = scalar_lea.vmem [#allocation2], %s6345
    %v6349 = vld [vmem:[%s6348] sm:$0xff]
    %s6350 = scalar_lea.vmem [#allocation2], %s6347
    %v6351 = vld [vmem:[%s6350] sm:$0xff]
    %v6352 = vsel %vm56, %v6349, %v6351
    %v6353 = vld [vmem:[#allocation5] sm:$0xff]
    %v6354 = vpack.c.bf16 %v6353, %v6353
    %v6359 = vunpack.c.l.b16 %v6334
    %v6360 = vunpack.c.l.b16 %v6335
    %v6361 = vunpack.c.l.b16 %v6336
    %v6362 = vunpack.c.l.b16 %v6337
    %v6363 = vpack.c.b16 %v6360, %v6359
    %v6364 = vpack.c.b16 %v6362, %v6361
    %v6368 = vsel %vm2784, %v6354, 0
    %6370 = vmatprep.subr.bf16.mxu0 0
    %6371 = vmatpush1.bf16.msra.mxu0 0
    %6372 = vmatprep.subr.bf16.mxu0 0
    %6373 = vmatpush1.bf16.msra.mxu0 0
    %6374 = vmatprep.subr.bf16.mxu0 0
    %6375 = vmatpush1.bf16.msra.mxu0 0
    %6376 = vmatprep.subr.bf16.mxu0 0
    %6377 = vmatpush1.bf16.msra.mxu0 0
    %6378 = vmatprep.subr.bf16.mxu0 0
    %6379 = vmatpush1.bf16.msra.mxu0 0
    %6380 = vmatprep.subr.bf16.mxu0 0
    %6381 = vmatpush1.bf16.msra.mxu0 0
    %6382 = vmatprep.subr.bf16.mxu0 0
    %6383 = vmatpush1.bf16.msra.mxu0 %v6364
    %6384 = vmatprep.subr.bf16.mxu0 0
    %6385 = vmatpush1.bf16.msra.mxu0 %v6363
    %6386 = vmatprep.subr.bf16.mxu0 0
    %6387 = vmatpush2.bf16.msra.mxu0 0
    %6388 = vmatprep.subr.bf16.mxu0 0
    %6389 = vmatpush2.bf16.msra.mxu0 0
    %6390 = vmatprep.subr.bf16.mxu0 0
    %6391 = vmatpush2.bf16.msra.mxu0 0
    %6392 = vmatprep.subr.bf16.mxu0 0
    %6393 = vmatpush2.bf16.msra.mxu0 0
    %6394 = vmatprep.subr.bf16.mxu0 0
    %6395 = vmatpush2.bf16.msra.mxu0 0
    %6396 = vmatprep.subr.bf16.mxu0 0
    %6397 = vmatpush2.bf16.msra.mxu0 0
    %6398 = vmatprep.subr.bf16.mxu0 0
    %6399 = vmatpush2.bf16.msra.mxu0 0
    %6400 = vmatprep.subr.bf16.mxu0 0
    %6401 = vmatpush2.bf16.msra.mxu0 0
    %6402 = vmatprep.mubr.bf16.mxu0 0
    %6403 = vmatmul.mubr.bf16.gmra.mxu0 %v6368
    %v6404 = vpop.f32.mrf.mxu0
    %v6405 = vadd.f32 0.0, %v6404
    %v6406 = vpop.f32.mrf.mxu0
    %v6407 = vpop.f32.mrf.mxu0
    %v6408 = vpop.f32.mrf.mxu0
    %6409 = vdwg.mxu0
    %v6410 = vadd.f32 %v6352, %v6405
    %v6411 = vxor.u32 %v6410, 2147483648
    %v6412 = vmul.f32 %v6411, 1.442695
    %v6413 = vpow.pop %v6412
    %v6414 = vadd.f32 %v6413, 1.0
    %v6415 = vrcp.pop %v6414
    %v6416 = vmul.f32 1.0, %v6415
    %v6417 = vtanh.pop %v6410
    %v6418 = vld [vmem:[#allocation6] sm:$0xff]
    %6420 = vrot.lane.b32.xlu0 %v6418, 32
    %v6421 = vpop.permute.xlu0 %6420
    %v6423 = vmul.f32 %v6416, %v6421
    %6425 = vrot.lane.b32.xlu0 %v6417, 64
    %v6426 = vpop.permute.xlu0 %6425
    %v6428 = vmul.f32 %v6416, %v6426
    %6430 = vrot.lane.b32.xlu0 %v6428, 32
    %v6431 = vpop.permute.xlu0 %6430
    %v6433 = vadd.f32 %v6423, %v6431
    %v6434 = vtanh.pop %v6433
    %6436 = vrot.lane.b32.xlu0 %v6434, 64
    %v6437 = vpop.permute.xlu0 %6436
    %v6439 = vmul.f32 %v6416, %v6437
    %6441 = vrot.lane.b32.xlu0 %v6433, 96
    %v6442 = vpop.permute.xlu0 %6441
    %6444 = vst.msk [vmem:[#allocation6] sm:$0xff] %vm2784, %v6442
    %6446 = vrot.lane.b32.xlu0 %v6439, 32
    %v6447 = vpop.permute.xlu0 %6446
    %6449 = vst.msk [vmem:[#allocation5] sm:$0xff] %vm2784, %v6447
    %s6450 = scalar_lea.vmem [#allocation3], %s6345
    %vm6451 = vcmask 130048
    %6452 = vst.msk [vmem:[%s6450] sm:$0xff] %vm6451, %v6447
    %s6453 = scalar_lea.vmem [#allocation3], %s6347
    %vm6454 = vcmask 261248
    %6455 = vst.msk [vmem:[%s6453] sm:$0xff] %vm6454, %v6447
    %s6456 = sadd.s32 %s6344, 1
    %s6457 = smul.u32 %s6456, 8
    %s6458 = ssub.s32 334, %s6344
    %s6459 = smul.u32 %s6458, 8
    %s6460 = scalar_lea.vmem [#allocation2], %s6457
    %v6461 = vld [vmem:[%s6460] sm:$0xff]
    %s6462 = scalar_lea.vmem [#allocation2], %s6459
    %v6463 = vld [vmem:[%s6462] sm:$0xff]
    %v6464 = vsel %vm56, %v6461, %v6463
    %v6465 = vld [vmem:[#allocation5] sm:$0xff]
    %v6466 = vpack.c.bf16 %v6465, %v6465
    %v6468 = vsel %vm2784, %v6466, 0
    %6470 = vmatprep.subr.bf16.mxu0 0
    %6471 = vmatpush1.bf16.msra.mxu0 0
    %6472 = vmatprep.subr.bf16.mxu0 0
    %6473 = vmatpush1.bf16.msra.mxu0 0
    %6474 = vmatprep.subr.bf16.mxu0 0
    %6475 = vmatpush1.bf16.msra.mxu0 0
    %6476 = vmatprep.subr.bf16.mxu0 0
    %6477 = vmatpush1.bf16.msra.mxu0 0
    %6478 = vmatprep.subr.bf16.mxu0 0
    %6479 = vmatpush1.bf16.msra.mxu0 0
    %6480 = vmatprep.subr.bf16.mxu0 0
    %6481 = vmatpush1.bf16.msra.mxu0 0
    %6482 = vmatprep.subr.bf16.mxu0 0
    %6483 = vmatpush1.bf16.msra.mxu0 %v6364
    %6484 = vmatprep.subr.bf16.mxu0 0
    %6485 = vmatpush1.bf16.msra.mxu0 %v6363
    %6486 = vmatprep.subr.bf16.mxu0 0
    %6487 = vmatpush2.bf16.msra.mxu0 0
    %6488 = vmatprep.subr.bf16.mxu0 0
    %6489 = vmatpush2.bf16.msra.mxu0 0
    %6490 = vmatprep.subr.bf16.mxu0 0
    %6491 = vmatpush2.bf16.msra.mxu0 0
    %6492 = vmatprep.subr.bf16.mxu0 0
    %6493 = vmatpush2.bf16.msra.mxu0 0
    %6494 = vmatprep.subr.bf16.mxu0 0
    %6495 = vmatpush2.bf16.msra.mxu0 0
    %6496 = vmatprep.subr.bf16.mxu0 0
    %6497 = vmatpush2.bf16.msra.mxu0 0
    %6498 = vmatprep.subr.bf16.mxu0 0
    %6499 = vmatpush2.bf16.msra.mxu0 0
    %6500 = vmatprep.subr.bf16.mxu0 0
    %6501 = vmatpush2.bf16.msra.mxu0 0
    %6502 = vmatprep.mubr.bf16.mxu0 0
    %6503 = vmatmul.mubr.bf16.gmra.mxu0 %v6468
    %v6504 = vpop.f32.mrf.mxu0
    %v6505 = vadd.f32 0.0, %v6504
    %v6506 = vpop.f32.mrf.mxu0
    %v6507 = vpop.f32.mrf.mxu0
    %v6508 = vpop.f32.mrf.mxu0
    %6509 = vdwg.mxu0
    %v6510 = vadd.f32 %v6464, %v6505
    %v6511 = vxor.u32 %v6510, 2147483648
    %v6512 = vmul.f32 %v6511, 1.442695
    %v6513 = vpow.pop %v6512
    %v6514 = vadd.f32 %v6513, 1.0
    %v6515 = vrcp.pop %v6514
    %v6516 = vmul.f32 1.0, %v6515
    %v6517 = vtanh.pop %v6510
    %v6518 = vld [vmem:[#allocation6] sm:$0xff]
    %6520 = vrot.lane.b32.xlu0 %v6518, 32
    %v6521 = vpop.permute.xlu0 %6520
    %v6523 = vmul.f32 %v6516, %v6521
    %6525 = vrot.lane.b32.xlu0 %v6517, 64
    %v6526 = vpop.permute.xlu0 %6525
    %v6528 = vmul.f32 %v6516, %v6526
    %6530 = vrot.lane.b32.xlu0 %v6528, 32
    %v6531 = vpop.permute.xlu0 %6530
    %v6533 = vadd.f32 %v6523, %v6531
    %v6534 = vtanh.pop %v6533
    %6536 = vrot.lane.b32.xlu0 %v6534, 64
    %v6537 = vpop.permute.xlu0 %6536
    %v6539 = vmul.f32 %v6516, %v6537
    %6541 = vrot.lane.b32.xlu0 %v6533, 96
    %v6542 = vpop.permute.xlu0 %6541
    %6544 = vst.msk [vmem:[#allocation6] sm:$0xff] %vm2784, %v6542
    %6546 = vrot.lane.b32.xlu0 %v6539, 32
    %v6547 = vpop.permute.xlu0 %6546
    %6549 = vst.msk [vmem:[#allocation5] sm:$0xff] %vm2784, %v6547
    %s6550 = scalar_lea.vmem [#allocation3], %s6457
    %6551 = vst.msk [vmem:[%s6550] sm:$0xff] %vm6451, %v6547
    %s6552 = scalar_lea.vmem [#allocation3], %s6459
    %6553 = vst.msk [vmem:[%s6552] sm:$0xff] %vm6454, %v6547
    %s6554 = sadd.s32 %s6344, 2
    %s6555 = smul.u32 %s6554, 8
    %s6556 = ssub.s32 333, %s6344
    %s6557 = smul.u32 %s6556, 8
    %s6558 = scalar_lea.vmem [#allocation2], %s6555
    %v6559 = vld [vmem:[%s6558] sm:$0xff]
    %s6560 = scalar_lea.vmem [#allocation2], %s6557
    %v6561 = vld [vmem:[%s6560] sm:$0xff]
    %v6562 = vsel %vm56, %v6559, %v6561
    %v6563 = vld [vmem:[#allocation5] sm:$0xff]
    %v6564 = vpack.c.bf16 %v6563, %v6563
    %v6566 = vsel %vm2784, %v6564, 0
    %6568 = vmatprep.subr.bf16.mxu0 0
    %6569 = vmatpush1.bf16.msra.mxu0 0
    %6570 = vmatprep.subr.bf16.mxu0 0
    %6571 = vmatpush1.bf16.msra.mxu0 0
    %6572 = vmatprep.subr.bf16.mxu0 0
    %6573 = vmatpush1.bf16.msra.mxu0 0
    %6574 = vmatprep.subr.bf16.mxu0 0
    %6575 = vmatpush1.bf16.msra.mxu0 0
    %6576 = vmatprep.subr.bf16.mxu0 0
    %6577 = vmatpush1.bf16.msra.mxu0 0
    %6578 = vmatprep.subr.bf16.mxu0 0
    %6579 = vmatpush1.bf16.msra.mxu0 0
    %6580 = vmatprep.subr.bf16.mxu0 0
    %6581 = vmatpush1.bf16.msra.mxu0 %v6364
    %6582 = vmatprep.subr.bf16.mxu0 0
    %6583 = vmatpush1.bf16.msra.mxu0 %v6363
    %6584 = vmatprep.subr.bf16.mxu0 0
    %6585 = vmatpush2.bf16.msra.mxu0 0
    %6586 = vmatprep.subr.bf16.mxu0 0
    %6587 = vmatpush2.bf16.msra.mxu0 0
    %6588 = vmatprep.subr.bf16.mxu0 0
    %6589 = vmatpush2.bf16.msra.mxu0 0
    %6590 = vmatprep.subr.bf16.mxu0 0
    %6591 = vmatpush2.bf16.msra.mxu0 0
    %6592 = vmatprep.subr.bf16.mxu0 0
    %6593 = vmatpush2.bf16.msra.mxu0 0
    %6594 = vmatprep.subr.bf16.mxu0 0
    %6595 = vmatpush2.bf16.msra.mxu0 0
    %6596 = vmatprep.subr.bf16.mxu0 0
    %6597 = vmatpush2.bf16.msra.mxu0 0
    %6598 = vmatprep.subr.bf16.mxu0 0
    %6599 = vmatpush2.bf16.msra.mxu0 0
    %6600 = vmatprep.mubr.bf16.mxu0 0
    %6601 = vmatmul.mubr.bf16.gmra.mxu0 %v6566
    %v6602 = vpop.f32.mrf.mxu0
    %v6603 = vadd.f32 0.0, %v6602
    %v6604 = vpop.f32.mrf.mxu0
    %v6605 = vpop.f32.mrf.mxu0
    %v6606 = vpop.f32.mrf.mxu0
    %6607 = vdwg.mxu0
    %v6608 = vadd.f32 %v6562, %v6603
    %v6609 = vxor.u32 %v6608, 2147483648
    %v6610 = vmul.f32 %v6609, 1.442695
    %v6611 = vpow.pop %v6610
    %v6612 = vadd.f32 %v6611, 1.0
    %v6613 = vrcp.pop %v6612
    %v6614 = vmul.f32 1.0, %v6613
    %v6615 = vtanh.pop %v6608
    %v6616 = vld [vmem:[#allocation6] sm:$0xff]
    %6618 = vrot.lane.b32.xlu0 %v6616, 32
    %v6619 = vpop.permute.xlu0 %6618
    %v6621 = vmul.f32 %v6614, %v6619
    %6623 = vrot.lane.b32.xlu0 %v6615, 64
    %v6624 = vpop.permute.xlu0 %6623
    %v6626 = vmul.f32 %v6614, %v6624
    %6628 = vrot.lane.b32.xlu0 %v6626, 32
    %v6629 = vpop.permute.xlu0 %6628
    %v6631 = vadd.f32 %v6621, %v6629
    %v6632 = vtanh.pop %v6631
    %6634 = vrot.lane.b32.xlu0 %v6632, 64
    %v6635 = vpop.permute.xlu0 %6634
    %v6637 = vmul.f32 %v6614, %v6635
    %6639 = vrot.lane.b32.xlu0 %v6631, 96
    %v6640 = vpop.permute.xlu0 %6639
    %6642 = vst.msk [vmem:[#allocation6] sm:$0xff] %vm2784, %v6640
    %6644 = vrot.lane.b32.xlu0 %v6637, 32
    %v6645 = vpop.permute.xlu0 %6644
    %6647 = vst.msk [vmem:[#allocation5] sm:$0xff] %vm2784, %v6645
    %s6648 = scalar_lea.vmem [#allocation3], %s6555
    %6649 = vst.msk [vmem:[%s6648] sm:$0xff] %vm6451, %v6645
    %s6650 = scalar_lea.vmem [#allocation3], %s6557
    %6651 = vst.msk [vmem:[%s6650] sm:$0xff] %vm6454, %v6645
    %s6652 = sadd.s32 %s6344, 3
    %s6653 = smul.u32 %s6652, 8
    %s6654 = ssub.s32 332, %s6344
    %s6655 = smul.u32 %s6654, 8
    %s6656 = scalar_lea.vmem [#allocation2], %s6653
    %v6657 = vld [vmem:[%s6656] sm:$0xff]
    %s6658 = scalar_lea.vmem [#allocation2], %s6655
    %v6659 = vld [vmem:[%s6658] sm:$0xff]
    %v6660 = vsel %vm56, %v6657, %v6659
    %v6661 = vld [vmem:[#allocation5] sm:$0xff]
    %v6662 = vpack.c.bf16 %v6661, %v6661
    %v6664 = vsel %vm2784, %v6662, 0
    %6666 = vmatprep.subr.bf16.mxu0 0
    %6667 = vmatpush1.bf16.msra.mxu0 0
    %6668 = vmatprep.subr.bf16.mxu0 0
    %6669 = vmatpush1.bf16.msra.mxu0 0
    %6670 = vmatprep.subr.bf16.mxu0 0
    %6671 = vmatpush1.bf16.msra.mxu0 0
    %6672 = vmatprep.subr.bf16.mxu0 0
    %6673 = vmatpush1.bf16.msra.mxu0 0
    %6674 = vmatprep.subr.bf16.mxu0 0
    %6675 = vmatpush1.bf16.msra.mxu0 0
    %6676 = vmatprep.subr.bf16.mxu0 0
    %6677 = vmatpush1.bf16.msra.mxu0 0
    %6678 = vmatprep.subr.bf16.mxu0 0
    %6679 = vmatpush1.bf16.msra.mxu0 %v6364
    %6680 = vmatprep.subr.bf16.mxu0 0
    %6681 = vmatpush1.bf16.msra.mxu0 %v6363
    %6682 = vmatprep.subr.bf16.mxu0 0
    %6683 = vmatpush2.bf16.msra.mxu0 0
    %6684 = vmatprep.subr.bf16.mxu0 0
    %6685 = vmatpush2.bf16.msra.mxu0 0
    %6686 = vmatprep.subr.bf16.mxu0 0
    %6687 = vmatpush2.bf16.msra.mxu0 0
    %6688 = vmatprep.subr.bf16.mxu0 0
    %6689 = vmatpush2.bf16.msra.mxu0 0
    %6690 = vmatprep.subr.bf16.mxu0 0
    %6691 = vmatpush2.bf16.msra.mxu0 0
    %6692 = vmatprep.subr.bf16.mxu0 0
    %6693 = vmatpush2.bf16.msra.mxu0 0
    %6694 = vmatprep.subr.bf16.mxu0 0
    %6695 = vmatpush2.bf16.msra.mxu0 0
    %6696 = vmatprep.subr.bf16.mxu0 0
    %6697 = vmatpush2.bf16.msra.mxu0 0
    %6698 = vmatprep.mubr.bf16.mxu0 0
    %6699 = vmatmul.mubr.bf16.gmra.mxu0 %v6664
    %v6700 = vpop.f32.mrf.mxu0
    %v6701 = vadd.f32 0.0, %v6700
    %v6702 = vpop.f32.mrf.mxu0
    %v6703 = vpop.f32.mrf.mxu0
    %v6704 = vpop.f32.mrf.mxu0
    %6705 = vdwg.mxu0
    %v6706 = vadd.f32 %v6660, %v6701
    %v6707 = vxor.u32 %v6706, 2147483648
    %v6708 = vmul.f32 %v6707, 1.442695
    %v6709 = vpow.pop %v6708
    %v6710 = vadd.f32 %v6709, 1.0
    %v6711 = vrcp.pop %v6710
    %v6712 = vmul.f32 1.0, %v6711
    %v6713 = vtanh.pop %v6706
    %v6714 = vld [vmem:[#allocation6] sm:$0xff]
    %6716 = vrot.lane.b32.xlu0 %v6714, 32
    %v6717 = vpop.permute.xlu0 %6716
    %v6719 = vmul.f32 %v6712, %v6717
    %6721 = vrot.lane.b32.xlu0 %v6713, 64
    %v6722 = vpop.permute.xlu0 %6721
    %v6724 = vmul.f32 %v6712, %v6722
    %6726 = vrot.lane.b32.xlu0 %v6724, 32
    %v6727 = vpop.permute.xlu0 %6726
    %v6729 = vadd.f32 %v6719, %v6727
    %v6730 = vtanh.pop %v6729
    %6732 = vrot.lane.b32.xlu0 %v6730, 64
    %v6733 = vpop.permute.xlu0 %6732
    %v6735 = vmul.f32 %v6712, %v6733
    %6737 = vrot.lane.b32.xlu0 %v6729, 96
    %v6738 = vpop.permute.xlu0 %6737
    %6740 = vst.msk [vmem:[#allocation6] sm:$0xff] %vm2784, %v6738
    %6742 = vrot.lane.b32.xlu0 %v6735, 32
    %v6743 = vpop.permute.xlu0 %6742
    %6745 = vst.msk [vmem:[#allocation5] sm:$0xff] %vm2784, %v6743
    %s6746 = scalar_lea.vmem [#allocation3], %s6653
    %6747 = vst.msk [vmem:[%s6746] sm:$0xff] %vm6451, %v6743
    %s6748 = scalar_lea.vmem [#allocation3], %s6655
    %6749 = vst.msk [vmem:[%s6748] sm:$0xff] %vm6454, %v6743
    %s6750 = sadd.s32 %s6344, 4
    %s6751 = smul.u32 %s6750, 8
    %s6752 = ssub.s32 331, %s6344
    %s6753 = smul.u32 %s6752, 8
    %s6754 = scalar_lea.vmem [#allocation2], %s6751
    %v6755 = vld [vmem:[%s6754] sm:$0xff]
    %s6756 = scalar_lea.vmem [#allocation2], %s6753
    %v6757 = vld [vmem:[%s6756] sm:$0xff]
    %v6758 = vsel %vm56, %v6755, %v6757
    %v6759 = vld [vmem:[#allocation5] sm:$0xff]
    %v6760 = vpack.c.bf16 %v6759, %v6759
    %v6762 = vsel %vm2784, %v6760, 0
    %6764 = vmatprep.subr.bf16.mxu0 0
    %6765 = vmatpush1.bf16.msra.mxu0 0
    %6766 = vmatprep.subr.bf16.mxu0 0
    %6767 = vmatpush1.bf16.msra.mxu0 0
    %6768 = vmatprep.subr.bf16.mxu0 0
    %6769 = vmatpush1.bf16.msra.mxu0 0
    %6770 = vmatprep.subr.bf16.mxu0 0
    %6771 = vmatpush1.bf16.msra.mxu0 0
    %6772 = vmatprep.subr.bf16.mxu0 0
    %6773 = vmatpush1.bf16.msra.mxu0 0
    %6774 = vmatprep.subr.bf16.mxu0 0
    %6775 = vmatpush1.bf16.msra.mxu0 0
    %6776 = vmatprep.subr.bf16.mxu0 0
    %6777 = vmatpush1.bf16.msra.mxu0 %v6364
    %6778 = vmatprep.subr.bf16.mxu0 0
    %6779 = vmatpush1.bf16.msra.mxu0 %v6363
    %6780 = vmatprep.subr.bf16.mxu0 0
    %6781 = vmatpush2.bf16.msra.mxu0 0
    %6782 = vmatprep.subr.bf16.mxu0 0
    %6783 = vmatpush2.bf16.msra.mxu0 0
    %6784 = vmatprep.subr.bf16.mxu0 0
    %6785 = vmatpush2.bf16.msra.mxu0 0
    %6786 = vmatprep.subr.bf16.mxu0 0
    %6787 = vmatpush2.bf16.msra.mxu0 0
    %6788 = vmatprep.subr.bf16.mxu0 0
    %6789 = vmatpush2.bf16.msra.mxu0 0
    %6790 = vmatprep.subr.bf16.mxu0 0
    %6791 = vmatpush2.bf16.msra.mxu0 0
    %6792 = vmatprep.subr.bf16.mxu0 0
    %6793 = vmatpush2.bf16.msra.mxu0 0
    %6794 = vmatprep.subr.bf16.mxu0 0
    %6795 = vmatpush2.bf16.msra.mxu0 0
    %6796 = vmatprep.mubr.bf16.mxu0 0
    %6797 = vmatmul.mubr.bf16.gmra.mxu0 %v6762
    %v6798 = vpop.f32.mrf.mxu0
    %v6799 = vadd.f32 0.0, %v6798
    %v6800 = vpop.f32.mrf.mxu0
    %v6801 = vpop.f32.mrf.mxu0
    %v6802 = vpop.f32.mrf.mxu0
    %6803 = vdwg.mxu0
    %v6804 = vadd.f32 %v6758, %v6799
    %v6805 = vxor.u32 %v6804, 2147483648
    %v6806 = vmul.f32 %v6805, 1.442695
    %v6807 = vpow.pop %v6806
    %v6808 = vadd.f32 %v6807, 1.0
    %v6809 = vrcp.pop %v6808
    %v6810 = vmul.f32 1.0, %v6809
    %v6811 = vtanh.pop %v6804
    %v6812 = vld [vmem:[#allocation6] sm:$0xff]
    %6814 = vrot.lane.b32.xlu0 %v6812, 32
    %v6815 = vpop.permute.xlu0 %6814
    %v6817 = vmul.f32 %v6810, %v6815
    %6819 = vrot.lane.b32.xlu0 %v6811, 64
    %v6820 = vpop.permute.xlu0 %6819
    %v6822 = vmul.f32 %v6810, %v6820
    %6824 = vrot.lane.b32.xlu0 %v6822, 32
    %v6825 = vpop.permute.xlu0 %6824
    %v6827 = vadd.f32 %v6817, %v6825
    %v6828 = vtanh.pop %v6827
    %6830 = vrot.lane.b32.xlu0 %v6828, 64
    %v6831 = vpop.permute.xlu0 %6830
    %v6833 = vmul.f32 %v6810, %v6831
    %6835 = vrot.lane.b32.xlu0 %v6827, 96
    %v6836 = vpop.permute.xlu0 %6835
    %6838 = vst.msk [vmem:[#allocation6] sm:$0xff] %vm2784, %v6836
    %6840 = vrot.lane.b32.xlu0 %v6833, 32
    %v6841 = vpop.permute.xlu0 %6840
    %6843 = vst.msk [vmem:[#allocation5] sm:$0xff] %vm2784, %v6841
    %s6844 = scalar_lea.vmem [#allocation3], %s6751
    %6845 = vst.msk [vmem:[%s6844] sm:$0xff] %vm6451, %v6841
    %s6846 = scalar_lea.vmem [#allocation3], %s6753
    %6847 = vst.msk [vmem:[%s6846] sm:$0xff] %vm6454, %v6841
    %s6848 = sadd.s32 %s6344, 5
    %s6849 = smul.u32 %s6848, 8
    %s6850 = ssub.s32 330, %s6344
    %s6851 = smul.u32 %s6850, 8
    %s6852 = scalar_lea.vmem [#allocation2], %s6849
    %v6853 = vld [vmem:[%s6852] sm:$0xff]
    %s6854 = scalar_lea.vmem [#allocation2], %s6851
    %v6855 = vld [vmem:[%s6854] sm:$0xff]
    %v6856 = vsel %vm56, %v6853, %v6855
    %v6857 = vld [vmem:[#allocation5] sm:$0xff]
    %v6858 = vpack.c.bf16 %v6857, %v6857
    %v6860 = vsel %vm2784, %v6858, 0
    %6862 = vmatprep.subr.bf16.mxu0 0
    %6863 = vmatpush1.bf16.msra.mxu0 0
    %6864 = vmatprep.subr.bf16.mxu0 0
    %6865 = vmatpush1.bf16.msra.mxu0 0
    %6866 = vmatprep.subr.bf16.mxu0 0
    %6867 = vmatpush1.bf16.msra.mxu0 0
    %6868 = vmatprep.subr.bf16.mxu0 0
    %6869 = vmatpush1.bf16.msra.mxu0 0
    %6870 = vmatprep.subr.bf16.mxu0 0
    %6871 = vmatpush1.bf16.msra.mxu0 0
    %6872 = vmatprep.subr.bf16.mxu0 0
    %6873 = vmatpush1.bf16.msra.mxu0 0
    %6874 = vmatprep.subr.bf16.mxu0 0
    %6875 = vmatpush1.bf16.msra.mxu0 %v6364
    %6876 = vmatprep.subr.bf16.mxu0 0
    %6877 = vmatpush1.bf16.msra.mxu0 %v6363
    %6878 = vmatprep.subr.bf16.mxu0 0
    %6879 = vmatpush2.bf16.msra.mxu0 0
    %6880 = vmatprep.subr.bf16.mxu0 0
    %6881 = vmatpush2.bf16.msra.mxu0 0
    %6882 = vmatprep.subr.bf16.mxu0 0
    %6883 = vmatpush2.bf16.msra.mxu0 0
    %6884 = vmatprep.subr.bf16.mxu0 0
    %6885 = vmatpush2.bf16.msra.mxu0 0
    %6886 = vmatprep.subr.bf16.mxu0 0
    %6887 = vmatpush2.bf16.msra.mxu0 0
    %6888 = vmatprep.subr.bf16.mxu0 0
    %6889 = vmatpush2.bf16.msra.mxu0 0
    %6890 = vmatprep.subr.bf16.mxu0 0
    %6891 = vmatpush2.bf16.msra.mxu0 0
    %6892 = vmatprep.subr.bf16.mxu0 0
    %6893 = vmatpush2.bf16.msra.mxu0 0
    %6894 = vmatprep.mubr.bf16.mxu0 0
    %6895 = vmatmul.mubr.bf16.gmra.mxu0 %v6860
    %v6896 = vpop.f32.mrf.mxu0
    %v6897 = vadd.f32 0.0, %v6896
    %v6898 = vpop.f32.mrf.mxu0
    %v6899 = vpop.f32.mrf.mxu0
    %v6900 = vpop.f32.mrf.mxu0
    %6901 = vdwg.mxu0
    %v6902 = vadd.f32 %v6856, %v6897
    %v6903 = vxor.u32 %v6902, 2147483648
    %v6904 = vmul.f32 %v6903, 1.442695
    %v6905 = vpow.pop %v6904
    %v6906 = vadd.f32 %v6905, 1.0
    %v6907 = vrcp.pop %v6906
    %v6908 = vmul.f32 1.0, %v6907
    %v6909 = vtanh.pop %v6902
    %v6910 = vld [vmem:[#allocation6] sm:$0xff]
    %6912 = vrot.lane.b32.xlu0 %v6910, 32
    %v6913 = vpop.permute.xlu0 %6912
    %v6915 = vmul.f32 %v6908, %v6913
    %6917 = vrot.lane.b32.xlu0 %v6909, 64
    %v6918 = vpop.permute.xlu0 %6917
    %v6920 = vmul.f32 %v6908, %v6918
    %6922 = vrot.lane.b32.xlu0 %v6920, 32
    %v6923 = vpop.permute.xlu0 %6922
    %v6925 = vadd.f32 %v6915, %v6923
    %v6926 = vtanh.pop %v6925
    %6928 = vrot.lane.b32.xlu0 %v6926, 64
    %v6929 = vpop.permute.xlu0 %6928
    %v6931 = vmul.f32 %v6908, %v6929
    %6933 = vrot.lane.b32.xlu0 %v6925, 96
    %v6934 = vpop.permute.xlu0 %6933
    %6936 = vst.msk [vmem:[#allocation6] sm:$0xff] %vm2784, %v6934
    %6938 = vrot.lane.b32.xlu0 %v6931, 32
    %v6939 = vpop.permute.xlu0 %6938
    %6941 = vst.msk [vmem:[#allocation5] sm:$0xff] %vm2784, %v6939
    %s6942 = scalar_lea.vmem [#allocation3], %s6849
    %6943 = vst.msk [vmem:[%s6942] sm:$0xff] %vm6451, %v6939
    %s6944 = scalar_lea.vmem [#allocation3], %s6851
    %6945 = vst.msk [vmem:[%s6944] sm:$0xff] %vm6454, %v6939
    %s6946 = sadd.s32 %s6344, 6
    %s6947 = smul.u32 %s6946, 8
    %s6948 = ssub.s32 329, %s6344
    %s6949 = smul.u32 %s6948, 8
    %s6950 = scalar_lea.vmem [#allocation2], %s6947
    %v6951 = vld [vmem:[%s6950] sm:$0xff]
    %s6952 = scalar_lea.vmem [#allocation2], %s6949
    %v6953 = vld [vmem:[%s6952] sm:$0xff]
    %v6954 = vsel %vm56, %v6951, %v6953
    %v6955 = vld [vmem:[#allocation5] sm:$0xff]
    %v6956 = vpack.c.bf16 %v6955, %v6955
    %v6958 = vsel %vm2784, %v6956, 0
    %6960 = vmatprep.subr.bf16.mxu0 0
    %6961 = vmatpush1.bf16.msra.mxu0 0
    %6962 = vmatprep.subr.bf16.mxu0 0
    %6963 = vmatpush1.bf16.msra.mxu0 0
    %6964 = vmatprep.subr.bf16.mxu0 0
    %6965 = vmatpush1.bf16.msra.mxu0 0
    %6966 = vmatprep.subr.bf16.mxu0 0
    %6967 = vmatpush1.bf16.msra.mxu0 0
    %6968 = vmatprep.subr.bf16.mxu0 0
    %6969 = vmatpush1.bf16.msra.mxu0 0
    %6970 = vmatprep.subr.bf16.mxu0 0
    %6971 = vmatpush1.bf16.msra.mxu0 0
    %6972 = vmatprep.subr.bf16.mxu0 0
    %6973 = vmatpush1.bf16.msra.mxu0 %v6364
    %6974 = vmatprep.subr.bf16.mxu0 0
    %6975 = vmatpush1.bf16.msra.mxu0 %v6363
    %6976 = vmatprep.subr.bf16.mxu0 0
    %6977 = vmatpush2.bf16.msra.mxu0 0
    %6978 = vmatprep.subr.bf16.mxu0 0
    %6979 = vmatpush2.bf16.msra.mxu0 0
    %6980 = vmatprep.subr.bf16.mxu0 0
    %6981 = vmatpush2.bf16.msra.mxu0 0
    %6982 = vmatprep.subr.bf16.mxu0 0
    %6983 = vmatpush2.bf16.msra.mxu0 0
    %6984 = vmatprep.subr.bf16.mxu0 0
    %6985 = vmatpush2.bf16.msra.mxu0 0
    %6986 = vmatprep.subr.bf16.mxu0 0
    %6987 = vmatpush2.bf16.msra.mxu0 0
    %6988 = vmatprep.subr.bf16.mxu0 0
    %6989 = vmatpush2.bf16.msra.mxu0 0
    %6990 = vmatprep.subr.bf16.mxu0 0
    %6991 = vmatpush2.bf16.msra.mxu0 0
    %6992 = vmatprep.mubr.bf16.mxu0 0
    %6993 = vmatmul.mubr.bf16.gmra.mxu0 %v6958
    %v6994 = vpop.f32.mrf.mxu0
    %v6995 = vadd.f32 0.0, %v6994
    %v6996 = vpop.f32.mrf.mxu0
    %v6997 = vpop.f32.mrf.mxu0
    %v6998 = vpop.f32.mrf.mxu0
    %6999 = vdwg.mxu0
    %v7000 = vadd.f32 %v6954, %v6995
    %v7001 = vxor.u32 %v7000, 2147483648
    %v7002 = vmul.f32 %v7001, 1.442695
    %v7003 = vpow.pop %v7002
    %v7004 = vadd.f32 %v7003, 1.0
    %v7005 = vrcp.pop %v7004
    %v7006 = vmul.f32 1.0, %v7005
    %v7007 = vtanh.pop %v7000
    %v7008 = vld [vmem:[#allocation6] sm:$0xff]
    %7010 = vrot.lane.b32.xlu0 %v7008, 32
    %v7011 = vpop.permute.xlu0 %7010
    %v7013 = vmul.f32 %v7006, %v7011
    %7015 = vrot.lane.b32.xlu0 %v7007, 64
    %v7016 = vpop.permute.xlu0 %7015
    %v7018 = vmul.f32 %v7006, %v7016
    %7020 = vrot.lane.b32.xlu0 %v7018, 32
    %v7021 = vpop.permute.xlu0 %7020
    %v7023 = vadd.f32 %v7013, %v7021
    %v7024 = vtanh.pop %v7023
    %7026 = vrot.lane.b32.xlu0 %v7024, 64
    %v7027 = vpop.permute.xlu0 %7026
    %v7029 = vmul.f32 %v7006, %v7027
    %7031 = vrot.lane.b32.xlu0 %v7023, 96
    %v7032 = vpop.permute.xlu0 %7031
    %7034 = vst.msk [vmem:[#allocation6] sm:$0xff] %vm2784, %v7032
    %7036 = vrot.lane.b32.xlu0 %v7029, 32
    %v7037 = vpop.permute.xlu0 %7036
    %7039 = vst.msk [vmem:[#allocation5] sm:$0xff] %vm2784, %v7037
    %s7040 = scalar_lea.vmem [#allocation3], %s6947
    %7041 = vst.msk [vmem:[%s7040] sm:$0xff] %vm6451, %v7037
    %s7042 = scalar_lea.vmem [#allocation3], %s6949
    %7043 = vst.msk [vmem:[%s7042] sm:$0xff] %vm6454, %v7037
    %s7044 = sadd.s32 %s6344, 7
    %s7045 = smul.u32 %s7044, 8
    %s7046 = ssub.s32 328, %s6344
    %s7047 = smul.u32 %s7046, 8
    %s7048 = scalar_lea.vmem [#allocation2], %s7045
    %v7049 = vld [vmem:[%s7048] sm:$0xff]
    %s7050 = scalar_lea.vmem [#allocation2], %s7047
    %v7051 = vld [vmem:[%s7050] sm:$0xff]
    %v7052 = vsel %vm56, %v7049, %v7051
    %v7053 = vld [vmem:[#allocation5] sm:$0xff]
    %v7054 = vpack.c.bf16 %v7053, %v7053
    %v7056 = vsel %vm2784, %v7054, 0
    %7058 = vmatprep.subr.bf16.mxu0 0
    %7059 = vmatpush1.bf16.msra.mxu0 0
    %7060 = vmatprep.subr.bf16.mxu0 0
    %7061 = vmatpush1.bf16.msra.mxu0 0
    %7062 = vmatprep.subr.bf16.mxu0 0
    %7063 = vmatpush1.bf16.msra.mxu0 0
    %7064 = vmatprep.subr.bf16.mxu0 0
    %7065 = vmatpush1.bf16.msra.mxu0 0
    %7066 = vmatprep.subr.bf16.mxu0 0
    %7067 = vmatpush1.bf16.msra.mxu0 0
    %7068 = vmatprep.subr.bf16.mxu0 0
    %7069 = vmatpush1.bf16.msra.mxu0 0
    %7070 = vmatprep.subr.bf16.mxu0 0
    %7071 = vmatpush1.bf16.msra.mxu0 %v6364
    %7072 = vmatprep.subr.bf16.mxu0 0
    %7073 = vmatpush1.bf16.msra.mxu0 %v6363
    %7074 = vmatprep.subr.bf16.mxu0 0
    %7075 = vmatpush2.bf16.msra.mxu0 0
    %7076 = vmatprep.subr.bf16.mxu0 0
    %7077 = vmatpush2.bf16.msra.mxu0 0
    %7078 = vmatprep.subr.bf16.mxu0 0
    %7079 = vmatpush2.bf16.msra.mxu0 0
    %7080 = vmatprep.subr.bf16.mxu0 0
    %7081 = vmatpush2.bf16.msra.mxu0 0
    %7082 = vmatprep.subr.bf16.mxu0 0
    %7083 = vmatpush2.bf16.msra.mxu0 0
    %7084 = vmatprep.subr.bf16.mxu0 0
    %7085 = vmatpush2.bf16.msra.mxu0 0
    %7086 = vmatprep.subr.bf16.mxu0 0
    %7087 = vmatpush2.bf16.msra.mxu0 0
    %7088 = vmatprep.subr.bf16.mxu0 0
    %7089 = vmatpush2.bf16.msra.mxu0 0
    %7090 = vmatprep.mubr.bf16.mxu0 0
    %7091 = vmatmul.mubr.bf16.gmra.mxu0 %v7056
    %v7092 = vpop.f32.mrf.mxu0
    %v7093 = vadd.f32 0.0, %v7092
    %v7094 = vpop.f32.mrf.mxu0
    %v7095 = vpop.f32.mrf.mxu0
    %v7096 = vpop.f32.mrf.mxu0
    %7097 = vdwg.mxu0
    %v7098 = vadd.f32 %v7052, %v7093
    %v7099 = vxor.u32 %v7098, 2147483648
    %v7100 = vmul.f32 %v7099, 1.442695
    %v7101 = vpow.pop %v7100
    %v7102 = vadd.f32 %v7101, 1.0
    %v7103 = vrcp.pop %v7102
    %v7104 = vmul.f32 1.0, %v7103
    %v7105 = vtanh.pop %v7098
    %v7106 = vld [vmem:[#allocation6] sm:$0xff]
    %7108 = vrot.lane.b32.xlu0 %v7106, 32
    %v7109 = vpop.permute.xlu0 %7108
    %v7111 = vmul.f32 %v7104, %v7109
    %7113 = vrot.lane.b32.xlu0 %v7105, 64
    %v7114 = vpop.permute.xlu0 %7113
    %v7116 = vmul.f32 %v7104, %v7114
    %7118 = vrot.lane.b32.xlu0 %v7116, 32
    %v7119 = vpop.permute.xlu0 %7118
    %v7121 = vadd.f32 %v7111, %v7119
    %v7122 = vtanh.pop %v7121
    %7124 = vrot.lane.b32.xlu0 %v7122, 64
    %v7125 = vpop.permute.xlu0 %7124
    %v7127 = vmul.f32 %v7104, %v7125
    %7129 = vrot.lane.b32.xlu0 %v7121, 96
    %v7130 = vpop.permute.xlu0 %7129
    %7132 = vst.msk [vmem:[#allocation6] sm:$0xff] %vm2784, %v7130
    %7134 = vrot.lane.b32.xlu0 %v7127, 32
    %v7135 = vpop.permute.xlu0 %7134
    %7137 = vst.msk [vmem:[#allocation5] sm:$0xff] %vm2784, %v7135
    %s7138 = scalar_lea.vmem [#allocation3], %s7045
    %7139 = vst.msk [vmem:[%s7138] sm:$0xff] %vm6451, %v7135
    %s7140 = scalar_lea.vmem [#allocation3], %s7047
    %7141 = vst.msk [vmem:[%s7140] sm:$0xff] %vm6454, %v7135
  $region61: #{bilstm2_forward.1} parent=0 // loop_footer
    %s6343 = sadd.s32 1, %s6339
  $region62: #{bilstm2_forward.1} parent=0 // loop_footer_branch
    %6338 = sbr.rel target = $region58
  $region63: #{bilstm2_forward.1} parent=0 // loop_exit
    _
  %v7142 = vld [vmem:[#allocation3] sm:$0xff]
  %7143 = vst.msk [vmem:[#allocation4] sm:$0xff] %vm2784, %v7142
  %v7144 = vld [vmem:[#allocation3 + $0x180] sm:$0xff]
  %7145 = vst.msk [vmem:[#allocation4 + $0x8] sm:$0xff] %vm2784, %v7144
  %v7146 = vld [vmem:[#allocation3 + $0x300] sm:$0xff]
  %7147 = vst.msk [vmem:[#allocation4 + $0x10] sm:$0xff] %vm2784, %v7146
  %v7148 = vld [vmem:[#allocation3 + $0x480] sm:$0xff]
  %7149 = vst.msk [vmem:[#allocation4 + $0x18] sm:$0xff] %vm2784, %v7148
  %v7150 = vld [vmem:[#allocation3 + $0x600] sm:$0xff]
  %7151 = vst.msk [vmem:[#allocation4 + $0x20] sm:$0xff] %vm2784, %v7150
  %v7152 = vld [vmem:[#allocation3 + $0x780] sm:$0xff]
  %7153 = vst.msk [vmem:[#allocation4 + $0x28] sm:$0xff] %vm2784, %v7152
  %v7154 = vld [vmem:[#allocation3 + $0x900] sm:$0xff]
  %7155 = vst.msk [vmem:[#allocation4 + $0x30] sm:$0xff] %vm2784, %v7154
  %v7156 = vld [vmem:[#allocation4] sm:$0xff]
  %v7157 = vld [vmem:[#allocation4 + $0x8] sm:$0xff]
  %v7158 = vld [vmem:[#allocation4 + $0x10] sm:$0xff]
  %v7159 = vld [vmem:[#allocation4 + $0x18] sm:$0xff]
  %v7160 = vld [vmem:[#allocation4 + $0x20] sm:$0xff]
  %v7161 = vld [vmem:[#allocation4 + $0x28] sm:$0xff]
  %v7162 = vld [vmem:[#allocation4 + $0x30] sm:$0xff]
  %v7163 = vld [vmem:[%s5] sm:$0xff]
  %v7164 = vld [vmem:[%s5 + $0x8] sm:$0xff]
  %v7165 = vld [vmem:[%s5 + $0x10] sm:$0xff]
  %v7166 = vld [vmem:[%s5 + $0x18] sm:$0xff]
  %v7167 = vld [vmem:[%s6] sm:$0x1]
  %v7169 = vlaneseq
  %v7170 = vshrl.u32 %v7169, 7
  %v7171 = vsub.s32 0, %v7170
  %v7172 = vrot.slane %v7167, %v7171
  %v7175 = vsel %vm2784, %v7156, 0
  %v7178 = vsel %vm2784, %v7157, 0
  %v7181 = vsel %vm2784, %v7158, 0
  %v7184 = vsel %vm2784, %v7159, 0
  %v7187 = vsel %vm2784, %v7160, 0
  %v7190 = vsel %vm2784, %v7161, 0
  %v7193 = vsel %vm2784, %v7162, 0
  %7195 = vmatprep.subr.mxu0 0.0
  %7196 = vmatpush1.msra.mxu0 0.0
  %7197 = vmatprep.subr.mxu0 0.0
  %7198 = vmatpush1.msra.mxu0 0.0
  %7199 = vmatprep.subr.mxu0 0.0
  %7200 = vmatpush1.msra.mxu0 0.0
  %7201 = vmatprep.subr.mxu0 0.0
  %7202 = vmatpush1.msra.mxu0 0.0
  %7203 = vmatprep.subr.mxu0 0.0
  %7204 = vmatpush1.msra.mxu0 0.0
  %7205 = vmatprep.subr.mxu0 0.0
  %7206 = vmatpush1.msra.mxu0 0.0
  %7207 = vmatprep.subr.mxu0 0.0
  %7208 = vmatpush1.msra.mxu0 0.0
  %7209 = vmatprep.subr.mxu0 0.0
  %7210 = vmatpush1.msra.mxu0 0.0
  %7211 = vmatprep.subr.mxu0 0.0
  %7212 = vmatpush1.msra.mxu0 0.0
  %7213 = vmatprep.subr.mxu0 0.0
  %7214 = vmatpush1.msra.mxu0 0.0
  %7215 = vmatprep.subr.mxu0 0.0
  %7216 = vmatpush1.msra.mxu0 0.0
  %7217 = vmatprep.subr.mxu0 0.0
  %7218 = vmatpush1.msra.mxu0 0.0
  %7219 = vmatprep.subr.mxu0 0.0
  %7220 = vmatpush1.msra.mxu0 %v7166
  %7221 = vmatprep.subr.mxu0 0.0
  %7222 = vmatpush1.msra.mxu0 %v7165
  %7223 = vmatprep.subr.mxu0 0.0
  %7224 = vmatpush1.msra.mxu0 %v7164
  %7225 = vmatprep.subr.mxu0 0.0
  %7226 = vmatpush1.msra.mxu0 %v7163
  %7227 = vmatprep.subr.mxu0 0.0
  %7228 = vmatpush2.msra.mxu0 0.0
  %7229 = vmatprep.subr.mxu0 0.0
  %7230 = vmatpush2.msra.mxu0 0.0
  %7231 = vmatprep.subr.mxu0 0.0
  %7232 = vmatpush2.msra.mxu0 0.0
  %7233 = vmatprep.subr.mxu0 0.0
  %7234 = vmatpush2.msra.mxu0 0.0
  %7235 = vmatprep.subr.mxu0 0.0
  %7236 = vmatpush2.msra.mxu0 0.0
  %7237 = vmatprep.subr.mxu0 0.0
  %7238 = vmatpush2.msra.mxu0 0.0
  %7239 = vmatprep.subr.mxu0 0.0
  %7240 = vmatpush2.msra.mxu0 0.0
  %7241 = vmatprep.subr.mxu0 0.0
  %7242 = vmatpush2.msra.mxu0 0.0
  %7243 = vmatprep.subr.mxu0 0.0
  %7244 = vmatpush2.msra.mxu0 0.0
  %7245 = vmatprep.subr.mxu0 0.0
  %7246 = vmatpush2.msra.mxu0 0.0
  %7247 = vmatprep.subr.mxu0 0.0
  %7248 = vmatpush2.msra.mxu0 0.0
  %7249 = vmatprep.subr.mxu0 0.0
  %7250 = vmatpush2.msra.mxu0 0.0
  %7251 = vmatprep.subr.mxu0 0.0
  %7252 = vmatpush2.msra.mxu0 0.0
  %7253 = vmatprep.subr.mxu0 0.0
  %7254 = vmatpush2.msra.mxu0 0.0
  %7255 = vmatprep.subr.mxu0 0.0
  %7256 = vmatpush2.msra.mxu0 0.0
  %7257 = vmatprep.subr.mxu0 0.0
  %7258 = vmatpush2.msra.mxu0 0.0
  %7259 = vmatprep.mubr.f32.mxu0 0.0
  %7260 = vmatmul.mubr.f32.gmra.mxu0 %v7175
  %v7261 = vpop.f32.mrf.mxu0
  %v7262 = vadd.f32 %v7172, %v7261
  %v7263 = vpop.f32.mrf.mxu0
  %7264 = vmatprep.mubr.f32.mxu0 0.0
  %7265 = vmatmul.mubr.f32.gmra.mxu0 %v7178
  %v7266 = vpop.f32.mrf.mxu0
  %v7267 = vadd.f32 %v7172, %v7266
  %v7268 = vpop.f32.mrf.mxu0
  %7269 = vmatprep.mubr.f32.mxu0 0.0
  %7270 = vmatmul.mubr.f32.gmra.mxu0 %v7181
  %v7271 = vpop.f32.mrf.mxu0
  %v7272 = vadd.f32 %v7172, %v7271
  %v7273 = vpop.f32.mrf.mxu0
  %7274 = vmatprep.mubr.f32.mxu0 0.0
  %7275 = vmatmul.mubr.f32.gmra.mxu0 %v7184
  %v7276 = vpop.f32.mrf.mxu0
  %v7277 = vadd.f32 %v7172, %v7276
  %v7278 = vpop.f32.mrf.mxu0
  %7279 = vmatprep.mubr.f32.mxu0 0.0
  %7280 = vmatmul.mubr.f32.gmra.mxu0 %v7187
  %v7281 = vpop.f32.mrf.mxu0
  %v7282 = vadd.f32 %v7172, %v7281
  %v7283 = vpop.f32.mrf.mxu0
  %7284 = vmatprep.mubr.f32.mxu0 0.0
  %7285 = vmatmul.mubr.f32.gmra.mxu0 %v7190
  %v7286 = vpop.f32.mrf.mxu0
  %v7287 = vadd.f32 %v7172, %v7286
  %v7288 = vpop.f32.mrf.mxu0
  %7289 = vmatprep.mubr.f32.mxu0 0.0
  %7290 = vmatmul.mubr.f32.gmra.mxu0 %v7193
  %v7291 = vpop.f32.mrf.mxu0
  %v7292 = vadd.f32 %v7172, %v7291
  %v7293 = vpop.f32.mrf.mxu0
  %7294 = vdwg.mxu0
  %v7295 = vld [vmem:[%s7] sm:$0xff]
  %v7296 = vld [vmem:[%s7 + $0x8] sm:$0xff]
  %v7297 = vld [vmem:[%s7 + $0x10] sm:$0xff]
  %v7298 = vld [vmem:[%s7 + $0x18] sm:$0xff]
  %v7299 = vld [vmem:[%s8] sm:$0x1]
  %v7301 = vlaneseq
  %v7302 = vshrl.u32 %v7301, 7
  %v7303 = vsub.s32 0, %v7302
  %v7304 = vrot.slane %v7299, %v7303
  %v7307 = vsel %vm2784, %v7262, 0
  %v7310 = vsel %vm2784, %v7267, 0
  %v7313 = vsel %vm2784, %v7272, 0
  %v7316 = vsel %vm2784, %v7277, 0
  %v7319 = vsel %vm2784, %v7282, 0
  %v7322 = vsel %vm2784, %v7287, 0
  %v7325 = vsel %vm2784, %v7292, 0
  %7327 = vmatprep.subr.mxu0 0.0
  %7328 = vmatpush1.msra.mxu0 0.0
  %7329 = vmatprep.subr.mxu0 0.0
  %7330 = vmatpush1.msra.mxu0 0.0
  %7331 = vmatprep.subr.mxu0 0.0
  %7332 = vmatpush1.msra.mxu0 0.0
  %7333 = vmatprep.subr.mxu0 0.0
  %7334 = vmatpush1.msra.mxu0 0.0
  %7335 = vmatprep.subr.mxu0 0.0
  %7336 = vmatpush1.msra.mxu0 0.0
  %7337 = vmatprep.subr.mxu0 0.0
  %7338 = vmatpush1.msra.mxu0 0.0
  %7339 = vmatprep.subr.mxu0 0.0
  %7340 = vmatpush1.msra.mxu0 0.0
  %7341 = vmatprep.subr.mxu0 0.0
  %7342 = vmatpush1.msra.mxu0 0.0
  %7343 = vmatprep.subr.mxu0 0.0
  %7344 = vmatpush1.msra.mxu0 0.0
  %7345 = vmatprep.subr.mxu0 0.0
  %7346 = vmatpush1.msra.mxu0 0.0
  %7347 = vmatprep.subr.mxu0 0.0
  %7348 = vmatpush1.msra.mxu0 0.0
  %7349 = vmatprep.subr.mxu0 0.0
  %7350 = vmatpush1.msra.mxu0 0.0
  %7351 = vmatprep.subr.mxu0 0.0
  %7352 = vmatpush1.msra.mxu0 %v7298
  %7353 = vmatprep.subr.mxu0 0.0
  %7354 = vmatpush1.msra.mxu0 %v7297
  %7355 = vmatprep.subr.mxu0 0.0
  %7356 = vmatpush1.msra.mxu0 %v7296
  %7357 = vmatprep.subr.mxu0 0.0
  %7358 = vmatpush1.msra.mxu0 %v7295
  %7359 = vmatprep.subr.mxu0 0.0
  %7360 = vmatpush2.msra.mxu0 0.0
  %7361 = vmatprep.subr.mxu0 0.0
  %7362 = vmatpush2.msra.mxu0 0.0
  %7363 = vmatprep.subr.mxu0 0.0
  %7364 = vmatpush2.msra.mxu0 0.0
  %7365 = vmatprep.subr.mxu0 0.0
  %7366 = vmatpush2.msra.mxu0 0.0
  %7367 = vmatprep.subr.mxu0 0.0
  %7368 = vmatpush2.msra.mxu0 0.0
  %7369 = vmatprep.subr.mxu0 0.0
  %7370 = vmatpush2.msra.mxu0 0.0
  %7371 = vmatprep.subr.mxu0 0.0
  %7372 = vmatpush2.msra.mxu0 0.0
  %7373 = vmatprep.subr.mxu0 0.0
  %7374 = vmatpush2.msra.mxu0 0.0
  %7375 = vmatprep.subr.mxu0 0.0
  %7376 = vmatpush2.msra.mxu0 0.0
  %7377 = vmatprep.subr.mxu0 0.0
  %7378 = vmatpush2.msra.mxu0 0.0
  %7379 = vmatprep.subr.mxu0 0.0
  %7380 = vmatpush2.msra.mxu0 0.0
  %7381 = vmatprep.subr.mxu0 0.0
  %7382 = vmatpush2.msra.mxu0 0.0
  %7383 = vmatprep.subr.mxu0 0.0
  %7384 = vmatpush2.msra.mxu0 0.0
  %7385 = vmatprep.subr.mxu0 0.0
  %7386 = vmatpush2.msra.mxu0 0.0
  %7387 = vmatprep.subr.mxu0 0.0
  %7388 = vmatpush2.msra.mxu0 0.0
  %7389 = vmatprep.subr.mxu0 0.0
  %7390 = vmatpush2.msra.mxu0 0.0
  %7391 = vmatprep.mubr.f32.mxu0 0.0
  %7392 = vmatmul.mubr.f32.gmra.mxu0 %v7307
  %v7393 = vpop.f32.mrf.mxu0
  %v7394 = vadd.f32 %v7304, %v7393
  %v7395 = vpop.f32.mrf.mxu0
  %7396 = vmatprep.mubr.f32.mxu0 0.0
  %7397 = vmatmul.mubr.f32.gmra.mxu0 %v7310
  %v7398 = vpop.f32.mrf.mxu0
  %v7399 = vadd.f32 %v7304, %v7398
  %v7400 = vpop.f32.mrf.mxu0
  %7401 = vmatprep.mubr.f32.mxu0 0.0
  %7402 = vmatmul.mubr.f32.gmra.mxu0 %v7313
  %v7403 = vpop.f32.mrf.mxu0
  %v7404 = vadd.f32 %v7304, %v7403
  %v7405 = vpop.f32.mrf.mxu0
  %7406 = vmatprep.mubr.f32.mxu0 0.0
  %7407 = vmatmul.mubr.f32.gmra.mxu0 %v7316
  %v7408 = vpop.f32.mrf.mxu0
  %v7409 = vadd.f32 %v7304, %v7408
  %v7410 = vpop.f32.mrf.mxu0
  %7411 = vmatprep.mubr.f32.mxu0 0.0
  %7412 = vmatmul.mubr.f32.gmra.mxu0 %v7319
  %v7413 = vpop.f32.mrf.mxu0
  %v7414 = vadd.f32 %v7304, %v7413
  %v7415 = vpop.f32.mrf.mxu0
  %7416 = vmatprep.mubr.f32.mxu0 0.0
  %7417 = vmatmul.mubr.f32.gmra.mxu0 %v7322
  %v7418 = vpop.f32.mrf.mxu0
  %v7419 = vadd.f32 %v7304, %v7418
  %v7420 = vpop.f32.mrf.mxu0
  %7421 = vmatprep.mubr.f32.mxu0 0.0
  %7422 = vmatmul.mubr.f32.gmra.mxu0 %v7325
  %v7423 = vpop.f32.mrf.mxu0
  %v7424 = vadd.f32 %v7304, %v7423
  %v7425 = vpop.f32.mrf.mxu0
  %7426 = vdwg.mxu0
  %v7427 = vld [vmem:[%s9] sm:$0xff]
  %v7428 = vld [vmem:[%s9 + $0x8] sm:$0xff]
  %v7429 = vld [vmem:[%s10] sm:$0x1]
  %v7431 = vlaneseq
  %v7432 = vshrl.u32 %v7431, 7
  %v7433 = vsub.s32 0, %v7432
  %v7434 = vrot.slane %v7429, %v7433
  %vm7436 = vcmask 130048
  %v7438 = vsel %vm7436, %v7394, 0
  %v7441 = vsel %vm7436, %v7399, 0
  %v7444 = vsel %vm7436, %v7404, 0
  %v7447 = vsel %vm7436, %v7409, 0
  %v7450 = vsel %vm7436, %v7414, 0
  %v7453 = vsel %vm7436, %v7419, 0
  %v7456 = vsel %vm7436, %v7424, 0
  %7458 = vmatprep.subr.mxu0 0.0
  %7459 = vmatpush1.msra.mxu0 0.0
  %7460 = vmatprep.subr.mxu0 0.0
  %7461 = vmatpush1.msra.mxu0 0.0
  %7462 = vmatprep.subr.mxu0 0.0
  %7463 = vmatpush1.msra.mxu0 0.0
  %7464 = vmatprep.subr.mxu0 0.0
  %7465 = vmatpush1.msra.mxu0 0.0
  %7466 = vmatprep.subr.mxu0 0.0
  %7467 = vmatpush1.msra.mxu0 0.0
  %7468 = vmatprep.subr.mxu0 0.0
  %7469 = vmatpush1.msra.mxu0 0.0
  %7470 = vmatprep.subr.mxu0 0.0
  %7471 = vmatpush1.msra.mxu0 0.0
  %7472 = vmatprep.subr.mxu0 0.0
  %7473 = vmatpush1.msra.mxu0 0.0
  %7474 = vmatprep.subr.mxu0 0.0
  %7475 = vmatpush1.msra.mxu0 0.0
  %7476 = vmatprep.subr.mxu0 0.0
  %7477 = vmatpush1.msra.mxu0 0.0
  %7478 = vmatprep.subr.mxu0 0.0
  %7479 = vmatpush1.msra.mxu0 0.0
  %7480 = vmatprep.subr.mxu0 0.0
  %7481 = vmatpush1.msra.mxu0 0.0
  %7482 = vmatprep.subr.mxu0 0.0
  %7483 = vmatpush1.msra.mxu0 0.0
  %7484 = vmatprep.subr.mxu0 0.0
  %7485 = vmatpush1.msra.mxu0 0.0
  %7486 = vmatprep.subr.mxu0 0.0
  %7487 = vmatpush1.msra.mxu0 %v7428
  %7488 = vmatprep.subr.mxu0 0.0
  %7489 = vmatpush1.msra.mxu0 %v7427
  %7490 = vmatprep.subr.mxu0 0.0
  %7491 = vmatpush2.msra.mxu0 0.0
  %7492 = vmatprep.subr.mxu0 0.0
  %7493 = vmatpush2.msra.mxu0 0.0
  %7494 = vmatprep.subr.mxu0 0.0
  %7495 = vmatpush2.msra.mxu0 0.0
  %7496 = vmatprep.subr.mxu0 0.0
  %7497 = vmatpush2.msra.mxu0 0.0
  %7498 = vmatprep.subr.mxu0 0.0
  %7499 = vmatpush2.msra.mxu0 0.0
  %7500 = vmatprep.subr.mxu0 0.0
  %7501 = vmatpush2.msra.mxu0 0.0
  %7502 = vmatprep.subr.mxu0 0.0
  %7503 = vmatpush2.msra.mxu0 0.0
  %7504 = vmatprep.subr.mxu0 0.0
  %7505 = vmatpush2.msra.mxu0 0.0
  %7506 = vmatprep.subr.mxu0 0.0
  %7507 = vmatpush2.msra.mxu0 0.0
  %7508 = vmatprep.subr.mxu0 0.0
  %7509 = vmatpush2.msra.mxu0 0.0
  %7510 = vmatprep.subr.mxu0 0.0
  %7511 = vmatpush2.msra.mxu0 0.0
  %7512 = vmatprep.subr.mxu0 0.0
  %7513 = vmatpush2.msra.mxu0 0.0
  %7514 = vmatprep.subr.mxu0 0.0
  %7515 = vmatpush2.msra.mxu0 0.0
  %7516 = vmatprep.subr.mxu0 0.0
  %7517 = vmatpush2.msra.mxu0 0.0
  %7518 = vmatprep.subr.mxu0 0.0
  %7519 = vmatpush2.msra.mxu0 0.0
  %7520 = vmatprep.subr.mxu0 0.0
  %7521 = vmatpush2.msra.mxu0 0.0
  %7522 = vmatprep.mubr.f32.mxu0 0.0
  %7523 = vmatmul.mubr.f32.gmra.mxu0 %v7438
  %v7524 = vpop.f32.mrf.mxu0
  %v7525 = vadd.f32 %v7434, %v7524
  %v7526 = vpop.f32.mrf.mxu0
  %7527 = vmatprep.mubr.f32.mxu0 0.0
  %7528 = vmatmul.mubr.f32.gmra.mxu0 %v7441
  %v7529 = vpop.f32.mrf.mxu0
  %v7530 = vadd.f32 %v7434, %v7529
  %v7531 = vpop.f32.mrf.mxu0
  %7532 = vmatprep.mubr.f32.mxu0 0.0
  %7533 = vmatmul.mubr.f32.gmra.mxu0 %v7444
  %v7534 = vpop.f32.mrf.mxu0
  %v7535 = vadd.f32 %v7434, %v7534
  %v7536 = vpop.f32.mrf.mxu0
  %7537 = vmatprep.mubr.f32.mxu0 0.0
  %7538 = vmatmul.mubr.f32.gmra.mxu0 %v7447
  %v7539 = vpop.f32.mrf.mxu0
  %v7540 = vadd.f32 %v7434, %v7539
  %v7541 = vpop.f32.mrf.mxu0
  %7542 = vmatprep.mubr.f32.mxu0 0.0
  %7543 = vmatmul.mubr.f32.gmra.mxu0 %v7450
  %v7544 = vpop.f32.mrf.mxu0
  %v7545 = vadd.f32 %v7434, %v7544
  %v7546 = vpop.f32.mrf.mxu0
  %7547 = vmatprep.mubr.f32.mxu0 0.0
  %7548 = vmatmul.mubr.f32.gmra.mxu0 %v7453
  %v7549 = vpop.f32.mrf.mxu0
  %v7550 = vadd.f32 %v7434, %v7549
  %v7551 = vpop.f32.mrf.mxu0
  %7552 = vmatprep.mubr.f32.mxu0 0.0
  %7553 = vmatmul.mubr.f32.gmra.mxu0 %v7456
  %v7554 = vpop.f32.mrf.mxu0
  %v7555 = vadd.f32 %v7434, %v7554
  %v7556 = vpop.f32.mrf.mxu0
  %7557 = vdwg.mxu0
  %v7558 = vmax.f32 %v7525, 0.0
  %v7559 = vmax.f32 %v7530, 0.0
  %v7560 = vmax.f32 %v7535, 0.0
  %v7561 = vmax.f32 %v7540, 0.0
  %v7562 = vmax.f32 %v7545, 0.0
  %v7563 = vmax.f32 %v7550, 0.0
  %v7564 = vmax.f32 %v7555, 0.0
  %7566 = vrot.lane.b32.xlu0 %v7559, 32
  %v7567 = vpop.permute.xlu0 %7566
  %7570 = vrot.lane.b32.xlu0 %v7560, 64
  %v7571 = vpop.permute.xlu0 %7570
  %7574 = vrot.lane.b32.xlu0 %v7561, 96
  %v7575 = vpop.permute.xlu0 %7574
  %7578 = vrot.lane.b32.xlu0 %v7563, 32
  %v7579 = vpop.permute.xlu0 %7578
  %7582 = vrot.lane.b32.xlu0 %v7564, 64
  %v7583 = vpop.permute.xlu0 %7582
  %v7585 = vsel %vm2784, %v7558, %v7567
  %vm7586 = vcmask 523264
  %v7587 = vsel %vm7586, %v7585, %v7571
  %vm7588 = vcmask 785408
  %v7589 = vsel %vm7588, %v7587, %v7575
  %v7590 = vsel %vm2784, %v7562, %v7579
  %v7591 = vsel %vm7586, %v7590, %v7583
  %v7592 = vld [vmem:[%s11] sm:$0xff]
  %v7593 = vld [vmem:[%s11 + $0x8] sm:$0xff]
  %v7594 = vld [vmem:[%s11 + $0x10] sm:$0xff]
  %v7595 = vld [vmem:[%s11 + $0x18] sm:$0xff]
  %v7596 = vld [vmem:[%s11 + $0x20] sm:$0xff]
  %v7597 = vld [vmem:[%s11 + $0x28] sm:$0xff]
  %v7598 = vld [vmem:[%s11 + $0x30] sm:$0xff]
  %v7599 = vld [vmem:[%s11 + $0x38] sm:$0xff]
  %v7600 = vld [vmem:[%s11 + $0x40] sm:$0xff]
  %v7601 = vld [vmem:[%s11 + $0x48] sm:$0xff]
  %v7602 = vld [vmem:[%s11 + $0x50] sm:$0xff]
  %v7603 = vld [vmem:[%s11 + $0x58] sm:$0xff]
  %v7604 = vld [vmem:[%s11 + $0x60] sm:$0xff]
  %v7605 = vld [vmem:[%s11 + $0x68] sm:$0xff]
  %v7606 = vld [vmem:[%s11 + $0x70] sm:$0xff]
  %v7607 = vld [vmem:[%s11 + $0x78] sm:$0xff]
  %v7608 = vld [vmem:[%s11 + $0x80] sm:$0xff]
  %v7609 = vld [vmem:[%s11 + $0x88] sm:$0xff]
  %v7610 = vld [vmem:[%s11 + $0x90] sm:$0xff]
  %v7611 = vld [vmem:[%s11 + $0x98] sm:$0xff]
  %v7612 = vld [vmem:[%s11 + $0xa0] sm:$0xff]
  %v7613 = vld [vmem:[%s11 + $0xa8] sm:$0xff]
  %v7614 = vld [vmem:[%s11 + $0xb0] sm:$0xff]
  %v7615 = vld [vmem:[%s11 + $0xb8] sm:$0xff]
  %v7616 = vld [vmem:[%s11 + $0xc0] sm:$0xff]
  %v7617 = vld [vmem:[%s11 + $0xc8] sm:$0xff]
  %v7618 = vld [vmem:[%s11 + $0xd0] sm:$0xff]
  %v7619 = vld [vmem:[%s11 + $0xd8] sm:$0xff]
  %v7621 = vsel %vm7588, %v7591, 0
  %7623 = vmatprep.subr.mxu0 0.0
  %7624 = vmatpush1.msra.mxu0 %v7607
  %7625 = vmatprep.subr.mxu0 0.0
  %7626 = vmatpush1.msra.mxu0 %v7606
  %7627 = vmatprep.subr.mxu0 0.0
  %7628 = vmatpush1.msra.mxu0 %v7605
  %7629 = vmatprep.subr.mxu0 0.0
  %7630 = vmatpush1.msra.mxu0 %v7604
  %7631 = vmatprep.subr.mxu0 0.0
  %7632 = vmatpush1.msra.mxu0 %v7603
  %7633 = vmatprep.subr.mxu0 0.0
  %7634 = vmatpush1.msra.mxu0 %v7602
  %7635 = vmatprep.subr.mxu0 0.0
  %7636 = vmatpush1.msra.mxu0 %v7601
  %7637 = vmatprep.subr.mxu0 0.0
  %7638 = vmatpush1.msra.mxu0 %v7600
  %7639 = vmatprep.subr.mxu0 0.0
  %7640 = vmatpush1.msra.mxu0 %v7599
  %7641 = vmatprep.subr.mxu0 0.0
  %7642 = vmatpush1.msra.mxu0 %v7598
  %7643 = vmatprep.subr.mxu0 0.0
  %7644 = vmatpush1.msra.mxu0 %v7597
  %7645 = vmatprep.subr.mxu0 0.0
  %7646 = vmatpush1.msra.mxu0 %v7596
  %7647 = vmatprep.subr.mxu0 0.0
  %7648 = vmatpush1.msra.mxu0 %v7595
  %7649 = vmatprep.subr.mxu0 0.0
  %7650 = vmatpush1.msra.mxu0 %v7594
  %7651 = vmatprep.subr.mxu0 0.0
  %7652 = vmatpush1.msra.mxu0 %v7593
  %7653 = vmatprep.subr.mxu0 0.0
  %7654 = vmatpush1.msra.mxu0 %v7592
  %7655 = vmatprep.subr.mxu0 0.0
  %7656 = vmatpush2.msra.mxu0 0.0
  %7657 = vmatprep.subr.mxu0 0.0
  %7658 = vmatpush2.msra.mxu0 0.0
  %7659 = vmatprep.subr.mxu0 0.0
  %7660 = vmatpush2.msra.mxu0 0.0
  %7661 = vmatprep.subr.mxu0 0.0
  %7662 = vmatpush2.msra.mxu0 0.0
  %7663 = vmatprep.subr.mxu0 0.0
  %7664 = vmatpush2.msra.mxu0 %v7619
  %7665 = vmatprep.subr.mxu0 0.0
  %7666 = vmatpush2.msra.mxu0 %v7618
  %7667 = vmatprep.subr.mxu0 0.0
  %7668 = vmatpush2.msra.mxu0 %v7617
  %7669 = vmatprep.subr.mxu0 0.0
  %7670 = vmatpush2.msra.mxu0 %v7616
  %7671 = vmatprep.subr.mxu0 0.0
  %7672 = vmatpush2.msra.mxu0 %v7615
  %7673 = vmatprep.subr.mxu0 0.0
  %7674 = vmatpush2.msra.mxu0 %v7614
  %7675 = vmatprep.subr.mxu0 0.0
  %7676 = vmatpush2.msra.mxu0 %v7613
  %7677 = vmatprep.subr.mxu0 0.0
  %7678 = vmatpush2.msra.mxu0 %v7612
  %7679 = vmatprep.subr.mxu0 0.0
  %7680 = vmatpush2.msra.mxu0 %v7611
  %7681 = vmatprep.subr.mxu0 0.0
  %7682 = vmatpush2.msra.mxu0 %v7610
  %7683 = vmatprep.subr.mxu0 0.0
  %7684 = vmatpush2.msra.mxu0 %v7609
  %7685 = vmatprep.subr.mxu0 0.0
  %7686 = vmatpush2.msra.mxu0 %v7608
  %7687 = vmatprep.mubr.f32.mxu0 %v7621
  %7688 = vmatmul.mubr.f32.gmra.mxu0 %v7589
  %v7689 = vpop.f32.mrf.mxu0
  %v7690 = vadd.f32 0.0, %v7689
  %v7691 = vpop.f32.mrf.mxu0
  %7692 = vdwg.mxu0
  %v7693 = vmax.f32 %v7690, 0.0
  %7694 = vst.msk [vmem:[%s12] sm:$0xff] %vm2784, %v7693
  // Predicated region
  $region64: #{bilstm2_forward.1} parent=0 // pred_check
    _
  $region65: #{bilstm2_forward.1} parent=0 // pred_check_branch
    %7696 = sbr.rel (0) target = $region67
  $region66: #{bilstm2_forward.1} parent=0 // pred_region
    _
  $region67: #{bilstm2_forward.1} parent=0 // pred_fallthru
    _
  // Predicated region
  $region68: #{bilstm2_forward.1} parent=0 // pred_check
    _
  $region69: #{bilstm2_forward.1} parent=0 // pred_check_branch
    %7698 = sbr.rel (0) target = $region71
  $region70: #{bilstm2_forward.1} parent=0 // pred_region
    _
  $region71: #{bilstm2_forward.1} parent=0 // pred_fallthru
    _

</llo_original>
